<compile_context>
chip_gen: v6e
topology: v6e:2x2x1
jax: 0.10.0
libtpu: 0.0.40
codegen_flags: <defaults>
</compile_context>

<pallas_src>
import jax
import jax.numpy as jnp
import numpy as np
from jax.experimental import pallas as pl
from jax.experimental.pallas import tpu as pltpu


# ----------------------- constant selection matrices ------------------------

def _pool_select(h, w):
    """(4, h*w, (h//2)*(w//2)) one-hot matrices: column m of matrix j selects
    the input pixel of pooling phase j feeding pooled output position m."""
    ho, wo = h // 2, w // 2
    s = np.zeros((4, h * w, ho * wo), np.float32)
    for di in (0, 1):
        for dj in (0, 1):
            j = 2 * di + dj
            for i in range(ho):
                for k in range(wo):
                    s[j, (2 * i + di) * w + (2 * k + dj), i * wo + k] = 1.0
    return s


def _conv_gather(h, w, kh, kw):
    """(kh*kw, h*w, oh*ow) one-hot gather matrices: matrix for tap (ki, kj)
    maps input pixel (i+ki, j+kj) onto VALID-conv output position (i, j)."""
    oh, ow = h - kh + 1, w - kw + 1
    g = np.zeros((kh * kw, h * w, oh * ow), np.float32)
    for ki in range(kh):
        for kj in range(kw):
            t = ki * kw + kj
            for i in range(oh):
                for j in range(ow):
                    g[t, (i + ki) * w + (j + kj), i * ow + j] = 1.0
    return g


# ------------------------------ fused kernel --------------------------------

def _lenet_kernel(x_ref, w1_ref, b1_ref, s1_ref, w3_ref, b3_ref, g3_ref,
                  s3_ref, w5_ref, b5_ref, w6_ref, b6_ref, w7_ref, b7_ref,
                  o_ref):
    f32 = jnp.float32
    cin = x_ref.shape[1]
    x = x_ref[0]                                        # (Cin, 784)
    w1 = w1_ref[...]                                    # (8, Cin)

    # --- C1: 1x1 conv (channels-major) + bias + ReLU -> (8, 784) ------------
    z1 = jnp.zeros((8, 28 * 28), f32)
    for c in range(cin):
        z1 = z1 + w1[:, c:c + 1] * x[c:c + 1, :]
    a1 = jnp.maximum(z1 + b1_ref[...], 0.0)

    # --- S2: 2x2/2 max pool via 4 phase-selection matmuls -> (8, 196) -------
    a1p = None
    for j in range(4):
        ph = jnp.dot(a1, s1_ref[j], preferred_element_type=f32)
        a1p = ph if a1p is None else jnp.maximum(a1p, ph)

    # --- C3: 5x5 conv as 25 (gather-matmul, weight-matmul) taps -> (16, 100) -
    acc3 = jnp.zeros((16, 10 * 10), f32)
    for t in range(25):
        patch = jnp.dot(a1p, g3_ref[t], preferred_element_type=f32)   # (8, 100)
        acc3 = acc3 + jnp.dot(w3_ref[t], patch, preferred_element_type=f32)
    a3 = jnp.maximum(acc3 + b3_ref[...], 0.0)

    # --- S4: 2x2/2 max pool -> (16, 25) --------------------------------------
    a3p = None
    for j in range(4):
        ph = jnp.dot(a3, s3_ref[j], preferred_element_type=f32)
        a3p = ph if a3p is None else jnp.maximum(a3p, ph)

    # --- C5: 5x5 conv == dense over (c, kh, kw) + ReLU -> (1, 128) -----------
    z5 = b5_ref[...]
    for c in range(16):
        z5 = z5 + jnp.dot(a3p[c:c + 1, :], w5_ref[c],
                          preferred_element_type=f32)
    a5 = jnp.maximum(z5, 0.0)

    # --- F6: Linear + ReLU -> (1, 128) ---------------------------------------
    a6 = jnp.maximum(
        jnp.dot(a5, w6_ref[...], preferred_element_type=f32) + b6_ref[...], 0.0)

    # --- F7: Linear + log-softmax (padded logit lanes carry -1e30 bias) ------
    z7 = jnp.dot(a6, w7_ref[...], preferred_element_type=f32) + b7_ref[...]
    m = jnp.max(z7, axis=-1, keepdims=True)
    lse = m + jnp.log(jnp.sum(jnp.exp(z7 - m), axis=-1, keepdims=True))
    o_ref[0] = z7 - lse                                 # (1, 128) lane-dense


# --------------------------- one-time param prep -----------------------------

def prepare_inputs(params, channels):
    """Hoisted, one-time weight re-layout / padding + selection constants."""
    f32 = jnp.float32
    # conv1 (1x1): (6, Cin, 1, 1) -> (8, Cin), output channels zero-padded.
    w1 = jnp.zeros((8, channels), f32).at[:6, :].set(
        params["c1_w"].reshape(6, channels).astype(f32))
    b1 = jnp.zeros((8, 1), f32).at[:6, 0].set(params["c1_b"].astype(f32))
    s1 = jnp.asarray(_pool_select(28, 28))                         # (4, 784, 196)

    # conv3: (16, 6, 5, 5) -> (25, 16, 8); tap-major, input channels padded.
    w3t = jnp.transpose(params["c3_w"].astype(f32), (2, 3, 0, 1)).reshape(25, 16, 6)
    w3 = jnp.zeros((25, 16, 8), f32).at[:, :, :6].set(w3t)
    b3 = params["c3_b"].astype(f32).reshape(16, 1)
    g3 = jnp.asarray(_conv_gather(14, 14, 5, 5))                   # (25, 196, 100)
    s3 = jnp.asarray(_pool_select(10, 10))                         # (4, 100, 25)

    # conv5: (120, 16, 5, 5) -> (16, 25, 128); out channels padded to 128.
    w5t = jnp.transpose(params["c5_w"].astype(f32), (1, 2, 3, 0)).reshape(16, 25, 120)
    w5 = jnp.zeros((16, 25, 128), f32).at[:, :, :120].set(w5t)
    b5 = jnp.zeros((1, 128), f32).at[0, :120].set(params["c5_b"].astype(f32))

    # fc6 / fc7: pre-transposed and zero/minus-inf padded to 128.
    w6 = jnp.zeros((128, 128), f32).at[:120, :84].set(params["f6_w"].astype(f32).T)
    b6 = jnp.zeros((1, 128), f32).at[0, :84].set(params["f6_b"].astype(f32))
    w7 = jnp.zeros((128, 128), f32).at[:84, :10].set(params["f7_w"].astype(f32).T)
    b7 = jnp.full((1, 128), -1e30, f32).at[0, :10].set(params["f7_b"].astype(f32))

    return (w1, b1, s1, w3, b3, g3, s3, w5, b5, w6, b6, w7, b7)


def _const_spec(shape):
    nd = len(shape)
    return pl.BlockSpec(shape, lambda b, _nd=nd: (0,) * _nd)


def make_forward(params, channels=1):
    prep = prepare_inputs(params, channels)
    const_specs = [_const_spec(a.shape) for a in prep]

    def forward(img):
        B = img.shape[0]
        x = img.astype(jnp.float32).reshape(B, channels, 28 * 28)
        out = pl.pallas_call(
            _lenet_kernel,
            out_shape=jax.ShapeDtypeStruct((B, 1, 128), jnp.float32),
            grid=(B,),
            in_specs=[pl.BlockSpec((1, channels, 28 * 28), lambda b: (b, 0, 0))]
                     + const_specs,
            out_specs=pl.BlockSpec((1, 1, 128), lambda b: (b, 0, 0)),
            compiler_params=pltpu.CompilerParams(
                dimension_semantics=("parallel",),
                vmem_limit_bytes=32 * 1024 * 1024),
        )(x, *prep)
        return out[:, 0, :10]                            # (B, 10) log-probs

    return forward


# --------------------------------- params -----------------------------------

def init_params(key, channels=1):
    """Deterministic init mirroring PyTorch default (uniform +-1/sqrt(fan_in))."""
    def uni(k, shape, fan_in):
        bound = 1.0 / np.sqrt(fan_in)
        return jax.random.uniform(k, shape, jnp.float32, -bound, bound)

    ks = jax.random.split(key, 10)
    return {
        "c1_w": uni(ks[0], (6, channels, 1, 1), channels * 1 * 1),
        "c1_b": uni(ks[1], (6,), channels * 1 * 1),
        "c3_w": uni(ks[2], (16, 6, 5, 5), 6 * 5 * 5),
        "c3_b": uni(ks[3], (16,), 6 * 5 * 5),
        "c5_w": uni(ks[4], (120, 16, 5, 5), 16 * 5 * 5),
        "c5_b": uni(ks[5], (120,), 16 * 5 * 5),
        "f6_w": uni(ks[6], (84, 120), 120),   # PyTorch Linear: (out, in)
        "f6_b": uni(ks[7], (84,), 120),
        "f7_w": uni(ks[8], (10, 84), 84),
        "f7_b": uni(ks[9], (10,), 84),
    }


# ------------------------- pure-JAX reference (check) ------------------------

def reference_forward(params, img):
    def conv(x, w, b):
        y = jax.lax.conv_general_dilated(
            x, w, (1, 1), "VALID", dimension_numbers=("NCHW", "OIHW", "NCHW"))
        return jax.nn.relu(y + b[None, :, None, None])

    def pool(x):
        return jax.lax.reduce_window(x, -jnp.inf, jax.lax.max,
                                     (1, 1, 2, 2), (1, 1, 2, 2), "VALID")

    x = conv(img, params["c1_w"], params["c1_b"])
    x = pool(x)
    x = conv(x, params["c3_w"], params["c3_b"])
    x = pool(x)
    x = conv(x, params["c5_w"], params["c5_b"])
    x = x.reshape(img.shape[0], -1)
    x = jax.nn.relu(x @ params["f6_w"].T + params["f6_b"])
    x = x @ params["f7_w"].T + params["f7_b"]
    return jax.nn.log_softmax(x, axis=-1)


if __name__ == "__main__":
    key = jax.random.PRNGKey(0)
    k_param, k_img = jax.random.split(key)

    B, channels = 2, 1
    img = jax.random.normal(k_img, (B, channels, 28, 28), jnp.float32)
    params = init_params(k_param, channels=channels)

    forward = jax.jit(make_forward(params, channels=channels))
    out = jax.block_until_ready(forward(img))

    ref = jax.block_until_ready(reference_forward(params, img))
    assert out.shape == (B, 10), out.shape
    np.testing.assert_allclose(np.asarray(out), np.asarray(ref),
                               rtol=1e-4, atol=1e-4)
    print("KERNEL_OK")
</pallas_src>

<mosaic_0001>
module attributes {stable_mosaic.version = 11 : i64} {
  func.func @_lenet_kernel(%arg0: i32, %arg1: memref<1x1x784xf32, #tpu.memory_space<vmem>>, %arg2: memref<8x1xf32, #tpu.memory_space<vmem>>, %arg3: memref<8x1xf32, #tpu.memory_space<vmem>>, %arg4: memref<4x784x196xf32, #tpu.memory_space<vmem>>, %arg5: memref<25x16x8xf32, #tpu.memory_space<vmem>>, %arg6: memref<16x1xf32, #tpu.memory_space<vmem>>, %arg7: memref<25x196x100xf32, #tpu.memory_space<vmem>>, %arg8: memref<4x100x25xf32, #tpu.memory_space<vmem>>, %arg9: memref<16x25x128xf32, #tpu.memory_space<vmem>>, %arg10: memref<1x128xf32, #tpu.memory_space<vmem>>, %arg11: memref<128x128xf32, #tpu.memory_space<vmem>>, %arg12: memref<1x128xf32, #tpu.memory_space<vmem>>, %arg13: memref<128x128xf32, #tpu.memory_space<vmem>>, %arg14: memref<1x128xf32, #tpu.memory_space<vmem>>, %arg15: memref<1x1x128xf32, #tpu.memory_space<vmem>>) attributes {dimension_semantics = [#tpu.dimension_semantics<parallel>], iteration_bounds = array<i64: 2>, scalar_prefetch = 0 : i64, scratch_operands = 0 : i64, tpu.core_type = #tpu.core_type<tc>, window_params = [{transform_indices = @transform_0, window_bounds = array<i64: 1, 1, 784>}, {pipeline_mode = #tpu.pipeline_mode<synchronous>, transform_indices = @transform_1, window_bounds = array<i64: 8, 1>}, {pipeline_mode = #tpu.pipeline_mode<synchronous>, transform_indices = @transform_2, window_bounds = array<i64: 8, 1>}, {pipeline_mode = #tpu.pipeline_mode<synchronous>, transform_indices = @transform_3, window_bounds = array<i64: 4, 784, 196>}, {pipeline_mode = #tpu.pipeline_mode<synchronous>, transform_indices = @transform_4, window_bounds = array<i64: 25, 16, 8>}, {pipeline_mode = #tpu.pipeline_mode<synchronous>, transform_indices = @transform_5, window_bounds = array<i64: 16, 1>}, {pipeline_mode = #tpu.pipeline_mode<synchronous>, transform_indices = @transform_6, window_bounds = array<i64: 25, 196, 100>}, {pipeline_mode = #tpu.pipeline_mode<synchronous>, transform_indices = @transform_7, window_bounds = array<i64: 4, 100, 25>}, {pipeline_mode = #tpu.pipeline_mode<synchronous>, transform_indices = @transform_8, window_bounds = array<i64: 16, 25, 128>}, {pipeline_mode = #tpu.pipeline_mode<synchronous>, transform_indices = @transform_9, window_bounds = array<i64: 1, 128>}, {pipeline_mode = #tpu.pipeline_mode<synchronous>, transform_indices = @transform_10, window_bounds = array<i64: 128, 128>}, {pipeline_mode = #tpu.pipeline_mode<synchronous>, transform_indices = @transform_11, window_bounds = array<i64: 1, 128>}, {pipeline_mode = #tpu.pipeline_mode<synchronous>, transform_indices = @transform_12, window_bounds = array<i64: 128, 128>}, {pipeline_mode = #tpu.pipeline_mode<synchronous>, transform_indices = @transform_13, window_bounds = array<i64: 1, 128>}, {transform_indices = @transform_14, window_bounds = array<i64: 1, 1, 128>}]} {
    %c0 = arith.constant 0 : index
    %c0_0 = arith.constant 0 : index
    %c0_1 = arith.constant 0 : index
    %0 = vector.load %arg1[%c0, %c0_0, %c0_1] : memref<1x1x784xf32, #tpu.memory_space<vmem>>, vector<1x1x784xf32>
    %1 = vector.shape_cast %0 : vector<1x1x784xf32> to vector<1x784xf32>
    %c0_2 = arith.constant 0 : index
    %c0_3 = arith.constant 0 : index
    %2 = vector.load %arg2[%c0_2, %c0_3] : memref<8x1xf32, #tpu.memory_space<vmem>>, vector<8x1xf32>
    %cst = arith.constant 0.000000e+00 : f32
    %3 = vector.broadcast %cst : f32 to vector<8x784xf32>
    %4 = vector.broadcast %2 : vector<8x1xf32> to vector<8x784xf32>
    %5 = vector.broadcast %1 : vector<1x784xf32> to vector<8x784xf32>
    %6 = arith.mulf %4, %5 : vector<8x784xf32>
    %7 = arith.addf %3, %6 : vector<8x784xf32>
    %c0_4 = arith.constant 0 : index
    %c0_5 = arith.constant 0 : index
    %8 = vector.load %arg3[%c0_4, %c0_5] : memref<8x1xf32, #tpu.memory_space<vmem>>, vector<8x1xf32>
    %9 = vector.broadcast %8 : vector<8x1xf32> to vector<8x784xf32>
    %10 = arith.addf %7, %9 : vector<8x784xf32>
    %cst_6 = arith.constant 0.000000e+00 : f32
    %11 = vector.broadcast %cst_6 : f32 to vector<8x784xf32>
    %12 = arith.maximumf %10, %11 : vector<8x784xf32>
    %c0_7 = arith.constant 0 : index
    %c0_8 = arith.constant 0 : index
    %c0_9 = arith.constant 0 : index
    %13 = vector.load %arg4[%c0_7, %c0_8, %c0_9] : memref<4x784x196xf32, #tpu.memory_space<vmem>>, vector<1x784x196xf32>
    %14 = vector.shape_cast %13 : vector<1x784x196xf32> to vector<784x196xf32>
    %cst_10 = arith.constant dense<0.000000e+00> : vector<8x196xf32>
    %15 = tpu.matmul %12, %14, %cst_10 {dimension_numbers = #tpu.dot_dimension_numbers<[1], [0], [0], [1], [0, 0, 1, 1], [], []>} : vector<8x784xf32>, vector<784x196xf32>, vector<8x196xf32> -> vector<8x196xf32>
    %c1 = arith.constant 1 : index
    %c0_11 = arith.constant 0 : index
    %c0_12 = arith.constant 0 : index
    %16 = vector.load %arg4[%c1, %c0_11, %c0_12] : memref<4x784x196xf32, #tpu.memory_space<vmem>>, vector<1x784x196xf32>
    %17 = vector.shape_cast %16 : vector<1x784x196xf32> to vector<784x196xf32>
    %cst_13 = arith.constant dense<0.000000e+00> : vector<8x196xf32>
    %18 = tpu.matmul %12, %17, %cst_13 {dimension_numbers = #tpu.dot_dimension_numbers<[1], [0], [0], [1], [0, 0, 1, 1], [], []>} : vector<8x784xf32>, vector<784x196xf32>, vector<8x196xf32> -> vector<8x196xf32>
    %19 = arith.maximumf %15, %18 : vector<8x196xf32>
    %c2 = arith.constant 2 : index
    %c0_14 = arith.constant 0 : index
    %c0_15 = arith.constant 0 : index
    %20 = vector.load %arg4[%c2, %c0_14, %c0_15] : memref<4x784x196xf32, #tpu.memory_space<vmem>>, vector<1x784x196xf32>
    %21 = vector.shape_cast %20 : vector<1x784x196xf32> to vector<784x196xf32>
    %cst_16 = arith.constant dense<0.000000e+00> : vector<8x196xf32>
    %22 = tpu.matmul %12, %21, %cst_16 {dimension_numbers = #tpu.dot_dimension_numbers<[1], [0], [0], [1], [0, 0, 1, 1], [], []>} : vector<8x784xf32>, vector<784x196xf32>, vector<8x196xf32> -> vector<8x196xf32>
    %23 = arith.maximumf %19, %22 : vector<8x196xf32>
    %c3 = arith.constant 3 : index
    %c0_17 = arith.constant 0 : index
    %c0_18 = arith.constant 0 : index
    %24 = vector.load %arg4[%c3, %c0_17, %c0_18] : memref<4x784x196xf32, #tpu.memory_space<vmem>>, vector<1x784x196xf32>
    %25 = vector.shape_cast %24 : vector<1x784x196xf32> to vector<784x196xf32>
    %cst_19 = arith.constant dense<0.000000e+00> : vector<8x196xf32>
    %26 = tpu.matmul %12, %25, %cst_19 {dimension_numbers = #tpu.dot_dimension_numbers<[1], [0], [0], [1], [0, 0, 1, 1], [], []>} : vector<8x784xf32>, vector<784x196xf32>, vector<8x196xf32> -> vector<8x196xf32>
    %27 = arith.maximumf %23, %26 : vector<8x196xf32>
    %cst_20 = arith.constant 0.000000e+00 : f32
    %28 = vector.broadcast %cst_20 : f32 to vector<16x100xf32>
    %c0_21 = arith.constant 0 : index
    %c0_22 = arith.constant 0 : index
    %c0_23 = arith.constant 0 : index
    %29 = vector.load %arg7[%c0_21, %c0_22, %c0_23] : memref<25x196x100xf32, #tpu.memory_space<vmem>>, vector<1x196x100xf32>
    %30 = vector.shape_cast %29 : vector<1x196x100xf32> to vector<196x100xf32>
    %cst_24 = arith.constant dense<0.000000e+00> : vector<8x100xf32>
    %31 = tpu.matmul %27, %30, %cst_24 {dimension_numbers = #tpu.dot_dimension_numbers<[1], [0], [0], [1], [0, 0, 1, 1], [], []>} : vector<8x196xf32>, vector<196x100xf32>, vector<8x100xf32> -> vector<8x100xf32>
    %c0_25 = arith.constant 0 : index
    %c0_26 = arith.constant 0 : index
    %c0_27 = arith.constant 0 : index
    %32 = vector.load %arg5[%c0_25, %c0_26, %c0_27] : memref<25x16x8xf32, #tpu.memory_space<vmem>>, vector<1x16x8xf32>
    %33 = vector.shape_cast %32 : vector<1x16x8xf32> to vector<16x8xf32>
    %cst_28 = arith.constant dense<0.000000e+00> : vector<16x100xf32>
    %34 = tpu.matmul %33, %31, %cst_28 {dimension_numbers = #tpu.dot_dimension_numbers<[1], [0], [0], [1], [0, 0, 1, 1], [], []>} : vector<16x8xf32>, vector<8x100xf32>, vector<16x100xf32> -> vector<16x100xf32>
    %35 = arith.addf %28, %34 : vector<16x100xf32>
    %c1_29 = arith.constant 1 : index
    %c0_30 = arith.constant 0 : index
    %c0_31 = arith.constant 0 : index
    %36 = vector.load %arg7[%c1_29, %c0_30, %c0_31] : memref<25x196x100xf32, #tpu.memory_space<vmem>>, vector<1x196x100xf32>
    %37 = vector.shape_cast %36 : vector<1x196x100xf32> to vector<196x100xf32>
    %cst_32 = arith.constant dense<0.000000e+00> : vector<8x100xf32>
    %38 = tpu.matmul %27, %37, %cst_32 {dimension_numbers = #tpu.dot_dimension_numbers<[1], [0], [0], [1], [0, 0, 1, 1], [], []>} : vector<8x196xf32>, vector<196x100xf32>, vector<8x100xf32> -> vector<8x100xf32>
    %c1_33 = arith.constant 1 : index
    %c0_34 = arith.constant 0 : index
    %c0_35 = arith.constant 0 : index
    %39 = vector.load %arg5[%c1_33, %c0_34, %c0_35] : memref<25x16x8xf32, #tpu.memory_space<vmem>>, vector<1x16x8xf32>
    %40 = vector.shape_cast %39 : vector<1x16x8xf32> to vector<16x8xf32>
    %cst_36 = arith.constant dense<0.000000e+00> : vector<16x100xf32>
    %41 = tpu.matmul %40, %38, %cst_36 {dimension_numbers = #tpu.dot_dimension_numbers<[1], [0], [0], [1], [0, 0, 1, 1], [], []>} : vector<16x8xf32>, vector<8x100xf32>, vector<16x100xf32> -> vector<16x100xf32>
    %42 = arith.addf %35, %41 : vector<16x100xf32>
    %c2_37 = arith.constant 2 : index
    %c0_38 = arith.constant 0 : index
    %c0_39 = arith.constant 0 : index
    %43 = vector.load %arg7[%c2_37, %c0_38, %c0_39] : memref<25x196x100xf32, #tpu.memory_space<vmem>>, vector<1x196x100xf32>
    %44 = vector.shape_cast %43 : vector<1x196x100xf32> to vector<196x100xf32>
    %cst_40 = arith.constant dense<0.000000e+00> : vector<8x100xf32>
    %45 = tpu.matmul %27, %44, %cst_40 {dimension_numbers = #tpu.dot_dimension_numbers<[1], [0], [0], [1], [0, 0, 1, 1], [], []>} : vector<8x196xf32>, vector<196x100xf32>, vector<8x100xf32> -> vector<8x100xf32>
    %c2_41 = arith.constant 2 : index
    %c0_42 = arith.constant 0 : index
    %c0_43 = arith.constant 0 : index
    %46 = vector.load %arg5[%c2_41, %c0_42, %c0_43] : memref<25x16x8xf32, #tpu.memory_space<vmem>>, vector<1x16x8xf32>
    %47 = vector.shape_cast %46 : vector<1x16x8xf32> to vector<16x8xf32>
    %cst_44 = arith.constant dense<0.000000e+00> : vector<16x100xf32>
    %48 = tpu.matmul %47, %45, %cst_44 {dimension_numbers = #tpu.dot_dimension_numbers<[1], [0], [0], [1], [0, 0, 1, 1], [], []>} : vector<16x8xf32>, vector<8x100xf32>, vector<16x100xf32> -> vector<16x100xf32>
    %49 = arith.addf %42, %48 : vector<16x100xf32>
    %c3_45 = arith.constant 3 : index
    %c0_46 = arith.constant 0 : index
    %c0_47 = arith.constant 0 : index
    %50 = vector.load %arg7[%c3_45, %c0_46, %c0_47] : memref<25x196x100xf32, #tpu.memory_space<vmem>>, vector<1x196x100xf32>
    %51 = vector.shape_cast %50 : vector<1x196x100xf32> to vector<196x100xf32>
    %cst_48 = arith.constant dense<0.000000e+00> : vector<8x100xf32>
    %52 = tpu.matmul %27, %51, %cst_48 {dimension_numbers = #tpu.dot_dimension_numbers<[1], [0], [0], [1], [0, 0, 1, 1], [], []>} : vector<8x196xf32>, vector<196x100xf32>, vector<8x100xf32> -> vector<8x100xf32>
    %c3_49 = arith.constant 3 : index
    %c0_50 = arith.constant 0 : index
    %c0_51 = arith.constant 0 : index
    %53 = vector.load %arg5[%c3_49, %c0_50, %c0_51] : memref<25x16x8xf32, #tpu.memory_space<vmem>>, vector<1x16x8xf32>
    %54 = vector.shape_cast %53 : vector<1x16x8xf32> to vector<16x8xf32>
    %cst_52 = arith.constant dense<0.000000e+00> : vector<16x100xf32>
    %55 = tpu.matmul %54, %52, %cst_52 {dimension_numbers = #tpu.dot_dimension_numbers<[1], [0], [0], [1], [0, 0, 1, 1], [], []>} : vector<16x8xf32>, vector<8x100xf32>, vector<16x100xf32> -> vector<16x100xf32>
    %56 = arith.addf %49, %55 : vector<16x100xf32>
    %c4 = arith.constant 4 : index
    %c0_53 = arith.constant 0 : index
    %c0_54 = arith.constant 0 : index
    %57 = vector.load %arg7[%c4, %c0_53, %c0_54] : memref<25x196x100xf32, #tpu.memory_space<vmem>>, vector<1x196x100xf32>
    %58 = vector.shape_cast %57 : vector<1x196x100xf32> to vector<196x100xf32>
    %cst_55 = arith.constant dense<0.000000e+00> : vector<8x100xf32>
    %59 = tpu.matmul %27, %58, %cst_55 {dimension_numbers = #tpu.dot_dimension_numbers<[1], [0], [0], [1], [0, 0, 1, 1], [], []>} : vector<8x196xf32>, vector<196x100xf32>, vector<8x100xf32> -> vector<8x100xf32>
    %c4_56 = arith.constant 4 : index
    %c0_57 = arith.constant 0 : index
    %c0_58 = arith.constant 0 : index
    %60 = vector.load %arg5[%c4_56, %c0_57, %c0_58] : memref<25x16x8xf32, #tpu.memory_space<vmem>>, vector<1x16x8xf32>
    %61 = vector.shape_cast %60 : vector<1x16x8xf32> to vector<16x8xf32>
    %cst_59 = arith.constant dense<0.000000e+00> : vector<16x100xf32>
    %62 = tpu.matmul %61, %59, %cst_59 {dimension_numbers = #tpu.dot_dimension_numbers<[1], [0], [0], [1], [0, 0, 1, 1], [], []>} : vector<16x8xf32>, vector<8x100xf32>, vector<16x100xf32> -> vector<16x100xf32>
    %63 = arith.addf %56, %62 : vector<16x100xf32>
    %c5 = arith.constant 5 : index
    %c0_60 = arith.constant 0 : index
    %c0_61 = arith.constant 0 : index
    %64 = vector.load %arg7[%c5, %c0_60, %c0_61] : memref<25x196x100xf32, #tpu.memory_space<vmem>>, vector<1x196x100xf32>
    %65 = vector.shape_cast %64 : vector<1x196x100xf32> to vector<196x100xf32>
    %cst_62 = arith.constant dense<0.000000e+00> : vector<8x100xf32>
    %66 = tpu.matmul %27, %65, %cst_62 {dimension_numbers = #tpu.dot_dimension_numbers<[1], [0], [0], [1], [0, 0, 1, 1], [], []>} : vector<8x196xf32>, vector<196x100xf32>, vector<8x100xf32> -> vector<8x100xf32>
    %c5_63 = arith.constant 5 : index
    %c0_64 = arith.constant 0 : index
    %c0_65 = arith.constant 0 : index
    %67 = vector.load %arg5[%c5_63, %c0_64, %c0_65] : memref<25x16x8xf32, #tpu.memory_space<vmem>>, vector<1x16x8xf32>
    %68 = vector.shape_cast %67 : vector<1x16x8xf32> to vector<16x8xf32>
    %cst_66 = arith.constant dense<0.000000e+00> : vector<16x100xf32>
    %69 = tpu.matmul %68, %66, %cst_66 {dimension_numbers = #tpu.dot_dimension_numbers<[1], [0], [0], [1], [0, 0, 1, 1], [], []>} : vector<16x8xf32>, vector<8x100xf32>, vector<16x100xf32> -> vector<16x100xf32>
    %70 = arith.addf %63, %69 : vector<16x100xf32>
    %c6 = arith.constant 6 : index
    %c0_67 = arith.constant 0 : index
    %c0_68 = arith.constant 0 : index
    %71 = vector.load %arg7[%c6, %c0_67, %c0_68] : memref<25x196x100xf32, #tpu.memory_space<vmem>>, vector<1x196x100xf32>
    %72 = vector.shape_cast %71 : vector<1x196x100xf32> to vector<196x100xf32>
    %cst_69 = arith.constant dense<0.000000e+00> : vector<8x100xf32>
    %73 = tpu.matmul %27, %72, %cst_69 {dimension_numbers = #tpu.dot_dimension_numbers<[1], [0], [0], [1], [0, 0, 1, 1], [], []>} : vector<8x196xf32>, vector<196x100xf32>, vector<8x100xf32> -> vector<8x100xf32>
    %c6_70 = arith.constant 6 : index
    %c0_71 = arith.constant 0 : index
    %c0_72 = arith.constant 0 : index
    %74 = vector.load %arg5[%c6_70, %c0_71, %c0_72] : memref<25x16x8xf32, #tpu.memory_space<vmem>>, vector<1x16x8xf32>
    %75 = vector.shape_cast %74 : vector<1x16x8xf32> to vector<16x8xf32>
    %cst_73 = arith.constant dense<0.000000e+00> : vector<16x100xf32>
    %76 = tpu.matmul %75, %73, %cst_73 {dimension_numbers = #tpu.dot_dimension_numbers<[1], [0], [0], [1], [0, 0, 1, 1], [], []>} : vector<16x8xf32>, vector<8x100xf32>, vector<16x100xf32> -> vector<16x100xf32>
    %77 = arith.addf %70, %76 : vector<16x100xf32>
    %c7 = arith.constant 7 : index
    %c0_74 = arith.constant 0 : index
    %c0_75 = arith.constant 0 : index
    %78 = vector.load %arg7[%c7, %c0_74, %c0_75] : memref<25x196x100xf32, #tpu.memory_space<vmem>>, vector<1x196x100xf32>
    %79 = vector.shape_cast %78 : vector<1x196x100xf32> to vector<196x100xf32>
    %cst_76 = arith.constant dense<0.000000e+00> : vector<8x100xf32>
    %80 = tpu.matmul %27, %79, %cst_76 {dimension_numbers = #tpu.dot_dimension_numbers<[1], [0], [0], [1], [0, 0, 1, 1], [], []>} : vector<8x196xf32>, vector<196x100xf32>, vector<8x100xf32> -> vector<8x100xf32>
    %c7_77 = arith.constant 7 : index
    %c0_78 = arith.constant 0 : index
    %c0_79 = arith.constant 0 : index
    %81 = vector.load %arg5[%c7_77, %c0_78, %c0_79] : memref<25x16x8xf32, #tpu.memory_space<vmem>>, vector<1x16x8xf32>
    %82 = vector.shape_cast %81 : vector<1x16x8xf32> to vector<16x8xf32>
    %cst_80 = arith.constant dense<0.000000e+00> : vector<16x100xf32>
    %83 = tpu.matmul %82, %80, %cst_80 {dimension_numbers = #tpu.dot_dimension_numbers<[1], [0], [0], [1], [0, 0, 1, 1], [], []>} : vector<16x8xf32>, vector<8x100xf32>, vector<16x100xf32> -> vector<16x100xf32>
    %84 = arith.addf %77, %83 : vector<16x100xf32>
    %c8 = arith.constant 8 : index
    %c0_81 = arith.constant 0 : index
    %c0_82 = arith.constant 0 : index
    %85 = vector.load %arg7[%c8, %c0_81, %c0_82] : memref<25x196x100xf32, #tpu.memory_space<vmem>>, vector<1x196x100xf32>
    %86 = vector.shape_cast %85 : vector<1x196x100xf32> to vector<196x100xf32>
    %cst_83 = arith.constant dense<0.000000e+00> : vector<8x100xf32>
    %87 = tpu.matmul %27, %86, %cst_83 {dimension_numbers = #tpu.dot_dimension_numbers<[1], [0], [0], [1], [0, 0, 1, 1], [], []>} : vector<8x196xf32>, vector<196x100xf32>, vector<8x100xf32> -> vector<8x100xf32>
    %c8_84 = arith.constant 8 : index
    %c0_85 = arith.constant 0 : index
    %c0_86 = arith.constant 0 : index
    %88 = vector.load %arg5[%c8_84, %c0_85, %c0_86] : memref<25x16x8xf32, #tpu.memory_space<vmem>>, vector<1x16x8xf32>
    %89 = vector.shape_cast %88 : vector<1x16x8xf32> to vector<16x8xf32>
    %cst_87 = arith.constant dense<0.000000e+00> : vector<16x100xf32>
    %90 = tpu.matmul %89, %87, %cst_87 {dimension_numbers = #tpu.dot_dimension_numbers<[1], [0], [0], [1], [0, 0, 1, 1], [], []>} : vector<16x8xf32>, vector<8x100xf32>, vector<16x100xf32> -> vector<16x100xf32>
    %91 = arith.addf %84, %90 : vector<16x100xf32>
    %c9 = arith.constant 9 : index
    %c0_88 = arith.constant 0 : index
    %c0_89 = arith.constant 0 : index
    %92 = vector.load %arg7[%c9, %c0_88, %c0_89] : memref<25x196x100xf32, #tpu.memory_space<vmem>>, vector<1x196x100xf32>
    %93 = vector.shape_cast %92 : vector<1x196x100xf32> to vector<196x100xf32>
    %cst_90 = arith.constant dense<0.000000e+00> : vector<8x100xf32>
    %94 = tpu.matmul %27, %93, %cst_90 {dimension_numbers = #tpu.dot_dimension_numbers<[1], [0], [0], [1], [0, 0, 1, 1], [], []>} : vector<8x196xf32>, vector<196x100xf32>, vector<8x100xf32> -> vector<8x100xf32>
    %c9_91 = arith.constant 9 : index
    %c0_92 = arith.constant 0 : index
    %c0_93 = arith.constant 0 : index
    %95 = vector.load %arg5[%c9_91, %c0_92, %c0_93] : memref<25x16x8xf32, #tpu.memory_space<vmem>>, vector<1x16x8xf32>
    %96 = vector.shape_cast %95 : vector<1x16x8xf32> to vector<16x8xf32>
    %cst_94 = arith.constant dense<0.000000e+00> : vector<16x100xf32>
    %97 = tpu.matmul %96, %94, %cst_94 {dimension_numbers = #tpu.dot_dimension_numbers<[1], [0], [0], [1], [0, 0, 1, 1], [], []>} : vector<16x8xf32>, vector<8x100xf32>, vector<16x100xf32> -> vector<16x100xf32>
    %98 = arith.addf %91, %97 : vector<16x100xf32>
    %c10 = arith.constant 10 : index
    %c0_95 = arith.constant 0 : index
    %c0_96 = arith.constant 0 : index
    %99 = vector.load %arg7[%c10, %c0_95, %c0_96] : memref<25x196x100xf32, #tpu.memory_space<vmem>>, vector<1x196x100xf32>
    %100 = vector.shape_cast %99 : vector<1x196x100xf32> to vector<196x100xf32>
    %cst_97 = arith.constant dense<0.000000e+00> : vector<8x100xf32>
    %101 = tpu.matmul %27, %100, %cst_97 {dimension_numbers = #tpu.dot_dimension_numbers<[1], [0], [0], [1], [0, 0, 1, 1], [], []>} : vector<8x196xf32>, vector<196x100xf32>, vector<8x100xf32> -> vector<8x100xf32>
    %c10_98 = arith.constant 10 : index
    %c0_99 = arith.constant 0 : index
    %c0_100 = arith.constant 0 : index
    %102 = vector.load %arg5[%c10_98, %c0_99, %c0_100] : memref<25x16x8xf32, #tpu.memory_space<vmem>>, vector<1x16x8xf32>
    %103 = vector.shape_cast %102 : vector<1x16x8xf32> to vector<16x8xf32>
    %cst_101 = arith.constant dense<0.000000e+00> : vector<16x100xf32>
    %104 = tpu.matmul %103, %101, %cst_101 {dimension_numbers = #tpu.dot_dimension_numbers<[1], [0], [0], [1], [0, 0, 1, 1], [], []>} : vector<16x8xf32>, vector<8x100xf32>, vector<16x100xf32> -> vector<16x100xf32>
    %105 = arith.addf %98, %104 : vector<16x100xf32>
    %c11 = arith.constant 11 : index
    %c0_102 = arith.constant 0 : index
    %c0_103 = arith.constant 0 : index
    %106 = vector.load %arg7[%c11, %c0_102, %c0_103] : memref<25x196x100xf32, #tpu.memory_space<vmem>>, vector<1x196x100xf32>
    %107 = vector.shape_cast %106 : vector<1x196x100xf32> to vector<196x100xf32>
    %cst_104 = arith.constant dense<0.000000e+00> : vector<8x100xf32>
    %108 = tpu.matmul %27, %107, %cst_104 {dimension_numbers = #tpu.dot_dimension_numbers<[1], [0], [0], [1], [0, 0, 1, 1], [], []>} : vector<8x196xf32>, vector<196x100xf32>, vector<8x100xf32> -> vector<8x100xf32>
    %c11_105 = arith.constant 11 : index
    %c0_106 = arith.constant 0 : index
    %c0_107 = arith.constant 0 : index
    %109 = vector.load %arg5[%c11_105, %c0_106, %c0_107] : memref<25x16x8xf32, #tpu.memory_space<vmem>>, vector<1x16x8xf32>
    %110 = vector.shape_cast %109 : vector<1x16x8xf32> to vector<16x8xf32>
    %cst_108 = arith.constant dense<0.000000e+00> : vector<16x100xf32>
    %111 = tpu.matmul %110, %108, %cst_108 {dimension_numbers = #tpu.dot_dimension_numbers<[1], [0], [0], [1], [0, 0, 1, 1], [], []>} : vector<16x8xf32>, vector<8x100xf32>, vector<16x100xf32> -> vector<16x100xf32>
    %112 = arith.addf %105, %111 : vector<16x100xf32>
    %c12 = arith.constant 12 : index
    %c0_109 = arith.constant 0 : index
    %c0_110 = arith.constant 0 : index
    %113 = vector.load %arg7[%c12, %c0_109, %c0_110] : memref<25x196x100xf32, #tpu.memory_space<vmem>>, vector<1x196x100xf32>
    %114 = vector.shape_cast %113 : vector<1x196x100xf32> to vector<196x100xf32>
    %cst_111 = arith.constant dense<0.000000e+00> : vector<8x100xf32>
    %115 = tpu.matmul %27, %114, %cst_111 {dimension_numbers = #tpu.dot_dimension_numbers<[1], [0], [0], [1], [0, 0, 1, 1], [], []>} : vector<8x196xf32>, vector<196x100xf32>, vector<8x100xf32> -> vector<8x100xf32>
    %c12_112 = arith.constant 12 : index
    %c0_113 = arith.constant 0 : index
    %c0_114 = arith.constant 0 : index
    %116 = vector.load %arg5[%c12_112, %c0_113, %c0_114] : memref<25x16x8xf32, #tpu.memory_space<vmem>>, vector<1x16x8xf32>
    %117 = vector.shape_cast %116 : vector<1x16x8xf32> to vector<16x8xf32>
    %cst_115 = arith.constant dense<0.000000e+00> : vector<16x100xf32>
    %118 = tpu.matmul %117, %115, %cst_115 {dimension_numbers = #tpu.dot_dimension_numbers<[1], [0], [0], [1], [0, 0, 1, 1], [], []>} : vector<16x8xf32>, vector<8x100xf32>, vector<16x100xf32> -> vector<16x100xf32>
    %119 = arith.addf %112, %118 : vector<16x100xf32>
    %c13 = arith.constant 13 : index
    %c0_116 = arith.constant 0 : index
    %c0_117 = arith.constant 0 : index
    %120 = vector.load %arg7[%c13, %c0_116, %c0_117] : memref<25x196x100xf32, #tpu.memory_space<vmem>>, vector<1x196x100xf32>
    %121 = vector.shape_cast %120 : vector<1x196x100xf32> to vector<196x100xf32>
    %cst_118 = arith.constant dense<0.000000e+00> : vector<8x100xf32>
    %122 = tpu.matmul %27, %121, %cst_118 {dimension_numbers = #tpu.dot_dimension_numbers<[1], [0], [0], [1], [0, 0, 1, 1], [], []>} : vector<8x196xf32>, vector<196x100xf32>, vector<8x100xf32> -> vector<8x100xf32>
    %c13_119 = arith.constant 13 : index
    %c0_120 = arith.constant 0 : index
    %c0_121 = arith.constant 0 : index
    %123 = vector.load %arg5[%c13_119, %c0_120, %c0_121] : memref<25x16x8xf32, #tpu.memory_space<vmem>>, vector<1x16x8xf32>
    %124 = vector.shape_cast %123 : vector<1x16x8xf32> to vector<16x8xf32>
    %cst_122 = arith.constant dense<0.000000e+00> : vector<16x100xf32>
    %125 = tpu.matmul %124, %122, %cst_122 {dimension_numbers = #tpu.dot_dimension_numbers<[1], [0], [0], [1], [0, 0, 1, 1], [], []>} : vector<16x8xf32>, vector<8x100xf32>, vector<16x100xf32> -> vector<16x100xf32>
    %126 = arith.addf %119, %125 : vector<16x100xf32>
    %c14 = arith.constant 14 : index
    %c0_123 = arith.constant 0 : index
    %c0_124 = arith.constant 0 : index
    %127 = vector.load %arg7[%c14, %c0_123, %c0_124] : memref<25x196x100xf32, #tpu.memory_space<vmem>>, vector<1x196x100xf32>
    %128 = vector.shape_cast %127 : vector<1x196x100xf32> to vector<196x100xf32>
    %cst_125 = arith.constant dense<0.000000e+00> : vector<8x100xf32>
    %129 = tpu.matmul %27, %128, %cst_125 {dimension_numbers = #tpu.dot_dimension_numbers<[1], [0], [0], [1], [0, 0, 1, 1], [], []>} : vector<8x196xf32>, vector<196x100xf32>, vector<8x100xf32> -> vector<8x100xf32>
    %c14_126 = arith.constant 14 : index
    %c0_127 = arith.constant 0 : index
    %c0_128 = arith.constant 0 : index
    %130 = vector.load %arg5[%c14_126, %c0_127, %c0_128] : memref<25x16x8xf32, #tpu.memory_space<vmem>>, vector<1x16x8xf32>
    %131 = vector.shape_cast %130 : vector<1x16x8xf32> to vector<16x8xf32>
    %cst_129 = arith.constant dense<0.000000e+00> : vector<16x100xf32>
    %132 = tpu.matmul %131, %129, %cst_129 {dimension_numbers = #tpu.dot_dimension_numbers<[1], [0], [0], [1], [0, 0, 1, 1], [], []>} : vector<16x8xf32>, vector<8x100xf32>, vector<16x100xf32> -> vector<16x100xf32>
    %133 = arith.addf %126, %132 : vector<16x100xf32>
    %c15 = arith.constant 15 : index
    %c0_130 = arith.constant 0 : index
    %c0_131 = arith.constant 0 : index
    %134 = vector.load %arg7[%c15, %c0_130, %c0_131] : memref<25x196x100xf32, #tpu.memory_space<vmem>>, vector<1x196x100xf32>
    %135 = vector.shape_cast %134 : vector<1x196x100xf32> to vector<196x100xf32>
    %cst_132 = arith.constant dense<0.000000e+00> : vector<8x100xf32>
    %136 = tpu.matmul %27, %135, %cst_132 {dimension_numbers = #tpu.dot_dimension_numbers<[1], [0], [0], [1], [0, 0, 1, 1], [], []>} : vector<8x196xf32>, vector<196x100xf32>, vector<8x100xf32> -> vector<8x100xf32>
    %c15_133 = arith.constant 15 : index
    %c0_134 = arith.constant 0 : index
    %c0_135 = arith.constant 0 : index
    %137 = vector.load %arg5[%c15_133, %c0_134, %c0_135] : memref<25x16x8xf32, #tpu.memory_space<vmem>>, vector<1x16x8xf32>
    %138 = vector.shape_cast %137 : vector<1x16x8xf32> to vector<16x8xf32>
    %cst_136 = arith.constant dense<0.000000e+00> : vector<16x100xf32>
    %139 = tpu.matmul %138, %136, %cst_136 {dimension_numbers = #tpu.dot_dimension_numbers<[1], [0], [0], [1], [0, 0, 1, 1], [], []>} : vector<16x8xf32>, vector<8x100xf32>, vector<16x100xf32> -> vector<16x100xf32>
    %140 = arith.addf %133, %139 : vector<16x100xf32>
    %c16 = arith.constant 16 : index
    %c0_137 = arith.constant 0 : index
    %c0_138 = arith.constant 0 : index
    %141 = vector.load %arg7[%c16, %c0_137, %c0_138] : memref<25x196x100xf32, #tpu.memory_space<vmem>>, vector<1x196x100xf32>
    %142 = vector.shape_cast %141 : vector<1x196x100xf32> to vector<196x100xf32>
    %cst_139 = arith.constant dense<0.000000e+00> : vector<8x100xf32>
    %143 = tpu.matmul %27, %142, %cst_139 {dimension_numbers = #tpu.dot_dimension_numbers<[1], [0], [0], [1], [0, 0, 1, 1], [], []>} : vector<8x196xf32>, vector<196x100xf32>, vector<8x100xf32> -> vector<8x100xf32>
    %c16_140 = arith.constant 16 : index
    %c0_141 = arith.constant 0 : index
    %c0_142 = arith.constant 0 : index
    %144 = vector.load %arg5[%c16_140, %c0_141, %c0_142] : memref<25x16x8xf32, #tpu.memory_space<vmem>>, vector<1x16x8xf32>
    %145 = vector.shape_cast %144 : vector<1x16x8xf32> to vector<16x8xf32>
    %cst_143 = arith.constant dense<0.000000e+00> : vector<16x100xf32>
    %146 = tpu.matmul %145, %143, %cst_143 {dimension_numbers = #tpu.dot_dimension_numbers<[1], [0], [0], [1], [0, 0, 1, 1], [], []>} : vector<16x8xf32>, vector<8x100xf32>, vector<16x100xf32> -> vector<16x100xf32>
    %147 = arith.addf %140, %146 : vector<16x100xf32>
    %c17 = arith.constant 17 : index
    %c0_144 = arith.constant 0 : index
    %c0_145 = arith.constant 0 : index
    %148 = vector.load %arg7[%c17, %c0_144, %c0_145] : memref<25x196x100xf32, #tpu.memory_space<vmem>>, vector<1x196x100xf32>
    %149 = vector.shape_cast %148 : vector<1x196x100xf32> to vector<196x100xf32>
    %cst_146 = arith.constant dense<0.000000e+00> : vector<8x100xf32>
    %150 = tpu.matmul %27, %149, %cst_146 {dimension_numbers = #tpu.dot_dimension_numbers<[1], [0], [0], [1], [0, 0, 1, 1], [], []>} : vector<8x196xf32>, vector<196x100xf32>, vector<8x100xf32> -> vector<8x100xf32>
    %c17_147 = arith.constant 17 : index
    %c0_148 = arith.constant 0 : index
    %c0_149 = arith.constant 0 : index
    %151 = vector.load %arg5[%c17_147, %c0_148, %c0_149] : memref<25x16x8xf32, #tpu.memory_space<vmem>>, vector<1x16x8xf32>
    %152 = vector.shape_cast %151 : vector<1x16x8xf32> to vector<16x8xf32>
    %cst_150 = arith.constant dense<0.000000e+00> : vector<16x100xf32>
    %153 = tpu.matmul %152, %150, %cst_150 {dimension_numbers = #tpu.dot_dimension_numbers<[1], [0], [0], [1], [0, 0, 1, 1], [], []>} : vector<16x8xf32>, vector<8x100xf32>, vector<16x100xf32> -> vector<16x100xf32>
    %154 = arith.addf %147, %153 : vector<16x100xf32>
    %c18 = arith.constant 18 : index
    %c0_151 = arith.constant 0 : index
    %c0_152 = arith.constant 0 : index
    %155 = vector.load %arg7[%c18, %c0_151, %c0_152] : memref<25x196x100xf32, #tpu.memory_space<vmem>>, vector<1x196x100xf32>
    %156 = vector.shape_cast %155 : vector<1x196x100xf32> to vector<196x100xf32>
    %cst_153 = arith.constant dense<0.000000e+00> : vector<8x100xf32>
    %157 = tpu.matmul %27, %156, %cst_153 {dimension_numbers = #tpu.dot_dimension_numbers<[1], [0], [0], [1], [0, 0, 1, 1], [], []>} : vector<8x196xf32>, vector<196x100xf32>, vector<8x100xf32> -> vector<8x100xf32>
    %c18_154 = arith.constant 18 : index
    %c0_155 = arith.constant 0 : index
    %c0_156 = arith.constant 0 : index
    %158 = vector.load %arg5[%c18_154, %c0_155, %c0_156] : memref<25x16x8xf32, #tpu.memory_space<vmem>>, vector<1x16x8xf32>
    %159 = vector.shape_cast %158 : vector<1x16x8xf32> to vector<16x8xf32>
    %cst_157 = arith.constant dense<0.000000e+00> : vector<16x100xf32>
    %160 = tpu.matmul %159, %157, %cst_157 {dimension_numbers = #tpu.dot_dimension_numbers<[1], [0], [0], [1], [0, 0, 1, 1], [], []>} : vector<16x8xf32>, vector<8x100xf32>, vector<16x100xf32> -> vector<16x100xf32>
    %161 = arith.addf %154, %160 : vector<16x100xf32>
    %c19 = arith.constant 19 : index
    %c0_158 = arith.constant 0 : index
    %c0_159 = arith.constant 0 : index
    %162 = vector.load %arg7[%c19, %c0_158, %c0_159] : memref<25x196x100xf32, #tpu.memory_space<vmem>>, vector<1x196x100xf32>
    %163 = vector.shape_cast %162 : vector<1x196x100xf32> to vector<196x100xf32>
    %cst_160 = arith.constant dense<0.000000e+00> : vector<8x100xf32>
    %164 = tpu.matmul %27, %163, %cst_160 {dimension_numbers = #tpu.dot_dimension_numbers<[1], [0], [0], [1], [0, 0, 1, 1], [], []>} : vector<8x196xf32>, vector<196x100xf32>, vector<8x100xf32> -> vector<8x100xf32>
    %c19_161 = arith.constant 19 : index
    %c0_162 = arith.constant 0 : index
    %c0_163 = arith.constant 0 : index
    %165 = vector.load %arg5[%c19_161, %c0_162, %c0_163] : memref<25x16x8xf32, #tpu.memory_space<vmem>>, vector<1x16x8xf32>
    %166 = vector.shape_cast %165 : vector<1x16x8xf32> to vector<16x8xf32>
    %cst_164 = arith.constant dense<0.000000e+00> : vector<16x100xf32>
    %167 = tpu.matmul %166, %164, %cst_164 {dimension_numbers = #tpu.dot_dimension_numbers<[1], [0], [0], [1], [0, 0, 1, 1], [], []>} : vector<16x8xf32>, vector<8x100xf32>, vector<16x100xf32> -> vector<16x100xf32>
    %168 = arith.addf %161, %167 : vector<16x100xf32>
    %c20 = arith.constant 20 : index
    %c0_165 = arith.constant 0 : index
    %c0_166 = arith.constant 0 : index
    %169 = vector.load %arg7[%c20, %c0_165, %c0_166] : memref<25x196x100xf32, #tpu.memory_space<vmem>>, vector<1x196x100xf32>
    %170 = vector.shape_cast %169 : vector<1x196x100xf32> to vector<196x100xf32>
    %cst_167 = arith.constant dense<0.000000e+00> : vector<8x100xf32>
    %171 = tpu.matmul %27, %170, %cst_167 {dimension_numbers = #tpu.dot_dimension_numbers<[1], [0], [0], [1], [0, 0, 1, 1], [], []>} : vector<8x196xf32>, vector<196x100xf32>, vector<8x100xf32> -> vector<8x100xf32>
    %c20_168 = arith.constant 20 : index
    %c0_169 = arith.constant 0 : index
    %c0_170 = arith.constant 0 : index
    %172 = vector.load %arg5[%c20_168, %c0_169, %c0_170] : memref<25x16x8xf32, #tpu.memory_space<vmem>>, vector<1x16x8xf32>
    %173 = vector.shape_cast %172 : vector<1x16x8xf32> to vector<16x8xf32>
    %cst_171 = arith.constant dense<0.000000e+00> : vector<16x100xf32>
    %174 = tpu.matmul %173, %171, %cst_171 {dimension_numbers = #tpu.dot_dimension_numbers<[1], [0], [0], [1], [0, 0, 1, 1], [], []>} : vector<16x8xf32>, vector<8x100xf32>, vector<16x100xf32> -> vector<16x100xf32>
    %175 = arith.addf %168, %174 : vector<16x100xf32>
    %c21 = arith.constant 21 : index
    %c0_172 = arith.constant 0 : index
    %c0_173 = arith.constant 0 : index
    %176 = vector.load %arg7[%c21, %c0_172, %c0_173] : memref<25x196x100xf32, #tpu.memory_space<vmem>>, vector<1x196x100xf32>
    %177 = vector.shape_cast %176 : vector<1x196x100xf32> to vector<196x100xf32>
    %cst_174 = arith.constant dense<0.000000e+00> : vector<8x100xf32>
    %178 = tpu.matmul %27, %177, %cst_174 {dimension_numbers = #tpu.dot_dimension_numbers<[1], [0], [0], [1], [0, 0, 1, 1], [], []>} : vector<8x196xf32>, vector<196x100xf32>, vector<8x100xf32> -> vector<8x100xf32>
    %c21_175 = arith.constant 21 : index
    %c0_176 = arith.constant 0 : index
    %c0_177 = arith.constant 0 : index
    %179 = vector.load %arg5[%c21_175, %c0_176, %c0_177] : memref<25x16x8xf32, #tpu.memory_space<vmem>>, vector<1x16x8xf32>
    %180 = vector.shape_cast %179 : vector<1x16x8xf32> to vector<16x8xf32>
    %cst_178 = arith.constant dense<0.000000e+00> : vector<16x100xf32>
    %181 = tpu.matmul %180, %178, %cst_178 {dimension_numbers = #tpu.dot_dimension_numbers<[1], [0], [0], [1], [0, 0, 1, 1], [], []>} : vector<16x8xf32>, vector<8x100xf32>, vector<16x100xf32> -> vector<16x100xf32>
    %182 = arith.addf %175, %181 : vector<16x100xf32>
    %c22 = arith.constant 22 : index
    %c0_179 = arith.constant 0 : index
    %c0_180 = arith.constant 0 : index
    %183 = vector.load %arg7[%c22, %c0_179, %c0_180] : memref<25x196x100xf32, #tpu.memory_space<vmem>>, vector<1x196x100xf32>
    %184 = vector.shape_cast %183 : vector<1x196x100xf32> to vector<196x100xf32>
    %cst_181 = arith.constant dense<0.000000e+00> : vector<8x100xf32>
    %185 = tpu.matmul %27, %184, %cst_181 {dimension_numbers = #tpu.dot_dimension_numbers<[1], [0], [0], [1], [0, 0, 1, 1], [], []>} : vector<8x196xf32>, vector<196x100xf32>, vector<8x100xf32> -> vector<8x100xf32>
    %c22_182 = arith.constant 22 : index
    %c0_183 = arith.constant 0 : index
    %c0_184 = arith.constant 0 : index
    %186 = vector.load %arg5[%c22_182, %c0_183, %c0_184] : memref<25x16x8xf32, #tpu.memory_space<vmem>>, vector<1x16x8xf32>
    %187 = vector.shape_cast %186 : vector<1x16x8xf32> to vector<16x8xf32>
    %cst_185 = arith.constant dense<0.000000e+00> : vector<16x100xf32>
    %188 = tpu.matmul %187, %185, %cst_185 {dimension_numbers = #tpu.dot_dimension_numbers<[1], [0], [0], [1], [0, 0, 1, 1], [], []>} : vector<16x8xf32>, vector<8x100xf32>, vector<16x100xf32> -> vector<16x100xf32>
    %189 = arith.addf %182, %188 : vector<16x100xf32>
    %c23 = arith.constant 23 : index
    %c0_186 = arith.constant 0 : index
    %c0_187 = arith.constant 0 : index
    %190 = vector.load %arg7[%c23, %c0_186, %c0_187] : memref<25x196x100xf32, #tpu.memory_space<vmem>>, vector<1x196x100xf32>
    %191 = vector.shape_cast %190 : vector<1x196x100xf32> to vector<196x100xf32>
    %cst_188 = arith.constant dense<0.000000e+00> : vector<8x100xf32>
    %192 = tpu.matmul %27, %191, %cst_188 {dimension_numbers = #tpu.dot_dimension_numbers<[1], [0], [0], [1], [0, 0, 1, 1], [], []>} : vector<8x196xf32>, vector<196x100xf32>, vector<8x100xf32> -> vector<8x100xf32>
    %c23_189 = arith.constant 23 : index
    %c0_190 = arith.constant 0 : index
    %c0_191 = arith.constant 0 : index
    %193 = vector.load %arg5[%c23_189, %c0_190, %c0_191] : memref<25x16x8xf32, #tpu.memory_space<vmem>>, vector<1x16x8xf32>
    %194 = vector.shape_cast %193 : vector<1x16x8xf32> to vector<16x8xf32>
    %cst_192 = arith.constant dense<0.000000e+00> : vector<16x100xf32>
    %195 = tpu.matmul %194, %192, %cst_192 {dimension_numbers = #tpu.dot_dimension_numbers<[1], [0], [0], [1], [0, 0, 1, 1], [], []>} : vector<16x8xf32>, vector<8x100xf32>, vector<16x100xf32> -> vector<16x100xf32>
    %196 = arith.addf %189, %195 : vector<16x100xf32>
    %c24 = arith.constant 24 : index
    %c0_193 = arith.constant 0 : index
    %c0_194 = arith.constant 0 : index
    %197 = vector.load %arg7[%c24, %c0_193, %c0_194] : memref<25x196x100xf32, #tpu.memory_space<vmem>>, vector<1x196x100xf32>
    %198 = vector.shape_cast %197 : vector<1x196x100xf32> to vector<196x100xf32>
    %cst_195 = arith.constant dense<0.000000e+00> : vector<8x100xf32>
    %199 = tpu.matmul %27, %198, %cst_195 {dimension_numbers = #tpu.dot_dimension_numbers<[1], [0], [0], [1], [0, 0, 1, 1], [], []>} : vector<8x196xf32>, vector<196x100xf32>, vector<8x100xf32> -> vector<8x100xf32>
    %c24_196 = arith.constant 24 : index
    %c0_197 = arith.constant 0 : index
    %c0_198 = arith.constant 0 : index
    %200 = vector.load %arg5[%c24_196, %c0_197, %c0_198] : memref<25x16x8xf32, #tpu.memory_space<vmem>>, vector<1x16x8xf32>
    %201 = vector.shape_cast %200 : vector<1x16x8xf32> to vector<16x8xf32>
    %cst_199 = arith.constant dense<0.000000e+00> : vector<16x100xf32>
    %202 = tpu.matmul %201, %199, %cst_199 {dimension_numbers = #tpu.dot_dimension_numbers<[1], [0], [0], [1], [0, 0, 1, 1], [], []>} : vector<16x8xf32>, vector<8x100xf32>, vector<16x100xf32> -> vector<16x100xf32>
    %203 = arith.addf %196, %202 : vector<16x100xf32>
    %c0_200 = arith.constant 0 : index
    %c0_201 = arith.constant 0 : index
    %204 = vector.load %arg6[%c0_200, %c0_201] : memref<16x1xf32, #tpu.memory_space<vmem>>, vector<16x1xf32>
    %205 = vector.broadcast %204 : vector<16x1xf32> to vector<16x100xf32>
    %206 = arith.addf %203, %205 : vector<16x100xf32>
    %cst_202 = arith.constant 0.000000e+00 : f32
    %207 = vector.broadcast %cst_202 : f32 to vector<16x100xf32>
    %208 = arith.maximumf %206, %207 : vector<16x100xf32>
    %c0_203 = arith.constant 0 : index
    %c0_204 = arith.constant 0 : index
    %c0_205 = arith.constant 0 : index
    %209 = vector.load %arg8[%c0_203, %c0_204, %c0_205] : memref<4x100x25xf32, #tpu.memory_space<vmem>>, vector<1x100x25xf32>
    %210 = vector.shape_cast %209 : vector<1x100x25xf32> to vector<100x25xf32>
    %cst_206 = arith.constant dense<0.000000e+00> : vector<16x25xf32>
    %211 = tpu.matmul %208, %210, %cst_206 {dimension_numbers = #tpu.dot_dimension_numbers<[1], [0], [0], [1], [0, 0, 1, 1], [], []>} : vector<16x100xf32>, vector<100x25xf32>, vector<16x25xf32> -> vector<16x25xf32>
    %c1_207 = arith.constant 1 : index
    %c0_208 = arith.constant 0 : index
    %c0_209 = arith.constant 0 : index
    %212 = vector.load %arg8[%c1_207, %c0_208, %c0_209] : memref<4x100x25xf32, #tpu.memory_space<vmem>>, vector<1x100x25xf32>
    %213 = vector.shape_cast %212 : vector<1x100x25xf32> to vector<100x25xf32>
    %cst_210 = arith.constant dense<0.000000e+00> : vector<16x25xf32>
    %214 = tpu.matmul %208, %213, %cst_210 {dimension_numbers = #tpu.dot_dimension_numbers<[1], [0], [0], [1], [0, 0, 1, 1], [], []>} : vector<16x100xf32>, vector<100x25xf32>, vector<16x25xf32> -> vector<16x25xf32>
    %215 = arith.maximumf %211, %214 : vector<16x25xf32>
    %c2_211 = arith.constant 2 : index
    %c0_212 = arith.constant 0 : index
    %c0_213 = arith.constant 0 : index
    %216 = vector.load %arg8[%c2_211, %c0_212, %c0_213] : memref<4x100x25xf32, #tpu.memory_space<vmem>>, vector<1x100x25xf32>
    %217 = vector.shape_cast %216 : vector<1x100x25xf32> to vector<100x25xf32>
    %cst_214 = arith.constant dense<0.000000e+00> : vector<16x25xf32>
    %218 = tpu.matmul %208, %217, %cst_214 {dimension_numbers = #tpu.dot_dimension_numbers<[1], [0], [0], [1], [0, 0, 1, 1], [], []>} : vector<16x100xf32>, vector<100x25xf32>, vector<16x25xf32> -> vector<16x25xf32>
    %219 = arith.maximumf %215, %218 : vector<16x25xf32>
    %c3_215 = arith.constant 3 : index
    %c0_216 = arith.constant 0 : index
    %c0_217 = arith.constant 0 : index
    %220 = vector.load %arg8[%c3_215, %c0_216, %c0_217] : memref<4x100x25xf32, #tpu.memory_space<vmem>>, vector<1x100x25xf32>
    %221 = vector.shape_cast %220 : vector<1x100x25xf32> to vector<100x25xf32>
    %cst_218 = arith.constant dense<0.000000e+00> : vector<16x25xf32>
    %222 = tpu.matmul %208, %221, %cst_218 {dimension_numbers = #tpu.dot_dimension_numbers<[1], [0], [0], [1], [0, 0, 1, 1], [], []>} : vector<16x100xf32>, vector<100x25xf32>, vector<16x25xf32> -> vector<16x25xf32>
    %223 = arith.maximumf %219, %222 : vector<16x25xf32>
    %c0_219 = arith.constant 0 : index
    %c0_220 = arith.constant 0 : index
    %224 = vector.load %arg10[%c0_219, %c0_220] : memref<1x128xf32, #tpu.memory_space<vmem>>, vector<1x128xf32>
    %225 = vector.extract_strided_slice %223 {offsets = [0, 0], sizes = [1, 25], strides = [1, 1]} : vector<16x25xf32> to vector<1x25xf32>
    %c0_221 = arith.constant 0 : index
    %c0_222 = arith.constant 0 : index
    %c0_223 = arith.constant 0 : index
    %226 = vector.load %arg9[%c0_221, %c0_222, %c0_223] : memref<16x25x128xf32, #tpu.memory_space<vmem>>, vector<1x25x128xf32>
    %227 = vector.shape_cast %226 : vector<1x25x128xf32> to vector<25x128xf32>
    %cst_224 = arith.constant dense<0.000000e+00> : vector<1x128xf32>
    %228 = tpu.matmul %225, %227, %cst_224 {dimension_numbers = #tpu.dot_dimension_numbers<[1], [0], [0], [1], [0, 0, 1, 1], [], []>} : vector<1x25xf32>, vector<25x128xf32>, vector<1x128xf32> -> vector<1x128xf32>
    %229 = arith.addf %224, %228 : vector<1x128xf32>
    %230 = vector.extract_strided_slice %223 {offsets = [1, 0], sizes = [1, 25], strides = [1, 1]} : vector<16x25xf32> to vector<1x25xf32>
    %c1_225 = arith.constant 1 : index
    %c0_226 = arith.constant 0 : index
    %c0_227 = arith.constant 0 : index
    %231 = vector.load %arg9[%c1_225, %c0_226, %c0_227] : memref<16x25x128xf32, #tpu.memory_space<vmem>>, vector<1x25x128xf32>
    %232 = vector.shape_cast %231 : vector<1x25x128xf32> to vector<25x128xf32>
    %cst_228 = arith.constant dense<0.000000e+00> : vector<1x128xf32>
    %233 = tpu.matmul %230, %232, %cst_228 {dimension_numbers = #tpu.dot_dimension_numbers<[1], [0], [0], [1], [0, 0, 1, 1], [], []>} : vector<1x25xf32>, vector<25x128xf32>, vector<1x128xf32> -> vector<1x128xf32>
    %234 = arith.addf %229, %233 : vector<1x128xf32>
    %235 = vector.extract_strided_slice %223 {offsets = [2, 0], sizes = [1, 25], strides = [1, 1]} : vector<16x25xf32> to vector<1x25xf32>
    %c2_229 = arith.constant 2 : index
    %c0_230 = arith.constant 0 : index
    %c0_231 = arith.constant 0 : index
    %236 = vector.load %arg9[%c2_229, %c0_230, %c0_231] : memref<16x25x128xf32, #tpu.memory_space<vmem>>, vector<1x25x128xf32>
    %237 = vector.shape_cast %236 : vector<1x25x128xf32> to vector<25x128xf32>
    %cst_232 = arith.constant dense<0.000000e+00> : vector<1x128xf32>
    %238 = tpu.matmul %235, %237, %cst_232 {dimension_numbers = #tpu.dot_dimension_numbers<[1], [0], [0], [1], [0, 0, 1, 1], [], []>} : vector<1x25xf32>, vector<25x128xf32>, vector<1x128xf32> -> vector<1x128xf32>
    %239 = arith.addf %234, %238 : vector<1x128xf32>
    %240 = vector.extract_strided_slice %223 {offsets = [3, 0], sizes = [1, 25], strides = [1, 1]} : vector<16x25xf32> to vector<1x25xf32>
    %c3_233 = arith.constant 3 : index
    %c0_234 = arith.constant 0 : index
    %c0_235 = arith.constant 0 : index
    %241 = vector.load %arg9[%c3_233, %c0_234, %c0_235] : memref<16x25x128xf32, #tpu.memory_space<vmem>>, vector<1x25x128xf32>
    %242 = vector.shape_cast %241 : vector<1x25x128xf32> to vector<25x128xf32>
    %cst_236 = arith.constant dense<0.000000e+00> : vector<1x128xf32>
    %243 = tpu.matmul %240, %242, %cst_236 {dimension_numbers = #tpu.dot_dimension_numbers<[1], [0], [0], [1], [0, 0, 1, 1], [], []>} : vector<1x25xf32>, vector<25x128xf32>, vector<1x128xf32> -> vector<1x128xf32>
    %244 = arith.addf %239, %243 : vector<1x128xf32>
    %245 = vector.extract_strided_slice %223 {offsets = [4, 0], sizes = [1, 25], strides = [1, 1]} : vector<16x25xf32> to vector<1x25xf32>
    %c4_237 = arith.constant 4 : index
    %c0_238 = arith.constant 0 : index
    %c0_239 = arith.constant 0 : index
    %246 = vector.load %arg9[%c4_237, %c0_238, %c0_239] : memref<16x25x128xf32, #tpu.memory_space<vmem>>, vector<1x25x128xf32>
    %247 = vector.shape_cast %246 : vector<1x25x128xf32> to vector<25x128xf32>
    %cst_240 = arith.constant dense<0.000000e+00> : vector<1x128xf32>
    %248 = tpu.matmul %245, %247, %cst_240 {dimension_numbers = #tpu.dot_dimension_numbers<[1], [0], [0], [1], [0, 0, 1, 1], [], []>} : vector<1x25xf32>, vector<25x128xf32>, vector<1x128xf32> -> vector<1x128xf32>
    %249 = arith.addf %244, %248 : vector<1x128xf32>
    %250 = vector.extract_strided_slice %223 {offsets = [5, 0], sizes = [1, 25], strides = [1, 1]} : vector<16x25xf32> to vector<1x25xf32>
    %c5_241 = arith.constant 5 : index
    %c0_242 = arith.constant 0 : index
    %c0_243 = arith.constant 0 : index
    %251 = vector.load %arg9[%c5_241, %c0_242, %c0_243] : memref<16x25x128xf32, #tpu.memory_space<vmem>>, vector<1x25x128xf32>
    %252 = vector.shape_cast %251 : vector<1x25x128xf32> to vector<25x128xf32>
    %cst_244 = arith.constant dense<0.000000e+00> : vector<1x128xf32>
    %253 = tpu.matmul %250, %252, %cst_244 {dimension_numbers = #tpu.dot_dimension_numbers<[1], [0], [0], [1], [0, 0, 1, 1], [], []>} : vector<1x25xf32>, vector<25x128xf32>, vector<1x128xf32> -> vector<1x128xf32>
    %254 = arith.addf %249, %253 : vector<1x128xf32>
    %255 = vector.extract_strided_slice %223 {offsets = [6, 0], sizes = [1, 25], strides = [1, 1]} : vector<16x25xf32> to vector<1x25xf32>
    %c6_245 = arith.constant 6 : index
    %c0_246 = arith.constant 0 : index
    %c0_247 = arith.constant 0 : index
    %256 = vector.load %arg9[%c6_245, %c0_246, %c0_247] : memref<16x25x128xf32, #tpu.memory_space<vmem>>, vector<1x25x128xf32>
    %257 = vector.shape_cast %256 : vector<1x25x128xf32> to vector<25x128xf32>
    %cst_248 = arith.constant dense<0.000000e+00> : vector<1x128xf32>
    %258 = tpu.matmul %255, %257, %cst_248 {dimension_numbers = #tpu.dot_dimension_numbers<[1], [0], [0], [1], [0, 0, 1, 1], [], []>} : vector<1x25xf32>, vector<25x128xf32>, vector<1x128xf32> -> vector<1x128xf32>
    %259 = arith.addf %254, %258 : vector<1x128xf32>
    %260 = vector.extract_strided_slice %223 {offsets = [7, 0], sizes = [1, 25], strides = [1, 1]} : vector<16x25xf32> to vector<1x25xf32>
    %c7_249 = arith.constant 7 : index
    %c0_250 = arith.constant 0 : index
    %c0_251 = arith.constant 0 : index
    %261 = vector.load %arg9[%c7_249, %c0_250, %c0_251] : memref<16x25x128xf32, #tpu.memory_space<vmem>>, vector<1x25x128xf32>
    %262 = vector.shape_cast %261 : vector<1x25x128xf32> to vector<25x128xf32>
    %cst_252 = arith.constant dense<0.000000e+00> : vector<1x128xf32>
    %263 = tpu.matmul %260, %262, %cst_252 {dimension_numbers = #tpu.dot_dimension_numbers<[1], [0], [0], [1], [0, 0, 1, 1], [], []>} : vector<1x25xf32>, vector<25x128xf32>, vector<1x128xf32> -> vector<1x128xf32>
    %264 = arith.addf %259, %263 : vector<1x128xf32>
    %265 = vector.extract_strided_slice %223 {offsets = [8, 0], sizes = [1, 25], strides = [1, 1]} : vector<16x25xf32> to vector<1x25xf32>
    %c8_253 = arith.constant 8 : index
    %c0_254 = arith.constant 0 : index
    %c0_255 = arith.constant 0 : index
    %266 = vector.load %arg9[%c8_253, %c0_254, %c0_255] : memref<16x25x128xf32, #tpu.memory_space<vmem>>, vector<1x25x128xf32>
    %267 = vector.shape_cast %266 : vector<1x25x128xf32> to vector<25x128xf32>
    %cst_256 = arith.constant dense<0.000000e+00> : vector<1x128xf32>
    %268 = tpu.matmul %265, %267, %cst_256 {dimension_numbers = #tpu.dot_dimension_numbers<[1], [0], [0], [1], [0, 0, 1, 1], [], []>} : vector<1x25xf32>, vector<25x128xf32>, vector<1x128xf32> -> vector<1x128xf32>
    %269 = arith.addf %264, %268 : vector<1x128xf32>
    %270 = vector.extract_strided_slice %223 {offsets = [9, 0], sizes = [1, 25], strides = [1, 1]} : vector<16x25xf32> to vector<1x25xf32>
    %c9_257 = arith.constant 9 : index
    %c0_258 = arith.constant 0 : index
    %c0_259 = arith.constant 0 : index
    %271 = vector.load %arg9[%c9_257, %c0_258, %c0_259] : memref<16x25x128xf32, #tpu.memory_space<vmem>>, vector<1x25x128xf32>
    %272 = vector.shape_cast %271 : vector<1x25x128xf32> to vector<25x128xf32>
    %cst_260 = arith.constant dense<0.000000e+00> : vector<1x128xf32>
    %273 = tpu.matmul %270, %272, %cst_260 {dimension_numbers = #tpu.dot_dimension_numbers<[1], [0], [0], [1], [0, 0, 1, 1], [], []>} : vector<1x25xf32>, vector<25x128xf32>, vector<1x128xf32> -> vector<1x128xf32>
    %274 = arith.addf %269, %273 : vector<1x128xf32>
    %275 = vector.extract_strided_slice %223 {offsets = [10, 0], sizes = [1, 25], strides = [1, 1]} : vector<16x25xf32> to vector<1x25xf32>
    %c10_261 = arith.constant 10 : index
    %c0_262 = arith.constant 0 : index
    %c0_263 = arith.constant 0 : index
    %276 = vector.load %arg9[%c10_261, %c0_262, %c0_263] : memref<16x25x128xf32, #tpu.memory_space<vmem>>, vector<1x25x128xf32>
    %277 = vector.shape_cast %276 : vector<1x25x128xf32> to vector<25x128xf32>
    %cst_264 = arith.constant dense<0.000000e+00> : vector<1x128xf32>
    %278 = tpu.matmul %275, %277, %cst_264 {dimension_numbers = #tpu.dot_dimension_numbers<[1], [0], [0], [1], [0, 0, 1, 1], [], []>} : vector<1x25xf32>, vector<25x128xf32>, vector<1x128xf32> -> vector<1x128xf32>
    %279 = arith.addf %274, %278 : vector<1x128xf32>
    %280 = vector.extract_strided_slice %223 {offsets = [11, 0], sizes = [1, 25], strides = [1, 1]} : vector<16x25xf32> to vector<1x25xf32>
    %c11_265 = arith.constant 11 : index
    %c0_266 = arith.constant 0 : index
    %c0_267 = arith.constant 0 : index
    %281 = vector.load %arg9[%c11_265, %c0_266, %c0_267] : memref<16x25x128xf32, #tpu.memory_space<vmem>>, vector<1x25x128xf32>
    %282 = vector.shape_cast %281 : vector<1x25x128xf32> to vector<25x128xf32>
    %cst_268 = arith.constant dense<0.000000e+00> : vector<1x128xf32>
    %283 = tpu.matmul %280, %282, %cst_268 {dimension_numbers = #tpu.dot_dimension_numbers<[1], [0], [0], [1], [0, 0, 1, 1], [], []>} : vector<1x25xf32>, vector<25x128xf32>, vector<1x128xf32> -> vector<1x128xf32>
    %284 = arith.addf %279, %283 : vector<1x128xf32>
    %285 = vector.extract_strided_slice %223 {offsets = [12, 0], sizes = [1, 25], strides = [1, 1]} : vector<16x25xf32> to vector<1x25xf32>
    %c12_269 = arith.constant 12 : index
    %c0_270 = arith.constant 0 : index
    %c0_271 = arith.constant 0 : index
    %286 = vector.load %arg9[%c12_269, %c0_270, %c0_271] : memref<16x25x128xf32, #tpu.memory_space<vmem>>, vector<1x25x128xf32>
    %287 = vector.shape_cast %286 : vector<1x25x128xf32> to vector<25x128xf32>
    %cst_272 = arith.constant dense<0.000000e+00> : vector<1x128xf32>
    %288 = tpu.matmul %285, %287, %cst_272 {dimension_numbers = #tpu.dot_dimension_numbers<[1], [0], [0], [1], [0, 0, 1, 1], [], []>} : vector<1x25xf32>, vector<25x128xf32>, vector<1x128xf32> -> vector<1x128xf32>
    %289 = arith.addf %284, %288 : vector<1x128xf32>
    %290 = vector.extract_strided_slice %223 {offsets = [13, 0], sizes = [1, 25], strides = [1, 1]} : vector<16x25xf32> to vector<1x25xf32>
    %c13_273 = arith.constant 13 : index
    %c0_274 = arith.constant 0 : index
    %c0_275 = arith.constant 0 : index
    %291 = vector.load %arg9[%c13_273, %c0_274, %c0_275] : memref<16x25x128xf32, #tpu.memory_space<vmem>>, vector<1x25x128xf32>
    %292 = vector.shape_cast %291 : vector<1x25x128xf32> to vector<25x128xf32>
    %cst_276 = arith.constant dense<0.000000e+00> : vector<1x128xf32>
    %293 = tpu.matmul %290, %292, %cst_276 {dimension_numbers = #tpu.dot_dimension_numbers<[1], [0], [0], [1], [0, 0, 1, 1], [], []>} : vector<1x25xf32>, vector<25x128xf32>, vector<1x128xf32> -> vector<1x128xf32>
    %294 = arith.addf %289, %293 : vector<1x128xf32>
    %295 = vector.extract_strided_slice %223 {offsets = [14, 0], sizes = [1, 25], strides = [1, 1]} : vector<16x25xf32> to vector<1x25xf32>
    %c14_277 = arith.constant 14 : index
    %c0_278 = arith.constant 0 : index
    %c0_279 = arith.constant 0 : index
    %296 = vector.load %arg9[%c14_277, %c0_278, %c0_279] : memref<16x25x128xf32, #tpu.memory_space<vmem>>, vector<1x25x128xf32>
    %297 = vector.shape_cast %296 : vector<1x25x128xf32> to vector<25x128xf32>
    %cst_280 = arith.constant dense<0.000000e+00> : vector<1x128xf32>
    %298 = tpu.matmul %295, %297, %cst_280 {dimension_numbers = #tpu.dot_dimension_numbers<[1], [0], [0], [1], [0, 0, 1, 1], [], []>} : vector<1x25xf32>, vector<25x128xf32>, vector<1x128xf32> -> vector<1x128xf32>
    %299 = arith.addf %294, %298 : vector<1x128xf32>
    %300 = vector.extract_strided_slice %223 {offsets = [15, 0], sizes = [1, 25], strides = [1, 1]} : vector<16x25xf32> to vector<1x25xf32>
    %c15_281 = arith.constant 15 : index
    %c0_282 = arith.constant 0 : index
    %c0_283 = arith.constant 0 : index
    %301 = vector.load %arg9[%c15_281, %c0_282, %c0_283] : memref<16x25x128xf32, #tpu.memory_space<vmem>>, vector<1x25x128xf32>
    %302 = vector.shape_cast %301 : vector<1x25x128xf32> to vector<25x128xf32>
    %cst_284 = arith.constant dense<0.000000e+00> : vector<1x128xf32>
    %303 = tpu.matmul %300, %302, %cst_284 {dimension_numbers = #tpu.dot_dimension_numbers<[1], [0], [0], [1], [0, 0, 1, 1], [], []>} : vector<1x25xf32>, vector<25x128xf32>, vector<1x128xf32> -> vector<1x128xf32>
    %304 = arith.addf %299, %303 : vector<1x128xf32>
    %cst_285 = arith.constant 0.000000e+00 : f32
    %305 = vector.broadcast %cst_285 : f32 to vector<1x128xf32>
    %306 = arith.maximumf %304, %305 : vector<1x128xf32>
    %c0_286 = arith.constant 0 : index
    %c0_287 = arith.constant 0 : index
    %307 = vector.load %arg11[%c0_286, %c0_287] : memref<128x128xf32, #tpu.memory_space<vmem>>, vector<128x128xf32>
    %cst_288 = arith.constant dense<0.000000e+00> : vector<1x128xf32>
    %308 = tpu.matmul %306, %307, %cst_288 {dimension_numbers = #tpu.dot_dimension_numbers<[1], [0], [0], [1], [0, 0, 1, 1], [], []>} : vector<1x128xf32>, vector<128x128xf32>, vector<1x128xf32> -> vector<1x128xf32>
    %c0_289 = arith.constant 0 : index
    %c0_290 = arith.constant 0 : index
    %309 = vector.load %arg12[%c0_289, %c0_290] : memref<1x128xf32, #tpu.memory_space<vmem>>, vector<1x128xf32>
    %310 = arith.addf %308, %309 : vector<1x128xf32>
    %cst_291 = arith.constant 0.000000e+00 : f32
    %311 = vector.broadcast %cst_291 : f32 to vector<1x128xf32>
    %312 = arith.maximumf %310, %311 : vector<1x128xf32>
    %c0_292 = arith.constant 0 : index
    %c0_293 = arith.constant 0 : index
    %313 = vector.load %arg13[%c0_292, %c0_293] : memref<128x128xf32, #tpu.memory_space<vmem>>, vector<128x128xf32>
    %cst_294 = arith.constant dense<0.000000e+00> : vector<1x128xf32>
    %314 = tpu.matmul %312, %313, %cst_294 {dimension_numbers = #tpu.dot_dimension_numbers<[1], [0], [0], [1], [0, 0, 1, 1], [], []>} : vector<1x128xf32>, vector<128x128xf32>, vector<1x128xf32> -> vector<1x128xf32>
    %c0_295 = arith.constant 0 : index
    %c0_296 = arith.constant 0 : index
    %315 = vector.load %arg14[%c0_295, %c0_296] : memref<1x128xf32, #tpu.memory_space<vmem>>, vector<1x128xf32>
    %316 = arith.addf %314, %315 : vector<1x128xf32>
    %cst_297 = arith.constant dense<0xFF800000> : vector<1xf32>
    %317 = vector.multi_reduction <maximumf>, %316, %cst_297 [1] : vector<1x128xf32> to vector<1xf32>
    %318 = vector.shape_cast %317 : vector<1xf32> to vector<1x1xf32>
    %319 = vector.broadcast %318 : vector<1x1xf32> to vector<1x128xf32>
    %320 = arith.subf %316, %319 : vector<1x128xf32>
    %321 = math.exp %320 : vector<1x128xf32>
    %cst_298 = arith.constant dense<0.000000e+00> : vector<1xf32>
    %322 = vector.multi_reduction <add>, %321, %cst_298 [1] : vector<1x128xf32> to vector<1xf32>
    %323 = vector.shape_cast %322 : vector<1xf32> to vector<1x1xf32>
    %324 = math.log %323 : vector<1x1xf32>
    %325 = arith.addf %318, %324 : vector<1x1xf32>
    %326 = vector.broadcast %325 : vector<1x1xf32> to vector<1x128xf32>
    %327 = arith.subf %316, %326 : vector<1x128xf32>
    %c0_299 = arith.constant 0 : index
    %c0_300 = arith.constant 0 : index
    %c0_301 = arith.constant 0 : index
    %328 = vector.load %arg15[%c0_299, %c0_300, %c0_301] : memref<1x1x128xf32, #tpu.memory_space<vmem>>, vector<1x1x128xf32>
    %329 = vector.shape_cast %328 : vector<1x1x128xf32> to vector<1x128xf32>
    %330 = vector.shape_cast %327 : vector<1x128xf32> to vector<1x1x128xf32>
    tpu.vector_store %arg15[%c0_299, %c0_300, %c0_301], %330 {strides = array<i32>} : memref<1x1x128xf32, #tpu.memory_space<vmem>>, vector<1x1x128xf32>,
    return
  }
  func.func @transform_0(%arg0: i32) -> (i32, i32, i32) {
    %c0_i32 = arith.constant 0 : i32
    %c0_i32_0 = arith.constant 0 : i32
    %c0_i32_1 = arith.constant 0 : i32
    return %arg0, %c0_i32, %c0_i32_0 : i32, i32, i32
  }
  func.func @transform_1(%arg0: i32) -> (i32, i32) {
    %c0_i32 = arith.constant 0 : i32
    %c0_i32_0 = arith.constant 0 : i32
    %c0_i32_1 = arith.constant 0 : i32
    return %c0_i32, %c0_i32_0 : i32, i32
  }
  func.func @transform_2(%arg0: i32) -> (i32, i32) {
    %c0_i32 = arith.constant 0 : i32
    %c0_i32_0 = arith.constant 0 : i32
    %c0_i32_1 = arith.constant 0 : i32
    return %c0_i32, %c0_i32_0 : i32, i32
  }
  func.func @transform_3(%arg0: i32) -> (i32, i32, i32) {
    %c0_i32 = arith.constant 0 : i32
    %c0_i32_0 = arith.constant 0 : i32
    %c0_i32_1 = arith.constant 0 : i32
    %c0_i32_2 = arith.constant 0 : i32
    return %c0_i32, %c0_i32_0, %c0_i32_1 : i32, i32, i32
  }
  func.func @transform_4(%arg0: i32) -> (i32, i32, i32) {
    %c0_i32 = arith.constant 0 : i32
    %c0_i32_0 = arith.constant 0 : i32
    %c0_i32_1 = arith.constant 0 : i32
    %c0_i32_2 = arith.constant 0 : i32
    return %c0_i32, %c0_i32_0, %c0_i32_1 : i32, i32, i32
  }
  func.func @transform_5(%arg0: i32) -> (i32, i32) {
    %c0_i32 = arith.constant 0 : i32
    %c0_i32_0 = arith.constant 0 : i32
    %c0_i32_1 = arith.constant 0 : i32
    return %c0_i32, %c0_i32_0 : i32, i32
  }
  func.func @transform_6(%arg0: i32) -> (i32, i32, i32) {
    %c0_i32 = arith.constant 0 : i32
    %c0_i32_0 = arith.constant 0 : i32
    %c0_i32_1 = arith.constant 0 : i32
    %c0_i32_2 = arith.constant 0 : i32
    return %c0_i32, %c0_i32_0, %c0_i32_1 : i32, i32, i32
  }
  func.func @transform_7(%arg0: i32) -> (i32, i32, i32) {
    %c0_i32 = arith.constant 0 : i32
    %c0_i32_0 = arith.constant 0 : i32
    %c0_i32_1 = arith.constant 0 : i32
    %c0_i32_2 = arith.constant 0 : i32
    return %c0_i32, %c0_i32_0, %c0_i32_1 : i32, i32, i32
  }
  func.func @transform_8(%arg0: i32) -> (i32, i32, i32) {
    %c0_i32 = arith.constant 0 : i32
    %c0_i32_0 = arith.constant 0 : i32
    %c0_i32_1 = arith.constant 0 : i32
    %c0_i32_2 = arith.constant 0 : i32
    return %c0_i32, %c0_i32_0, %c0_i32_1 : i32, i32, i32
  }
  func.func @transform_9(%arg0: i32) -> (i32, i32) {
    %c0_i32 = arith.constant 0 : i32
    %c0_i32_0 = arith.constant 0 : i32
    %c0_i32_1 = arith.constant 0 : i32
    return %c0_i32, %c0_i32_0 : i32, i32
  }
  func.func @transform_10(%arg0: i32) -> (i32, i32) {
    %c0_i32 = arith.constant 0 : i32
    %c0_i32_0 = arith.constant 0 : i32
    %c0_i32_1 = arith.constant 0 : i32
    return %c0_i32, %c0_i32_0 : i32, i32
  }
  func.func @transform_11(%arg0: i32) -> (i32, i32) {
    %c0_i32 = arith.constant 0 : i32
    %c0_i32_0 = arith.constant 0 : i32
    %c0_i32_1 = arith.constant 0 : i32
    return %c0_i32, %c0_i32_0 : i32, i32
  }
  func.func @transform_12(%arg0: i32) -> (i32, i32) {
    %c0_i32 = arith.constant 0 : i32
    %c0_i32_0 = arith.constant 0 : i32
    %c0_i32_1 = arith.constant 0 : i32
    return %c0_i32, %c0_i32_0 : i32, i32
  }
  func.func @transform_13(%arg0: i32) -> (i32, i32) {
    %c0_i32 = arith.constant 0 : i32
    %c0_i32_0 = arith.constant 0 : i32
    %c0_i32_1 = arith.constant 0 : i32
    return %c0_i32, %c0_i32_0 : i32, i32
  }
  func.func @transform_14(%arg0: i32) -> (i32, i32, i32) {
    %c0_i32 = arith.constant 0 : i32
    %c0_i32_0 = arith.constant 0 : i32
    %c0_i32_1 = arith.constant 0 : i32
    return %arg0, %c0_i32, %c0_i32_0 : i32, i32, i32
  }
}

</mosaic_0001>

<llo_original>
// kernel: forward.1
$region0: #{forward.1}
  #allocation0 [shape = 'u32[]', space=smem, size = 0x4, offset = 0x4, fixed_abs, tag = 'smem constant byte address 0x4 - core index']
  #allocation1 [shape = 'u32[144,128]{1,0:T(1,128)}', space=vmem, size = 0x12000, scoped, tag = 'internal scratch']
  %s0 = inlined_call_operand.vmem [shape: f32[2,1,784], index: 0, kind: input, shape index: {}]
  %s1 = inlined_call_operand.hbm [shape: f32[8,1], index: 1, kind: input, shape index: {}]
  %s2 = inlined_call_operand.hbm [shape: f32[8,1], index: 2, kind: input, shape index: {}]
  %s3 = inlined_call_operand.hbm [shape: f32[4,784,196], index: 3, kind: input, shape index: {}]
  %s4 = inlined_call_operand.hbm [shape: f32[25,16,8], index: 4, kind: input, shape index: {}]
  %s5 = inlined_call_operand.hbm [shape: f32[16,1], index: 5, kind: input, shape index: {}]
  %s6 = inlined_call_operand.hbm [shape: f32[25,196,100], index: 6, kind: input, shape index: {}]
  %s7 = inlined_call_operand.hbm [shape: f32[4,100,25], index: 7, kind: input, shape index: {}]
  %s8 = inlined_call_operand.hbm [shape: f32[16,25,128], index: 8, kind: input, shape index: {}]
  %s9 = inlined_call_operand.hbm [shape: f32[1,128], index: 9, kind: input, shape index: {}]
  %s10 = inlined_call_operand.hbm [shape: f32[128,128], index: 10, kind: input, shape index: {}]
  %s11 = inlined_call_operand.hbm [shape: f32[1,128], index: 11, kind: input, shape index: {}]
  %s12 = inlined_call_operand.hbm [shape: f32[128,128], index: 12, kind: input, shape index: {}]
  %s13 = inlined_call_operand.hbm [shape: f32[1,128], index: 13, kind: input, shape index: {}]
  %s14 = inlined_call_operand.hbm [shape: f32[2,1,128], index: 14, kind: output, shape index: {}]
  %s15 = sld [smem:[#allocation0]]
  $region141: #{forward.1} parent=0
    _
  %s17 = ssub.s32 1, %s15
  %s18 = scalar_select 0, %s17, %s15
  $region1: #{forward.1} parent=0
    #allocation2 [shape = 'u8[4096]{0}', space=vmem, size = 0x1000, scoped, tag = 'input window, operand 1, single buffered']
    #allocation3 [shape = 's32[2]{0}', space=sflag, size = 0x8, scoped, tag = 'scoped memory for forward.1']
    #allocation4 [shape = 's32[2]{0}', space=sflag, size = 0x8, scoped, tag = 'scoped memory for forward.1']
    #allocation5 [shape = 'u8[4096]{0}', space=vmem, size = 0x1000, scoped, tag = 'input window, operand 2, single buffered']
    #allocation6 [shape = 's32[1]{0}', space=sflag, size = 0x4, scoped, tag = 'scoped memory for forward.1']
    #allocation7 [shape = 'u8[3211264]{0}', space=vmem, size = 0x310000, scoped, tag = 'input window, operand 3, single buffered']
    #allocation8 [shape = 'u8[204800]{0}', space=vmem, size = 0x32000, scoped, tag = 'input window, operand 4, single buffered']
    #allocation9 [shape = 's32[1]{0}', space=sflag, size = 0x4, scoped, tag = 'scoped memory for forward.1']
    #allocation10 [shape = 'u8[8192]{0}', space=vmem, size = 0x2000, scoped, tag = 'input window, operand 5, single buffered']
    #allocation11 [shape = 'u8[2560000]{0}', space=vmem, size = 0x271000, scoped, tag = 'input window, operand 6, single buffered']
    #allocation12 [shape = 's32[1]{0}', space=sflag, size = 0x4, scoped, tag = 'scoped memory for forward.1']
    #allocation13 [shape = 'u8[212992]{0}', space=vmem, size = 0x34000, scoped, tag = 'input window, operand 7, single buffered']
    #allocation14 [shape = 'u8[262144]{0}', space=vmem, size = 0x40000, scoped, tag = 'input window, operand 8, single buffered']
    #allocation15 [shape = 's32[1]{0}', space=sflag, size = 0x4, scoped, tag = 'scoped memory for forward.1']
    #allocation16 [shape = 'u8[512]{0}', space=vmem, size = 0x400, scoped, tag = 'input window, operand 9, single buffered']
    #allocation17 [shape = 'u8[65536]{0}', space=vmem, size = 0x10000, scoped, tag = 'input window, operand 10, single buffered']
    #allocation18 [shape = 's32[1]{0}', space=sflag, size = 0x4, scoped, tag = 'scoped memory for forward.1']
    #allocation19 [shape = 'u8[512]{0}', space=vmem, size = 0x400, scoped, tag = 'input window, operand 11, single buffered']
    #allocation20 [shape = 'u8[65536]{0}', space=vmem, size = 0x10000, scoped, tag = 'input window, operand 12, single buffered']
    #allocation21 [shape = 's32[1]{0}', space=sflag, size = 0x4, scoped, tag = 'scoped memory for forward.1']
    #allocation22 [shape = 'u8[512]{0}', space=vmem, size = 0x400, scoped, tag = 'input window, operand 13, single buffered']
    #allocation23 [shape = 'u8[1024]{0}', space=vmem, size = 0x400, scoped, tag = 'output window, operand 0']
    %19 = vsyncpa [#allocation3], 0
    %20 = vsyncpa [#allocation6], 0
    %21 = vsyncpa [#allocation9], 0
    %22 = vsyncpa [#allocation12], 0
    %23 = vsyncpa [#allocation15], 0
    %24 = vsyncpa [#allocation18], 0
    %25 = vsyncpa [#allocation21], 0
    %26 = vsyncpa [#allocation4], 0
    %s27 = scalar_lea.sflag [#allocation4], 1
    %28 = vsyncpa %s27, 0
    loop: start=0, step=1, limit=4
    $region2: #{forward.1} parent=1 // loop_pre_header
      _
    $region3: #{forward.1} parent=1 // loop_header
      %s30 = sphi 0, %s34
      %p31 = scmp.ge.s32.totalorder %s30, 4
      %s40 = sphi 0, %s42
      %s43 = sphi 0, %s40
      %s44 = sphi 0, %s43
      %s60 = sphi 0, %s44
      %s64 = sphi 0, %s64
      %s66 = sphi 0, %s64
      %s67 = sphi 0, %s66
      %s81 = sphi 0, %s67
      %s85 = sphi 0, %s85
      %s87 = sphi 0, %s85
      %s88 = sphi 0, %s87
      %s102 = sphi 0, %s88
      %s106 = sphi 0, %s106
      %s108 = sphi 0, %s106
      %s109 = sphi 0, %s108
      %s123 = sphi 0, %s109
      %s127 = sphi 0, %s127
      %s129 = sphi 0, %s127
      %s130 = sphi 0, %s129
      %s144 = sphi 0, %s130
      %s148 = sphi 0, %s148
      %s150 = sphi 0, %s148
      %s151 = sphi 0, %s150
      %s165 = sphi 0, %s151
      %s169 = sphi 0, %s169
      %s171 = sphi 0, %s169
      %s172 = sphi 0, %s171
      %s186 = sphi 0, %s172
      %s190 = sphi 0, %s190
      %s192 = sphi 0, %s190
      %s193 = sphi 0, %s192
      %s207 = sphi 0, %s193
      %s211 = sphi 0, %s211
      %s213 = sphi 0, %s211
      %s214 = sphi 0, %s213
      %s228 = sphi 0, %s214
      %s232 = sphi 0, %s232
      %s234 = sphi 0, %s232
      %s235 = sphi 0, %s234
      %s249 = sphi 0, %s235
      %s253 = sphi 0, %s253
      %s255 = sphi 0, %s253
      %s256 = sphi 0, %s255
      %s270 = sphi 0, %s256
      %s274 = sphi 0, %s274
      %s276 = sphi 0, %s274
      %s277 = sphi 0, %s276
      %s291 = sphi 0, %s277
      %s295 = sphi 0, %s295
      %s297 = sphi 0, %s295
      %s298 = sphi 0, %s297
      %s312 = sphi 0, %s298
      %s316 = sphi 0, %s316
      %s318 = sphi 0, %s316
      %s319 = sphi 0, %s318
      %s333 = sphi 0, %s319
      %s339 = sphi 0, %s341
      %s342 = sphi 0, %s339
      %s343 = sphi 0, %s342
      %s359 = sphi 0, %s343
    $region4: #{forward.1} parent=1 // loop_header_branch
      %33 = sbr.rel (%p31) target = $region8
    $region5: #{forward.1} parent=1 // loop_body
      %s35 = ssub.s32 %s30, 1
      %s36 = ssub.s32 %s30, 2
      %s37 = sadd.s32 %s30, 1
      %s38 = ssub.s32 %s30, %s37
      %p39 = scmp.eq.s32.totalorder %s38, 0
      %s41 = sadd.s32 %s40, 1
      %s42 = scalar_select %p39, %s40, %s41
      %p45 = pneg %p39
      %p46 = scmp.eq.s32.totalorder %s30, 1
      %p47 = por %p45, %p46
      %p48 = scmp.ne.s32.totalorder %s40, %s43
      %p49 = scmp.eq.s32.totalorder %s30, 0
      %p50 = por %p48, %p49
      %p51 = scmp.ne.s32.totalorder %s40, %s43
      %p52 = scmp.eq.s32.totalorder %s35, 1
      %p53 = por %p51, %p52
      %p54 = scmp.ne.s32.totalorder %s43, %s44
      %p55 = scmp.eq.s32.totalorder %s35, 0
      %p56 = por %p54, %p55
      %p57 = scmp.ne.s32.totalorder %s43, %s44
      %p58 = scmp.eq.s32.totalorder %s36, 1
      %p59 = por %p57, %p58
      %p61 = scmp.ne.s32.totalorder %s44, %s60
      %p62 = scmp.eq.s32.totalorder %s36, 0
      %p63 = por %p61, %p62
      %s65 = sadd.s32 %s64, 1
      %p68 = scmp.eq.s32.totalorder %s30, 1
      %p69 = scmp.ne.s32.totalorder %s64, %s66
      %p70 = scmp.eq.s32.totalorder %s30, 0
      %p71 = por %p69, %p70
      %p72 = scmp.ne.s32.totalorder %s64, %s66
      %p73 = scmp.eq.s32.totalorder %s35, 1
      %p74 = por %p72, %p73
      %p75 = scmp.ne.s32.totalorder %s66, %s67
      %p76 = scmp.eq.s32.totalorder %s35, 0
      %p77 = por %p75, %p76
      %p78 = scmp.ne.s32.totalorder %s66, %s67
      %p79 = scmp.eq.s32.totalorder %s36, 1
      %p80 = por %p78, %p79
      %p82 = scmp.ne.s32.totalorder %s67, %s81
      %p83 = scmp.eq.s32.totalorder %s36, 0
      %p84 = por %p82, %p83
      %s86 = sadd.s32 %s85, 1
      %p89 = scmp.eq.s32.totalorder %s30, 1
      %p90 = scmp.ne.s32.totalorder %s85, %s87
      %p91 = scmp.eq.s32.totalorder %s30, 0
      %p92 = por %p90, %p91
      %p93 = scmp.ne.s32.totalorder %s85, %s87
      %p94 = scmp.eq.s32.totalorder %s35, 1
      %p95 = por %p93, %p94
      %p96 = scmp.ne.s32.totalorder %s87, %s88
      %p97 = scmp.eq.s32.totalorder %s35, 0
      %p98 = por %p96, %p97
      %p99 = scmp.ne.s32.totalorder %s87, %s88
      %p100 = scmp.eq.s32.totalorder %s36, 1
      %p101 = por %p99, %p100
      %p103 = scmp.ne.s32.totalorder %s88, %s102
      %p104 = scmp.eq.s32.totalorder %s36, 0
      %p105 = por %p103, %p104
      %s107 = sadd.s32 %s106, 1
      %p110 = scmp.eq.s32.totalorder %s30, 1
      %p111 = scmp.ne.s32.totalorder %s106, %s108
      %p112 = scmp.eq.s32.totalorder %s30, 0
      %p113 = por %p111, %p112
      %p114 = scmp.ne.s32.totalorder %s106, %s108
      %p115 = scmp.eq.s32.totalorder %s35, 1
      %p116 = por %p114, %p115
      %p117 = scmp.ne.s32.totalorder %s108, %s109
      %p118 = scmp.eq.s32.totalorder %s35, 0
      %p119 = por %p117, %p118
      %p120 = scmp.ne.s32.totalorder %s108, %s109
      %p121 = scmp.eq.s32.totalorder %s36, 1
      %p122 = por %p120, %p121
      %p124 = scmp.ne.s32.totalorder %s109, %s123
      %p125 = scmp.eq.s32.totalorder %s36, 0
      %p126 = por %p124, %p125
      %s128 = sadd.s32 %s127, 1
      %p131 = scmp.eq.s32.totalorder %s30, 1
      %p132 = scmp.ne.s32.totalorder %s127, %s129
      %p133 = scmp.eq.s32.totalorder %s30, 0
      %p134 = por %p132, %p133
      %p135 = scmp.ne.s32.totalorder %s127, %s129
      %p136 = scmp.eq.s32.totalorder %s35, 1
      %p137 = por %p135, %p136
      %p138 = scmp.ne.s32.totalorder %s129, %s130
      %p139 = scmp.eq.s32.totalorder %s35, 0
      %p140 = por %p138, %p139
      %p141 = scmp.ne.s32.totalorder %s129, %s130
      %p142 = scmp.eq.s32.totalorder %s36, 1
      %p143 = por %p141, %p142
      %p145 = scmp.ne.s32.totalorder %s130, %s144
      %p146 = scmp.eq.s32.totalorder %s36, 0
      %p147 = por %p145, %p146
      %s149 = sadd.s32 %s148, 1
      %p152 = scmp.eq.s32.totalorder %s30, 1
      %p153 = scmp.ne.s32.totalorder %s148, %s150
      %p154 = scmp.eq.s32.totalorder %s30, 0
      %p155 = por %p153, %p154
      %p156 = scmp.ne.s32.totalorder %s148, %s150
      %p157 = scmp.eq.s32.totalorder %s35, 1
      %p158 = por %p156, %p157
      %p159 = scmp.ne.s32.totalorder %s150, %s151
      %p160 = scmp.eq.s32.totalorder %s35, 0
      %p161 = por %p159, %p160
      %p162 = scmp.ne.s32.totalorder %s150, %s151
      %p163 = scmp.eq.s32.totalorder %s36, 1
      %p164 = por %p162, %p163
      %p166 = scmp.ne.s32.totalorder %s151, %s165
      %p167 = scmp.eq.s32.totalorder %s36, 0
      %p168 = por %p166, %p167
      %s170 = sadd.s32 %s169, 1
      %p173 = scmp.eq.s32.totalorder %s30, 1
      %p174 = scmp.ne.s32.totalorder %s169, %s171
      %p175 = scmp.eq.s32.totalorder %s30, 0
      %p176 = por %p174, %p175
      %p177 = scmp.ne.s32.totalorder %s169, %s171
      %p178 = scmp.eq.s32.totalorder %s35, 1
      %p179 = por %p177, %p178
      %p180 = scmp.ne.s32.totalorder %s171, %s172
      %p181 = scmp.eq.s32.totalorder %s35, 0
      %p182 = por %p180, %p181
      %p183 = scmp.ne.s32.totalorder %s171, %s172
      %p184 = scmp.eq.s32.totalorder %s36, 1
      %p185 = por %p183, %p184
      %p187 = scmp.ne.s32.totalorder %s172, %s186
      %p188 = scmp.eq.s32.totalorder %s36, 0
      %p189 = por %p187, %p188
      %s191 = sadd.s32 %s190, 1
      %p194 = scmp.eq.s32.totalorder %s30, 1
      %p195 = scmp.ne.s32.totalorder %s190, %s192
      %p196 = scmp.eq.s32.totalorder %s30, 0
      %p197 = por %p195, %p196
      %p198 = scmp.ne.s32.totalorder %s190, %s192
      %p199 = scmp.eq.s32.totalorder %s35, 1
      %p200 = por %p198, %p199
      %p201 = scmp.ne.s32.totalorder %s192, %s193
      %p202 = scmp.eq.s32.totalorder %s35, 0
      %p203 = por %p201, %p202
      %p204 = scmp.ne.s32.totalorder %s192, %s193
      %p205 = scmp.eq.s32.totalorder %s36, 1
      %p206 = por %p204, %p205
      %p208 = scmp.ne.s32.totalorder %s193, %s207
      %p209 = scmp.eq.s32.totalorder %s36, 0
      %p210 = por %p208, %p209
      %s212 = sadd.s32 %s211, 1
      %p215 = scmp.eq.s32.totalorder %s30, 1
      %p216 = scmp.ne.s32.totalorder %s211, %s213
      %p217 = scmp.eq.s32.totalorder %s30, 0
      %p218 = por %p216, %p217
      %p219 = scmp.ne.s32.totalorder %s211, %s213
      %p220 = scmp.eq.s32.totalorder %s35, 1
      %p221 = por %p219, %p220
      %p222 = scmp.ne.s32.totalorder %s213, %s214
      %p223 = scmp.eq.s32.totalorder %s35, 0
      %p224 = por %p222, %p223
      %p225 = scmp.ne.s32.totalorder %s213, %s214
      %p226 = scmp.eq.s32.totalorder %s36, 1
      %p227 = por %p225, %p226
      %p229 = scmp.ne.s32.totalorder %s214, %s228
      %p230 = scmp.eq.s32.totalorder %s36, 0
      %p231 = por %p229, %p230
      %s233 = sadd.s32 %s232, 1
      %p236 = scmp.eq.s32.totalorder %s30, 1
      %p237 = scmp.ne.s32.totalorder %s232, %s234
      %p238 = scmp.eq.s32.totalorder %s30, 0
      %p239 = por %p237, %p238
      %p240 = scmp.ne.s32.totalorder %s232, %s234
      %p241 = scmp.eq.s32.totalorder %s35, 1
      %p242 = por %p240, %p241
      %p243 = scmp.ne.s32.totalorder %s234, %s235
      %p244 = scmp.eq.s32.totalorder %s35, 0
      %p245 = por %p243, %p244
      %p246 = scmp.ne.s32.totalorder %s234, %s235
      %p247 = scmp.eq.s32.totalorder %s36, 1
      %p248 = por %p246, %p247
      %p250 = scmp.ne.s32.totalorder %s235, %s249
      %p251 = scmp.eq.s32.totalorder %s36, 0
      %p252 = por %p250, %p251
      %s254 = sadd.s32 %s253, 1
      %p257 = scmp.eq.s32.totalorder %s30, 1
      %p258 = scmp.ne.s32.totalorder %s253, %s255
      %p259 = scmp.eq.s32.totalorder %s30, 0
      %p260 = por %p258, %p259
      %p261 = scmp.ne.s32.totalorder %s253, %s255
      %p262 = scmp.eq.s32.totalorder %s35, 1
      %p263 = por %p261, %p262
      %p264 = scmp.ne.s32.totalorder %s255, %s256
      %p265 = scmp.eq.s32.totalorder %s35, 0
      %p266 = por %p264, %p265
      %p267 = scmp.ne.s32.totalorder %s255, %s256
      %p268 = scmp.eq.s32.totalorder %s36, 1
      %p269 = por %p267, %p268
      %p271 = scmp.ne.s32.totalorder %s256, %s270
      %p272 = scmp.eq.s32.totalorder %s36, 0
      %p273 = por %p271, %p272
      %s275 = sadd.s32 %s274, 1
      %p278 = scmp.eq.s32.totalorder %s30, 1
      %p279 = scmp.ne.s32.totalorder %s274, %s276
      %p280 = scmp.eq.s32.totalorder %s30, 0
      %p281 = por %p279, %p280
      %p282 = scmp.ne.s32.totalorder %s274, %s276
      %p283 = scmp.eq.s32.totalorder %s35, 1
      %p284 = por %p282, %p283
      %p285 = scmp.ne.s32.totalorder %s276, %s277
      %p286 = scmp.eq.s32.totalorder %s35, 0
      %p287 = por %p285, %p286
      %p288 = scmp.ne.s32.totalorder %s276, %s277
      %p289 = scmp.eq.s32.totalorder %s36, 1
      %p290 = por %p288, %p289
      %p292 = scmp.ne.s32.totalorder %s277, %s291
      %p293 = scmp.eq.s32.totalorder %s36, 0
      %p294 = por %p292, %p293
      %s296 = sadd.s32 %s295, 1
      %p299 = scmp.eq.s32.totalorder %s30, 1
      %p300 = scmp.ne.s32.totalorder %s295, %s297
      %p301 = scmp.eq.s32.totalorder %s30, 0
      %p302 = por %p300, %p301
      %p303 = scmp.ne.s32.totalorder %s295, %s297
      %p304 = scmp.eq.s32.totalorder %s35, 1
      %p305 = por %p303, %p304
      %p306 = scmp.ne.s32.totalorder %s297, %s298
      %p307 = scmp.eq.s32.totalorder %s35, 0
      %p308 = por %p306, %p307
      %p309 = scmp.ne.s32.totalorder %s297, %s298
      %p310 = scmp.eq.s32.totalorder %s36, 1
      %p311 = por %p309, %p310
      %p313 = scmp.ne.s32.totalorder %s298, %s312
      %p314 = scmp.eq.s32.totalorder %s36, 0
      %p315 = por %p313, %p314
      %s317 = sadd.s32 %s316, 1
      %p320 = scmp.eq.s32.totalorder %s30, 1
      %p321 = scmp.ne.s32.totalorder %s316, %s318
      %p322 = scmp.eq.s32.totalorder %s30, 0
      %p323 = por %p321, %p322
      %p324 = scmp.ne.s32.totalorder %s316, %s318
      %p325 = scmp.eq.s32.totalorder %s35, 1
      %p326 = por %p324, %p325
      %p327 = scmp.ne.s32.totalorder %s318, %s319
      %p328 = scmp.eq.s32.totalorder %s35, 0
      %p329 = por %p327, %p328
      %p330 = scmp.ne.s32.totalorder %s318, %s319
      %p331 = scmp.eq.s32.totalorder %s36, 1
      %p332 = por %p330, %p331
      %p334 = scmp.ne.s32.totalorder %s319, %s333
      %p335 = scmp.eq.s32.totalorder %s36, 0
      %p336 = por %p334, %p335
      %s337 = ssub.s32 %s30, %s37
      %p338 = scmp.eq.s32.totalorder %s337, 0
      %s340 = sadd.s32 %s339, 1
      %s341 = scalar_select %p338, %s339, %s340
      %p344 = pneg %p338
      %p345 = scmp.eq.s32.totalorder %s30, 1
      %p346 = por %p344, %p345
      %p347 = scmp.ne.s32.totalorder %s339, %s342
      %p348 = scmp.eq.s32.totalorder %s30, 0
      %p349 = por %p347, %p348
      %p350 = scmp.ne.s32.totalorder %s339, %s342
      %p351 = scmp.eq.s32.totalorder %s35, 1
      %p352 = por %p350, %p351
      %p353 = scmp.ne.s32.totalorder %s342, %s343
      %p354 = scmp.eq.s32.totalorder %s35, 0
      %p355 = por %p353, %p354
      %p356 = scmp.ne.s32.totalorder %s342, %s343
      %p357 = scmp.eq.s32.totalorder %s36, 1
      %p358 = por %p356, %p357
      %p360 = scmp.ne.s32.totalorder %s343, %s359
      %p361 = scmp.eq.s32.totalorder %s36, 0
      %p362 = por %p360, %p361
      %p363 = scmp.le.s32.totalorder 1, %s30
      %p364 = scmp.lt.s32.totalorder %s30, 3
      %p365 = pnand %p363, %p364
      %p366 = pneg %p365
      // Predicated region
      $region9: #{forward.1} parent=5 // pred_check
        _
      $region10: #{forward.1} parent=5 // pred_check_branch
        %368 = sbr.rel (%p365) target = $region12
      $region11: #{forward.1} parent=5 // pred_region
        %s369 = ssub.s32 %s30, 1
        // Predicated region
        $region13: #{forward.1} parent=11 // pred_check
          %p370 = pneg %p77
        $region14: #{forward.1} parent=11 // pred_check_branch
          %372 = sbr.rel (%p370) target = $region16
        $region15: #{forward.1} parent=11 // pred_region
          %s374 = ssub.s32 128, 128
          %375 = vsyncadd [#allocation3], %s374
          %s377 = sshll.u32 [#allocation2], 4
          %s378 = int_to_ptr.vmem [resolvable:$true] %s377
          %380 = dma.hbm_to_vmem [thread:$0]  %s1, 128, %s378, [#allocation3]
        $region16: #{forward.1} parent=11 // pred_fallthru
          _
        // Predicated region
        $region17: #{forward.1} parent=11 // pred_check
          %p381 = pneg %p98
        $region18: #{forward.1} parent=11 // pred_check_branch
          %383 = sbr.rel (%p381) target = $region20
        $region19: #{forward.1} parent=11 // pred_region
          %s385 = ssub.s32 128, 128
          %386 = vsyncadd [#allocation6], %s385
          %s388 = sshll.u32 [#allocation5], 4
          %s389 = int_to_ptr.vmem [resolvable:$true] %s388
          %391 = dma.hbm_to_vmem [thread:$0]  %s2, 128, %s389, [#allocation6]
        $region20: #{forward.1} parent=11 // pred_fallthru
          _
        // Predicated region
        $region21: #{forward.1} parent=11 // pred_check
          %p392 = pneg %p119
        $region22: #{forward.1} parent=11 // pred_check_branch
          %394 = sbr.rel (%p392) target = $region24
        $region23: #{forward.1} parent=11 // pred_region
          %s396 = ssub.s32 100352, 100352
          %397 = vsyncadd [#allocation6], %s396
          %s398 = sshll.u32 [#allocation7], 4
          %s399 = int_to_ptr.vmem [resolvable:$true] %s398
          %404 = dma.hbm_to_vmem [thread:$0]  %s3, 100352, %s399, [#allocation6], 256, 256, 16
        $region24: #{forward.1} parent=11 // pred_fallthru
          _
        // Predicated region
        $region25: #{forward.1} parent=11 // pred_check
          %p405 = pneg %p140
        $region26: #{forward.1} parent=11 // pred_check_branch
          %407 = sbr.rel (%p405) target = $region28
        $region27: #{forward.1} parent=11 // pred_region
          %s409 = ssub.s32 6400, 6400
          %410 = vsyncadd [#allocation9], %s409
          %s411 = sshll.u32 [#allocation8], 4
          %s412 = int_to_ptr.vmem [resolvable:$true] %s411
          %417 = dma.hbm_to_vmem [thread:$0]  %s4, 6400, %s412, [#allocation9], 128, 128, 8
        $region28: #{forward.1} parent=11 // pred_fallthru
          _
        // Predicated region
        $region29: #{forward.1} parent=11 // pred_check
          %p418 = pneg %p161
        $region30: #{forward.1} parent=11 // pred_check_branch
          %420 = sbr.rel (%p418) target = $region32
        $region31: #{forward.1} parent=11 // pred_region
          %s422 = ssub.s32 256, 256
          %423 = vsyncadd [#allocation9], %s422
          %s424 = sshll.u32 [#allocation10], 4
          %s425 = int_to_ptr.vmem [resolvable:$true] %s424
          %430 = dma.hbm_to_vmem [thread:$0]  %s5, 256, %s425, [#allocation9], 128, 128, 8
        $region32: #{forward.1} parent=11 // pred_fallthru
          _
        // Predicated region
        $region33: #{forward.1} parent=11 // pred_check
          %p431 = pneg %p182
        $region34: #{forward.1} parent=11 // pred_check_branch
          %433 = sbr.rel (%p431) target = $region36
        $region35: #{forward.1} parent=11 // pred_region
          %s435 = ssub.s32 80000, 80000
          %436 = vsyncadd [#allocation12], %s435
          %s437 = sshll.u32 [#allocation11], 4
          %s438 = int_to_ptr.vmem [resolvable:$true] %s437
          %443 = dma.hbm_to_vmem [thread:$0]  %s6, 80000, %s438, [#allocation12], 128, 128, 8
        $region36: #{forward.1} parent=11 // pred_fallthru
          _
        // Predicated region
        $region37: #{forward.1} parent=11 // pred_check
          %p444 = pneg %p203
        $region38: #{forward.1} parent=11 // pred_check_branch
          %446 = sbr.rel (%p444) target = $region40
        $region39: #{forward.1} parent=11 // pred_region
          %s448 = ssub.s32 6656, 6656
          %449 = vsyncadd [#allocation12], %s448
          %s450 = sshll.u32 [#allocation13], 4
          %s451 = int_to_ptr.vmem [resolvable:$true] %s450
          %456 = dma.hbm_to_vmem [thread:$0]  %s7, 6656, %s451, [#allocation12], 128, 128, 8
        $region40: #{forward.1} parent=11 // pred_fallthru
          _
        // Predicated region
        $region41: #{forward.1} parent=11 // pred_check
          %p457 = pneg %p224
        $region42: #{forward.1} parent=11 // pred_check_branch
          %459 = sbr.rel (%p457) target = $region44
        $region43: #{forward.1} parent=11 // pred_region
          %s461 = ssub.s32 8192, 8192
          %462 = vsyncadd [#allocation15], %s461
          %s463 = sshll.u32 [#allocation14], 4
          %s464 = int_to_ptr.vmem [resolvable:$true] %s463
          %469 = dma.hbm_to_vmem [thread:$0]  %s8, 8192, %s464, [#allocation15], 128, 128, 8
        $region44: #{forward.1} parent=11 // pred_fallthru
          _
        // Predicated region
        $region45: #{forward.1} parent=11 // pred_check
          %p470 = pneg %p245
        $region46: #{forward.1} parent=11 // pred_check_branch
          %472 = sbr.rel (%p470) target = $region48
        $region47: #{forward.1} parent=11 // pred_region
          %s474 = ssub.s32 16, 16
          %475 = vsyncadd [#allocation15], %s474
          %s477 = sshll.u32 [#allocation16], 4
          %s478 = int_to_ptr.vmem [resolvable:$true] %s477
          %480 = dma.hbm_to_vmem [thread:$0]  %s9, 16, %s478, [#allocation15]
        $region48: #{forward.1} parent=11 // pred_fallthru
          _
        // Predicated region
        $region49: #{forward.1} parent=11 // pred_check
          %p481 = pneg %p266
        $region50: #{forward.1} parent=11 // pred_check_branch
          %483 = sbr.rel (%p481) target = $region52
        $region51: #{forward.1} parent=11 // pred_region
          %s485 = ssub.s32 2048, 2048
          %486 = vsyncadd [#allocation18], %s485
          %s487 = sshll.u32 [#allocation17], 4
          %s488 = int_to_ptr.vmem [resolvable:$true] %s487
          %493 = dma.hbm_to_vmem [thread:$0]  %s10, 2048, %s488, [#allocation18], 128, 128, 8
        $region52: #{forward.1} parent=11 // pred_fallthru
          _
        // Predicated region
        $region53: #{forward.1} parent=11 // pred_check
          %p494 = pneg %p287
        $region54: #{forward.1} parent=11 // pred_check_branch
          %496 = sbr.rel (%p494) target = $region56
        $region55: #{forward.1} parent=11 // pred_region
          %s498 = ssub.s32 16, 16
          %499 = vsyncadd [#allocation18], %s498
          %s501 = sshll.u32 [#allocation19], 4
          %s502 = int_to_ptr.vmem [resolvable:$true] %s501
          %504 = dma.hbm_to_vmem [thread:$0]  %s11, 16, %s502, [#allocation18]
        $region56: #{forward.1} parent=11 // pred_fallthru
          _
        // Predicated region
        $region57: #{forward.1} parent=11 // pred_check
          %p505 = pneg %p308
        $region58: #{forward.1} parent=11 // pred_check_branch
          %507 = sbr.rel (%p505) target = $region60
        $region59: #{forward.1} parent=11 // pred_region
          %s509 = ssub.s32 2048, 2048
          %510 = vsyncadd [#allocation21], %s509
          %s511 = sshll.u32 [#allocation20], 4
          %s512 = int_to_ptr.vmem [resolvable:$true] %s511
          %517 = dma.hbm_to_vmem [thread:$0]  %s12, 2048, %s512, [#allocation21], 128, 128, 8
        $region60: #{forward.1} parent=11 // pred_fallthru
          _
        // Predicated region
        $region61: #{forward.1} parent=11 // pred_check
          %p518 = pneg %p329
        $region62: #{forward.1} parent=11 // pred_check_branch
          %520 = sbr.rel (%p518) target = $region64
        $region63: #{forward.1} parent=11 // pred_region
          %s522 = ssub.s32 16, 16
          %523 = vsyncadd [#allocation21], %s522
          %s525 = sshll.u32 [#allocation22], 4
          %s526 = int_to_ptr.vmem [resolvable:$true] %s525
          %528 = dma.hbm_to_vmem [thread:$0]  %s13, 16, %s526, [#allocation21]
        $region64: #{forward.1} parent=11 // pred_fallthru
          _
      $region12: #{forward.1} parent=5 // pred_fallthru
        _
      %p529 = scmp.lt.s32.totalorder %s30, 2
      // Predicated region
      $region65: #{forward.1} parent=5 // pred_check
        %p530 = pneg %p529
      $region66: #{forward.1} parent=5 // pred_check_branch
        %532 = sbr.rel (%p530) target = $region68
      $region67: #{forward.1} parent=5 // pred_region
        // Predicated region
        $region69: #{forward.1} parent=67 // pred_check
          %p533 = pneg %p50
        $region70: #{forward.1} parent=67 // pred_check_branch
          %535 = sbr.rel (%p533) target = $region72
        $region71: #{forward.1} parent=67 // pred_region
          %p536 = scmp.lt.s32.totalorder %s30, 1
          %s537 = scalar_select %p536, %s30, 1
          %s538 = smul.addr %s537, 7
          %s539 = scalar_lea.vmem %s0, %s538
        $region72: #{forward.1} parent=67 // pred_fallthru
          _
      $region68: #{forward.1} parent=5 // pred_fallthru
        _
      %p540 = scmp.le.s32.totalorder 1, %s30
      %p541 = scmp.lt.s32.totalorder %s30, 3
      %p542 = pnand %p540, %p541
      %p543 = pneg %p542
      // Predicated region
      $region73: #{forward.1} parent=5 // pred_check
        _
      $region74: #{forward.1} parent=5 // pred_check_branch
        %545 = sbr.rel (%p542) target = $region76
      $region75: #{forward.1} parent=5 // pred_region
        %s546 = ssub.s32 %s30, 1
        // Predicated region
        $region77: #{forward.1} parent=75 // pred_check
          %p547 = pneg %p77
        $region78: #{forward.1} parent=75 // pred_check_branch
          %549 = sbr.rel (%p547) target = $region80
        $region79: #{forward.1} parent=75 // pred_region
          %550 = dma.done [#allocation3], 128
        $region80: #{forward.1} parent=75 // pred_fallthru
          _
        // Predicated region
        $region81: #{forward.1} parent=75 // pred_check
          %p551 = pneg %p98
        $region82: #{forward.1} parent=75 // pred_check_branch
          %553 = sbr.rel (%p551) target = $region84
        $region83: #{forward.1} parent=75 // pred_region
          %554 = dma.done [#allocation6], 128
        $region84: #{forward.1} parent=75 // pred_fallthru
          _
        // Predicated region
        $region85: #{forward.1} parent=75 // pred_check
          %p555 = pneg %p119
        $region86: #{forward.1} parent=75 // pred_check_branch
          %557 = sbr.rel (%p555) target = $region88
        $region87: #{forward.1} parent=75 // pred_region
          %558 = dma.done [#allocation6], 100352
        $region88: #{forward.1} parent=75 // pred_fallthru
          _
        // Predicated region
        $region89: #{forward.1} parent=75 // pred_check
          %p559 = pneg %p140
        $region90: #{forward.1} parent=75 // pred_check_branch
          %561 = sbr.rel (%p559) target = $region92
        $region91: #{forward.1} parent=75 // pred_region
          %562 = dma.done [#allocation9], 6400
        $region92: #{forward.1} parent=75 // pred_fallthru
          _
        // Predicated region
        $region93: #{forward.1} parent=75 // pred_check
          %p563 = pneg %p161
        $region94: #{forward.1} parent=75 // pred_check_branch
          %565 = sbr.rel (%p563) target = $region96
        $region95: #{forward.1} parent=75 // pred_region
          %566 = dma.done [#allocation9], 256
        $region96: #{forward.1} parent=75 // pred_fallthru
          _
        // Predicated region
        $region97: #{forward.1} parent=75 // pred_check
          %p567 = pneg %p182
        $region98: #{forward.1} parent=75 // pred_check_branch
          %569 = sbr.rel (%p567) target = $region100
        $region99: #{forward.1} parent=75 // pred_region
          %570 = dma.done [#allocation12], 80000
        $region100: #{forward.1} parent=75 // pred_fallthru
          _
        // Predicated region
        $region101: #{forward.1} parent=75 // pred_check
          %p571 = pneg %p203
        $region102: #{forward.1} parent=75 // pred_check_branch
          %573 = sbr.rel (%p571) target = $region104
        $region103: #{forward.1} parent=75 // pred_region
          %574 = dma.done [#allocation12], 6656
        $region104: #{forward.1} parent=75 // pred_fallthru
          _
        // Predicated region
        $region105: #{forward.1} parent=75 // pred_check
          %p575 = pneg %p224
        $region106: #{forward.1} parent=75 // pred_check_branch
          %577 = sbr.rel (%p575) target = $region108
        $region107: #{forward.1} parent=75 // pred_region
          %578 = dma.done [#allocation15], 8192
        $region108: #{forward.1} parent=75 // pred_fallthru
          _
        // Predicated region
        $region109: #{forward.1} parent=75 // pred_check
          %p579 = pneg %p245
        $region110: #{forward.1} parent=75 // pred_check_branch
          %581 = sbr.rel (%p579) target = $region112
        $region111: #{forward.1} parent=75 // pred_region
          %582 = dma.done [#allocation15], 16
        $region112: #{forward.1} parent=75 // pred_fallthru
          _
        // Predicated region
        $region113: #{forward.1} parent=75 // pred_check
          %p583 = pneg %p266
        $region114: #{forward.1} parent=75 // pred_check_branch
          %585 = sbr.rel (%p583) target = $region116
        $region115: #{forward.1} parent=75 // pred_region
          %586 = dma.done [#allocation18], 2048
        $region116: #{forward.1} parent=75 // pred_fallthru
          _
        // Predicated region
        $region117: #{forward.1} parent=75 // pred_check
          %p587 = pneg %p287
        $region118: #{forward.1} parent=75 // pred_check_branch
          %589 = sbr.rel (%p587) target = $region120
        $region119: #{forward.1} parent=75 // pred_region
          %590 = dma.done [#allocation18], 16
        $region120: #{forward.1} parent=75 // pred_fallthru
          _
        // Predicated region
        $region121: #{forward.1} parent=75 // pred_check
          %p591 = pneg %p308
        $region122: #{forward.1} parent=75 // pred_check_branch
          %593 = sbr.rel (%p591) target = $region124
        $region123: #{forward.1} parent=75 // pred_region
          %594 = dma.done [#allocation21], 2048
        $region124: #{forward.1} parent=75 // pred_fallthru
          _
        // Predicated region
        $region125: #{forward.1} parent=75 // pred_check
          %p595 = pneg %p329
        $region126: #{forward.1} parent=75 // pred_check_branch
          %597 = sbr.rel (%p595) target = $region128
        $region127: #{forward.1} parent=75 // pred_region
          %598 = dma.done [#allocation21], 16
        $region128: #{forward.1} parent=75 // pred_fallthru
          _
        %p599 = scmp.lt.s32.totalorder %s35, 1
        %s600 = scalar_select %p599, %s35, 1
        %s601 = smul.addr %s600, 7
        %s602 = scalar_lea.vmem %s0, %s601
        %p603 = pneg %p56
        %p604 = pneg %p53
        %p605 = pneg %p77
        %p606 = pneg %p74
        %p607 = pneg %p98
        %p608 = pneg %p95
        %p609 = pneg %p119
        %p610 = pneg %p116
        %p611 = pneg %p140
        %p612 = pneg %p137
        %p613 = pneg %p161
        %p614 = pneg %p158
        %p615 = pneg %p182
        %p616 = pneg %p179
        %p617 = pneg %p203
        %p618 = pneg %p200
        %p619 = pneg %p224
        %p620 = pneg %p221
        %p621 = pneg %p245
        %p622 = pneg %p242
        %p623 = pneg %p266
        %p624 = pneg %p263
        %p625 = pneg %p287
        %p626 = pneg %p284
        %p627 = pneg %p308
        %p628 = pneg %p305
        %p629 = pneg %p329
        %p630 = pneg %p326
        %p631 = pneg %p355
        %p632 = pneg %p352
        %s633 = sand.u32 %s342, 1
        %s634 = scalar_lea.sflag [#allocation4], %s633
        %s635 = sand.u32 %s342, 1
        %s636 = scalar_lea.vmem [#allocation23], %s635
        %p637 = scmp.lt.s32.totalorder %s35, 1
        %s638 = scalar_select %p637, %s35, 1
        %s639 = smul.addr %s638, 7
        %s640 = scalar_lea.vmem %s0, %s639
        %v641 = vld [vmem:[%s640] sm:$0x7f]
        %v642 = vld [vmem:[#allocation2] sm:$0xff]
        %644 = vset.pattern.permute.xlu0 0
        %645 = vperm.xlu0 %644, %v642
        %v646 = vpop.permute.xlu0 %645
        %v649 = vlaneseq
        %v650 = vshrl.u32 %v649, 7
        %v651 = vsub.s32 0, %v650
        %v652 = vrot.slane %v641, %v651
        %v653 = vlaneseq
        %v654 = vshrl.u32 %v653, 7
        %v655 = vsub.s32 1, %v654
        %v656 = vrot.slane %v641, %v655
        %v657 = vlaneseq
        %v658 = vshrl.u32 %v657, 7
        %v659 = vsub.s32 2, %v658
        %v660 = vrot.slane %v641, %v659
        %v661 = vlaneseq
        %v662 = vshrl.u32 %v661, 7
        %v663 = vsub.s32 3, %v662
        %v664 = vrot.slane %v641, %v663
        %v665 = vlaneseq
        %v666 = vshrl.u32 %v665, 7
        %v667 = vsub.s32 4, %v666
        %v668 = vrot.slane %v641, %v667
        %v669 = vlaneseq
        %v670 = vshrl.u32 %v669, 7
        %v671 = vsub.s32 5, %v670
        %v672 = vrot.slane %v641, %v671
        %v673 = vlaneseq
        %v674 = vshrl.u32 %v673, 7
        %v675 = vsub.s32 6, %v674
        %v676 = vrot.slane %v641, %v675
        %v684 = vmul.f32 %v646, %v652
        %v685 = vmul.f32 %v646, %v656
        %v686 = vmul.f32 %v646, %v660
        %v687 = vmul.f32 %v646, %v664
        %v688 = vmul.f32 %v646, %v668
        %v689 = vmul.f32 %v646, %v672
        %v690 = vmul.f32 %v646, %v676
        %v691 = vadd.f32 %v684, 0.0
        %v692 = vadd.f32 %v685, 0.0
        %v693 = vadd.f32 %v686, 0.0
        %v694 = vadd.f32 %v687, 0.0
        %v695 = vadd.f32 %v688, 0.0
        %v696 = vadd.f32 %v689, 0.0
        %v697 = vadd.f32 %v690, 0.0
        %v698 = vld [vmem:[#allocation5] sm:$0xff]
        %700 = vset.pattern.permute.xlu0 0
        %701 = vperm.xlu0 %700, %v698
        %v702 = vpop.permute.xlu0 %701
        %v704 = vadd.f32 %v691, %v702
        %v705 = vadd.f32 %v692, %v702
        %v706 = vadd.f32 %v693, %v702
        %v707 = vadd.f32 %v694, %v702
        %v708 = vadd.f32 %v695, %v702
        %v709 = vadd.f32 %v696, %v702
        %v710 = vadd.f32 %v697, %v702
        %v711 = vmax.f32 %v704, 0.0
        %v712 = vmax.f32 %v705, 0.0
        %v713 = vmax.f32 %v706, 0.0
        %v714 = vmax.f32 %v707, 0.0
        %v715 = vmax.f32 %v708, 0.0
        %v716 = vmax.f32 %v709, 0.0
        %v717 = vmax.f32 %v710, 0.0
        %v718 = vld [vmem:[#allocation7] sm:$0xff]
        %v719 = vld [vmem:[#allocation7 + $0x8] sm:$0xff]
        %v720 = vld [vmem:[#allocation7 + $0x10] sm:$0xff]
        %v721 = vld [vmem:[#allocation7 + $0x18] sm:$0xff]
        %v722 = vld [vmem:[#allocation7 + $0x20] sm:$0xff]
        %v723 = vld [vmem:[#allocation7 + $0x28] sm:$0xff]
        %v724 = vld [vmem:[#allocation7 + $0x30] sm:$0xff]
        %v725 = vld [vmem:[#allocation7 + $0x38] sm:$0xff]
        %v726 = vld [vmem:[#allocation7 + $0x40] sm:$0xff]
        %v727 = vld [vmem:[#allocation7 + $0x48] sm:$0xff]
        %v728 = vld [vmem:[#allocation7 + $0x50] sm:$0xff]
        %v729 = vld [vmem:[#allocation7 + $0x58] sm:$0xff]
        %v730 = vld [vmem:[#allocation7 + $0x60] sm:$0xff]
        %v731 = vld [vmem:[#allocation7 + $0x68] sm:$0xff]
        %v732 = vld [vmem:[#allocation7 + $0x70] sm:$0xff]
        %v733 = vld [vmem:[#allocation7 + $0x78] sm:$0xff]
        %v734 = vld [vmem:[#allocation7 + $0x80] sm:$0xff]
        %v735 = vld [vmem:[#allocation7 + $0x88] sm:$0xff]
        %v736 = vld [vmem:[#allocation7 + $0x90] sm:$0xff]
        %v737 = vld [vmem:[#allocation7 + $0x98] sm:$0xff]
        %v738 = vld [vmem:[#allocation7 + $0xa0] sm:$0xff]
        %v739 = vld [vmem:[#allocation7 + $0xa8] sm:$0xff]
        %v740 = vld [vmem:[#allocation7 + $0xb0] sm:$0xff]
        %v741 = vld [vmem:[#allocation7 + $0xb8] sm:$0xff]
        %v742 = vld [vmem:[#allocation7 + $0xc0] sm:$0xff]
        %v743 = vld [vmem:[#allocation7 + $0xc8] sm:$0xff]
        %v744 = vld [vmem:[#allocation7 + $0xd0] sm:$0xff]
        %v745 = vld [vmem:[#allocation7 + $0xd8] sm:$0xff]
        %v746 = vld [vmem:[#allocation7 + $0xe0] sm:$0xff]
        %v747 = vld [vmem:[#allocation7 + $0xe8] sm:$0xff]
        %v748 = vld [vmem:[#allocation7 + $0xf0] sm:$0xff]
        %v749 = vld [vmem:[#allocation7 + $0xf8] sm:$0xff]
        %v750 = vld [vmem:[#allocation7 + $0x100] sm:$0xff]
        %v751 = vld [vmem:[#allocation7 + $0x108] sm:$0xff]
        %v752 = vld [vmem:[#allocation7 + $0x110] sm:$0xff]
        %v753 = vld [vmem:[#allocation7 + $0x118] sm:$0xff]
        %v754 = vld [vmem:[#allocation7 + $0x120] sm:$0xff]
        %v755 = vld [vmem:[#allocation7 + $0x128] sm:$0xff]
        %v756 = vld [vmem:[#allocation7 + $0x130] sm:$0xff]
        %v757 = vld [vmem:[#allocation7 + $0x138] sm:$0xff]
        %v758 = vld [vmem:[#allocation7 + $0x140] sm:$0xff]
        %v759 = vld [vmem:[#allocation7 + $0x148] sm:$0xff]
        %v760 = vld [vmem:[#allocation7 + $0x150] sm:$0xff]
        %v761 = vld [vmem:[#allocation7 + $0x158] sm:$0xff]
        %v762 = vld [vmem:[#allocation7 + $0x160] sm:$0xff]
        %v763 = vld [vmem:[#allocation7 + $0x168] sm:$0xff]
        %v764 = vld [vmem:[#allocation7 + $0x170] sm:$0xff]
        %v765 = vld [vmem:[#allocation7 + $0x178] sm:$0xff]
        %v766 = vld [vmem:[#allocation7 + $0x180] sm:$0xff]
        %v767 = vld [vmem:[#allocation7 + $0x188] sm:$0xff]
        %v768 = vld [vmem:[#allocation7 + $0x190] sm:$0xff]
        %v769 = vld [vmem:[#allocation7 + $0x198] sm:$0xff]
        %v770 = vld [vmem:[#allocation7 + $0x1a0] sm:$0xff]
        %v771 = vld [vmem:[#allocation7 + $0x1a8] sm:$0xff]
        %v772 = vld [vmem:[#allocation7 + $0x1b0] sm:$0xff]
        %v773 = vld [vmem:[#allocation7 + $0x1b8] sm:$0xff]
        %v774 = vld [vmem:[#allocation7 + $0x1c0] sm:$0xff]
        %v775 = vld [vmem:[#allocation7 + $0x1c8] sm:$0xff]
        %v776 = vld [vmem:[#allocation7 + $0x1d0] sm:$0xff]
        %v777 = vld [vmem:[#allocation7 + $0x1d8] sm:$0xff]
        %v778 = vld [vmem:[#allocation7 + $0x1e0] sm:$0xff]
        %v779 = vld [vmem:[#allocation7 + $0x1e8] sm:$0xff]
        %v780 = vld [vmem:[#allocation7 + $0x1f0] sm:$0xff]
        %v781 = vld [vmem:[#allocation7 + $0x1f8] sm:$0xff]
        %v782 = vld [vmem:[#allocation7 + $0x200] sm:$0xff]
        %v783 = vld [vmem:[#allocation7 + $0x208] sm:$0xff]
        %v784 = vld [vmem:[#allocation7 + $0x210] sm:$0xff]
        %v785 = vld [vmem:[#allocation7 + $0x218] sm:$0xff]
        %v786 = vld [vmem:[#allocation7 + $0x220] sm:$0xff]
        %v787 = vld [vmem:[#allocation7 + $0x228] sm:$0xff]
        %v788 = vld [vmem:[#allocation7 + $0x230] sm:$0xff]
        %v789 = vld [vmem:[#allocation7 + $0x238] sm:$0xff]
        %v790 = vld [vmem:[#allocation7 + $0x240] sm:$0xff]
        %v791 = vld [vmem:[#allocation7 + $0x248] sm:$0xff]
        %v792 = vld [vmem:[#allocation7 + $0x250] sm:$0xff]
        %v793 = vld [vmem:[#allocation7 + $0x258] sm:$0xff]
        %v794 = vld [vmem:[#allocation7 + $0x260] sm:$0xff]
        %v795 = vld [vmem:[#allocation7 + $0x268] sm:$0xff]
        %v796 = vld [vmem:[#allocation7 + $0x270] sm:$0xff]
        %v797 = vld [vmem:[#allocation7 + $0x278] sm:$0xff]
        %v798 = vld [vmem:[#allocation7 + $0x280] sm:$0xff]
        %v799 = vld [vmem:[#allocation7 + $0x288] sm:$0xff]
        %v800 = vld [vmem:[#allocation7 + $0x290] sm:$0xff]
        %v801 = vld [vmem:[#allocation7 + $0x298] sm:$0xff]
        %v802 = vld [vmem:[#allocation7 + $0x2a0] sm:$0xff]
        %v803 = vld [vmem:[#allocation7 + $0x2a8] sm:$0xff]
        %v804 = vld [vmem:[#allocation7 + $0x2b0] sm:$0xff]
        %v805 = vld [vmem:[#allocation7 + $0x2b8] sm:$0xff]
        %v806 = vld [vmem:[#allocation7 + $0x2c0] sm:$0xff]
        %v807 = vld [vmem:[#allocation7 + $0x2c8] sm:$0xff]
        %v808 = vld [vmem:[#allocation7 + $0x2d0] sm:$0xff]
        %v809 = vld [vmem:[#allocation7 + $0x2d8] sm:$0xff]
        %v810 = vld [vmem:[#allocation7 + $0x2e0] sm:$0xff]
        %v811 = vld [vmem:[#allocation7 + $0x2e8] sm:$0xff]
        %v812 = vld [vmem:[#allocation7 + $0x2f0] sm:$0xff]
        %v813 = vld [vmem:[#allocation7 + $0x2f8] sm:$0xff]
        %v814 = vld [vmem:[#allocation7 + $0x300] sm:$0xff]
        %v815 = vld [vmem:[#allocation7 + $0x308] sm:$0xff]
        %v816 = vld [vmem:[#allocation7 + $0x310] sm:$0xff]
        %v817 = vld [vmem:[#allocation7 + $0x318] sm:$0xff]
        %v818 = vld [vmem:[#allocation7 + $0x320] sm:$0xff]
        %v819 = vld [vmem:[#allocation7 + $0x328] sm:$0xff]
        %v820 = vld [vmem:[#allocation7 + $0x330] sm:$0xff]
        %v821 = vld [vmem:[#allocation7 + $0x338] sm:$0xff]
        %v822 = vld [vmem:[#allocation7 + $0x340] sm:$0xff]
        %v823 = vld [vmem:[#allocation7 + $0x348] sm:$0xff]
        %v824 = vld [vmem:[#allocation7 + $0x350] sm:$0xff]
        %v825 = vld [vmem:[#allocation7 + $0x358] sm:$0xff]
        %v826 = vld [vmem:[#allocation7 + $0x360] sm:$0xff]
        %v827 = vld [vmem:[#allocation7 + $0x368] sm:$0xff]
        %v828 = vld [vmem:[#allocation7 + $0x370] sm:$0xff]
        %v829 = vld [vmem:[#allocation7 + $0x378] sm:$0xff]
        %v830 = vld [vmem:[#allocation7 + $0x380] sm:$0xff]
        %v831 = vld [vmem:[#allocation7 + $0x388] sm:$0xff]
        %v832 = vld [vmem:[#allocation7 + $0x390] sm:$0xff]
        %v833 = vld [vmem:[#allocation7 + $0x398] sm:$0xff]
        %v834 = vld [vmem:[#allocation7 + $0x3a0] sm:$0xff]
        %v835 = vld [vmem:[#allocation7 + $0x3a8] sm:$0xff]
        %v836 = vld [vmem:[#allocation7 + $0x3b0] sm:$0xff]
        %v837 = vld [vmem:[#allocation7 + $0x3b8] sm:$0xff]
        %v838 = vld [vmem:[#allocation7 + $0x3c0] sm:$0xff]
        %v839 = vld [vmem:[#allocation7 + $0x3c8] sm:$0xff]
        %v840 = vld [vmem:[#allocation7 + $0x3d0] sm:$0xff]
        %v841 = vld [vmem:[#allocation7 + $0x3d8] sm:$0xff]
        %v842 = vld [vmem:[#allocation7 + $0x3e0] sm:$0xff]
        %v843 = vld [vmem:[#allocation7 + $0x3e8] sm:$0xff]
        %v844 = vld [vmem:[#allocation7 + $0x3f0] sm:$0xff]
        %v845 = vld [vmem:[#allocation7 + $0x3f8] sm:$0xff]
        %v846 = vld [vmem:[#allocation7 + $0x400] sm:$0xff]
        %v847 = vld [vmem:[#allocation7 + $0x408] sm:$0xff]
        %v848 = vld [vmem:[#allocation7 + $0x410] sm:$0xff]
        %v849 = vld [vmem:[#allocation7 + $0x418] sm:$0xff]
        %v850 = vld [vmem:[#allocation7 + $0x420] sm:$0xff]
        %v851 = vld [vmem:[#allocation7 + $0x428] sm:$0xff]
        %v852 = vld [vmem:[#allocation7 + $0x430] sm:$0xff]
        %v853 = vld [vmem:[#allocation7 + $0x438] sm:$0xff]
        %v854 = vld [vmem:[#allocation7 + $0x440] sm:$0xff]
        %v855 = vld [vmem:[#allocation7 + $0x448] sm:$0xff]
        %v856 = vld [vmem:[#allocation7 + $0x450] sm:$0xff]
        %v857 = vld [vmem:[#allocation7 + $0x458] sm:$0xff]
        %v858 = vld [vmem:[#allocation7 + $0x460] sm:$0xff]
        %v859 = vld [vmem:[#allocation7 + $0x468] sm:$0xff]
        %v860 = vld [vmem:[#allocation7 + $0x470] sm:$0xff]
        %v861 = vld [vmem:[#allocation7 + $0x478] sm:$0xff]
        %v862 = vld [vmem:[#allocation7 + $0x480] sm:$0xff]
        %v863 = vld [vmem:[#allocation7 + $0x488] sm:$0xff]
        %v864 = vld [vmem:[#allocation7 + $0x490] sm:$0xff]
        %v865 = vld [vmem:[#allocation7 + $0x498] sm:$0xff]
        %v866 = vld [vmem:[#allocation7 + $0x4a0] sm:$0xff]
        %v867 = vld [vmem:[#allocation7 + $0x4a8] sm:$0xff]
        %v868 = vld [vmem:[#allocation7 + $0x4b0] sm:$0xff]
        %v869 = vld [vmem:[#allocation7 + $0x4b8] sm:$0xff]
        %v870 = vld [vmem:[#allocation7 + $0x4c0] sm:$0xff]
        %v871 = vld [vmem:[#allocation7 + $0x4c8] sm:$0xff]
        %v872 = vld [vmem:[#allocation7 + $0x4d0] sm:$0xff]
        %v873 = vld [vmem:[#allocation7 + $0x4d8] sm:$0xff]
        %v874 = vld [vmem:[#allocation7 + $0x4e0] sm:$0xff]
        %v875 = vld [vmem:[#allocation7 + $0x4e8] sm:$0xff]
        %v876 = vld [vmem:[#allocation7 + $0x4f0] sm:$0xff]
        %v877 = vld [vmem:[#allocation7 + $0x4f8] sm:$0xff]
        %v878 = vld [vmem:[#allocation7 + $0x500] sm:$0xff]
        %v879 = vld [vmem:[#allocation7 + $0x508] sm:$0xff]
        %v880 = vld [vmem:[#allocation7 + $0x510] sm:$0xff]
        %v881 = vld [vmem:[#allocation7 + $0x518] sm:$0xff]
        %v882 = vld [vmem:[#allocation7 + $0x520] sm:$0xff]
        %v883 = vld [vmem:[#allocation7 + $0x528] sm:$0xff]
        %v884 = vld [vmem:[#allocation7 + $0x530] sm:$0xff]
        %v885 = vld [vmem:[#allocation7 + $0x538] sm:$0xff]
        %v886 = vld [vmem:[#allocation7 + $0x540] sm:$0xff]
        %v887 = vld [vmem:[#allocation7 + $0x548] sm:$0xff]
        %v888 = vld [vmem:[#allocation7 + $0x550] sm:$0xff]
        %v889 = vld [vmem:[#allocation7 + $0x558] sm:$0xff]
        %v890 = vld [vmem:[#allocation7 + $0x560] sm:$0xff]
        %v891 = vld [vmem:[#allocation7 + $0x568] sm:$0xff]
        %v892 = vld [vmem:[#allocation7 + $0x570] sm:$0xff]
        %v893 = vld [vmem:[#allocation7 + $0x578] sm:$0xff]
        %v894 = vld [vmem:[#allocation7 + $0x580] sm:$0xff]
        %v895 = vld [vmem:[#allocation7 + $0x588] sm:$0xff]
        %v896 = vld [vmem:[#allocation7 + $0x590] sm:$0xff]
        %v897 = vld [vmem:[#allocation7 + $0x598] sm:$0xff]
        %v898 = vld [vmem:[#allocation7 + $0x5a0] sm:$0xff]
        %v899 = vld [vmem:[#allocation7 + $0x5a8] sm:$0xff]
        %v900 = vld [vmem:[#allocation7 + $0x5b0] sm:$0xff]
        %v901 = vld [vmem:[#allocation7 + $0x5b8] sm:$0xff]
        %v902 = vld [vmem:[#allocation7 + $0x5c0] sm:$0xff]
        %v903 = vld [vmem:[#allocation7 + $0x5c8] sm:$0xff]
        %v904 = vld [vmem:[#allocation7 + $0x5d0] sm:$0xff]
        %v905 = vld [vmem:[#allocation7 + $0x5d8] sm:$0xff]
        %v906 = vld [vmem:[#allocation7 + $0x5e0] sm:$0xff]
        %v907 = vld [vmem:[#allocation7 + $0x5e8] sm:$0xff]
        %v908 = vld [vmem:[#allocation7 + $0x5f0] sm:$0xff]
        %v909 = vld [vmem:[#allocation7 + $0x5f8] sm:$0xff]
        %v910 = vld [vmem:[#allocation7 + $0x600] sm:$0xff]
        %v911 = vld [vmem:[#allocation7 + $0x608] sm:$0xff]
        %v912 = vld [vmem:[#allocation7 + $0x610] sm:$0xff]
        %v913 = vld [vmem:[#allocation7 + $0x618] sm:$0xff]
        %vm914 = vcmask 130048
        %v916 = vsel %vm914, %v717, 0
        %918 = vmatprep.subr.mxu0 %v749
        %919 = vmatpush1.msra.mxu0 %v748
        %920 = vmatprep.subr.mxu0 %v747
        %921 = vmatpush1.msra.mxu0 %v746
        %922 = vmatprep.subr.mxu0 %v745
        %923 = vmatpush1.msra.mxu0 %v744
        %924 = vmatprep.subr.mxu0 %v743
        %925 = vmatpush1.msra.mxu0 %v742
        %926 = vmatprep.subr.mxu0 %v741
        %927 = vmatpush1.msra.mxu0 %v740
        %928 = vmatprep.subr.mxu0 %v739
        %929 = vmatpush1.msra.mxu0 %v738
        %930 = vmatprep.subr.mxu0 %v737
        %931 = vmatpush1.msra.mxu0 %v736
        %932 = vmatprep.subr.mxu0 %v735
        %933 = vmatpush1.msra.mxu0 %v734
        %934 = vmatprep.subr.mxu0 %v733
        %935 = vmatpush1.msra.mxu0 %v732
        %936 = vmatprep.subr.mxu0 %v731
        %937 = vmatpush1.msra.mxu0 %v730
        %938 = vmatprep.subr.mxu0 %v729
        %939 = vmatpush1.msra.mxu0 %v728
        %940 = vmatprep.subr.mxu0 %v727
        %941 = vmatpush1.msra.mxu0 %v726
        %942 = vmatprep.subr.mxu0 %v725
        %943 = vmatpush1.msra.mxu0 %v724
        %944 = vmatprep.subr.mxu0 %v723
        %945 = vmatpush1.msra.mxu0 %v722
        %946 = vmatprep.subr.mxu0 %v721
        %947 = vmatpush1.msra.mxu0 %v720
        %948 = vmatprep.subr.mxu0 %v719
        %949 = vmatpush1.msra.mxu0 %v718
        %950 = vmatprep.subr.mxu0 %v781
        %951 = vmatpush2.msra.mxu0 %v780
        %952 = vmatprep.subr.mxu0 %v779
        %953 = vmatpush2.msra.mxu0 %v778
        %954 = vmatprep.subr.mxu0 %v777
        %955 = vmatpush2.msra.mxu0 %v776
        %956 = vmatprep.subr.mxu0 %v775
        %957 = vmatpush2.msra.mxu0 %v774
        %958 = vmatprep.subr.mxu0 %v773
        %959 = vmatpush2.msra.mxu0 %v772
        %960 = vmatprep.subr.mxu0 %v771
        %961 = vmatpush2.msra.mxu0 %v770
        %962 = vmatprep.subr.mxu0 %v769
        %963 = vmatpush2.msra.mxu0 %v768
        %964 = vmatprep.subr.mxu0 %v767
        %965 = vmatpush2.msra.mxu0 %v766
        %966 = vmatprep.subr.mxu0 %v765
        %967 = vmatpush2.msra.mxu0 %v764
        %968 = vmatprep.subr.mxu0 %v763
        %969 = vmatpush2.msra.mxu0 %v762
        %970 = vmatprep.subr.mxu0 %v761
        %971 = vmatpush2.msra.mxu0 %v760
        %972 = vmatprep.subr.mxu0 %v759
        %973 = vmatpush2.msra.mxu0 %v758
        %974 = vmatprep.subr.mxu0 %v757
        %975 = vmatpush2.msra.mxu0 %v756
        %976 = vmatprep.subr.mxu0 %v755
        %977 = vmatpush2.msra.mxu0 %v754
        %978 = vmatprep.subr.mxu0 %v753
        %979 = vmatpush2.msra.mxu0 %v752
        %980 = vmatprep.subr.mxu0 %v751
        %981 = vmatpush2.msra.mxu0 %v750
        %982 = vmatprep.mubr.f32.mxu0 %v712
        %983 = vmatmul.mubr.f32.gmra.mxu0 %v711
        %v984 = vpop.f32.mrf.mxu0
        %v985 = vadd.f32 0.0, %v984
        %v986 = vpop.f32.mrf.mxu0
        %v987 = vadd.f32 0.0, %v986
        %988 = vdwg.mxu0
        %989 = vmatprep.subr.mxu0 %v813
        %990 = vmatpush1.msra.mxu0 %v812
        %991 = vmatprep.subr.mxu0 %v811
        %992 = vmatpush1.msra.mxu0 %v810
        %993 = vmatprep.subr.mxu0 %v809
        %994 = vmatpush1.msra.mxu0 %v808
        %995 = vmatprep.subr.mxu0 %v807
        %996 = vmatpush1.msra.mxu0 %v806
        %997 = vmatprep.subr.mxu0 %v805
        %998 = vmatpush1.msra.mxu0 %v804
        %999 = vmatprep.subr.mxu0 %v803
        %1000 = vmatpush1.msra.mxu0 %v802
        %1001 = vmatprep.subr.mxu0 %v801
        %1002 = vmatpush1.msra.mxu0 %v800
        %1003 = vmatprep.subr.mxu0 %v799
        %1004 = vmatpush1.msra.mxu0 %v798
        %1005 = vmatprep.subr.mxu0 %v797
        %1006 = vmatpush1.msra.mxu0 %v796
        %1007 = vmatprep.subr.mxu0 %v795
        %1008 = vmatpush1.msra.mxu0 %v794
        %1009 = vmatprep.subr.mxu0 %v793
        %1010 = vmatpush1.msra.mxu0 %v792
        %1011 = vmatprep.subr.mxu0 %v791
        %1012 = vmatpush1.msra.mxu0 %v790
        %1013 = vmatprep.subr.mxu0 %v789
        %1014 = vmatpush1.msra.mxu0 %v788
        %1015 = vmatprep.subr.mxu0 %v787
        %1016 = vmatpush1.msra.mxu0 %v786
        %1017 = vmatprep.subr.mxu0 %v785
        %1018 = vmatpush1.msra.mxu0 %v784
        %1019 = vmatprep.subr.mxu0 %v783
        %1020 = vmatpush1.msra.mxu0 %v782
        %1021 = vmatprep.subr.mxu0 %v845
        %1022 = vmatpush2.msra.mxu0 %v844
        %1023 = vmatprep.subr.mxu0 %v843
        %1024 = vmatpush2.msra.mxu0 %v842
        %1025 = vmatprep.subr.mxu0 %v841
        %1026 = vmatpush2.msra.mxu0 %v840
        %1027 = vmatprep.subr.mxu0 %v839
        %1028 = vmatpush2.msra.mxu0 %v838
        %1029 = vmatprep.subr.mxu0 %v837
        %1030 = vmatpush2.msra.mxu0 %v836
        %1031 = vmatprep.subr.mxu0 %v835
        %1032 = vmatpush2.msra.mxu0 %v834
        %1033 = vmatprep.subr.mxu0 %v833
        %1034 = vmatpush2.msra.mxu0 %v832
        %1035 = vmatprep.subr.mxu0 %v831
        %1036 = vmatpush2.msra.mxu0 %v830
        %1037 = vmatprep.subr.mxu0 %v829
        %1038 = vmatpush2.msra.mxu0 %v828
        %1039 = vmatprep.subr.mxu0 %v827
        %1040 = vmatpush2.msra.mxu0 %v826
        %1041 = vmatprep.subr.mxu0 %v825
        %1042 = vmatpush2.msra.mxu0 %v824
        %1043 = vmatprep.subr.mxu0 %v823
        %1044 = vmatpush2.msra.mxu0 %v822
        %1045 = vmatprep.subr.mxu0 %v821
        %1046 = vmatpush2.msra.mxu0 %v820
        %1047 = vmatprep.subr.mxu0 %v819
        %1048 = vmatpush2.msra.mxu0 %v818
        %1049 = vmatprep.subr.mxu0 %v817
        %1050 = vmatpush2.msra.mxu0 %v816
        %1051 = vmatprep.subr.mxu0 %v815
        %1052 = vmatpush2.msra.mxu0 %v814
        %1053 = vmatprep.mubr.f32.mxu0 %v714
        %1054 = vmatmul.mubr.f32.gmra.mxu0 %v713
        %v1055 = vpop.f32.mrf.mxu0
        %v1056 = vadd.f32 %v985, %v1055
        %v1057 = vpop.f32.mrf.mxu0
        %v1058 = vadd.f32 %v987, %v1057
        %1059 = vdwg.mxu0
        %1060 = vmatprep.subr.mxu0 %v877
        %1061 = vmatpush1.msra.mxu0 %v876
        %1062 = vmatprep.subr.mxu0 %v875
        %1063 = vmatpush1.msra.mxu0 %v874
        %1064 = vmatprep.subr.mxu0 %v873
        %1065 = vmatpush1.msra.mxu0 %v872
        %1066 = vmatprep.subr.mxu0 %v871
        %1067 = vmatpush1.msra.mxu0 %v870
        %1068 = vmatprep.subr.mxu0 %v869
        %1069 = vmatpush1.msra.mxu0 %v868
        %1070 = vmatprep.subr.mxu0 %v867
        %1071 = vmatpush1.msra.mxu0 %v866
        %1072 = vmatprep.subr.mxu0 %v865
        %1073 = vmatpush1.msra.mxu0 %v864
        %1074 = vmatprep.subr.mxu0 %v863
        %1075 = vmatpush1.msra.mxu0 %v862
        %1076 = vmatprep.subr.mxu0 %v861
        %1077 = vmatpush1.msra.mxu0 %v860
        %1078 = vmatprep.subr.mxu0 %v859
        %1079 = vmatpush1.msra.mxu0 %v858
        %1080 = vmatprep.subr.mxu0 %v857
        %1081 = vmatpush1.msra.mxu0 %v856
        %1082 = vmatprep.subr.mxu0 %v855
        %1083 = vmatpush1.msra.mxu0 %v854
        %1084 = vmatprep.subr.mxu0 %v853
        %1085 = vmatpush1.msra.mxu0 %v852
        %1086 = vmatprep.subr.mxu0 %v851
        %1087 = vmatpush1.msra.mxu0 %v850
        %1088 = vmatprep.subr.mxu0 %v849
        %1089 = vmatpush1.msra.mxu0 %v848
        %1090 = vmatprep.subr.mxu0 %v847
        %1091 = vmatpush1.msra.mxu0 %v846
        %1092 = vmatprep.subr.mxu0 %v909
        %1093 = vmatpush2.msra.mxu0 %v908
        %1094 = vmatprep.subr.mxu0 %v907
        %1095 = vmatpush2.msra.mxu0 %v906
        %1096 = vmatprep.subr.mxu0 %v905
        %1097 = vmatpush2.msra.mxu0 %v904
        %1098 = vmatprep.subr.mxu0 %v903
        %1099 = vmatpush2.msra.mxu0 %v902
        %1100 = vmatprep.subr.mxu0 %v901
        %1101 = vmatpush2.msra.mxu0 %v900
        %1102 = vmatprep.subr.mxu0 %v899
        %1103 = vmatpush2.msra.mxu0 %v898
        %1104 = vmatprep.subr.mxu0 %v897
        %1105 = vmatpush2.msra.mxu0 %v896
        %1106 = vmatprep.subr.mxu0 %v895
        %1107 = vmatpush2.msra.mxu0 %v894
        %1108 = vmatprep.subr.mxu0 %v893
        %1109 = vmatpush2.msra.mxu0 %v892
        %1110 = vmatprep.subr.mxu0 %v891
        %1111 = vmatpush2.msra.mxu0 %v890
        %1112 = vmatprep.subr.mxu0 %v889
        %1113 = vmatpush2.msra.mxu0 %v888
        %1114 = vmatprep.subr.mxu0 %v887
        %1115 = vmatpush2.msra.mxu0 %v886
        %1116 = vmatprep.subr.mxu0 %v885
        %1117 = vmatpush2.msra.mxu0 %v884
        %1118 = vmatprep.subr.mxu0 %v883
        %1119 = vmatpush2.msra.mxu0 %v882
        %1120 = vmatprep.subr.mxu0 %v881
        %1121 = vmatpush2.msra.mxu0 %v880
        %1122 = vmatprep.subr.mxu0 %v879
        %1123 = vmatpush2.msra.mxu0 %v878
        %1124 = vmatprep.mubr.f32.mxu0 %v716
        %1125 = vmatmul.mubr.f32.gmra.mxu0 %v715
        %v1126 = vpop.f32.mrf.mxu0
        %v1127 = vadd.f32 %v1056, %v1126
        %v1128 = vpop.f32.mrf.mxu0
        %v1129 = vadd.f32 %v1058, %v1128
        %1130 = vdwg.mxu0
        %1131 = vmatprep.subr.mxu0 0.0
        %1132 = vmatpush1.msra.mxu0 0.0
        %1133 = vmatprep.subr.mxu0 0.0
        %1134 = vmatpush1.msra.mxu0 0.0
        %1135 = vmatprep.subr.mxu0 0.0
        %1136 = vmatpush1.msra.mxu0 0.0
        %1137 = vmatprep.subr.mxu0 0.0
        %1138 = vmatpush1.msra.mxu0 0.0
        %1139 = vmatprep.subr.mxu0 0.0
        %1140 = vmatpush1.msra.mxu0 0.0
        %1141 = vmatprep.subr.mxu0 0.0
        %1142 = vmatpush1.msra.mxu0 0.0
        %1143 = vmatprep.subr.mxu0 0.0
        %1144 = vmatpush1.msra.mxu0 0.0
        %1145 = vmatprep.subr.mxu0 0.0
        %1146 = vmatpush1.msra.mxu0 0.0
        %1147 = vmatprep.subr.mxu0 0.0
        %1148 = vmatpush1.msra.mxu0 0.0
        %1149 = vmatprep.subr.mxu0 0.0
        %1150 = vmatpush1.msra.mxu0 0.0
        %1151 = vmatprep.subr.mxu0 0.0
        %1152 = vmatpush1.msra.mxu0 0.0
        %1153 = vmatprep.subr.mxu0 0.0
        %1154 = vmatpush1.msra.mxu0 0.0
        %1155 = vmatprep.subr.mxu0 0.0
        %1156 = vmatpush1.msra.mxu0 0.0
        %1157 = vmatprep.subr.mxu0 0.0
        %1158 = vmatpush1.msra.mxu0 0.0
        %1159 = vmatprep.subr.mxu0 %v913
        %1160 = vmatpush1.msra.mxu0 %v912
        %1161 = vmatprep.subr.mxu0 %v911
        %1162 = vmatpush1.msra.mxu0 %v910
        %1163 = vmatprep.subr.mxu0 0.0
        %1164 = vmatpush2.msra.mxu0 0.0
        %1165 = vmatprep.subr.mxu0 0.0
        %1166 = vmatpush2.msra.mxu0 0.0
        %1167 = vmatprep.subr.mxu0 0.0
        %1168 = vmatpush2.msra.mxu0 0.0
        %1169 = vmatprep.subr.mxu0 0.0
        %1170 = vmatpush2.msra.mxu0 0.0
        %1171 = vmatprep.subr.mxu0 0.0
        %1172 = vmatpush2.msra.mxu0 0.0
        %1173 = vmatprep.subr.mxu0 0.0
        %1174 = vmatpush2.msra.mxu0 0.0
        %1175 = vmatprep.subr.mxu0 0.0
        %1176 = vmatpush2.msra.mxu0 0.0
        %1177 = vmatprep.subr.mxu0 0.0
        %1178 = vmatpush2.msra.mxu0 0.0
        %1179 = vmatprep.subr.mxu0 0.0
        %1180 = vmatpush2.msra.mxu0 0.0
        %1181 = vmatprep.subr.mxu0 0.0
        %1182 = vmatpush2.msra.mxu0 0.0
        %1183 = vmatprep.subr.mxu0 0.0
        %1184 = vmatpush2.msra.mxu0 0.0
        %1185 = vmatprep.subr.mxu0 0.0
        %1186 = vmatpush2.msra.mxu0 0.0
        %1187 = vmatprep.subr.mxu0 0.0
        %1188 = vmatpush2.msra.mxu0 0.0
        %1189 = vmatprep.subr.mxu0 0.0
        %1190 = vmatpush2.msra.mxu0 0.0
        %1191 = vmatprep.subr.mxu0 0.0
        %1192 = vmatpush2.msra.mxu0 0.0
        %1193 = vmatprep.subr.mxu0 0.0
        %1194 = vmatpush2.msra.mxu0 0.0
        %1195 = vmatprep.mubr.f32.mxu0 0.0
        %1196 = vmatmul.mubr.f32.gmra.mxu0 %v916
        %v1197 = vpop.f32.mrf.mxu0
        %v1198 = vadd.f32 %v1127, %v1197
        %v1199 = vpop.f32.mrf.mxu0
        %v1200 = vadd.f32 %v1129, %v1199
        %1201 = vdwg.mxu0
        %s1202 = scalar_lea.vmem [#allocation7], 1568
        %v1203 = vld [vmem:[%s1202] sm:$0xff]
        %v1204 = vld [vmem:[%s1202 + $0x8] sm:$0xff]
        %v1205 = vld [vmem:[%s1202 + $0x10] sm:$0xff]
        %v1206 = vld [vmem:[%s1202 + $0x18] sm:$0xff]
        %v1207 = vld [vmem:[%s1202 + $0x20] sm:$0xff]
        %v1208 = vld [vmem:[%s1202 + $0x28] sm:$0xff]
        %v1209 = vld [vmem:[%s1202 + $0x30] sm:$0xff]
        %v1210 = vld [vmem:[%s1202 + $0x38] sm:$0xff]
        %v1211 = vld [vmem:[%s1202 + $0x40] sm:$0xff]
        %v1212 = vld [vmem:[%s1202 + $0x48] sm:$0xff]
        %v1213 = vld [vmem:[%s1202 + $0x50] sm:$0xff]
        %v1214 = vld [vmem:[%s1202 + $0x58] sm:$0xff]
        %v1215 = vld [vmem:[%s1202 + $0x60] sm:$0xff]
        %v1216 = vld [vmem:[%s1202 + $0x68] sm:$0xff]
        %v1217 = vld [vmem:[%s1202 + $0x70] sm:$0xff]
        %v1218 = vld [vmem:[%s1202 + $0x78] sm:$0xff]
        %v1219 = vld [vmem:[%s1202 + $0x80] sm:$0xff]
        %v1220 = vld [vmem:[%s1202 + $0x88] sm:$0xff]
        %v1221 = vld [vmem:[%s1202 + $0x90] sm:$0xff]
        %v1222 = vld [vmem:[%s1202 + $0x98] sm:$0xff]
        %v1223 = vld [vmem:[%s1202 + $0xa0] sm:$0xff]
        %v1224 = vld [vmem:[%s1202 + $0xa8] sm:$0xff]
        %v1225 = vld [vmem:[%s1202 + $0xb0] sm:$0xff]
        %v1226 = vld [vmem:[%s1202 + $0xb8] sm:$0xff]
        %v1227 = vld [vmem:[%s1202 + $0xc0] sm:$0xff]
        %v1228 = vld [vmem:[%s1202 + $0xc8] sm:$0xff]
        %v1229 = vld [vmem:[%s1202 + $0xd0] sm:$0xff]
        %v1230 = vld [vmem:[%s1202 + $0xd8] sm:$0xff]
        %v1231 = vld [vmem:[%s1202 + $0xe0] sm:$0xff]
        %v1232 = vld [vmem:[%s1202 + $0xe8] sm:$0xff]
        %v1233 = vld [vmem:[%s1202 + $0xf0] sm:$0xff]
        %v1234 = vld [vmem:[%s1202 + $0xf8] sm:$0xff]
        %v1235 = vld [vmem:[%s1202 + $0x100] sm:$0xff]
        %v1236 = vld [vmem:[%s1202 + $0x108] sm:$0xff]
        %v1237 = vld [vmem:[%s1202 + $0x110] sm:$0xff]
        %v1238 = vld [vmem:[%s1202 + $0x118] sm:$0xff]
        %v1239 = vld [vmem:[%s1202 + $0x120] sm:$0xff]
        %v1240 = vld [vmem:[%s1202 + $0x128] sm:$0xff]
        %v1241 = vld [vmem:[%s1202 + $0x130] sm:$0xff]
        %v1242 = vld [vmem:[%s1202 + $0x138] sm:$0xff]
        %v1243 = vld [vmem:[%s1202 + $0x140] sm:$0xff]
        %v1244 = vld [vmem:[%s1202 + $0x148] sm:$0xff]
        %v1245 = vld [vmem:[%s1202 + $0x150] sm:$0xff]
        %v1246 = vld [vmem:[%s1202 + $0x158] sm:$0xff]
        %v1247 = vld [vmem:[%s1202 + $0x160] sm:$0xff]
        %v1248 = vld [vmem:[%s1202 + $0x168] sm:$0xff]
        %v1249 = vld [vmem:[%s1202 + $0x170] sm:$0xff]
        %v1250 = vld [vmem:[%s1202 + $0x178] sm:$0xff]
        %v1251 = vld [vmem:[%s1202 + $0x180] sm:$0xff]
        %v1252 = vld [vmem:[%s1202 + $0x188] sm:$0xff]
        %v1253 = vld [vmem:[%s1202 + $0x190] sm:$0xff]
        %v1254 = vld [vmem:[%s1202 + $0x198] sm:$0xff]
        %v1255 = vld [vmem:[%s1202 + $0x1a0] sm:$0xff]
        %v1256 = vld [vmem:[%s1202 + $0x1a8] sm:$0xff]
        %v1257 = vld [vmem:[%s1202 + $0x1b0] sm:$0xff]
        %v1258 = vld [vmem:[%s1202 + $0x1b8] sm:$0xff]
        %v1259 = vld [vmem:[%s1202 + $0x1c0] sm:$0xff]
        %v1260 = vld [vmem:[%s1202 + $0x1c8] sm:$0xff]
        %v1261 = vld [vmem:[%s1202 + $0x1d0] sm:$0xff]
        %v1262 = vld [vmem:[%s1202 + $0x1d8] sm:$0xff]
        %v1263 = vld [vmem:[%s1202 + $0x1e0] sm:$0xff]
        %v1264 = vld [vmem:[%s1202 + $0x1e8] sm:$0xff]
        %v1265 = vld [vmem:[%s1202 + $0x1f0] sm:$0xff]
        %v1266 = vld [vmem:[%s1202 + $0x1f8] sm:$0xff]
        %v1267 = vld [vmem:[%s1202 + $0x200] sm:$0xff]
        %v1268 = vld [vmem:[%s1202 + $0x208] sm:$0xff]
        %v1269 = vld [vmem:[%s1202 + $0x210] sm:$0xff]
        %v1270 = vld [vmem:[%s1202 + $0x218] sm:$0xff]
        %v1271 = vld [vmem:[%s1202 + $0x220] sm:$0xff]
        %v1272 = vld [vmem:[%s1202 + $0x228] sm:$0xff]
        %v1273 = vld [vmem:[%s1202 + $0x230] sm:$0xff]
        %v1274 = vld [vmem:[%s1202 + $0x238] sm:$0xff]
        %v1275 = vld [vmem:[%s1202 + $0x240] sm:$0xff]
        %v1276 = vld [vmem:[%s1202 + $0x248] sm:$0xff]
        %v1277 = vld [vmem:[%s1202 + $0x250] sm:$0xff]
        %v1278 = vld [vmem:[%s1202 + $0x258] sm:$0xff]
        %v1279 = vld [vmem:[%s1202 + $0x260] sm:$0xff]
        %v1280 = vld [vmem:[%s1202 + $0x268] sm:$0xff]
        %v1281 = vld [vmem:[%s1202 + $0x270] sm:$0xff]
        %v1282 = vld [vmem:[%s1202 + $0x278] sm:$0xff]
        %v1283 = vld [vmem:[%s1202 + $0x280] sm:$0xff]
        %v1284 = vld [vmem:[%s1202 + $0x288] sm:$0xff]
        %v1285 = vld [vmem:[%s1202 + $0x290] sm:$0xff]
        %v1286 = vld [vmem:[%s1202 + $0x298] sm:$0xff]
        %v1287 = vld [vmem:[%s1202 + $0x2a0] sm:$0xff]
        %v1288 = vld [vmem:[%s1202 + $0x2a8] sm:$0xff]
        %v1289 = vld [vmem:[%s1202 + $0x2b0] sm:$0xff]
        %v1290 = vld [vmem:[%s1202 + $0x2b8] sm:$0xff]
        %v1291 = vld [vmem:[%s1202 + $0x2c0] sm:$0xff]
        %v1292 = vld [vmem:[%s1202 + $0x2c8] sm:$0xff]
        %v1293 = vld [vmem:[%s1202 + $0x2d0] sm:$0xff]
        %v1294 = vld [vmem:[%s1202 + $0x2d8] sm:$0xff]
        %v1295 = vld [vmem:[%s1202 + $0x2e0] sm:$0xff]
        %v1296 = vld [vmem:[%s1202 + $0x2e8] sm:$0xff]
        %v1297 = vld [vmem:[%s1202 + $0x2f0] sm:$0xff]
        %v1298 = vld [vmem:[%s1202 + $0x2f8] sm:$0xff]
        %v1299 = vld [vmem:[%s1202 + $0x300] sm:$0xff]
        %v1300 = vld [vmem:[%s1202 + $0x308] sm:$0xff]
        %v1301 = vld [vmem:[%s1202 + $0x310] sm:$0xff]
        %v1302 = vld [vmem:[%s1202 + $0x318] sm:$0xff]
        %v1303 = vld [vmem:[%s1202 + $0x320] sm:$0xff]
        %v1304 = vld [vmem:[%s1202 + $0x328] sm:$0xff]
        %v1305 = vld [vmem:[%s1202 + $0x330] sm:$0xff]
        %v1306 = vld [vmem:[%s1202 + $0x338] sm:$0xff]
        %v1307 = vld [vmem:[%s1202 + $0x340] sm:$0xff]
        %v1308 = vld [vmem:[%s1202 + $0x348] sm:$0xff]
        %v1309 = vld [vmem:[%s1202 + $0x350] sm:$0xff]
        %v1310 = vld [vmem:[%s1202 + $0x358] sm:$0xff]
        %v1311 = vld [vmem:[%s1202 + $0x360] sm:$0xff]
        %v1312 = vld [vmem:[%s1202 + $0x368] sm:$0xff]
        %v1313 = vld [vmem:[%s1202 + $0x370] sm:$0xff]
        %v1314 = vld [vmem:[%s1202 + $0x378] sm:$0xff]
        %v1315 = vld [vmem:[%s1202 + $0x380] sm:$0xff]
        %v1316 = vld [vmem:[%s1202 + $0x388] sm:$0xff]
        %v1317 = vld [vmem:[%s1202 + $0x390] sm:$0xff]
        %v1318 = vld [vmem:[%s1202 + $0x398] sm:$0xff]
        %v1319 = vld [vmem:[%s1202 + $0x3a0] sm:$0xff]
        %v1320 = vld [vmem:[%s1202 + $0x3a8] sm:$0xff]
        %v1321 = vld [vmem:[%s1202 + $0x3b0] sm:$0xff]
        %v1322 = vld [vmem:[%s1202 + $0x3b8] sm:$0xff]
        %v1323 = vld [vmem:[%s1202 + $0x3c0] sm:$0xff]
        %v1324 = vld [vmem:[%s1202 + $0x3c8] sm:$0xff]
        %v1325 = vld [vmem:[%s1202 + $0x3d0] sm:$0xff]
        %v1326 = vld [vmem:[%s1202 + $0x3d8] sm:$0xff]
        %v1327 = vld [vmem:[%s1202 + $0x3e0] sm:$0xff]
        %v1328 = vld [vmem:[%s1202 + $0x3e8] sm:$0xff]
        %v1329 = vld [vmem:[%s1202 + $0x3f0] sm:$0xff]
        %v1330 = vld [vmem:[%s1202 + $0x3f8] sm:$0xff]
        %v1331 = vld [vmem:[%s1202 + $0x400] sm:$0xff]
        %v1332 = vld [vmem:[%s1202 + $0x408] sm:$0xff]
        %v1333 = vld [vmem:[%s1202 + $0x410] sm:$0xff]
        %v1334 = vld [vmem:[%s1202 + $0x418] sm:$0xff]
        %v1335 = vld [vmem:[%s1202 + $0x420] sm:$0xff]
        %v1336 = vld [vmem:[%s1202 + $0x428] sm:$0xff]
        %v1337 = vld [vmem:[%s1202 + $0x430] sm:$0xff]
        %v1338 = vld [vmem:[%s1202 + $0x438] sm:$0xff]
        %v1339 = vld [vmem:[%s1202 + $0x440] sm:$0xff]
        %v1340 = vld [vmem:[%s1202 + $0x448] sm:$0xff]
        %v1341 = vld [vmem:[%s1202 + $0x450] sm:$0xff]
        %v1342 = vld [vmem:[%s1202 + $0x458] sm:$0xff]
        %v1343 = vld [vmem:[%s1202 + $0x460] sm:$0xff]
        %v1344 = vld [vmem:[%s1202 + $0x468] sm:$0xff]
        %v1345 = vld [vmem:[%s1202 + $0x470] sm:$0xff]
        %v1346 = vld [vmem:[%s1202 + $0x478] sm:$0xff]
        %v1347 = vld [vmem:[%s1202 + $0x480] sm:$0xff]
        %v1348 = vld [vmem:[%s1202 + $0x488] sm:$0xff]
        %v1349 = vld [vmem:[%s1202 + $0x490] sm:$0xff]
        %v1350 = vld [vmem:[%s1202 + $0x498] sm:$0xff]
        %v1351 = vld [vmem:[%s1202 + $0x4a0] sm:$0xff]
        %v1352 = vld [vmem:[%s1202 + $0x4a8] sm:$0xff]
        %v1353 = vld [vmem:[%s1202 + $0x4b0] sm:$0xff]
        %v1354 = vld [vmem:[%s1202 + $0x4b8] sm:$0xff]
        %v1355 = vld [vmem:[%s1202 + $0x4c0] sm:$0xff]
        %v1356 = vld [vmem:[%s1202 + $0x4c8] sm:$0xff]
        %v1357 = vld [vmem:[%s1202 + $0x4d0] sm:$0xff]
        %v1358 = vld [vmem:[%s1202 + $0x4d8] sm:$0xff]
        %v1359 = vld [vmem:[%s1202 + $0x4e0] sm:$0xff]
        %v1360 = vld [vmem:[%s1202 + $0x4e8] sm:$0xff]
        %v1361 = vld [vmem:[%s1202 + $0x4f0] sm:$0xff]
        %v1362 = vld [vmem:[%s1202 + $0x4f8] sm:$0xff]
        %v1363 = vld [vmem:[%s1202 + $0x500] sm:$0xff]
        %v1364 = vld [vmem:[%s1202 + $0x508] sm:$0xff]
        %v1365 = vld [vmem:[%s1202 + $0x510] sm:$0xff]
        %v1366 = vld [vmem:[%s1202 + $0x518] sm:$0xff]
        %v1367 = vld [vmem:[%s1202 + $0x520] sm:$0xff]
        %v1368 = vld [vmem:[%s1202 + $0x528] sm:$0xff]
        %v1369 = vld [vmem:[%s1202 + $0x530] sm:$0xff]
        %v1370 = vld [vmem:[%s1202 + $0x538] sm:$0xff]
        %v1371 = vld [vmem:[%s1202 + $0x540] sm:$0xff]
        %v1372 = vld [vmem:[%s1202 + $0x548] sm:$0xff]
        %v1373 = vld [vmem:[%s1202 + $0x550] sm:$0xff]
        %v1374 = vld [vmem:[%s1202 + $0x558] sm:$0xff]
        %v1375 = vld [vmem:[%s1202 + $0x560] sm:$0xff]
        %v1376 = vld [vmem:[%s1202 + $0x568] sm:$0xff]
        %v1377 = vld [vmem:[%s1202 + $0x570] sm:$0xff]
        %v1378 = vld [vmem:[%s1202 + $0x578] sm:$0xff]
        %v1379 = vld [vmem:[%s1202 + $0x580] sm:$0xff]
        %v1380 = vld [vmem:[%s1202 + $0x588] sm:$0xff]
        %v1381 = vld [vmem:[%s1202 + $0x590] sm:$0xff]
        %v1382 = vld [vmem:[%s1202 + $0x598] sm:$0xff]
        %v1383 = vld [vmem:[%s1202 + $0x5a0] sm:$0xff]
        %v1384 = vld [vmem:[%s1202 + $0x5a8] sm:$0xff]
        %v1385 = vld [vmem:[%s1202 + $0x5b0] sm:$0xff]
        %v1386 = vld [vmem:[%s1202 + $0x5b8] sm:$0xff]
        %v1387 = vld [vmem:[%s1202 + $0x5c0] sm:$0xff]
        %v1388 = vld [vmem:[%s1202 + $0x5c8] sm:$0xff]
        %v1389 = vld [vmem:[%s1202 + $0x5d0] sm:$0xff]
        %v1390 = vld [vmem:[%s1202 + $0x5d8] sm:$0xff]
        %v1391 = vld [vmem:[%s1202 + $0x5e0] sm:$0xff]
        %v1392 = vld [vmem:[%s1202 + $0x5e8] sm:$0xff]
        %v1393 = vld [vmem:[%s1202 + $0x5f0] sm:$0xff]
        %v1394 = vld [vmem:[%s1202 + $0x5f8] sm:$0xff]
        %v1395 = vld [vmem:[%s1202 + $0x600] sm:$0xff]
        %v1396 = vld [vmem:[%s1202 + $0x608] sm:$0xff]
        %v1397 = vld [vmem:[%s1202 + $0x610] sm:$0xff]
        %v1398 = vld [vmem:[%s1202 + $0x618] sm:$0xff]
        %1399 = vmatprep.subr.mxu0 %v1234
        %1400 = vmatpush1.msra.mxu0 %v1233
        %1401 = vmatprep.subr.mxu0 %v1232
        %1402 = vmatpush1.msra.mxu0 %v1231
        %1403 = vmatprep.subr.mxu0 %v1230
        %1404 = vmatpush1.msra.mxu0 %v1229
        %1405 = vmatprep.subr.mxu0 %v1228
        %1406 = vmatpush1.msra.mxu0 %v1227
        %1407 = vmatprep.subr.mxu0 %v1226
        %1408 = vmatpush1.msra.mxu0 %v1225
        %1409 = vmatprep.subr.mxu0 %v1224
        %1410 = vmatpush1.msra.mxu0 %v1223
        %1411 = vmatprep.subr.mxu0 %v1222
        %1412 = vmatpush1.msra.mxu0 %v1221
        %1413 = vmatprep.subr.mxu0 %v1220
        %1414 = vmatpush1.msra.mxu0 %v1219
        %1415 = vmatprep.subr.mxu0 %v1218
        %1416 = vmatpush1.msra.mxu0 %v1217
        %1417 = vmatprep.subr.mxu0 %v1216
        %1418 = vmatpush1.msra.mxu0 %v1215
        %1419 = vmatprep.subr.mxu0 %v1214
        %1420 = vmatpush1.msra.mxu0 %v1213
        %1421 = vmatprep.subr.mxu0 %v1212
        %1422 = vmatpush1.msra.mxu0 %v1211
        %1423 = vmatprep.subr.mxu0 %v1210
        %1424 = vmatpush1.msra.mxu0 %v1209
        %1425 = vmatprep.subr.mxu0 %v1208
        %1426 = vmatpush1.msra.mxu0 %v1207
        %1427 = vmatprep.subr.mxu0 %v1206
        %1428 = vmatpush1.msra.mxu0 %v1205
        %1429 = vmatprep.subr.mxu0 %v1204
        %1430 = vmatpush1.msra.mxu0 %v1203
        %1431 = vmatprep.subr.mxu0 %v1266
        %1432 = vmatpush2.msra.mxu0 %v1265
        %1433 = vmatprep.subr.mxu0 %v1264
        %1434 = vmatpush2.msra.mxu0 %v1263
        %1435 = vmatprep.subr.mxu0 %v1262
        %1436 = vmatpush2.msra.mxu0 %v1261
        %1437 = vmatprep.subr.mxu0 %v1260
        %1438 = vmatpush2.msra.mxu0 %v1259
        %1439 = vmatprep.subr.mxu0 %v1258
        %1440 = vmatpush2.msra.mxu0 %v1257
        %1441 = vmatprep.subr.mxu0 %v1256
        %1442 = vmatpush2.msra.mxu0 %v1255
        %1443 = vmatprep.subr.mxu0 %v1254
        %1444 = vmatpush2.msra.mxu0 %v1253
        %1445 = vmatprep.subr.mxu0 %v1252
        %1446 = vmatpush2.msra.mxu0 %v1251
        %1447 = vmatprep.subr.mxu0 %v1250
        %1448 = vmatpush2.msra.mxu0 %v1249
        %1449 = vmatprep.subr.mxu0 %v1248
        %1450 = vmatpush2.msra.mxu0 %v1247
        %1451 = vmatprep.subr.mxu0 %v1246
        %1452 = vmatpush2.msra.mxu0 %v1245
        %1453 = vmatprep.subr.mxu0 %v1244
        %1454 = vmatpush2.msra.mxu0 %v1243
        %1455 = vmatprep.subr.mxu0 %v1242
        %1456 = vmatpush2.msra.mxu0 %v1241
        %1457 = vmatprep.subr.mxu0 %v1240
        %1458 = vmatpush2.msra.mxu0 %v1239
        %1459 = vmatprep.subr.mxu0 %v1238
        %1460 = vmatpush2.msra.mxu0 %v1237
        %1461 = vmatprep.subr.mxu0 %v1236
        %1462 = vmatpush2.msra.mxu0 %v1235
        %1463 = vmatprep.mubr.f32.mxu0 %v712
        %1464 = vmatmul.mubr.f32.gmra.mxu0 %v711
        %v1465 = vpop.f32.mrf.mxu0
        %v1466 = vadd.f32 0.0, %v1465
        %v1467 = vpop.f32.mrf.mxu0
        %v1468 = vadd.f32 0.0, %v1467
        %1469 = vdwg.mxu0
        %1470 = vmatprep.subr.mxu0 %v1298
        %1471 = vmatpush1.msra.mxu0 %v1297
        %1472 = vmatprep.subr.mxu0 %v1296
        %1473 = vmatpush1.msra.mxu0 %v1295
        %1474 = vmatprep.subr.mxu0 %v1294
        %1475 = vmatpush1.msra.mxu0 %v1293
        %1476 = vmatprep.subr.mxu0 %v1292
        %1477 = vmatpush1.msra.mxu0 %v1291
        %1478 = vmatprep.subr.mxu0 %v1290
        %1479 = vmatpush1.msra.mxu0 %v1289
        %1480 = vmatprep.subr.mxu0 %v1288
        %1481 = vmatpush1.msra.mxu0 %v1287
        %1482 = vmatprep.subr.mxu0 %v1286
        %1483 = vmatpush1.msra.mxu0 %v1285
        %1484 = vmatprep.subr.mxu0 %v1284
        %1485 = vmatpush1.msra.mxu0 %v1283
        %1486 = vmatprep.subr.mxu0 %v1282
        %1487 = vmatpush1.msra.mxu0 %v1281
        %1488 = vmatprep.subr.mxu0 %v1280
        %1489 = vmatpush1.msra.mxu0 %v1279
        %1490 = vmatprep.subr.mxu0 %v1278
        %1491 = vmatpush1.msra.mxu0 %v1277
        %1492 = vmatprep.subr.mxu0 %v1276
        %1493 = vmatpush1.msra.mxu0 %v1275
        %1494 = vmatprep.subr.mxu0 %v1274
        %1495 = vmatpush1.msra.mxu0 %v1273
        %1496 = vmatprep.subr.mxu0 %v1272
        %1497 = vmatpush1.msra.mxu0 %v1271
        %1498 = vmatprep.subr.mxu0 %v1270
        %1499 = vmatpush1.msra.mxu0 %v1269
        %1500 = vmatprep.subr.mxu0 %v1268
        %1501 = vmatpush1.msra.mxu0 %v1267
        %1502 = vmatprep.subr.mxu0 %v1330
        %1503 = vmatpush2.msra.mxu0 %v1329
        %1504 = vmatprep.subr.mxu0 %v1328
        %1505 = vmatpush2.msra.mxu0 %v1327
        %1506 = vmatprep.subr.mxu0 %v1326
        %1507 = vmatpush2.msra.mxu0 %v1325
        %1508 = vmatprep.subr.mxu0 %v1324
        %1509 = vmatpush2.msra.mxu0 %v1323
        %1510 = vmatprep.subr.mxu0 %v1322
        %1511 = vmatpush2.msra.mxu0 %v1321
        %1512 = vmatprep.subr.mxu0 %v1320
        %1513 = vmatpush2.msra.mxu0 %v1319
        %1514 = vmatprep.subr.mxu0 %v1318
        %1515 = vmatpush2.msra.mxu0 %v1317
        %1516 = vmatprep.subr.mxu0 %v1316
        %1517 = vmatpush2.msra.mxu0 %v1315
        %1518 = vmatprep.subr.mxu0 %v1314
        %1519 = vmatpush2.msra.mxu0 %v1313
        %1520 = vmatprep.subr.mxu0 %v1312
        %1521 = vmatpush2.msra.mxu0 %v1311
        %1522 = vmatprep.subr.mxu0 %v1310
        %1523 = vmatpush2.msra.mxu0 %v1309
        %1524 = vmatprep.subr.mxu0 %v1308
        %1525 = vmatpush2.msra.mxu0 %v1307
        %1526 = vmatprep.subr.mxu0 %v1306
        %1527 = vmatpush2.msra.mxu0 %v1305
        %1528 = vmatprep.subr.mxu0 %v1304
        %1529 = vmatpush2.msra.mxu0 %v1303
        %1530 = vmatprep.subr.mxu0 %v1302
        %1531 = vmatpush2.msra.mxu0 %v1301
        %1532 = vmatprep.subr.mxu0 %v1300
        %1533 = vmatpush2.msra.mxu0 %v1299
        %1534 = vmatprep.mubr.f32.mxu0 %v714
        %1535 = vmatmul.mubr.f32.gmra.mxu0 %v713
        %v1536 = vpop.f32.mrf.mxu0
        %v1537 = vadd.f32 %v1466, %v1536
        %v1538 = vpop.f32.mrf.mxu0
        %v1539 = vadd.f32 %v1468, %v1538
        %1540 = vdwg.mxu0
        %1541 = vmatprep.subr.mxu0 %v1362
        %1542 = vmatpush1.msra.mxu0 %v1361
        %1543 = vmatprep.subr.mxu0 %v1360
        %1544 = vmatpush1.msra.mxu0 %v1359
        %1545 = vmatprep.subr.mxu0 %v1358
        %1546 = vmatpush1.msra.mxu0 %v1357
        %1547 = vmatprep.subr.mxu0 %v1356
        %1548 = vmatpush1.msra.mxu0 %v1355
        %1549 = vmatprep.subr.mxu0 %v1354
        %1550 = vmatpush1.msra.mxu0 %v1353
        %1551 = vmatprep.subr.mxu0 %v1352
        %1552 = vmatpush1.msra.mxu0 %v1351
        %1553 = vmatprep.subr.mxu0 %v1350
        %1554 = vmatpush1.msra.mxu0 %v1349
        %1555 = vmatprep.subr.mxu0 %v1348
        %1556 = vmatpush1.msra.mxu0 %v1347
        %1557 = vmatprep.subr.mxu0 %v1346
        %1558 = vmatpush1.msra.mxu0 %v1345
        %1559 = vmatprep.subr.mxu0 %v1344
        %1560 = vmatpush1.msra.mxu0 %v1343
        %1561 = vmatprep.subr.mxu0 %v1342
        %1562 = vmatpush1.msra.mxu0 %v1341
        %1563 = vmatprep.subr.mxu0 %v1340
        %1564 = vmatpush1.msra.mxu0 %v1339
        %1565 = vmatprep.subr.mxu0 %v1338
        %1566 = vmatpush1.msra.mxu0 %v1337
        %1567 = vmatprep.subr.mxu0 %v1336
        %1568 = vmatpush1.msra.mxu0 %v1335
        %1569 = vmatprep.subr.mxu0 %v1334
        %1570 = vmatpush1.msra.mxu0 %v1333
        %1571 = vmatprep.subr.mxu0 %v1332
        %1572 = vmatpush1.msra.mxu0 %v1331
        %1573 = vmatprep.subr.mxu0 %v1394
        %1574 = vmatpush2.msra.mxu0 %v1393
        %1575 = vmatprep.subr.mxu0 %v1392
        %1576 = vmatpush2.msra.mxu0 %v1391
        %1577 = vmatprep.subr.mxu0 %v1390
        %1578 = vmatpush2.msra.mxu0 %v1389
        %1579 = vmatprep.subr.mxu0 %v1388
        %1580 = vmatpush2.msra.mxu0 %v1387
        %1581 = vmatprep.subr.mxu0 %v1386
        %1582 = vmatpush2.msra.mxu0 %v1385
        %1583 = vmatprep.subr.mxu0 %v1384
        %1584 = vmatpush2.msra.mxu0 %v1383
        %1585 = vmatprep.subr.mxu0 %v1382
        %1586 = vmatpush2.msra.mxu0 %v1381
        %1587 = vmatprep.subr.mxu0 %v1380
        %1588 = vmatpush2.msra.mxu0 %v1379
        %1589 = vmatprep.subr.mxu0 %v1378
        %1590 = vmatpush2.msra.mxu0 %v1377
        %1591 = vmatprep.subr.mxu0 %v1376
        %1592 = vmatpush2.msra.mxu0 %v1375
        %1593 = vmatprep.subr.mxu0 %v1374
        %1594 = vmatpush2.msra.mxu0 %v1373
        %1595 = vmatprep.subr.mxu0 %v1372
        %1596 = vmatpush2.msra.mxu0 %v1371
        %1597 = vmatprep.subr.mxu0 %v1370
        %1598 = vmatpush2.msra.mxu0 %v1369
        %1599 = vmatprep.subr.mxu0 %v1368
        %1600 = vmatpush2.msra.mxu0 %v1367
        %1601 = vmatprep.subr.mxu0 %v1366
        %1602 = vmatpush2.msra.mxu0 %v1365
        %1603 = vmatprep.subr.mxu0 %v1364
        %1604 = vmatpush2.msra.mxu0 %v1363
        %1605 = vmatprep.mubr.f32.mxu0 %v716
        %1606 = vmatmul.mubr.f32.gmra.mxu0 %v715
        %v1607 = vpop.f32.mrf.mxu0
        %v1608 = vadd.f32 %v1537, %v1607
        %v1609 = vpop.f32.mrf.mxu0
        %v1610 = vadd.f32 %v1539, %v1609
        %1611 = vdwg.mxu0
        %1612 = vmatprep.subr.mxu0 0.0
        %1613 = vmatpush1.msra.mxu0 0.0
        %1614 = vmatprep.subr.mxu0 0.0
        %1615 = vmatpush1.msra.mxu0 0.0
        %1616 = vmatprep.subr.mxu0 0.0
        %1617 = vmatpush1.msra.mxu0 0.0
        %1618 = vmatprep.subr.mxu0 0.0
        %1619 = vmatpush1.msra.mxu0 0.0
        %1620 = vmatprep.subr.mxu0 0.0
        %1621 = vmatpush1.msra.mxu0 0.0
        %1622 = vmatprep.subr.mxu0 0.0
        %1623 = vmatpush1.msra.mxu0 0.0
        %1624 = vmatprep.subr.mxu0 0.0
        %1625 = vmatpush1.msra.mxu0 0.0
        %1626 = vmatprep.subr.mxu0 0.0
        %1627 = vmatpush1.msra.mxu0 0.0
        %1628 = vmatprep.subr.mxu0 0.0
        %1629 = vmatpush1.msra.mxu0 0.0
        %1630 = vmatprep.subr.mxu0 0.0
        %1631 = vmatpush1.msra.mxu0 0.0
        %1632 = vmatprep.subr.mxu0 0.0
        %1633 = vmatpush1.msra.mxu0 0.0
        %1634 = vmatprep.subr.mxu0 0.0
        %1635 = vmatpush1.msra.mxu0 0.0
        %1636 = vmatprep.subr.mxu0 0.0
        %1637 = vmatpush1.msra.mxu0 0.0
        %1638 = vmatprep.subr.mxu0 0.0
        %1639 = vmatpush1.msra.mxu0 0.0
        %1640 = vmatprep.subr.mxu0 %v1398
        %1641 = vmatpush1.msra.mxu0 %v1397
        %1642 = vmatprep.subr.mxu0 %v1396
        %1643 = vmatpush1.msra.mxu0 %v1395
        %1644 = vmatprep.subr.mxu0 0.0
        %1645 = vmatpush2.msra.mxu0 0.0
        %1646 = vmatprep.subr.mxu0 0.0
        %1647 = vmatpush2.msra.mxu0 0.0
        %1648 = vmatprep.subr.mxu0 0.0
        %1649 = vmatpush2.msra.mxu0 0.0
        %1650 = vmatprep.subr.mxu0 0.0
        %1651 = vmatpush2.msra.mxu0 0.0
        %1652 = vmatprep.subr.mxu0 0.0
        %1653 = vmatpush2.msra.mxu0 0.0
        %1654 = vmatprep.subr.mxu0 0.0
        %1655 = vmatpush2.msra.mxu0 0.0
        %1656 = vmatprep.subr.mxu0 0.0
        %1657 = vmatpush2.msra.mxu0 0.0
        %1658 = vmatprep.subr.mxu0 0.0
        %1659 = vmatpush2.msra.mxu0 0.0
        %1660 = vmatprep.subr.mxu0 0.0
        %1661 = vmatpush2.msra.mxu0 0.0
        %1662 = vmatprep.subr.mxu0 0.0
        %1663 = vmatpush2.msra.mxu0 0.0
        %1664 = vmatprep.subr.mxu0 0.0
        %1665 = vmatpush2.msra.mxu0 0.0
        %1666 = vmatprep.subr.mxu0 0.0
        %1667 = vmatpush2.msra.mxu0 0.0
        %1668 = vmatprep.subr.mxu0 0.0
        %1669 = vmatpush2.msra.mxu0 0.0
        %1670 = vmatprep.subr.mxu0 0.0
        %1671 = vmatpush2.msra.mxu0 0.0
        %1672 = vmatprep.subr.mxu0 0.0
        %1673 = vmatpush2.msra.mxu0 0.0
        %1674 = vmatprep.subr.mxu0 0.0
        %1675 = vmatpush2.msra.mxu0 0.0
        %1676 = vmatprep.mubr.f32.mxu0 0.0
        %1677 = vmatmul.mubr.f32.gmra.mxu0 %v916
        %v1678 = vpop.f32.mrf.mxu0
        %v1679 = vadd.f32 %v1608, %v1678
        %v1680 = vpop.f32.mrf.mxu0
        %v1681 = vadd.f32 %v1610, %v1680
        %1682 = vdwg.mxu0
        %v1683 = vmax.f32 %v1198, %v1679
        %v1684 = vmax.f32 %v1200, %v1681
        %s1685 = scalar_lea.vmem [#allocation7], 3136
        %v1686 = vld [vmem:[%s1685] sm:$0xff]
        %v1687 = vld [vmem:[%s1685 + $0x8] sm:$0xff]
        %v1688 = vld [vmem:[%s1685 + $0x10] sm:$0xff]
        %v1689 = vld [vmem:[%s1685 + $0x18] sm:$0xff]
        %v1690 = vld [vmem:[%s1685 + $0x20] sm:$0xff]
        %v1691 = vld [vmem:[%s1685 + $0x28] sm:$0xff]
        %v1692 = vld [vmem:[%s1685 + $0x30] sm:$0xff]
        %v1693 = vld [vmem:[%s1685 + $0x38] sm:$0xff]
        %v1694 = vld [vmem:[%s1685 + $0x40] sm:$0xff]
        %v1695 = vld [vmem:[%s1685 + $0x48] sm:$0xff]
        %v1696 = vld [vmem:[%s1685 + $0x50] sm:$0xff]
        %v1697 = vld [vmem:[%s1685 + $0x58] sm:$0xff]
        %v1698 = vld [vmem:[%s1685 + $0x60] sm:$0xff]
        %v1699 = vld [vmem:[%s1685 + $0x68] sm:$0xff]
        %v1700 = vld [vmem:[%s1685 + $0x70] sm:$0xff]
        %v1701 = vld [vmem:[%s1685 + $0x78] sm:$0xff]
        %v1702 = vld [vmem:[%s1685 + $0x80] sm:$0xff]
        %v1703 = vld [vmem:[%s1685 + $0x88] sm:$0xff]
        %v1704 = vld [vmem:[%s1685 + $0x90] sm:$0xff]
        %v1705 = vld [vmem:[%s1685 + $0x98] sm:$0xff]
        %v1706 = vld [vmem:[%s1685 + $0xa0] sm:$0xff]
        %v1707 = vld [vmem:[%s1685 + $0xa8] sm:$0xff]
        %v1708 = vld [vmem:[%s1685 + $0xb0] sm:$0xff]
        %v1709 = vld [vmem:[%s1685 + $0xb8] sm:$0xff]
        %v1710 = vld [vmem:[%s1685 + $0xc0] sm:$0xff]
        %v1711 = vld [vmem:[%s1685 + $0xc8] sm:$0xff]
        %v1712 = vld [vmem:[%s1685 + $0xd0] sm:$0xff]
        %v1713 = vld [vmem:[%s1685 + $0xd8] sm:$0xff]
        %v1714 = vld [vmem:[%s1685 + $0xe0] sm:$0xff]
        %v1715 = vld [vmem:[%s1685 + $0xe8] sm:$0xff]
        %v1716 = vld [vmem:[%s1685 + $0xf0] sm:$0xff]
        %v1717 = vld [vmem:[%s1685 + $0xf8] sm:$0xff]
        %v1718 = vld [vmem:[%s1685 + $0x100] sm:$0xff]
        %v1719 = vld [vmem:[%s1685 + $0x108] sm:$0xff]
        %v1720 = vld [vmem:[%s1685 + $0x110] sm:$0xff]
        %v1721 = vld [vmem:[%s1685 + $0x118] sm:$0xff]
        %v1722 = vld [vmem:[%s1685 + $0x120] sm:$0xff]
        %v1723 = vld [vmem:[%s1685 + $0x128] sm:$0xff]
        %v1724 = vld [vmem:[%s1685 + $0x130] sm:$0xff]
        %v1725 = vld [vmem:[%s1685 + $0x138] sm:$0xff]
        %v1726 = vld [vmem:[%s1685 + $0x140] sm:$0xff]
        %v1727 = vld [vmem:[%s1685 + $0x148] sm:$0xff]
        %v1728 = vld [vmem:[%s1685 + $0x150] sm:$0xff]
        %v1729 = vld [vmem:[%s1685 + $0x158] sm:$0xff]
        %v1730 = vld [vmem:[%s1685 + $0x160] sm:$0xff]
        %v1731 = vld [vmem:[%s1685 + $0x168] sm:$0xff]
        %v1732 = vld [vmem:[%s1685 + $0x170] sm:$0xff]
        %v1733 = vld [vmem:[%s1685 + $0x178] sm:$0xff]
        %v1734 = vld [vmem:[%s1685 + $0x180] sm:$0xff]
        %v1735 = vld [vmem:[%s1685 + $0x188] sm:$0xff]
        %v1736 = vld [vmem:[%s1685 + $0x190] sm:$0xff]
        %v1737 = vld [vmem:[%s1685 + $0x198] sm:$0xff]
        %v1738 = vld [vmem:[%s1685 + $0x1a0] sm:$0xff]
        %v1739 = vld [vmem:[%s1685 + $0x1a8] sm:$0xff]
        %v1740 = vld [vmem:[%s1685 + $0x1b0] sm:$0xff]
        %v1741 = vld [vmem:[%s1685 + $0x1b8] sm:$0xff]
        %v1742 = vld [vmem:[%s1685 + $0x1c0] sm:$0xff]
        %v1743 = vld [vmem:[%s1685 + $0x1c8] sm:$0xff]
        %v1744 = vld [vmem:[%s1685 + $0x1d0] sm:$0xff]
        %v1745 = vld [vmem:[%s1685 + $0x1d8] sm:$0xff]
        %v1746 = vld [vmem:[%s1685 + $0x1e0] sm:$0xff]
        %v1747 = vld [vmem:[%s1685 + $0x1e8] sm:$0xff]
        %v1748 = vld [vmem:[%s1685 + $0x1f0] sm:$0xff]
        %v1749 = vld [vmem:[%s1685 + $0x1f8] sm:$0xff]
        %v1750 = vld [vmem:[%s1685 + $0x200] sm:$0xff]
        %v1751 = vld [vmem:[%s1685 + $0x208] sm:$0xff]
        %v1752 = vld [vmem:[%s1685 + $0x210] sm:$0xff]
        %v1753 = vld [vmem:[%s1685 + $0x218] sm:$0xff]
        %v1754 = vld [vmem:[%s1685 + $0x220] sm:$0xff]
        %v1755 = vld [vmem:[%s1685 + $0x228] sm:$0xff]
        %v1756 = vld [vmem:[%s1685 + $0x230] sm:$0xff]
        %v1757 = vld [vmem:[%s1685 + $0x238] sm:$0xff]
        %v1758 = vld [vmem:[%s1685 + $0x240] sm:$0xff]
        %v1759 = vld [vmem:[%s1685 + $0x248] sm:$0xff]
        %v1760 = vld [vmem:[%s1685 + $0x250] sm:$0xff]
        %v1761 = vld [vmem:[%s1685 + $0x258] sm:$0xff]
        %v1762 = vld [vmem:[%s1685 + $0x260] sm:$0xff]
        %v1763 = vld [vmem:[%s1685 + $0x268] sm:$0xff]
        %v1764 = vld [vmem:[%s1685 + $0x270] sm:$0xff]
        %v1765 = vld [vmem:[%s1685 + $0x278] sm:$0xff]
        %v1766 = vld [vmem:[%s1685 + $0x280] sm:$0xff]
        %v1767 = vld [vmem:[%s1685 + $0x288] sm:$0xff]
        %v1768 = vld [vmem:[%s1685 + $0x290] sm:$0xff]
        %v1769 = vld [vmem:[%s1685 + $0x298] sm:$0xff]
        %v1770 = vld [vmem:[%s1685 + $0x2a0] sm:$0xff]
        %v1771 = vld [vmem:[%s1685 + $0x2a8] sm:$0xff]
        %v1772 = vld [vmem:[%s1685 + $0x2b0] sm:$0xff]
        %v1773 = vld [vmem:[%s1685 + $0x2b8] sm:$0xff]
        %v1774 = vld [vmem:[%s1685 + $0x2c0] sm:$0xff]
        %v1775 = vld [vmem:[%s1685 + $0x2c8] sm:$0xff]
        %v1776 = vld [vmem:[%s1685 + $0x2d0] sm:$0xff]
        %v1777 = vld [vmem:[%s1685 + $0x2d8] sm:$0xff]
        %v1778 = vld [vmem:[%s1685 + $0x2e0] sm:$0xff]
        %v1779 = vld [vmem:[%s1685 + $0x2e8] sm:$0xff]
        %v1780 = vld [vmem:[%s1685 + $0x2f0] sm:$0xff]
        %v1781 = vld [vmem:[%s1685 + $0x2f8] sm:$0xff]
        %v1782 = vld [vmem:[%s1685 + $0x300] sm:$0xff]
        %v1783 = vld [vmem:[%s1685 + $0x308] sm:$0xff]
        %v1784 = vld [vmem:[%s1685 + $0x310] sm:$0xff]
        %v1785 = vld [vmem:[%s1685 + $0x318] sm:$0xff]
        %v1786 = vld [vmem:[%s1685 + $0x320] sm:$0xff]
        %v1787 = vld [vmem:[%s1685 + $0x328] sm:$0xff]
        %v1788 = vld [vmem:[%s1685 + $0x330] sm:$0xff]
        %v1789 = vld [vmem:[%s1685 + $0x338] sm:$0xff]
        %v1790 = vld [vmem:[%s1685 + $0x340] sm:$0xff]
        %v1791 = vld [vmem:[%s1685 + $0x348] sm:$0xff]
        %v1792 = vld [vmem:[%s1685 + $0x350] sm:$0xff]
        %v1793 = vld [vmem:[%s1685 + $0x358] sm:$0xff]
        %v1794 = vld [vmem:[%s1685 + $0x360] sm:$0xff]
        %v1795 = vld [vmem:[%s1685 + $0x368] sm:$0xff]
        %v1796 = vld [vmem:[%s1685 + $0x370] sm:$0xff]
        %v1797 = vld [vmem:[%s1685 + $0x378] sm:$0xff]
        %v1798 = vld [vmem:[%s1685 + $0x380] sm:$0xff]
        %v1799 = vld [vmem:[%s1685 + $0x388] sm:$0xff]
        %v1800 = vld [vmem:[%s1685 + $0x390] sm:$0xff]
        %v1801 = vld [vmem:[%s1685 + $0x398] sm:$0xff]
        %v1802 = vld [vmem:[%s1685 + $0x3a0] sm:$0xff]
        %v1803 = vld [vmem:[%s1685 + $0x3a8] sm:$0xff]
        %v1804 = vld [vmem:[%s1685 + $0x3b0] sm:$0xff]
        %v1805 = vld [vmem:[%s1685 + $0x3b8] sm:$0xff]
        %v1806 = vld [vmem:[%s1685 + $0x3c0] sm:$0xff]
        %v1807 = vld [vmem:[%s1685 + $0x3c8] sm:$0xff]
        %v1808 = vld [vmem:[%s1685 + $0x3d0] sm:$0xff]
        %v1809 = vld [vmem:[%s1685 + $0x3d8] sm:$0xff]
        %v1810 = vld [vmem:[%s1685 + $0x3e0] sm:$0xff]
        %v1811 = vld [vmem:[%s1685 + $0x3e8] sm:$0xff]
        %v1812 = vld [vmem:[%s1685 + $0x3f0] sm:$0xff]
        %v1813 = vld [vmem:[%s1685 + $0x3f8] sm:$0xff]
        %v1814 = vld [vmem:[%s1685 + $0x400] sm:$0xff]
        %v1815 = vld [vmem:[%s1685 + $0x408] sm:$0xff]
        %v1816 = vld [vmem:[%s1685 + $0x410] sm:$0xff]
        %v1817 = vld [vmem:[%s1685 + $0x418] sm:$0xff]
        %v1818 = vld [vmem:[%s1685 + $0x420] sm:$0xff]
        %v1819 = vld [vmem:[%s1685 + $0x428] sm:$0xff]
        %v1820 = vld [vmem:[%s1685 + $0x430] sm:$0xff]
        %v1821 = vld [vmem:[%s1685 + $0x438] sm:$0xff]
        %v1822 = vld [vmem:[%s1685 + $0x440] sm:$0xff]
        %v1823 = vld [vmem:[%s1685 + $0x448] sm:$0xff]
        %v1824 = vld [vmem:[%s1685 + $0x450] sm:$0xff]
        %v1825 = vld [vmem:[%s1685 + $0x458] sm:$0xff]
        %v1826 = vld [vmem:[%s1685 + $0x460] sm:$0xff]
        %v1827 = vld [vmem:[%s1685 + $0x468] sm:$0xff]
        %v1828 = vld [vmem:[%s1685 + $0x470] sm:$0xff]
        %v1829 = vld [vmem:[%s1685 + $0x478] sm:$0xff]
        %v1830 = vld [vmem:[%s1685 + $0x480] sm:$0xff]
        %v1831 = vld [vmem:[%s1685 + $0x488] sm:$0xff]
        %v1832 = vld [vmem:[%s1685 + $0x490] sm:$0xff]
        %v1833 = vld [vmem:[%s1685 + $0x498] sm:$0xff]
        %v1834 = vld [vmem:[%s1685 + $0x4a0] sm:$0xff]
        %v1835 = vld [vmem:[%s1685 + $0x4a8] sm:$0xff]
        %v1836 = vld [vmem:[%s1685 + $0x4b0] sm:$0xff]
        %v1837 = vld [vmem:[%s1685 + $0x4b8] sm:$0xff]
        %v1838 = vld [vmem:[%s1685 + $0x4c0] sm:$0xff]
        %v1839 = vld [vmem:[%s1685 + $0x4c8] sm:$0xff]
        %v1840 = vld [vmem:[%s1685 + $0x4d0] sm:$0xff]
        %v1841 = vld [vmem:[%s1685 + $0x4d8] sm:$0xff]
        %v1842 = vld [vmem:[%s1685 + $0x4e0] sm:$0xff]
        %v1843 = vld [vmem:[%s1685 + $0x4e8] sm:$0xff]
        %v1844 = vld [vmem:[%s1685 + $0x4f0] sm:$0xff]
        %v1845 = vld [vmem:[%s1685 + $0x4f8] sm:$0xff]
        %v1846 = vld [vmem:[%s1685 + $0x500] sm:$0xff]
        %v1847 = vld [vmem:[%s1685 + $0x508] sm:$0xff]
        %v1848 = vld [vmem:[%s1685 + $0x510] sm:$0xff]
        %v1849 = vld [vmem:[%s1685 + $0x518] sm:$0xff]
        %v1850 = vld [vmem:[%s1685 + $0x520] sm:$0xff]
        %v1851 = vld [vmem:[%s1685 + $0x528] sm:$0xff]
        %v1852 = vld [vmem:[%s1685 + $0x530] sm:$0xff]
        %v1853 = vld [vmem:[%s1685 + $0x538] sm:$0xff]
        %v1854 = vld [vmem:[%s1685 + $0x540] sm:$0xff]
        %v1855 = vld [vmem:[%s1685 + $0x548] sm:$0xff]
        %v1856 = vld [vmem:[%s1685 + $0x550] sm:$0xff]
        %v1857 = vld [vmem:[%s1685 + $0x558] sm:$0xff]
        %v1858 = vld [vmem:[%s1685 + $0x560] sm:$0xff]
        %v1859 = vld [vmem:[%s1685 + $0x568] sm:$0xff]
        %v1860 = vld [vmem:[%s1685 + $0x570] sm:$0xff]
        %v1861 = vld [vmem:[%s1685 + $0x578] sm:$0xff]
        %v1862 = vld [vmem:[%s1685 + $0x580] sm:$0xff]
        %v1863 = vld [vmem:[%s1685 + $0x588] sm:$0xff]
        %v1864 = vld [vmem:[%s1685 + $0x590] sm:$0xff]
        %v1865 = vld [vmem:[%s1685 + $0x598] sm:$0xff]
        %v1866 = vld [vmem:[%s1685 + $0x5a0] sm:$0xff]
        %v1867 = vld [vmem:[%s1685 + $0x5a8] sm:$0xff]
        %v1868 = vld [vmem:[%s1685 + $0x5b0] sm:$0xff]
        %v1869 = vld [vmem:[%s1685 + $0x5b8] sm:$0xff]
        %v1870 = vld [vmem:[%s1685 + $0x5c0] sm:$0xff]
        %v1871 = vld [vmem:[%s1685 + $0x5c8] sm:$0xff]
        %v1872 = vld [vmem:[%s1685 + $0x5d0] sm:$0xff]
        %v1873 = vld [vmem:[%s1685 + $0x5d8] sm:$0xff]
        %v1874 = vld [vmem:[%s1685 + $0x5e0] sm:$0xff]
        %v1875 = vld [vmem:[%s1685 + $0x5e8] sm:$0xff]
        %v1876 = vld [vmem:[%s1685 + $0x5f0] sm:$0xff]
        %v1877 = vld [vmem:[%s1685 + $0x5f8] sm:$0xff]
        %v1878 = vld [vmem:[%s1685 + $0x600] sm:$0xff]
        %v1879 = vld [vmem:[%s1685 + $0x608] sm:$0xff]
        %v1880 = vld [vmem:[%s1685 + $0x610] sm:$0xff]
        %v1881 = vld [vmem:[%s1685 + $0x618] sm:$0xff]
        %1882 = vmatprep.subr.mxu0 %v1717
        %1883 = vmatpush1.msra.mxu0 %v1716
        %1884 = vmatprep.subr.mxu0 %v1715
        %1885 = vmatpush1.msra.mxu0 %v1714
        %1886 = vmatprep.subr.mxu0 %v1713
        %1887 = vmatpush1.msra.mxu0 %v1712
        %1888 = vmatprep.subr.mxu0 %v1711
        %1889 = vmatpush1.msra.mxu0 %v1710
        %1890 = vmatprep.subr.mxu0 %v1709
        %1891 = vmatpush1.msra.mxu0 %v1708
        %1892 = vmatprep.subr.mxu0 %v1707
        %1893 = vmatpush1.msra.mxu0 %v1706
        %1894 = vmatprep.subr.mxu0 %v1705
        %1895 = vmatpush1.msra.mxu0 %v1704
        %1896 = vmatprep.subr.mxu0 %v1703
        %1897 = vmatpush1.msra.mxu0 %v1702
        %1898 = vmatprep.subr.mxu0 %v1701
        %1899 = vmatpush1.msra.mxu0 %v1700
        %1900 = vmatprep.subr.mxu0 %v1699
        %1901 = vmatpush1.msra.mxu0 %v1698
        %1902 = vmatprep.subr.mxu0 %v1697
        %1903 = vmatpush1.msra.mxu0 %v1696
        %1904 = vmatprep.subr.mxu0 %v1695
        %1905 = vmatpush1.msra.mxu0 %v1694
        %1906 = vmatprep.subr.mxu0 %v1693
        %1907 = vmatpush1.msra.mxu0 %v1692
        %1908 = vmatprep.subr.mxu0 %v1691
        %1909 = vmatpush1.msra.mxu0 %v1690
        %1910 = vmatprep.subr.mxu0 %v1689
        %1911 = vmatpush1.msra.mxu0 %v1688
        %1912 = vmatprep.subr.mxu0 %v1687
        %1913 = vmatpush1.msra.mxu0 %v1686
        %1914 = vmatprep.subr.mxu0 %v1749
        %1915 = vmatpush2.msra.mxu0 %v1748
        %1916 = vmatprep.subr.mxu0 %v1747
        %1917 = vmatpush2.msra.mxu0 %v1746
        %1918 = vmatprep.subr.mxu0 %v1745
        %1919 = vmatpush2.msra.mxu0 %v1744
        %1920 = vmatprep.subr.mxu0 %v1743
        %1921 = vmatpush2.msra.mxu0 %v1742
        %1922 = vmatprep.subr.mxu0 %v1741
        %1923 = vmatpush2.msra.mxu0 %v1740
        %1924 = vmatprep.subr.mxu0 %v1739
        %1925 = vmatpush2.msra.mxu0 %v1738
        %1926 = vmatprep.subr.mxu0 %v1737
        %1927 = vmatpush2.msra.mxu0 %v1736
        %1928 = vmatprep.subr.mxu0 %v1735
        %1929 = vmatpush2.msra.mxu0 %v1734
        %1930 = vmatprep.subr.mxu0 %v1733
        %1931 = vmatpush2.msra.mxu0 %v1732
        %1932 = vmatprep.subr.mxu0 %v1731
        %1933 = vmatpush2.msra.mxu0 %v1730
        %1934 = vmatprep.subr.mxu0 %v1729
        %1935 = vmatpush2.msra.mxu0 %v1728
        %1936 = vmatprep.subr.mxu0 %v1727
        %1937 = vmatpush2.msra.mxu0 %v1726
        %1938 = vmatprep.subr.mxu0 %v1725
        %1939 = vmatpush2.msra.mxu0 %v1724
        %1940 = vmatprep.subr.mxu0 %v1723
        %1941 = vmatpush2.msra.mxu0 %v1722
        %1942 = vmatprep.subr.mxu0 %v1721
        %1943 = vmatpush2.msra.mxu0 %v1720
        %1944 = vmatprep.subr.mxu0 %v1719
        %1945 = vmatpush2.msra.mxu0 %v1718
        %1946 = vmatprep.mubr.f32.mxu0 %v712
        %1947 = vmatmul.mubr.f32.gmra.mxu0 %v711
        %v1948 = vpop.f32.mrf.mxu0
        %v1949 = vadd.f32 0.0, %v1948
        %v1950 = vpop.f32.mrf.mxu0
        %v1951 = vadd.f32 0.0, %v1950
        %1952 = vdwg.mxu0
        %1953 = vmatprep.subr.mxu0 %v1781
        %1954 = vmatpush1.msra.mxu0 %v1780
        %1955 = vmatprep.subr.mxu0 %v1779
        %1956 = vmatpush1.msra.mxu0 %v1778
        %1957 = vmatprep.subr.mxu0 %v1777
        %1958 = vmatpush1.msra.mxu0 %v1776
        %1959 = vmatprep.subr.mxu0 %v1775
        %1960 = vmatpush1.msra.mxu0 %v1774
        %1961 = vmatprep.subr.mxu0 %v1773
        %1962 = vmatpush1.msra.mxu0 %v1772
        %1963 = vmatprep.subr.mxu0 %v1771
        %1964 = vmatpush1.msra.mxu0 %v1770
        %1965 = vmatprep.subr.mxu0 %v1769
        %1966 = vmatpush1.msra.mxu0 %v1768
        %1967 = vmatprep.subr.mxu0 %v1767
        %1968 = vmatpush1.msra.mxu0 %v1766
        %1969 = vmatprep.subr.mxu0 %v1765
        %1970 = vmatpush1.msra.mxu0 %v1764
        %1971 = vmatprep.subr.mxu0 %v1763
        %1972 = vmatpush1.msra.mxu0 %v1762
        %1973 = vmatprep.subr.mxu0 %v1761
        %1974 = vmatpush1.msra.mxu0 %v1760
        %1975 = vmatprep.subr.mxu0 %v1759
        %1976 = vmatpush1.msra.mxu0 %v1758
        %1977 = vmatprep.subr.mxu0 %v1757
        %1978 = vmatpush1.msra.mxu0 %v1756
        %1979 = vmatprep.subr.mxu0 %v1755
        %1980 = vmatpush1.msra.mxu0 %v1754
        %1981 = vmatprep.subr.mxu0 %v1753
        %1982 = vmatpush1.msra.mxu0 %v1752
        %1983 = vmatprep.subr.mxu0 %v1751
        %1984 = vmatpush1.msra.mxu0 %v1750
        %1985 = vmatprep.subr.mxu0 %v1813
        %1986 = vmatpush2.msra.mxu0 %v1812
        %1987 = vmatprep.subr.mxu0 %v1811
        %1988 = vmatpush2.msra.mxu0 %v1810
        %1989 = vmatprep.subr.mxu0 %v1809
        %1990 = vmatpush2.msra.mxu0 %v1808
        %1991 = vmatprep.subr.mxu0 %v1807
        %1992 = vmatpush2.msra.mxu0 %v1806
        %1993 = vmatprep.subr.mxu0 %v1805
        %1994 = vmatpush2.msra.mxu0 %v1804
        %1995 = vmatprep.subr.mxu0 %v1803
        %1996 = vmatpush2.msra.mxu0 %v1802
        %1997 = vmatprep.subr.mxu0 %v1801
        %1998 = vmatpush2.msra.mxu0 %v1800
        %1999 = vmatprep.subr.mxu0 %v1799
        %2000 = vmatpush2.msra.mxu0 %v1798
        %2001 = vmatprep.subr.mxu0 %v1797
        %2002 = vmatpush2.msra.mxu0 %v1796
        %2003 = vmatprep.subr.mxu0 %v1795
        %2004 = vmatpush2.msra.mxu0 %v1794
        %2005 = vmatprep.subr.mxu0 %v1793
        %2006 = vmatpush2.msra.mxu0 %v1792
        %2007 = vmatprep.subr.mxu0 %v1791
        %2008 = vmatpush2.msra.mxu0 %v1790
        %2009 = vmatprep.subr.mxu0 %v1789
        %2010 = vmatpush2.msra.mxu0 %v1788
        %2011 = vmatprep.subr.mxu0 %v1787
        %2012 = vmatpush2.msra.mxu0 %v1786
        %2013 = vmatprep.subr.mxu0 %v1785
        %2014 = vmatpush2.msra.mxu0 %v1784
        %2015 = vmatprep.subr.mxu0 %v1783
        %2016 = vmatpush2.msra.mxu0 %v1782
        %2017 = vmatprep.mubr.f32.mxu0 %v714
        %2018 = vmatmul.mubr.f32.gmra.mxu0 %v713
        %v2019 = vpop.f32.mrf.mxu0
        %v2020 = vadd.f32 %v1949, %v2019
        %v2021 = vpop.f32.mrf.mxu0
        %v2022 = vadd.f32 %v1951, %v2021
        %2023 = vdwg.mxu0
        %2024 = vmatprep.subr.mxu0 %v1845
        %2025 = vmatpush1.msra.mxu0 %v1844
        %2026 = vmatprep.subr.mxu0 %v1843
        %2027 = vmatpush1.msra.mxu0 %v1842
        %2028 = vmatprep.subr.mxu0 %v1841
        %2029 = vmatpush1.msra.mxu0 %v1840
        %2030 = vmatprep.subr.mxu0 %v1839
        %2031 = vmatpush1.msra.mxu0 %v1838
        %2032 = vmatprep.subr.mxu0 %v1837
        %2033 = vmatpush1.msra.mxu0 %v1836
        %2034 = vmatprep.subr.mxu0 %v1835
        %2035 = vmatpush1.msra.mxu0 %v1834
        %2036 = vmatprep.subr.mxu0 %v1833
        %2037 = vmatpush1.msra.mxu0 %v1832
        %2038 = vmatprep.subr.mxu0 %v1831
        %2039 = vmatpush1.msra.mxu0 %v1830
        %2040 = vmatprep.subr.mxu0 %v1829
        %2041 = vmatpush1.msra.mxu0 %v1828
        %2042 = vmatprep.subr.mxu0 %v1827
        %2043 = vmatpush1.msra.mxu0 %v1826
        %2044 = vmatprep.subr.mxu0 %v1825
        %2045 = vmatpush1.msra.mxu0 %v1824
        %2046 = vmatprep.subr.mxu0 %v1823
        %2047 = vmatpush1.msra.mxu0 %v1822
        %2048 = vmatprep.subr.mxu0 %v1821
        %2049 = vmatpush1.msra.mxu0 %v1820
        %2050 = vmatprep.subr.mxu0 %v1819
        %2051 = vmatpush1.msra.mxu0 %v1818
        %2052 = vmatprep.subr.mxu0 %v1817
        %2053 = vmatpush1.msra.mxu0 %v1816
        %2054 = vmatprep.subr.mxu0 %v1815
        %2055 = vmatpush1.msra.mxu0 %v1814
        %2056 = vmatprep.subr.mxu0 %v1877
        %2057 = vmatpush2.msra.mxu0 %v1876
        %2058 = vmatprep.subr.mxu0 %v1875
        %2059 = vmatpush2.msra.mxu0 %v1874
        %2060 = vmatprep.subr.mxu0 %v1873
        %2061 = vmatpush2.msra.mxu0 %v1872
        %2062 = vmatprep.subr.mxu0 %v1871
        %2063 = vmatpush2.msra.mxu0 %v1870
        %2064 = vmatprep.subr.mxu0 %v1869
        %2065 = vmatpush2.msra.mxu0 %v1868
        %2066 = vmatprep.subr.mxu0 %v1867
        %2067 = vmatpush2.msra.mxu0 %v1866
        %2068 = vmatprep.subr.mxu0 %v1865
        %2069 = vmatpush2.msra.mxu0 %v1864
        %2070 = vmatprep.subr.mxu0 %v1863
        %2071 = vmatpush2.msra.mxu0 %v1862
        %2072 = vmatprep.subr.mxu0 %v1861
        %2073 = vmatpush2.msra.mxu0 %v1860
        %2074 = vmatprep.subr.mxu0 %v1859
        %2075 = vmatpush2.msra.mxu0 %v1858
        %2076 = vmatprep.subr.mxu0 %v1857
        %2077 = vmatpush2.msra.mxu0 %v1856
        %2078 = vmatprep.subr.mxu0 %v1855
        %2079 = vmatpush2.msra.mxu0 %v1854
        %2080 = vmatprep.subr.mxu0 %v1853
        %2081 = vmatpush2.msra.mxu0 %v1852
        %2082 = vmatprep.subr.mxu0 %v1851
        %2083 = vmatpush2.msra.mxu0 %v1850
        %2084 = vmatprep.subr.mxu0 %v1849
        %2085 = vmatpush2.msra.mxu0 %v1848
        %2086 = vmatprep.subr.mxu0 %v1847
        %2087 = vmatpush2.msra.mxu0 %v1846
        %2088 = vmatprep.mubr.f32.mxu0 %v716
        %2089 = vmatmul.mubr.f32.gmra.mxu0 %v715
        %v2090 = vpop.f32.mrf.mxu0
        %v2091 = vadd.f32 %v2020, %v2090
        %v2092 = vpop.f32.mrf.mxu0
        %v2093 = vadd.f32 %v2022, %v2092
        %2094 = vdwg.mxu0
        %2095 = vmatprep.subr.mxu0 0.0
        %2096 = vmatpush1.msra.mxu0 0.0
        %2097 = vmatprep.subr.mxu0 0.0
        %2098 = vmatpush1.msra.mxu0 0.0
        %2099 = vmatprep.subr.mxu0 0.0
        %2100 = vmatpush1.msra.mxu0 0.0
        %2101 = vmatprep.subr.mxu0 0.0
        %2102 = vmatpush1.msra.mxu0 0.0
        %2103 = vmatprep.subr.mxu0 0.0
        %2104 = vmatpush1.msra.mxu0 0.0
        %2105 = vmatprep.subr.mxu0 0.0
        %2106 = vmatpush1.msra.mxu0 0.0
        %2107 = vmatprep.subr.mxu0 0.0
        %2108 = vmatpush1.msra.mxu0 0.0
        %2109 = vmatprep.subr.mxu0 0.0
        %2110 = vmatpush1.msra.mxu0 0.0
        %2111 = vmatprep.subr.mxu0 0.0
        %2112 = vmatpush1.msra.mxu0 0.0
        %2113 = vmatprep.subr.mxu0 0.0
        %2114 = vmatpush1.msra.mxu0 0.0
        %2115 = vmatprep.subr.mxu0 0.0
        %2116 = vmatpush1.msra.mxu0 0.0
        %2117 = vmatprep.subr.mxu0 0.0
        %2118 = vmatpush1.msra.mxu0 0.0
        %2119 = vmatprep.subr.mxu0 0.0
        %2120 = vmatpush1.msra.mxu0 0.0
        %2121 = vmatprep.subr.mxu0 0.0
        %2122 = vmatpush1.msra.mxu0 0.0
        %2123 = vmatprep.subr.mxu0 %v1881
        %2124 = vmatpush1.msra.mxu0 %v1880
        %2125 = vmatprep.subr.mxu0 %v1879
        %2126 = vmatpush1.msra.mxu0 %v1878
        %2127 = vmatprep.subr.mxu0 0.0
        %2128 = vmatpush2.msra.mxu0 0.0
        %2129 = vmatprep.subr.mxu0 0.0
        %2130 = vmatpush2.msra.mxu0 0.0
        %2131 = vmatprep.subr.mxu0 0.0
        %2132 = vmatpush2.msra.mxu0 0.0
        %2133 = vmatprep.subr.mxu0 0.0
        %2134 = vmatpush2.msra.mxu0 0.0
        %2135 = vmatprep.subr.mxu0 0.0
        %2136 = vmatpush2.msra.mxu0 0.0
        %2137 = vmatprep.subr.mxu0 0.0
        %2138 = vmatpush2.msra.mxu0 0.0
        %2139 = vmatprep.subr.mxu0 0.0
        %2140 = vmatpush2.msra.mxu0 0.0
        %2141 = vmatprep.subr.mxu0 0.0
        %2142 = vmatpush2.msra.mxu0 0.0
        %2143 = vmatprep.subr.mxu0 0.0
        %2144 = vmatpush2.msra.mxu0 0.0
        %2145 = vmatprep.subr.mxu0 0.0
        %2146 = vmatpush2.msra.mxu0 0.0
        %2147 = vmatprep.subr.mxu0 0.0
        %2148 = vmatpush2.msra.mxu0 0.0
        %2149 = vmatprep.subr.mxu0 0.0
        %2150 = vmatpush2.msra.mxu0 0.0
        %2151 = vmatprep.subr.mxu0 0.0
        %2152 = vmatpush2.msra.mxu0 0.0
        %2153 = vmatprep.subr.mxu0 0.0
        %2154 = vmatpush2.msra.mxu0 0.0
        %2155 = vmatprep.subr.mxu0 0.0
        %2156 = vmatpush2.msra.mxu0 0.0
        %2157 = vmatprep.subr.mxu0 0.0
        %2158 = vmatpush2.msra.mxu0 0.0
        %2159 = vmatprep.mubr.f32.mxu0 0.0
        %2160 = vmatmul.mubr.f32.gmra.mxu0 %v916
        %v2161 = vpop.f32.mrf.mxu0
        %v2162 = vadd.f32 %v2091, %v2161
        %v2163 = vpop.f32.mrf.mxu0
        %v2164 = vadd.f32 %v2093, %v2163
        %2165 = vdwg.mxu0
        %v2166 = vmax.f32 %v1683, %v2162
        %v2167 = vmax.f32 %v1684, %v2164
        %s2168 = scalar_lea.vmem [#allocation7], 4704
        %v2169 = vld [vmem:[%s2168] sm:$0xff]
        %v2170 = vld [vmem:[%s2168 + $0x8] sm:$0xff]
        %v2171 = vld [vmem:[%s2168 + $0x10] sm:$0xff]
        %v2172 = vld [vmem:[%s2168 + $0x18] sm:$0xff]
        %v2173 = vld [vmem:[%s2168 + $0x20] sm:$0xff]
        %v2174 = vld [vmem:[%s2168 + $0x28] sm:$0xff]
        %v2175 = vld [vmem:[%s2168 + $0x30] sm:$0xff]
        %v2176 = vld [vmem:[%s2168 + $0x38] sm:$0xff]
        %v2177 = vld [vmem:[%s2168 + $0x40] sm:$0xff]
        %v2178 = vld [vmem:[%s2168 + $0x48] sm:$0xff]
        %v2179 = vld [vmem:[%s2168 + $0x50] sm:$0xff]
        %v2180 = vld [vmem:[%s2168 + $0x58] sm:$0xff]
        %v2181 = vld [vmem:[%s2168 + $0x60] sm:$0xff]
        %v2182 = vld [vmem:[%s2168 + $0x68] sm:$0xff]
        %v2183 = vld [vmem:[%s2168 + $0x70] sm:$0xff]
        %v2184 = vld [vmem:[%s2168 + $0x78] sm:$0xff]
        %v2185 = vld [vmem:[%s2168 + $0x80] sm:$0xff]
        %v2186 = vld [vmem:[%s2168 + $0x88] sm:$0xff]
        %v2187 = vld [vmem:[%s2168 + $0x90] sm:$0xff]
        %v2188 = vld [vmem:[%s2168 + $0x98] sm:$0xff]
        %v2189 = vld [vmem:[%s2168 + $0xa0] sm:$0xff]
        %v2190 = vld [vmem:[%s2168 + $0xa8] sm:$0xff]
        %v2191 = vld [vmem:[%s2168 + $0xb0] sm:$0xff]
        %v2192 = vld [vmem:[%s2168 + $0xb8] sm:$0xff]
        %v2193 = vld [vmem:[%s2168 + $0xc0] sm:$0xff]
        %v2194 = vld [vmem:[%s2168 + $0xc8] sm:$0xff]
        %v2195 = vld [vmem:[%s2168 + $0xd0] sm:$0xff]
        %v2196 = vld [vmem:[%s2168 + $0xd8] sm:$0xff]
        %v2197 = vld [vmem:[%s2168 + $0xe0] sm:$0xff]
        %v2198 = vld [vmem:[%s2168 + $0xe8] sm:$0xff]
        %v2199 = vld [vmem:[%s2168 + $0xf0] sm:$0xff]
        %v2200 = vld [vmem:[%s2168 + $0xf8] sm:$0xff]
        %v2201 = vld [vmem:[%s2168 + $0x100] sm:$0xff]
        %v2202 = vld [vmem:[%s2168 + $0x108] sm:$0xff]
        %v2203 = vld [vmem:[%s2168 + $0x110] sm:$0xff]
        %v2204 = vld [vmem:[%s2168 + $0x118] sm:$0xff]
        %v2205 = vld [vmem:[%s2168 + $0x120] sm:$0xff]
        %v2206 = vld [vmem:[%s2168 + $0x128] sm:$0xff]
        %v2207 = vld [vmem:[%s2168 + $0x130] sm:$0xff]
        %v2208 = vld [vmem:[%s2168 + $0x138] sm:$0xff]
        %v2209 = vld [vmem:[%s2168 + $0x140] sm:$0xff]
        %v2210 = vld [vmem:[%s2168 + $0x148] sm:$0xff]
        %v2211 = vld [vmem:[%s2168 + $0x150] sm:$0xff]
        %v2212 = vld [vmem:[%s2168 + $0x158] sm:$0xff]
        %v2213 = vld [vmem:[%s2168 + $0x160] sm:$0xff]
        %v2214 = vld [vmem:[%s2168 + $0x168] sm:$0xff]
        %v2215 = vld [vmem:[%s2168 + $0x170] sm:$0xff]
        %v2216 = vld [vmem:[%s2168 + $0x178] sm:$0xff]
        %v2217 = vld [vmem:[%s2168 + $0x180] sm:$0xff]
        %v2218 = vld [vmem:[%s2168 + $0x188] sm:$0xff]
        %v2219 = vld [vmem:[%s2168 + $0x190] sm:$0xff]
        %v2220 = vld [vmem:[%s2168 + $0x198] sm:$0xff]
        %v2221 = vld [vmem:[%s2168 + $0x1a0] sm:$0xff]
        %v2222 = vld [vmem:[%s2168 + $0x1a8] sm:$0xff]
        %v2223 = vld [vmem:[%s2168 + $0x1b0] sm:$0xff]
        %v2224 = vld [vmem:[%s2168 + $0x1b8] sm:$0xff]
        %v2225 = vld [vmem:[%s2168 + $0x1c0] sm:$0xff]
        %v2226 = vld [vmem:[%s2168 + $0x1c8] sm:$0xff]
        %v2227 = vld [vmem:[%s2168 + $0x1d0] sm:$0xff]
        %v2228 = vld [vmem:[%s2168 + $0x1d8] sm:$0xff]
        %v2229 = vld [vmem:[%s2168 + $0x1e0] sm:$0xff]
        %v2230 = vld [vmem:[%s2168 + $0x1e8] sm:$0xff]
        %v2231 = vld [vmem:[%s2168 + $0x1f0] sm:$0xff]
        %v2232 = vld [vmem:[%s2168 + $0x1f8] sm:$0xff]
        %v2233 = vld [vmem:[%s2168 + $0x200] sm:$0xff]
        %v2234 = vld [vmem:[%s2168 + $0x208] sm:$0xff]
        %v2235 = vld [vmem:[%s2168 + $0x210] sm:$0xff]
        %v2236 = vld [vmem:[%s2168 + $0x218] sm:$0xff]
        %v2237 = vld [vmem:[%s2168 + $0x220] sm:$0xff]
        %v2238 = vld [vmem:[%s2168 + $0x228] sm:$0xff]
        %v2239 = vld [vmem:[%s2168 + $0x230] sm:$0xff]
        %v2240 = vld [vmem:[%s2168 + $0x238] sm:$0xff]
        %v2241 = vld [vmem:[%s2168 + $0x240] sm:$0xff]
        %v2242 = vld [vmem:[%s2168 + $0x248] sm:$0xff]
        %v2243 = vld [vmem:[%s2168 + $0x250] sm:$0xff]
        %v2244 = vld [vmem:[%s2168 + $0x258] sm:$0xff]
        %v2245 = vld [vmem:[%s2168 + $0x260] sm:$0xff]
        %v2246 = vld [vmem:[%s2168 + $0x268] sm:$0xff]
        %v2247 = vld [vmem:[%s2168 + $0x270] sm:$0xff]
        %v2248 = vld [vmem:[%s2168 + $0x278] sm:$0xff]
        %v2249 = vld [vmem:[%s2168 + $0x280] sm:$0xff]
        %v2250 = vld [vmem:[%s2168 + $0x288] sm:$0xff]
        %v2251 = vld [vmem:[%s2168 + $0x290] sm:$0xff]
        %v2252 = vld [vmem:[%s2168 + $0x298] sm:$0xff]
        %v2253 = vld [vmem:[%s2168 + $0x2a0] sm:$0xff]
        %v2254 = vld [vmem:[%s2168 + $0x2a8] sm:$0xff]
        %v2255 = vld [vmem:[%s2168 + $0x2b0] sm:$0xff]
        %v2256 = vld [vmem:[%s2168 + $0x2b8] sm:$0xff]
        %v2257 = vld [vmem:[%s2168 + $0x2c0] sm:$0xff]
        %v2258 = vld [vmem:[%s2168 + $0x2c8] sm:$0xff]
        %v2259 = vld [vmem:[%s2168 + $0x2d0] sm:$0xff]
        %v2260 = vld [vmem:[%s2168 + $0x2d8] sm:$0xff]
        %v2261 = vld [vmem:[%s2168 + $0x2e0] sm:$0xff]
        %v2262 = vld [vmem:[%s2168 + $0x2e8] sm:$0xff]
        %v2263 = vld [vmem:[%s2168 + $0x2f0] sm:$0xff]
        %v2264 = vld [vmem:[%s2168 + $0x2f8] sm:$0xff]
        %v2265 = vld [vmem:[%s2168 + $0x300] sm:$0xff]
        %v2266 = vld [vmem:[%s2168 + $0x308] sm:$0xff]
        %v2267 = vld [vmem:[%s2168 + $0x310] sm:$0xff]
        %v2268 = vld [vmem:[%s2168 + $0x318] sm:$0xff]
        %v2269 = vld [vmem:[%s2168 + $0x320] sm:$0xff]
        %v2270 = vld [vmem:[%s2168 + $0x328] sm:$0xff]
        %v2271 = vld [vmem:[%s2168 + $0x330] sm:$0xff]
        %v2272 = vld [vmem:[%s2168 + $0x338] sm:$0xff]
        %v2273 = vld [vmem:[%s2168 + $0x340] sm:$0xff]
        %v2274 = vld [vmem:[%s2168 + $0x348] sm:$0xff]
        %v2275 = vld [vmem:[%s2168 + $0x350] sm:$0xff]
        %v2276 = vld [vmem:[%s2168 + $0x358] sm:$0xff]
        %v2277 = vld [vmem:[%s2168 + $0x360] sm:$0xff]
        %v2278 = vld [vmem:[%s2168 + $0x368] sm:$0xff]
        %v2279 = vld [vmem:[%s2168 + $0x370] sm:$0xff]
        %v2280 = vld [vmem:[%s2168 + $0x378] sm:$0xff]
        %v2281 = vld [vmem:[%s2168 + $0x380] sm:$0xff]
        %v2282 = vld [vmem:[%s2168 + $0x388] sm:$0xff]
        %v2283 = vld [vmem:[%s2168 + $0x390] sm:$0xff]
        %v2284 = vld [vmem:[%s2168 + $0x398] sm:$0xff]
        %v2285 = vld [vmem:[%s2168 + $0x3a0] sm:$0xff]
        %v2286 = vld [vmem:[%s2168 + $0x3a8] sm:$0xff]
        %v2287 = vld [vmem:[%s2168 + $0x3b0] sm:$0xff]
        %v2288 = vld [vmem:[%s2168 + $0x3b8] sm:$0xff]
        %v2289 = vld [vmem:[%s2168 + $0x3c0] sm:$0xff]
        %v2290 = vld [vmem:[%s2168 + $0x3c8] sm:$0xff]
        %v2291 = vld [vmem:[%s2168 + $0x3d0] sm:$0xff]
        %v2292 = vld [vmem:[%s2168 + $0x3d8] sm:$0xff]
        %v2293 = vld [vmem:[%s2168 + $0x3e0] sm:$0xff]
        %v2294 = vld [vmem:[%s2168 + $0x3e8] sm:$0xff]
        %v2295 = vld [vmem:[%s2168 + $0x3f0] sm:$0xff]
        %v2296 = vld [vmem:[%s2168 + $0x3f8] sm:$0xff]
        %v2297 = vld [vmem:[%s2168 + $0x400] sm:$0xff]
        %v2298 = vld [vmem:[%s2168 + $0x408] sm:$0xff]
        %v2299 = vld [vmem:[%s2168 + $0x410] sm:$0xff]
        %v2300 = vld [vmem:[%s2168 + $0x418] sm:$0xff]
        %v2301 = vld [vmem:[%s2168 + $0x420] sm:$0xff]
        %v2302 = vld [vmem:[%s2168 + $0x428] sm:$0xff]
        %v2303 = vld [vmem:[%s2168 + $0x430] sm:$0xff]
        %v2304 = vld [vmem:[%s2168 + $0x438] sm:$0xff]
        %v2305 = vld [vmem:[%s2168 + $0x440] sm:$0xff]
        %v2306 = vld [vmem:[%s2168 + $0x448] sm:$0xff]
        %v2307 = vld [vmem:[%s2168 + $0x450] sm:$0xff]
        %v2308 = vld [vmem:[%s2168 + $0x458] sm:$0xff]
        %v2309 = vld [vmem:[%s2168 + $0x460] sm:$0xff]
        %v2310 = vld [vmem:[%s2168 + $0x468] sm:$0xff]
        %v2311 = vld [vmem:[%s2168 + $0x470] sm:$0xff]
        %v2312 = vld [vmem:[%s2168 + $0x478] sm:$0xff]
        %v2313 = vld [vmem:[%s2168 + $0x480] sm:$0xff]
        %v2314 = vld [vmem:[%s2168 + $0x488] sm:$0xff]
        %v2315 = vld [vmem:[%s2168 + $0x490] sm:$0xff]
        %v2316 = vld [vmem:[%s2168 + $0x498] sm:$0xff]
        %v2317 = vld [vmem:[%s2168 + $0x4a0] sm:$0xff]
        %v2318 = vld [vmem:[%s2168 + $0x4a8] sm:$0xff]
        %v2319 = vld [vmem:[%s2168 + $0x4b0] sm:$0xff]
        %v2320 = vld [vmem:[%s2168 + $0x4b8] sm:$0xff]
        %v2321 = vld [vmem:[%s2168 + $0x4c0] sm:$0xff]
        %v2322 = vld [vmem:[%s2168 + $0x4c8] sm:$0xff]
        %v2323 = vld [vmem:[%s2168 + $0x4d0] sm:$0xff]
        %v2324 = vld [vmem:[%s2168 + $0x4d8] sm:$0xff]
        %v2325 = vld [vmem:[%s2168 + $0x4e0] sm:$0xff]
        %v2326 = vld [vmem:[%s2168 + $0x4e8] sm:$0xff]
        %v2327 = vld [vmem:[%s2168 + $0x4f0] sm:$0xff]
        %v2328 = vld [vmem:[%s2168 + $0x4f8] sm:$0xff]
        %v2329 = vld [vmem:[%s2168 + $0x500] sm:$0xff]
        %v2330 = vld [vmem:[%s2168 + $0x508] sm:$0xff]
        %v2331 = vld [vmem:[%s2168 + $0x510] sm:$0xff]
        %v2332 = vld [vmem:[%s2168 + $0x518] sm:$0xff]
        %v2333 = vld [vmem:[%s2168 + $0x520] sm:$0xff]
        %v2334 = vld [vmem:[%s2168 + $0x528] sm:$0xff]
        %v2335 = vld [vmem:[%s2168 + $0x530] sm:$0xff]
        %v2336 = vld [vmem:[%s2168 + $0x538] sm:$0xff]
        %v2337 = vld [vmem:[%s2168 + $0x540] sm:$0xff]
        %v2338 = vld [vmem:[%s2168 + $0x548] sm:$0xff]
        %v2339 = vld [vmem:[%s2168 + $0x550] sm:$0xff]
        %v2340 = vld [vmem:[%s2168 + $0x558] sm:$0xff]
        %v2341 = vld [vmem:[%s2168 + $0x560] sm:$0xff]
        %v2342 = vld [vmem:[%s2168 + $0x568] sm:$0xff]
        %v2343 = vld [vmem:[%s2168 + $0x570] sm:$0xff]
        %v2344 = vld [vmem:[%s2168 + $0x578] sm:$0xff]
        %v2345 = vld [vmem:[%s2168 + $0x580] sm:$0xff]
        %v2346 = vld [vmem:[%s2168 + $0x588] sm:$0xff]
        %v2347 = vld [vmem:[%s2168 + $0x590] sm:$0xff]
        %v2348 = vld [vmem:[%s2168 + $0x598] sm:$0xff]
        %v2349 = vld [vmem:[%s2168 + $0x5a0] sm:$0xff]
        %v2350 = vld [vmem:[%s2168 + $0x5a8] sm:$0xff]
        %v2351 = vld [vmem:[%s2168 + $0x5b0] sm:$0xff]
        %v2352 = vld [vmem:[%s2168 + $0x5b8] sm:$0xff]
        %v2353 = vld [vmem:[%s2168 + $0x5c0] sm:$0xff]
        %v2354 = vld [vmem:[%s2168 + $0x5c8] sm:$0xff]
        %v2355 = vld [vmem:[%s2168 + $0x5d0] sm:$0xff]
        %v2356 = vld [vmem:[%s2168 + $0x5d8] sm:$0xff]
        %v2357 = vld [vmem:[%s2168 + $0x5e0] sm:$0xff]
        %v2358 = vld [vmem:[%s2168 + $0x5e8] sm:$0xff]
        %v2359 = vld [vmem:[%s2168 + $0x5f0] sm:$0xff]
        %v2360 = vld [vmem:[%s2168 + $0x5f8] sm:$0xff]
        %v2361 = vld [vmem:[%s2168 + $0x600] sm:$0xff]
        %v2362 = vld [vmem:[%s2168 + $0x608] sm:$0xff]
        %v2363 = vld [vmem:[%s2168 + $0x610] sm:$0xff]
        %v2364 = vld [vmem:[%s2168 + $0x618] sm:$0xff]
        %2365 = vmatprep.subr.mxu0 %v2200
        %2366 = vmatpush1.msra.mxu0 %v2199
        %2367 = vmatprep.subr.mxu0 %v2198
        %2368 = vmatpush1.msra.mxu0 %v2197
        %2369 = vmatprep.subr.mxu0 %v2196
        %2370 = vmatpush1.msra.mxu0 %v2195
        %2371 = vmatprep.subr.mxu0 %v2194
        %2372 = vmatpush1.msra.mxu0 %v2193
        %2373 = vmatprep.subr.mxu0 %v2192
        %2374 = vmatpush1.msra.mxu0 %v2191
        %2375 = vmatprep.subr.mxu0 %v2190
        %2376 = vmatpush1.msra.mxu0 %v2189
        %2377 = vmatprep.subr.mxu0 %v2188
        %2378 = vmatpush1.msra.mxu0 %v2187
        %2379 = vmatprep.subr.mxu0 %v2186
        %2380 = vmatpush1.msra.mxu0 %v2185
        %2381 = vmatprep.subr.mxu0 %v2184
        %2382 = vmatpush1.msra.mxu0 %v2183
        %2383 = vmatprep.subr.mxu0 %v2182
        %2384 = vmatpush1.msra.mxu0 %v2181
        %2385 = vmatprep.subr.mxu0 %v2180
        %2386 = vmatpush1.msra.mxu0 %v2179
        %2387 = vmatprep.subr.mxu0 %v2178
        %2388 = vmatpush1.msra.mxu0 %v2177
        %2389 = vmatprep.subr.mxu0 %v2176
        %2390 = vmatpush1.msra.mxu0 %v2175
        %2391 = vmatprep.subr.mxu0 %v2174
        %2392 = vmatpush1.msra.mxu0 %v2173
        %2393 = vmatprep.subr.mxu0 %v2172
        %2394 = vmatpush1.msra.mxu0 %v2171
        %2395 = vmatprep.subr.mxu0 %v2170
        %2396 = vmatpush1.msra.mxu0 %v2169
        %2397 = vmatprep.subr.mxu0 %v2232
        %2398 = vmatpush2.msra.mxu0 %v2231
        %2399 = vmatprep.subr.mxu0 %v2230
        %2400 = vmatpush2.msra.mxu0 %v2229
        %2401 = vmatprep.subr.mxu0 %v2228
        %2402 = vmatpush2.msra.mxu0 %v2227
        %2403 = vmatprep.subr.mxu0 %v2226
        %2404 = vmatpush2.msra.mxu0 %v2225
        %2405 = vmatprep.subr.mxu0 %v2224
        %2406 = vmatpush2.msra.mxu0 %v2223
        %2407 = vmatprep.subr.mxu0 %v2222
        %2408 = vmatpush2.msra.mxu0 %v2221
        %2409 = vmatprep.subr.mxu0 %v2220
        %2410 = vmatpush2.msra.mxu0 %v2219
        %2411 = vmatprep.subr.mxu0 %v2218
        %2412 = vmatpush2.msra.mxu0 %v2217
        %2413 = vmatprep.subr.mxu0 %v2216
        %2414 = vmatpush2.msra.mxu0 %v2215
        %2415 = vmatprep.subr.mxu0 %v2214
        %2416 = vmatpush2.msra.mxu0 %v2213
        %2417 = vmatprep.subr.mxu0 %v2212
        %2418 = vmatpush2.msra.mxu0 %v2211
        %2419 = vmatprep.subr.mxu0 %v2210
        %2420 = vmatpush2.msra.mxu0 %v2209
        %2421 = vmatprep.subr.mxu0 %v2208
        %2422 = vmatpush2.msra.mxu0 %v2207
        %2423 = vmatprep.subr.mxu0 %v2206
        %2424 = vmatpush2.msra.mxu0 %v2205
        %2425 = vmatprep.subr.mxu0 %v2204
        %2426 = vmatpush2.msra.mxu0 %v2203
        %2427 = vmatprep.subr.mxu0 %v2202
        %2428 = vmatpush2.msra.mxu0 %v2201
        %2429 = vmatprep.mubr.f32.mxu0 %v712
        %2430 = vmatmul.mubr.f32.gmra.mxu0 %v711
        %v2431 = vpop.f32.mrf.mxu0
        %v2432 = vadd.f32 0.0, %v2431
        %v2433 = vpop.f32.mrf.mxu0
        %v2434 = vadd.f32 0.0, %v2433
        %2435 = vdwg.mxu0
        %2436 = vmatprep.subr.mxu0 %v2264
        %2437 = vmatpush1.msra.mxu0 %v2263
        %2438 = vmatprep.subr.mxu0 %v2262
        %2439 = vmatpush1.msra.mxu0 %v2261
        %2440 = vmatprep.subr.mxu0 %v2260
        %2441 = vmatpush1.msra.mxu0 %v2259
        %2442 = vmatprep.subr.mxu0 %v2258
        %2443 = vmatpush1.msra.mxu0 %v2257
        %2444 = vmatprep.subr.mxu0 %v2256
        %2445 = vmatpush1.msra.mxu0 %v2255
        %2446 = vmatprep.subr.mxu0 %v2254
        %2447 = vmatpush1.msra.mxu0 %v2253
        %2448 = vmatprep.subr.mxu0 %v2252
        %2449 = vmatpush1.msra.mxu0 %v2251
        %2450 = vmatprep.subr.mxu0 %v2250
        %2451 = vmatpush1.msra.mxu0 %v2249
        %2452 = vmatprep.subr.mxu0 %v2248
        %2453 = vmatpush1.msra.mxu0 %v2247
        %2454 = vmatprep.subr.mxu0 %v2246
        %2455 = vmatpush1.msra.mxu0 %v2245
        %2456 = vmatprep.subr.mxu0 %v2244
        %2457 = vmatpush1.msra.mxu0 %v2243
        %2458 = vmatprep.subr.mxu0 %v2242
        %2459 = vmatpush1.msra.mxu0 %v2241
        %2460 = vmatprep.subr.mxu0 %v2240
        %2461 = vmatpush1.msra.mxu0 %v2239
        %2462 = vmatprep.subr.mxu0 %v2238
        %2463 = vmatpush1.msra.mxu0 %v2237
        %2464 = vmatprep.subr.mxu0 %v2236
        %2465 = vmatpush1.msra.mxu0 %v2235
        %2466 = vmatprep.subr.mxu0 %v2234
        %2467 = vmatpush1.msra.mxu0 %v2233
        %2468 = vmatprep.subr.mxu0 %v2296
        %2469 = vmatpush2.msra.mxu0 %v2295
        %2470 = vmatprep.subr.mxu0 %v2294
        %2471 = vmatpush2.msra.mxu0 %v2293
        %2472 = vmatprep.subr.mxu0 %v2292
        %2473 = vmatpush2.msra.mxu0 %v2291
        %2474 = vmatprep.subr.mxu0 %v2290
        %2475 = vmatpush2.msra.mxu0 %v2289
        %2476 = vmatprep.subr.mxu0 %v2288
        %2477 = vmatpush2.msra.mxu0 %v2287
        %2478 = vmatprep.subr.mxu0 %v2286
        %2479 = vmatpush2.msra.mxu0 %v2285
        %2480 = vmatprep.subr.mxu0 %v2284
        %2481 = vmatpush2.msra.mxu0 %v2283
        %2482 = vmatprep.subr.mxu0 %v2282
        %2483 = vmatpush2.msra.mxu0 %v2281
        %2484 = vmatprep.subr.mxu0 %v2280
        %2485 = vmatpush2.msra.mxu0 %v2279
        %2486 = vmatprep.subr.mxu0 %v2278
        %2487 = vmatpush2.msra.mxu0 %v2277
        %2488 = vmatprep.subr.mxu0 %v2276
        %2489 = vmatpush2.msra.mxu0 %v2275
        %2490 = vmatprep.subr.mxu0 %v2274
        %2491 = vmatpush2.msra.mxu0 %v2273
        %2492 = vmatprep.subr.mxu0 %v2272
        %2493 = vmatpush2.msra.mxu0 %v2271
        %2494 = vmatprep.subr.mxu0 %v2270
        %2495 = vmatpush2.msra.mxu0 %v2269
        %2496 = vmatprep.subr.mxu0 %v2268
        %2497 = vmatpush2.msra.mxu0 %v2267
        %2498 = vmatprep.subr.mxu0 %v2266
        %2499 = vmatpush2.msra.mxu0 %v2265
        %2500 = vmatprep.mubr.f32.mxu0 %v714
        %2501 = vmatmul.mubr.f32.gmra.mxu0 %v713
        %v2502 = vpop.f32.mrf.mxu0
        %v2503 = vadd.f32 %v2432, %v2502
        %v2504 = vpop.f32.mrf.mxu0
        %v2505 = vadd.f32 %v2434, %v2504
        %2506 = vdwg.mxu0
        %2507 = vmatprep.subr.mxu0 %v2328
        %2508 = vmatpush1.msra.mxu0 %v2327
        %2509 = vmatprep.subr.mxu0 %v2326
        %2510 = vmatpush1.msra.mxu0 %v2325
        %2511 = vmatprep.subr.mxu0 %v2324
        %2512 = vmatpush1.msra.mxu0 %v2323
        %2513 = vmatprep.subr.mxu0 %v2322
        %2514 = vmatpush1.msra.mxu0 %v2321
        %2515 = vmatprep.subr.mxu0 %v2320
        %2516 = vmatpush1.msra.mxu0 %v2319
        %2517 = vmatprep.subr.mxu0 %v2318
        %2518 = vmatpush1.msra.mxu0 %v2317
        %2519 = vmatprep.subr.mxu0 %v2316
        %2520 = vmatpush1.msra.mxu0 %v2315
        %2521 = vmatprep.subr.mxu0 %v2314
        %2522 = vmatpush1.msra.mxu0 %v2313
        %2523 = vmatprep.subr.mxu0 %v2312
        %2524 = vmatpush1.msra.mxu0 %v2311
        %2525 = vmatprep.subr.mxu0 %v2310
        %2526 = vmatpush1.msra.mxu0 %v2309
        %2527 = vmatprep.subr.mxu0 %v2308
        %2528 = vmatpush1.msra.mxu0 %v2307
        %2529 = vmatprep.subr.mxu0 %v2306
        %2530 = vmatpush1.msra.mxu0 %v2305
        %2531 = vmatprep.subr.mxu0 %v2304
        %2532 = vmatpush1.msra.mxu0 %v2303
        %2533 = vmatprep.subr.mxu0 %v2302
        %2534 = vmatpush1.msra.mxu0 %v2301
        %2535 = vmatprep.subr.mxu0 %v2300
        %2536 = vmatpush1.msra.mxu0 %v2299
        %2537 = vmatprep.subr.mxu0 %v2298
        %2538 = vmatpush1.msra.mxu0 %v2297
        %2539 = vmatprep.subr.mxu0 %v2360
        %2540 = vmatpush2.msra.mxu0 %v2359
        %2541 = vmatprep.subr.mxu0 %v2358
        %2542 = vmatpush2.msra.mxu0 %v2357
        %2543 = vmatprep.subr.mxu0 %v2356
        %2544 = vmatpush2.msra.mxu0 %v2355
        %2545 = vmatprep.subr.mxu0 %v2354
        %2546 = vmatpush2.msra.mxu0 %v2353
        %2547 = vmatprep.subr.mxu0 %v2352
        %2548 = vmatpush2.msra.mxu0 %v2351
        %2549 = vmatprep.subr.mxu0 %v2350
        %2550 = vmatpush2.msra.mxu0 %v2349
        %2551 = vmatprep.subr.mxu0 %v2348
        %2552 = vmatpush2.msra.mxu0 %v2347
        %2553 = vmatprep.subr.mxu0 %v2346
        %2554 = vmatpush2.msra.mxu0 %v2345
        %2555 = vmatprep.subr.mxu0 %v2344
        %2556 = vmatpush2.msra.mxu0 %v2343
        %2557 = vmatprep.subr.mxu0 %v2342
        %2558 = vmatpush2.msra.mxu0 %v2341
        %2559 = vmatprep.subr.mxu0 %v2340
        %2560 = vmatpush2.msra.mxu0 %v2339
        %2561 = vmatprep.subr.mxu0 %v2338
        %2562 = vmatpush2.msra.mxu0 %v2337
        %2563 = vmatprep.subr.mxu0 %v2336
        %2564 = vmatpush2.msra.mxu0 %v2335
        %2565 = vmatprep.subr.mxu0 %v2334
        %2566 = vmatpush2.msra.mxu0 %v2333
        %2567 = vmatprep.subr.mxu0 %v2332
        %2568 = vmatpush2.msra.mxu0 %v2331
        %2569 = vmatprep.subr.mxu0 %v2330
        %2570 = vmatpush2.msra.mxu0 %v2329
        %2571 = vmatprep.mubr.f32.mxu0 %v716
        %2572 = vmatmul.mubr.f32.gmra.mxu0 %v715
        %v2573 = vpop.f32.mrf.mxu0
        %v2574 = vadd.f32 %v2503, %v2573
        %v2575 = vpop.f32.mrf.mxu0
        %v2576 = vadd.f32 %v2505, %v2575
        %2577 = vdwg.mxu0
        %2578 = vmatprep.subr.mxu0 0.0
        %2579 = vmatpush1.msra.mxu0 0.0
        %2580 = vmatprep.subr.mxu0 0.0
        %2581 = vmatpush1.msra.mxu0 0.0
        %2582 = vmatprep.subr.mxu0 0.0
        %2583 = vmatpush1.msra.mxu0 0.0
        %2584 = vmatprep.subr.mxu0 0.0
        %2585 = vmatpush1.msra.mxu0 0.0
        %2586 = vmatprep.subr.mxu0 0.0
        %2587 = vmatpush1.msra.mxu0 0.0
        %2588 = vmatprep.subr.mxu0 0.0
        %2589 = vmatpush1.msra.mxu0 0.0
        %2590 = vmatprep.subr.mxu0 0.0
        %2591 = vmatpush1.msra.mxu0 0.0
        %2592 = vmatprep.subr.mxu0 0.0
        %2593 = vmatpush1.msra.mxu0 0.0
        %2594 = vmatprep.subr.mxu0 0.0
        %2595 = vmatpush1.msra.mxu0 0.0
        %2596 = vmatprep.subr.mxu0 0.0
        %2597 = vmatpush1.msra.mxu0 0.0
        %2598 = vmatprep.subr.mxu0 0.0
        %2599 = vmatpush1.msra.mxu0 0.0
        %2600 = vmatprep.subr.mxu0 0.0
        %2601 = vmatpush1.msra.mxu0 0.0
        %2602 = vmatprep.subr.mxu0 0.0
        %2603 = vmatpush1.msra.mxu0 0.0
        %2604 = vmatprep.subr.mxu0 0.0
        %2605 = vmatpush1.msra.mxu0 0.0
        %2606 = vmatprep.subr.mxu0 %v2364
        %2607 = vmatpush1.msra.mxu0 %v2363
        %2608 = vmatprep.subr.mxu0 %v2362
        %2609 = vmatpush1.msra.mxu0 %v2361
        %2610 = vmatprep.subr.mxu0 0.0
        %2611 = vmatpush2.msra.mxu0 0.0
        %2612 = vmatprep.subr.mxu0 0.0
        %2613 = vmatpush2.msra.mxu0 0.0
        %2614 = vmatprep.subr.mxu0 0.0
        %2615 = vmatpush2.msra.mxu0 0.0
        %2616 = vmatprep.subr.mxu0 0.0
        %2617 = vmatpush2.msra.mxu0 0.0
        %2618 = vmatprep.subr.mxu0 0.0
        %2619 = vmatpush2.msra.mxu0 0.0
        %2620 = vmatprep.subr.mxu0 0.0
        %2621 = vmatpush2.msra.mxu0 0.0
        %2622 = vmatprep.subr.mxu0 0.0
        %2623 = vmatpush2.msra.mxu0 0.0
        %2624 = vmatprep.subr.mxu0 0.0
        %2625 = vmatpush2.msra.mxu0 0.0
        %2626 = vmatprep.subr.mxu0 0.0
        %2627 = vmatpush2.msra.mxu0 0.0
        %2628 = vmatprep.subr.mxu0 0.0
        %2629 = vmatpush2.msra.mxu0 0.0
        %2630 = vmatprep.subr.mxu0 0.0
        %2631 = vmatpush2.msra.mxu0 0.0
        %2632 = vmatprep.subr.mxu0 0.0
        %2633 = vmatpush2.msra.mxu0 0.0
        %2634 = vmatprep.subr.mxu0 0.0
        %2635 = vmatpush2.msra.mxu0 0.0
        %2636 = vmatprep.subr.mxu0 0.0
        %2637 = vmatpush2.msra.mxu0 0.0
        %2638 = vmatprep.subr.mxu0 0.0
        %2639 = vmatpush2.msra.mxu0 0.0
        %2640 = vmatprep.subr.mxu0 0.0
        %2641 = vmatpush2.msra.mxu0 0.0
        %2642 = vmatprep.mubr.f32.mxu0 0.0
        %2643 = vmatmul.mubr.f32.gmra.mxu0 %v916
        %v2644 = vpop.f32.mrf.mxu0
        %v2645 = vadd.f32 %v2574, %v2644
        %v2646 = vpop.f32.mrf.mxu0
        %v2647 = vadd.f32 %v2576, %v2646
        %2648 = vdwg.mxu0
        %v2649 = vmax.f32 %v2166, %v2645
        %v2650 = vmax.f32 %v2167, %v2647
        %v2651 = vld [vmem:[#allocation11] sm:$0xff]
        %v2652 = vld [vmem:[#allocation11 + $0x8] sm:$0xff]
        %v2653 = vld [vmem:[#allocation11 + $0x10] sm:$0xff]
        %v2654 = vld [vmem:[#allocation11 + $0x18] sm:$0xff]
        %v2655 = vld [vmem:[#allocation11 + $0x20] sm:$0xff]
        %v2656 = vld [vmem:[#allocation11 + $0x28] sm:$0xff]
        %v2657 = vld [vmem:[#allocation11 + $0x30] sm:$0xff]
        %v2658 = vld [vmem:[#allocation11 + $0x38] sm:$0xff]
        %v2659 = vld [vmem:[#allocation11 + $0x40] sm:$0xff]
        %v2660 = vld [vmem:[#allocation11 + $0x48] sm:$0xff]
        %v2661 = vld [vmem:[#allocation11 + $0x50] sm:$0xff]
        %v2662 = vld [vmem:[#allocation11 + $0x58] sm:$0xff]
        %v2663 = vld [vmem:[#allocation11 + $0x60] sm:$0xff]
        %v2664 = vld [vmem:[#allocation11 + $0x68] sm:$0xff]
        %v2665 = vld [vmem:[#allocation11 + $0x70] sm:$0xff]
        %v2666 = vld [vmem:[#allocation11 + $0x78] sm:$0xff]
        %v2667 = vld [vmem:[#allocation11 + $0x80] sm:$0xff]
        %v2668 = vld [vmem:[#allocation11 + $0x88] sm:$0xff]
        %v2669 = vld [vmem:[#allocation11 + $0x90] sm:$0xff]
        %v2670 = vld [vmem:[#allocation11 + $0x98] sm:$0xff]
        %v2671 = vld [vmem:[#allocation11 + $0xa0] sm:$0xff]
        %v2672 = vld [vmem:[#allocation11 + $0xa8] sm:$0xff]
        %v2673 = vld [vmem:[#allocation11 + $0xb0] sm:$0xff]
        %v2674 = vld [vmem:[#allocation11 + $0xb8] sm:$0xff]
        %v2675 = vld [vmem:[#allocation11 + $0xc0] sm:$0xf]
        %vm2676 = vcmask 556032
        %v2678 = vsel %vm2676, %v2650, 0
        %vm2680 = vcmask 1043456
        %v2682 = vsel %vm2680, %v2675, 0
        %2684 = vmatprep.subr.mxu0 0.0
        %2685 = vmatpush1.msra.mxu0 %v2666
        %2686 = vmatprep.subr.mxu0 0.0
        %2687 = vmatpush1.msra.mxu0 %v2665
        %2688 = vmatprep.subr.mxu0 0.0
        %2689 = vmatpush1.msra.mxu0 %v2664
        %2690 = vmatprep.subr.mxu0 0.0
        %2691 = vmatpush1.msra.mxu0 %v2663
        %2692 = vmatprep.subr.mxu0 0.0
        %2693 = vmatpush1.msra.mxu0 %v2662
        %2694 = vmatprep.subr.mxu0 0.0
        %2695 = vmatpush1.msra.mxu0 %v2661
        %2696 = vmatprep.subr.mxu0 0.0
        %2697 = vmatpush1.msra.mxu0 %v2660
        %2698 = vmatprep.subr.mxu0 0.0
        %2699 = vmatpush1.msra.mxu0 %v2659
        %2700 = vmatprep.subr.mxu0 0.0
        %2701 = vmatpush1.msra.mxu0 %v2658
        %2702 = vmatprep.subr.mxu0 0.0
        %2703 = vmatpush1.msra.mxu0 %v2657
        %2704 = vmatprep.subr.mxu0 0.0
        %2705 = vmatpush1.msra.mxu0 %v2656
        %2706 = vmatprep.subr.mxu0 0.0
        %2707 = vmatpush1.msra.mxu0 %v2655
        %2708 = vmatprep.subr.mxu0 0.0
        %2709 = vmatpush1.msra.mxu0 %v2654
        %2710 = vmatprep.subr.mxu0 0.0
        %2711 = vmatpush1.msra.mxu0 %v2653
        %2712 = vmatprep.subr.mxu0 0.0
        %2713 = vmatpush1.msra.mxu0 %v2652
        %2714 = vmatprep.subr.mxu0 0.0
        %2715 = vmatpush1.msra.mxu0 %v2651
        %2716 = vmatprep.subr.mxu0 0.0
        %2717 = vmatpush2.msra.mxu0 0.0
        %2718 = vmatprep.subr.mxu0 0.0
        %2719 = vmatpush2.msra.mxu0 0.0
        %2720 = vmatprep.subr.mxu0 0.0
        %2721 = vmatpush2.msra.mxu0 0.0
        %2722 = vmatprep.subr.mxu0 0.0
        %2723 = vmatpush2.msra.mxu0 0.0
        %2724 = vmatprep.subr.mxu0 0.0
        %2725 = vmatpush2.msra.mxu0 0.0
        %2726 = vmatprep.subr.mxu0 0.0
        %2727 = vmatpush2.msra.mxu0 0.0
        %2728 = vmatprep.subr.mxu0 0.0
        %2729 = vmatpush2.msra.mxu0 0.0
        %2730 = vmatprep.subr.mxu0 0.0
        %2731 = vmatpush2.msra.mxu0 %v2682
        %2732 = vmatprep.subr.mxu0 0.0
        %2733 = vmatpush2.msra.mxu0 %v2674
        %2734 = vmatprep.subr.mxu0 0.0
        %2735 = vmatpush2.msra.mxu0 %v2673
        %2736 = vmatprep.subr.mxu0 0.0
        %2737 = vmatpush2.msra.mxu0 %v2672
        %2738 = vmatprep.subr.mxu0 0.0
        %2739 = vmatpush2.msra.mxu0 %v2671
        %2740 = vmatprep.subr.mxu0 0.0
        %2741 = vmatpush2.msra.mxu0 %v2670
        %2742 = vmatprep.subr.mxu0 0.0
        %2743 = vmatpush2.msra.mxu0 %v2669
        %2744 = vmatprep.subr.mxu0 0.0
        %2745 = vmatpush2.msra.mxu0 %v2668
        %2746 = vmatprep.subr.mxu0 0.0
        %2747 = vmatpush2.msra.mxu0 %v2667
        %2748 = vmatprep.mubr.f32.mxu0 %v2678
        %2749 = vmatmul.mubr.f32.gmra.mxu0 %v2649
        %v2750 = vpop.f32.mrf.mxu0
        %v2751 = vadd.f32 0.0, %v2750
        %v2752 = vpop.f32.mrf.mxu0
        %2753 = vdwg.mxu0
        %v2754 = vld [vmem:[#allocation8] sm:$0xff]
        %v2755 = vld [vmem:[#allocation8 + $0x8] sm:$0xff]
        %s2756 = scalar_lea.vmem [#allocation11], 200
        %v2757 = vld [vmem:[%s2756] sm:$0xff]
        %v2758 = vld [vmem:[%s2756 + $0x8] sm:$0xff]
        %v2759 = vld [vmem:[%s2756 + $0x10] sm:$0xff]
        %v2760 = vld [vmem:[%s2756 + $0x18] sm:$0xff]
        %v2761 = vld [vmem:[%s2756 + $0x20] sm:$0xff]
        %v2762 = vld [vmem:[%s2756 + $0x28] sm:$0xff]
        %v2763 = vld [vmem:[%s2756 + $0x30] sm:$0xff]
        %v2764 = vld [vmem:[%s2756 + $0x38] sm:$0xff]
        %v2765 = vld [vmem:[%s2756 + $0x40] sm:$0xff]
        %v2766 = vld [vmem:[%s2756 + $0x48] sm:$0xff]
        %v2767 = vld [vmem:[%s2756 + $0x50] sm:$0xff]
        %v2768 = vld [vmem:[%s2756 + $0x58] sm:$0xff]
        %v2769 = vld [vmem:[%s2756 + $0x60] sm:$0xff]
        %v2770 = vld [vmem:[%s2756 + $0x68] sm:$0xff]
        %v2771 = vld [vmem:[%s2756 + $0x70] sm:$0xff]
        %v2772 = vld [vmem:[%s2756 + $0x78] sm:$0xff]
        %v2773 = vld [vmem:[%s2756 + $0x80] sm:$0xff]
        %v2774 = vld [vmem:[%s2756 + $0x88] sm:$0xff]
        %v2775 = vld [vmem:[%s2756 + $0x90] sm:$0xff]
        %v2776 = vld [vmem:[%s2756 + $0x98] sm:$0xff]
        %v2777 = vld [vmem:[%s2756 + $0xa0] sm:$0xff]
        %v2778 = vld [vmem:[%s2756 + $0xa8] sm:$0xff]
        %v2779 = vld [vmem:[%s2756 + $0xb0] sm:$0xff]
        %v2780 = vld [vmem:[%s2756 + $0xb8] sm:$0xff]
        %v2781 = vld [vmem:[%s2756 + $0xc0] sm:$0xf]
        %v2783 = vsel %vm2680, %v2781, 0
        %2785 = vmatprep.subr.mxu0 0.0
        %2786 = vmatpush1.msra.mxu0 %v2772
        %2787 = vmatprep.subr.mxu0 0.0
        %2788 = vmatpush1.msra.mxu0 %v2771
        %2789 = vmatprep.subr.mxu0 0.0
        %2790 = vmatpush1.msra.mxu0 %v2770
        %2791 = vmatprep.subr.mxu0 0.0
        %2792 = vmatpush1.msra.mxu0 %v2769
        %2793 = vmatprep.subr.mxu0 0.0
        %2794 = vmatpush1.msra.mxu0 %v2768
        %2795 = vmatprep.subr.mxu0 0.0
        %2796 = vmatpush1.msra.mxu0 %v2767
        %2797 = vmatprep.subr.mxu0 0.0
        %2798 = vmatpush1.msra.mxu0 %v2766
        %2799 = vmatprep.subr.mxu0 0.0
        %2800 = vmatpush1.msra.mxu0 %v2765
        %2801 = vmatprep.subr.mxu0 0.0
        %2802 = vmatpush1.msra.mxu0 %v2764
        %2803 = vmatprep.subr.mxu0 0.0
        %2804 = vmatpush1.msra.mxu0 %v2763
        %2805 = vmatprep.subr.mxu0 0.0
        %2806 = vmatpush1.msra.mxu0 %v2762
        %2807 = vmatprep.subr.mxu0 0.0
        %2808 = vmatpush1.msra.mxu0 %v2761
        %2809 = vmatprep.subr.mxu0 0.0
        %2810 = vmatpush1.msra.mxu0 %v2760
        %2811 = vmatprep.subr.mxu0 0.0
        %2812 = vmatpush1.msra.mxu0 %v2759
        %2813 = vmatprep.subr.mxu0 0.0
        %2814 = vmatpush1.msra.mxu0 %v2758
        %2815 = vmatprep.subr.mxu0 0.0
        %2816 = vmatpush1.msra.mxu0 %v2757
        %2817 = vmatprep.subr.mxu0 0.0
        %2818 = vmatpush2.msra.mxu0 0.0
        %2819 = vmatprep.subr.mxu0 0.0
        %2820 = vmatpush2.msra.mxu0 0.0
        %2821 = vmatprep.subr.mxu0 0.0
        %2822 = vmatpush2.msra.mxu0 0.0
        %2823 = vmatprep.subr.mxu0 0.0
        %2824 = vmatpush2.msra.mxu0 0.0
        %2825 = vmatprep.subr.mxu0 0.0
        %2826 = vmatpush2.msra.mxu0 0.0
        %2827 = vmatprep.subr.mxu0 0.0
        %2828 = vmatpush2.msra.mxu0 0.0
        %2829 = vmatprep.subr.mxu0 0.0
        %2830 = vmatpush2.msra.mxu0 0.0
        %2831 = vmatprep.subr.mxu0 0.0
        %2832 = vmatpush2.msra.mxu0 %v2783
        %2833 = vmatprep.subr.mxu0 0.0
        %2834 = vmatpush2.msra.mxu0 %v2780
        %2835 = vmatprep.subr.mxu0 0.0
        %2836 = vmatpush2.msra.mxu0 %v2779
        %2837 = vmatprep.subr.mxu0 0.0
        %2838 = vmatpush2.msra.mxu0 %v2778
        %2839 = vmatprep.subr.mxu0 0.0
        %2840 = vmatpush2.msra.mxu0 %v2777
        %2841 = vmatprep.subr.mxu0 0.0
        %2842 = vmatpush2.msra.mxu0 %v2776
        %2843 = vmatprep.subr.mxu0 0.0
        %2844 = vmatpush2.msra.mxu0 %v2775
        %2845 = vmatprep.subr.mxu0 0.0
        %2846 = vmatpush2.msra.mxu0 %v2774
        %2847 = vmatprep.subr.mxu0 0.0
        %2848 = vmatpush2.msra.mxu0 %v2773
        %2849 = vmatprep.mubr.f32.mxu0 %v2678
        %2850 = vmatmul.mubr.f32.gmra.mxu0 %v2649
        %v2851 = vpop.f32.mrf.mxu0
        %v2852 = vadd.f32 0.0, %v2851
        %v2853 = vpop.f32.mrf.mxu0
        %2854 = vdwg.mxu0
        %s2855 = scalar_lea.vmem [#allocation8], 16
        %v2856 = vld [vmem:[%s2855] sm:$0xff]
        %v2857 = vld [vmem:[%s2855 + $0x8] sm:$0xff]
        %vm2858 = vcmask 64512
        %v2860 = vsel %vm2858, %v2856, 0
        %v2863 = vsel %vm2858, %v2857, 0
        %2865 = vmatprep.subr.mxu0 0.0
        %2866 = vmatpush1.msra.mxu0 0.0
        %2867 = vmatprep.subr.mxu0 0.0
        %2868 = vmatpush1.msra.mxu0 0.0
        %2869 = vmatprep.subr.mxu0 0.0
        %2870 = vmatpush1.msra.mxu0 0.0
        %2871 = vmatprep.subr.mxu0 0.0
        %2872 = vmatpush1.msra.mxu0 0.0
        %2873 = vmatprep.subr.mxu0 0.0
        %2874 = vmatpush1.msra.mxu0 0.0
        %2875 = vmatprep.subr.mxu0 0.0
        %2876 = vmatpush1.msra.mxu0 0.0
        %2877 = vmatprep.subr.mxu0 0.0
        %2878 = vmatpush1.msra.mxu0 0.0
        %2879 = vmatprep.subr.mxu0 0.0
        %2880 = vmatpush1.msra.mxu0 0.0
        %2881 = vmatprep.subr.mxu0 0.0
        %2882 = vmatpush1.msra.mxu0 0.0
        %2883 = vmatprep.subr.mxu0 0.0
        %2884 = vmatpush1.msra.mxu0 0.0
        %2885 = vmatprep.subr.mxu0 0.0
        %2886 = vmatpush1.msra.mxu0 0.0
        %2887 = vmatprep.subr.mxu0 0.0
        %2888 = vmatpush1.msra.mxu0 0.0
        %2889 = vmatprep.subr.mxu0 0.0
        %2890 = vmatpush1.msra.mxu0 0.0
        %2891 = vmatprep.subr.mxu0 0.0
        %2892 = vmatpush1.msra.mxu0 0.0
        %2893 = vmatprep.subr.mxu0 0.0
        %2894 = vmatpush1.msra.mxu0 0.0
        %2895 = vmatprep.subr.mxu0 0.0
        %2896 = vmatpush1.msra.mxu0 %v2852
        %2897 = vmatprep.subr.mxu0 0.0
        %2898 = vmatpush2.msra.mxu0 0.0
        %2899 = vmatprep.subr.mxu0 0.0
        %2900 = vmatpush2.msra.mxu0 0.0
        %2901 = vmatprep.subr.mxu0 0.0
        %2902 = vmatpush2.msra.mxu0 0.0
        %2903 = vmatprep.subr.mxu0 0.0
        %2904 = vmatpush2.msra.mxu0 0.0
        %2905 = vmatprep.subr.mxu0 0.0
        %2906 = vmatpush2.msra.mxu0 0.0
        %2907 = vmatprep.subr.mxu0 0.0
        %2908 = vmatpush2.msra.mxu0 0.0
        %2909 = vmatprep.subr.mxu0 0.0
        %2910 = vmatpush2.msra.mxu0 0.0
        %2911 = vmatprep.subr.mxu0 0.0
        %2912 = vmatpush2.msra.mxu0 0.0
        %2913 = vmatprep.subr.mxu0 0.0
        %2914 = vmatpush2.msra.mxu0 0.0
        %2915 = vmatprep.subr.mxu0 0.0
        %2916 = vmatpush2.msra.mxu0 0.0
        %2917 = vmatprep.subr.mxu0 0.0
        %2918 = vmatpush2.msra.mxu0 0.0
        %2919 = vmatprep.subr.mxu0 0.0
        %2920 = vmatpush2.msra.mxu0 0.0
        %2921 = vmatprep.subr.mxu0 0.0
        %2922 = vmatpush2.msra.mxu0 0.0
        %2923 = vmatprep.subr.mxu0 0.0
        %2924 = vmatpush2.msra.mxu0 0.0
        %2925 = vmatprep.subr.mxu0 0.0
        %2926 = vmatpush2.msra.mxu0 0.0
        %2927 = vmatprep.subr.mxu0 0.0
        %2928 = vmatpush2.msra.mxu0 0.0
        %2929 = vmatprep.mubr.f32.mxu0 0.0
        %2930 = vmatmul.mubr.f32.gmra.mxu0 %v2860
        %v2931 = vpop.f32.mrf.mxu0
        %v2932 = vadd.f32 0.0, %v2931
        %v2933 = vpop.f32.mrf.mxu0
        %2934 = vmatprep.mubr.f32.mxu0 0.0
        %2935 = vmatmul.mubr.f32.gmra.mxu0 %v2863
        %v2936 = vpop.f32.mrf.mxu0
        %v2937 = vadd.f32 0.0, %v2936
        %v2938 = vpop.f32.mrf.mxu0
        %2939 = vdwg.mxu0
        %v2941 = vsel %vm2858, %v2754, 0
        %v2944 = vsel %vm2858, %v2755, 0
        %2946 = vmatprep.subr.mxu0 0.0
        %2947 = vmatpush1.msra.mxu0 0.0
        %2948 = vmatprep.subr.mxu0 0.0
        %2949 = vmatpush1.msra.mxu0 0.0
        %2950 = vmatprep.subr.mxu0 0.0
        %2951 = vmatpush1.msra.mxu0 0.0
        %2952 = vmatprep.subr.mxu0 0.0
        %2953 = vmatpush1.msra.mxu0 0.0
        %2954 = vmatprep.subr.mxu0 0.0
        %2955 = vmatpush1.msra.mxu0 0.0
        %2956 = vmatprep.subr.mxu0 0.0
        %2957 = vmatpush1.msra.mxu0 0.0
        %2958 = vmatprep.subr.mxu0 0.0
        %2959 = vmatpush1.msra.mxu0 0.0
        %2960 = vmatprep.subr.mxu0 0.0
        %2961 = vmatpush1.msra.mxu0 0.0
        %2962 = vmatprep.subr.mxu0 0.0
        %2963 = vmatpush1.msra.mxu0 0.0
        %2964 = vmatprep.subr.mxu0 0.0
        %2965 = vmatpush1.msra.mxu0 0.0
        %2966 = vmatprep.subr.mxu0 0.0
        %2967 = vmatpush1.msra.mxu0 0.0
        %2968 = vmatprep.subr.mxu0 0.0
        %2969 = vmatpush1.msra.mxu0 0.0
        %2970 = vmatprep.subr.mxu0 0.0
        %2971 = vmatpush1.msra.mxu0 0.0
        %2972 = vmatprep.subr.mxu0 0.0
        %2973 = vmatpush1.msra.mxu0 0.0
        %2974 = vmatprep.subr.mxu0 0.0
        %2975 = vmatpush1.msra.mxu0 0.0
        %2976 = vmatprep.subr.mxu0 0.0
        %2977 = vmatpush1.msra.mxu0 %v2751
        %2978 = vmatprep.subr.mxu0 0.0
        %2979 = vmatpush2.msra.mxu0 0.0
        %2980 = vmatprep.subr.mxu0 0.0
        %2981 = vmatpush2.msra.mxu0 0.0
        %2982 = vmatprep.subr.mxu0 0.0
        %2983 = vmatpush2.msra.mxu0 0.0
        %2984 = vmatprep.subr.mxu0 0.0
        %2985 = vmatpush2.msra.mxu0 0.0
        %2986 = vmatprep.subr.mxu0 0.0
        %2987 = vmatpush2.msra.mxu0 0.0
        %2988 = vmatprep.subr.mxu0 0.0
        %2989 = vmatpush2.msra.mxu0 0.0
        %2990 = vmatprep.subr.mxu0 0.0
        %2991 = vmatpush2.msra.mxu0 0.0
        %2992 = vmatprep.subr.mxu0 0.0
        %2993 = vmatpush2.msra.mxu0 0.0
        %2994 = vmatprep.subr.mxu0 0.0
        %2995 = vmatpush2.msra.mxu0 0.0
        %2996 = vmatprep.subr.mxu0 0.0
        %2997 = vmatpush2.msra.mxu0 0.0
        %2998 = vmatprep.subr.mxu0 0.0
        %2999 = vmatpush2.msra.mxu0 0.0
        %3000 = vmatprep.subr.mxu0 0.0
        %3001 = vmatpush2.msra.mxu0 0.0
        %3002 = vmatprep.subr.mxu0 0.0
        %3003 = vmatpush2.msra.mxu0 0.0
        %3004 = vmatprep.subr.mxu0 0.0
        %3005 = vmatpush2.msra.mxu0 0.0
        %3006 = vmatprep.subr.mxu0 0.0
        %3007 = vmatpush2.msra.mxu0 0.0
        %3008 = vmatprep.subr.mxu0 0.0
        %3009 = vmatpush2.msra.mxu0 0.0
        %3010 = vmatprep.mubr.f32.mxu0 0.0
        %3011 = vmatmul.mubr.f32.gmra.mxu0 %v2941
        %v3012 = vpop.f32.mrf.mxu0
        %v3013 = vadd.f32 %v2932, %v3012
        %v3014 = vpop.f32.mrf.mxu0
        %3015 = vmatprep.mubr.f32.mxu0 0.0
        %3016 = vmatmul.mubr.f32.gmra.mxu0 %v2944
        %v3017 = vpop.f32.mrf.mxu0
        %v3018 = vadd.f32 %v2937, %v3017
        %v3019 = vpop.f32.mrf.mxu0
        %3020 = vdwg.mxu0
        %s3021 = scalar_lea.vmem [#allocation11], 400
        %v3022 = vld [vmem:[%s3021] sm:$0xff]
        %v3023 = vld [vmem:[%s3021 + $0x8] sm:$0xff]
        %v3024 = vld [vmem:[%s3021 + $0x10] sm:$0xff]
        %v3025 = vld [vmem:[%s3021 + $0x18] sm:$0xff]
        %v3026 = vld [vmem:[%s3021 + $0x20] sm:$0xff]
        %v3027 = vld [vmem:[%s3021 + $0x28] sm:$0xff]
        %v3028 = vld [vmem:[%s3021 + $0x30] sm:$0xff]
        %v3029 = vld [vmem:[%s3021 + $0x38] sm:$0xff]
        %v3030 = vld [vmem:[%s3021 + $0x40] sm:$0xff]
        %v3031 = vld [vmem:[%s3021 + $0x48] sm:$0xff]
        %v3032 = vld [vmem:[%s3021 + $0x50] sm:$0xff]
        %v3033 = vld [vmem:[%s3021 + $0x58] sm:$0xff]
        %v3034 = vld [vmem:[%s3021 + $0x60] sm:$0xff]
        %v3035 = vld [vmem:[%s3021 + $0x68] sm:$0xff]
        %v3036 = vld [vmem:[%s3021 + $0x70] sm:$0xff]
        %v3037 = vld [vmem:[%s3021 + $0x78] sm:$0xff]
        %v3038 = vld [vmem:[%s3021 + $0x80] sm:$0xff]
        %v3039 = vld [vmem:[%s3021 + $0x88] sm:$0xff]
        %v3040 = vld [vmem:[%s3021 + $0x90] sm:$0xff]
        %v3041 = vld [vmem:[%s3021 + $0x98] sm:$0xff]
        %v3042 = vld [vmem:[%s3021 + $0xa0] sm:$0xff]
        %v3043 = vld [vmem:[%s3021 + $0xa8] sm:$0xff]
        %v3044 = vld [vmem:[%s3021 + $0xb0] sm:$0xff]
        %v3045 = vld [vmem:[%s3021 + $0xb8] sm:$0xff]
        %v3046 = vld [vmem:[%s3021 + $0xc0] sm:$0xf]
        %v3048 = vsel %vm2680, %v3046, 0
        %3050 = vmatprep.subr.mxu0 0.0
        %3051 = vmatpush1.msra.mxu0 %v3037
        %3052 = vmatprep.subr.mxu0 0.0
        %3053 = vmatpush1.msra.mxu0 %v3036
        %3054 = vmatprep.subr.mxu0 0.0
        %3055 = vmatpush1.msra.mxu0 %v3035
        %3056 = vmatprep.subr.mxu0 0.0
        %3057 = vmatpush1.msra.mxu0 %v3034
        %3058 = vmatprep.subr.mxu0 0.0
        %3059 = vmatpush1.msra.mxu0 %v3033
        %3060 = vmatprep.subr.mxu0 0.0
        %3061 = vmatpush1.msra.mxu0 %v3032
        %3062 = vmatprep.subr.mxu0 0.0
        %3063 = vmatpush1.msra.mxu0 %v3031
        %3064 = vmatprep.subr.mxu0 0.0
        %3065 = vmatpush1.msra.mxu0 %v3030
        %3066 = vmatprep.subr.mxu0 0.0
        %3067 = vmatpush1.msra.mxu0 %v3029
        %3068 = vmatprep.subr.mxu0 0.0
        %3069 = vmatpush1.msra.mxu0 %v3028
        %3070 = vmatprep.subr.mxu0 0.0
        %3071 = vmatpush1.msra.mxu0 %v3027
        %3072 = vmatprep.subr.mxu0 0.0
        %3073 = vmatpush1.msra.mxu0 %v3026
        %3074 = vmatprep.subr.mxu0 0.0
        %3075 = vmatpush1.msra.mxu0 %v3025
        %3076 = vmatprep.subr.mxu0 0.0
        %3077 = vmatpush1.msra.mxu0 %v3024
        %3078 = vmatprep.subr.mxu0 0.0
        %3079 = vmatpush1.msra.mxu0 %v3023
        %3080 = vmatprep.subr.mxu0 0.0
        %3081 = vmatpush1.msra.mxu0 %v3022
        %3082 = vmatprep.subr.mxu0 0.0
        %3083 = vmatpush2.msra.mxu0 0.0
        %3084 = vmatprep.subr.mxu0 0.0
        %3085 = vmatpush2.msra.mxu0 0.0
        %3086 = vmatprep.subr.mxu0 0.0
        %3087 = vmatpush2.msra.mxu0 0.0
        %3088 = vmatprep.subr.mxu0 0.0
        %3089 = vmatpush2.msra.mxu0 0.0
        %3090 = vmatprep.subr.mxu0 0.0
        %3091 = vmatpush2.msra.mxu0 0.0
        %3092 = vmatprep.subr.mxu0 0.0
        %3093 = vmatpush2.msra.mxu0 0.0
        %3094 = vmatprep.subr.mxu0 0.0
        %3095 = vmatpush2.msra.mxu0 0.0
        %3096 = vmatprep.subr.mxu0 0.0
        %3097 = vmatpush2.msra.mxu0 %v3048
        %3098 = vmatprep.subr.mxu0 0.0
        %3099 = vmatpush2.msra.mxu0 %v3045
        %3100 = vmatprep.subr.mxu0 0.0
        %3101 = vmatpush2.msra.mxu0 %v3044
        %3102 = vmatprep.subr.mxu0 0.0
        %3103 = vmatpush2.msra.mxu0 %v3043
        %3104 = vmatprep.subr.mxu0 0.0
        %3105 = vmatpush2.msra.mxu0 %v3042
        %3106 = vmatprep.subr.mxu0 0.0
        %3107 = vmatpush2.msra.mxu0 %v3041
        %3108 = vmatprep.subr.mxu0 0.0
        %3109 = vmatpush2.msra.mxu0 %v3040
        %3110 = vmatprep.subr.mxu0 0.0
        %3111 = vmatpush2.msra.mxu0 %v3039
        %3112 = vmatprep.subr.mxu0 0.0
        %3113 = vmatpush2.msra.mxu0 %v3038
        %3114 = vmatprep.mubr.f32.mxu0 %v2678
        %3115 = vmatmul.mubr.f32.gmra.mxu0 %v2649
        %v3116 = vpop.f32.mrf.mxu0
        %v3117 = vadd.f32 0.0, %v3116
        %v3118 = vpop.f32.mrf.mxu0
        %3119 = vdwg.mxu0
        %s3120 = scalar_lea.vmem [#allocation8], 32
        %v3121 = vld [vmem:[%s3120] sm:$0xff]
        %v3122 = vld [vmem:[%s3120 + $0x8] sm:$0xff]
        %v3124 = vsel %vm2858, %v3121, 0
        %v3127 = vsel %vm2858, %v3122, 0
        %3129 = vmatprep.subr.mxu0 0.0
        %3130 = vmatpush1.msra.mxu0 0.0
        %3131 = vmatprep.subr.mxu0 0.0
        %3132 = vmatpush1.msra.mxu0 0.0
        %3133 = vmatprep.subr.mxu0 0.0
        %3134 = vmatpush1.msra.mxu0 0.0
        %3135 = vmatprep.subr.mxu0 0.0
        %3136 = vmatpush1.msra.mxu0 0.0
        %3137 = vmatprep.subr.mxu0 0.0
        %3138 = vmatpush1.msra.mxu0 0.0
        %3139 = vmatprep.subr.mxu0 0.0
        %3140 = vmatpush1.msra.mxu0 0.0
        %3141 = vmatprep.subr.mxu0 0.0
        %3142 = vmatpush1.msra.mxu0 0.0
        %3143 = vmatprep.subr.mxu0 0.0
        %3144 = vmatpush1.msra.mxu0 0.0
        %3145 = vmatprep.subr.mxu0 0.0
        %3146 = vmatpush1.msra.mxu0 0.0
        %3147 = vmatprep.subr.mxu0 0.0
        %3148 = vmatpush1.msra.mxu0 0.0
        %3149 = vmatprep.subr.mxu0 0.0
        %3150 = vmatpush1.msra.mxu0 0.0
        %3151 = vmatprep.subr.mxu0 0.0
        %3152 = vmatpush1.msra.mxu0 0.0
        %3153 = vmatprep.subr.mxu0 0.0
        %3154 = vmatpush1.msra.mxu0 0.0
        %3155 = vmatprep.subr.mxu0 0.0
        %3156 = vmatpush1.msra.mxu0 0.0
        %3157 = vmatprep.subr.mxu0 0.0
        %3158 = vmatpush1.msra.mxu0 0.0
        %3159 = vmatprep.subr.mxu0 0.0
        %3160 = vmatpush1.msra.mxu0 %v3117
        %3161 = vmatprep.subr.mxu0 0.0
        %3162 = vmatpush2.msra.mxu0 0.0
        %3163 = vmatprep.subr.mxu0 0.0
        %3164 = vmatpush2.msra.mxu0 0.0
        %3165 = vmatprep.subr.mxu0 0.0
        %3166 = vmatpush2.msra.mxu0 0.0
        %3167 = vmatprep.subr.mxu0 0.0
        %3168 = vmatpush2.msra.mxu0 0.0
        %3169 = vmatprep.subr.mxu0 0.0
        %3170 = vmatpush2.msra.mxu0 0.0
        %3171 = vmatprep.subr.mxu0 0.0
        %3172 = vmatpush2.msra.mxu0 0.0
        %3173 = vmatprep.subr.mxu0 0.0
        %3174 = vmatpush2.msra.mxu0 0.0
        %3175 = vmatprep.subr.mxu0 0.0
        %3176 = vmatpush2.msra.mxu0 0.0
        %3177 = vmatprep.subr.mxu0 0.0
        %3178 = vmatpush2.msra.mxu0 0.0
        %3179 = vmatprep.subr.mxu0 0.0
        %3180 = vmatpush2.msra.mxu0 0.0
        %3181 = vmatprep.subr.mxu0 0.0
        %3182 = vmatpush2.msra.mxu0 0.0
        %3183 = vmatprep.subr.mxu0 0.0
        %3184 = vmatpush2.msra.mxu0 0.0
        %3185 = vmatprep.subr.mxu0 0.0
        %3186 = vmatpush2.msra.mxu0 0.0
        %3187 = vmatprep.subr.mxu0 0.0
        %3188 = vmatpush2.msra.mxu0 0.0
        %3189 = vmatprep.subr.mxu0 0.0
        %3190 = vmatpush2.msra.mxu0 0.0
        %3191 = vmatprep.subr.mxu0 0.0
        %3192 = vmatpush2.msra.mxu0 0.0
        %3193 = vmatprep.mubr.f32.mxu0 0.0
        %3194 = vmatmul.mubr.f32.gmra.mxu0 %v3124
        %v3195 = vpop.f32.mrf.mxu0
        %v3196 = vadd.f32 0.0, %v3195
        %v3197 = vpop.f32.mrf.mxu0
        %3198 = vmatprep.mubr.f32.mxu0 0.0
        %3199 = vmatmul.mubr.f32.gmra.mxu0 %v3127
        %v3200 = vpop.f32.mrf.mxu0
        %v3201 = vadd.f32 0.0, %v3200
        %v3202 = vpop.f32.mrf.mxu0
        %3203 = vdwg.mxu0
        %v3204 = vadd.f32 %v3013, %v3196
        %v3205 = vadd.f32 %v3018, %v3201
        %s3206 = scalar_lea.vmem [#allocation11], 600
        %v3207 = vld [vmem:[%s3206] sm:$0xff]
        %v3208 = vld [vmem:[%s3206 + $0x8] sm:$0xff]
        %v3209 = vld [vmem:[%s3206 + $0x10] sm:$0xff]
        %v3210 = vld [vmem:[%s3206 + $0x18] sm:$0xff]
        %v3211 = vld [vmem:[%s3206 + $0x20] sm:$0xff]
        %v3212 = vld [vmem:[%s3206 + $0x28] sm:$0xff]
        %v3213 = vld [vmem:[%s3206 + $0x30] sm:$0xff]
        %v3214 = vld [vmem:[%s3206 + $0x38] sm:$0xff]
        %v3215 = vld [vmem:[%s3206 + $0x40] sm:$0xff]
        %v3216 = vld [vmem:[%s3206 + $0x48] sm:$0xff]
        %v3217 = vld [vmem:[%s3206 + $0x50] sm:$0xff]
        %v3218 = vld [vmem:[%s3206 + $0x58] sm:$0xff]
        %v3219 = vld [vmem:[%s3206 + $0x60] sm:$0xff]
        %v3220 = vld [vmem:[%s3206 + $0x68] sm:$0xff]
        %v3221 = vld [vmem:[%s3206 + $0x70] sm:$0xff]
        %v3222 = vld [vmem:[%s3206 + $0x78] sm:$0xff]
        %v3223 = vld [vmem:[%s3206 + $0x80] sm:$0xff]
        %v3224 = vld [vmem:[%s3206 + $0x88] sm:$0xff]
        %v3225 = vld [vmem:[%s3206 + $0x90] sm:$0xff]
        %v3226 = vld [vmem:[%s3206 + $0x98] sm:$0xff]
        %v3227 = vld [vmem:[%s3206 + $0xa0] sm:$0xff]
        %v3228 = vld [vmem:[%s3206 + $0xa8] sm:$0xff]
        %v3229 = vld [vmem:[%s3206 + $0xb0] sm:$0xff]
        %v3230 = vld [vmem:[%s3206 + $0xb8] sm:$0xff]
        %v3231 = vld [vmem:[%s3206 + $0xc0] sm:$0xf]
        %v3233 = vsel %vm2680, %v3231, 0
        %3235 = vmatprep.subr.mxu0 0.0
        %3236 = vmatpush1.msra.mxu0 %v3222
        %3237 = vmatprep.subr.mxu0 0.0
        %3238 = vmatpush1.msra.mxu0 %v3221
        %3239 = vmatprep.subr.mxu0 0.0
        %3240 = vmatpush1.msra.mxu0 %v3220
        %3241 = vmatprep.subr.mxu0 0.0
        %3242 = vmatpush1.msra.mxu0 %v3219
        %3243 = vmatprep.subr.mxu0 0.0
        %3244 = vmatpush1.msra.mxu0 %v3218
        %3245 = vmatprep.subr.mxu0 0.0
        %3246 = vmatpush1.msra.mxu0 %v3217
        %3247 = vmatprep.subr.mxu0 0.0
        %3248 = vmatpush1.msra.mxu0 %v3216
        %3249 = vmatprep.subr.mxu0 0.0
        %3250 = vmatpush1.msra.mxu0 %v3215
        %3251 = vmatprep.subr.mxu0 0.0
        %3252 = vmatpush1.msra.mxu0 %v3214
        %3253 = vmatprep.subr.mxu0 0.0
        %3254 = vmatpush1.msra.mxu0 %v3213
        %3255 = vmatprep.subr.mxu0 0.0
        %3256 = vmatpush1.msra.mxu0 %v3212
        %3257 = vmatprep.subr.mxu0 0.0
        %3258 = vmatpush1.msra.mxu0 %v3211
        %3259 = vmatprep.subr.mxu0 0.0
        %3260 = vmatpush1.msra.mxu0 %v3210
        %3261 = vmatprep.subr.mxu0 0.0
        %3262 = vmatpush1.msra.mxu0 %v3209
        %3263 = vmatprep.subr.mxu0 0.0
        %3264 = vmatpush1.msra.mxu0 %v3208
        %3265 = vmatprep.subr.mxu0 0.0
        %3266 = vmatpush1.msra.mxu0 %v3207
        %3267 = vmatprep.subr.mxu0 0.0
        %3268 = vmatpush2.msra.mxu0 0.0
        %3269 = vmatprep.subr.mxu0 0.0
        %3270 = vmatpush2.msra.mxu0 0.0
        %3271 = vmatprep.subr.mxu0 0.0
        %3272 = vmatpush2.msra.mxu0 0.0
        %3273 = vmatprep.subr.mxu0 0.0
        %3274 = vmatpush2.msra.mxu0 0.0
        %3275 = vmatprep.subr.mxu0 0.0
        %3276 = vmatpush2.msra.mxu0 0.0
        %3277 = vmatprep.subr.mxu0 0.0
        %3278 = vmatpush2.msra.mxu0 0.0
        %3279 = vmatprep.subr.mxu0 0.0
        %3280 = vmatpush2.msra.mxu0 0.0
        %3281 = vmatprep.subr.mxu0 0.0
        %3282 = vmatpush2.msra.mxu0 %v3233
        %3283 = vmatprep.subr.mxu0 0.0
        %3284 = vmatpush2.msra.mxu0 %v3230
        %3285 = vmatprep.subr.mxu0 0.0
        %3286 = vmatpush2.msra.mxu0 %v3229
        %3287 = vmatprep.subr.mxu0 0.0
        %3288 = vmatpush2.msra.mxu0 %v3228
        %3289 = vmatprep.subr.mxu0 0.0
        %3290 = vmatpush2.msra.mxu0 %v3227
        %3291 = vmatprep.subr.mxu0 0.0
        %3292 = vmatpush2.msra.mxu0 %v3226
        %3293 = vmatprep.subr.mxu0 0.0
        %3294 = vmatpush2.msra.mxu0 %v3225
        %3295 = vmatprep.subr.mxu0 0.0
        %3296 = vmatpush2.msra.mxu0 %v3224
        %3297 = vmatprep.subr.mxu0 0.0
        %3298 = vmatpush2.msra.mxu0 %v3223
        %3299 = vmatprep.mubr.f32.mxu0 %v2678
        %3300 = vmatmul.mubr.f32.gmra.mxu0 %v2649
        %v3301 = vpop.f32.mrf.mxu0
        %v3302 = vadd.f32 0.0, %v3301
        %v3303 = vpop.f32.mrf.mxu0
        %3304 = vdwg.mxu0
        %s3305 = scalar_lea.vmem [#allocation8], 48
        %v3306 = vld [vmem:[%s3305] sm:$0xff]
        %v3307 = vld [vmem:[%s3305 + $0x8] sm:$0xff]
        %v3309 = vsel %vm2858, %v3306, 0
        %v3312 = vsel %vm2858, %v3307, 0
        %3314 = vmatprep.subr.mxu0 0.0
        %3315 = vmatpush1.msra.mxu0 0.0
        %3316 = vmatprep.subr.mxu0 0.0
        %3317 = vmatpush1.msra.mxu0 0.0
        %3318 = vmatprep.subr.mxu0 0.0
        %3319 = vmatpush1.msra.mxu0 0.0
        %3320 = vmatprep.subr.mxu0 0.0
        %3321 = vmatpush1.msra.mxu0 0.0
        %3322 = vmatprep.subr.mxu0 0.0
        %3323 = vmatpush1.msra.mxu0 0.0
        %3324 = vmatprep.subr.mxu0 0.0
        %3325 = vmatpush1.msra.mxu0 0.0
        %3326 = vmatprep.subr.mxu0 0.0
        %3327 = vmatpush1.msra.mxu0 0.0
        %3328 = vmatprep.subr.mxu0 0.0
        %3329 = vmatpush1.msra.mxu0 0.0
        %3330 = vmatprep.subr.mxu0 0.0
        %3331 = vmatpush1.msra.mxu0 0.0
        %3332 = vmatprep.subr.mxu0 0.0
        %3333 = vmatpush1.msra.mxu0 0.0
        %3334 = vmatprep.subr.mxu0 0.0
        %3335 = vmatpush1.msra.mxu0 0.0
        %3336 = vmatprep.subr.mxu0 0.0
        %3337 = vmatpush1.msra.mxu0 0.0
        %3338 = vmatprep.subr.mxu0 0.0
        %3339 = vmatpush1.msra.mxu0 0.0
        %3340 = vmatprep.subr.mxu0 0.0
        %3341 = vmatpush1.msra.mxu0 0.0
        %3342 = vmatprep.subr.mxu0 0.0
        %3343 = vmatpush1.msra.mxu0 0.0
        %3344 = vmatprep.subr.mxu0 0.0
        %3345 = vmatpush1.msra.mxu0 %v3302
        %3346 = vmatprep.subr.mxu0 0.0
        %3347 = vmatpush2.msra.mxu0 0.0
        %3348 = vmatprep.subr.mxu0 0.0
        %3349 = vmatpush2.msra.mxu0 0.0
        %3350 = vmatprep.subr.mxu0 0.0
        %3351 = vmatpush2.msra.mxu0 0.0
        %3352 = vmatprep.subr.mxu0 0.0
        %3353 = vmatpush2.msra.mxu0 0.0
        %3354 = vmatprep.subr.mxu0 0.0
        %3355 = vmatpush2.msra.mxu0 0.0
        %3356 = vmatprep.subr.mxu0 0.0
        %3357 = vmatpush2.msra.mxu0 0.0
        %3358 = vmatprep.subr.mxu0 0.0
        %3359 = vmatpush2.msra.mxu0 0.0
        %3360 = vmatprep.subr.mxu0 0.0
        %3361 = vmatpush2.msra.mxu0 0.0
        %3362 = vmatprep.subr.mxu0 0.0
        %3363 = vmatpush2.msra.mxu0 0.0
        %3364 = vmatprep.subr.mxu0 0.0
        %3365 = vmatpush2.msra.mxu0 0.0
        %3366 = vmatprep.subr.mxu0 0.0
        %3367 = vmatpush2.msra.mxu0 0.0
        %3368 = vmatprep.subr.mxu0 0.0
        %3369 = vmatpush2.msra.mxu0 0.0
        %3370 = vmatprep.subr.mxu0 0.0
        %3371 = vmatpush2.msra.mxu0 0.0
        %3372 = vmatprep.subr.mxu0 0.0
        %3373 = vmatpush2.msra.mxu0 0.0
        %3374 = vmatprep.subr.mxu0 0.0
        %3375 = vmatpush2.msra.mxu0 0.0
        %3376 = vmatprep.subr.mxu0 0.0
        %3377 = vmatpush2.msra.mxu0 0.0
        %3378 = vmatprep.mubr.f32.mxu0 0.0
        %3379 = vmatmul.mubr.f32.gmra.mxu0 %v3309
        %v3380 = vpop.f32.mrf.mxu0
        %v3381 = vadd.f32 0.0, %v3380
        %v3382 = vpop.f32.mrf.mxu0
        %3383 = vmatprep.mubr.f32.mxu0 0.0
        %3384 = vmatmul.mubr.f32.gmra.mxu0 %v3312
        %v3385 = vpop.f32.mrf.mxu0
        %v3386 = vadd.f32 0.0, %v3385
        %v3387 = vpop.f32.mrf.mxu0
        %3388 = vdwg.mxu0
        %v3389 = vadd.f32 %v3204, %v3381
        %v3390 = vadd.f32 %v3205, %v3386
        %s3391 = scalar_lea.vmem [#allocation11], 800
        %v3392 = vld [vmem:[%s3391] sm:$0xff]
        %v3393 = vld [vmem:[%s3391 + $0x8] sm:$0xff]
        %v3394 = vld [vmem:[%s3391 + $0x10] sm:$0xff]
        %v3395 = vld [vmem:[%s3391 + $0x18] sm:$0xff]
        %v3396 = vld [vmem:[%s3391 + $0x20] sm:$0xff]
        %v3397 = vld [vmem:[%s3391 + $0x28] sm:$0xff]
        %v3398 = vld [vmem:[%s3391 + $0x30] sm:$0xff]
        %v3399 = vld [vmem:[%s3391 + $0x38] sm:$0xff]
        %v3400 = vld [vmem:[%s3391 + $0x40] sm:$0xff]
        %v3401 = vld [vmem:[%s3391 + $0x48] sm:$0xff]
        %v3402 = vld [vmem:[%s3391 + $0x50] sm:$0xff]
        %v3403 = vld [vmem:[%s3391 + $0x58] sm:$0xff]
        %v3404 = vld [vmem:[%s3391 + $0x60] sm:$0xff]
        %v3405 = vld [vmem:[%s3391 + $0x68] sm:$0xff]
        %v3406 = vld [vmem:[%s3391 + $0x70] sm:$0xff]
        %v3407 = vld [vmem:[%s3391 + $0x78] sm:$0xff]
        %v3408 = vld [vmem:[%s3391 + $0x80] sm:$0xff]
        %v3409 = vld [vmem:[%s3391 + $0x88] sm:$0xff]
        %v3410 = vld [vmem:[%s3391 + $0x90] sm:$0xff]
        %v3411 = vld [vmem:[%s3391 + $0x98] sm:$0xff]
        %v3412 = vld [vmem:[%s3391 + $0xa0] sm:$0xff]
        %v3413 = vld [vmem:[%s3391 + $0xa8] sm:$0xff]
        %v3414 = vld [vmem:[%s3391 + $0xb0] sm:$0xff]
        %v3415 = vld [vmem:[%s3391 + $0xb8] sm:$0xff]
        %v3416 = vld [vmem:[%s3391 + $0xc0] sm:$0xf]
        %v3418 = vsel %vm2680, %v3416, 0
        %3420 = vmatprep.subr.mxu0 0.0
        %3421 = vmatpush1.msra.mxu0 %v3407
        %3422 = vmatprep.subr.mxu0 0.0
        %3423 = vmatpush1.msra.mxu0 %v3406
        %3424 = vmatprep.subr.mxu0 0.0
        %3425 = vmatpush1.msra.mxu0 %v3405
        %3426 = vmatprep.subr.mxu0 0.0
        %3427 = vmatpush1.msra.mxu0 %v3404
        %3428 = vmatprep.subr.mxu0 0.0
        %3429 = vmatpush1.msra.mxu0 %v3403
        %3430 = vmatprep.subr.mxu0 0.0
        %3431 = vmatpush1.msra.mxu0 %v3402
        %3432 = vmatprep.subr.mxu0 0.0
        %3433 = vmatpush1.msra.mxu0 %v3401
        %3434 = vmatprep.subr.mxu0 0.0
        %3435 = vmatpush1.msra.mxu0 %v3400
        %3436 = vmatprep.subr.mxu0 0.0
        %3437 = vmatpush1.msra.mxu0 %v3399
        %3438 = vmatprep.subr.mxu0 0.0
        %3439 = vmatpush1.msra.mxu0 %v3398
        %3440 = vmatprep.subr.mxu0 0.0
        %3441 = vmatpush1.msra.mxu0 %v3397
        %3442 = vmatprep.subr.mxu0 0.0
        %3443 = vmatpush1.msra.mxu0 %v3396
        %3444 = vmatprep.subr.mxu0 0.0
        %3445 = vmatpush1.msra.mxu0 %v3395
        %3446 = vmatprep.subr.mxu0 0.0
        %3447 = vmatpush1.msra.mxu0 %v3394
        %3448 = vmatprep.subr.mxu0 0.0
        %3449 = vmatpush1.msra.mxu0 %v3393
        %3450 = vmatprep.subr.mxu0 0.0
        %3451 = vmatpush1.msra.mxu0 %v3392
        %3452 = vmatprep.subr.mxu0 0.0
        %3453 = vmatpush2.msra.mxu0 0.0
        %3454 = vmatprep.subr.mxu0 0.0
        %3455 = vmatpush2.msra.mxu0 0.0
        %3456 = vmatprep.subr.mxu0 0.0
        %3457 = vmatpush2.msra.mxu0 0.0
        %3458 = vmatprep.subr.mxu0 0.0
        %3459 = vmatpush2.msra.mxu0 0.0
        %3460 = vmatprep.subr.mxu0 0.0
        %3461 = vmatpush2.msra.mxu0 0.0
        %3462 = vmatprep.subr.mxu0 0.0
        %3463 = vmatpush2.msra.mxu0 0.0
        %3464 = vmatprep.subr.mxu0 0.0
        %3465 = vmatpush2.msra.mxu0 0.0
        %3466 = vmatprep.subr.mxu0 0.0
        %3467 = vmatpush2.msra.mxu0 %v3418
        %3468 = vmatprep.subr.mxu0 0.0
        %3469 = vmatpush2.msra.mxu0 %v3415
        %3470 = vmatprep.subr.mxu0 0.0
        %3471 = vmatpush2.msra.mxu0 %v3414
        %3472 = vmatprep.subr.mxu0 0.0
        %3473 = vmatpush2.msra.mxu0 %v3413
        %3474 = vmatprep.subr.mxu0 0.0
        %3475 = vmatpush2.msra.mxu0 %v3412
        %3476 = vmatprep.subr.mxu0 0.0
        %3477 = vmatpush2.msra.mxu0 %v3411
        %3478 = vmatprep.subr.mxu0 0.0
        %3479 = vmatpush2.msra.mxu0 %v3410
        %3480 = vmatprep.subr.mxu0 0.0
        %3481 = vmatpush2.msra.mxu0 %v3409
        %3482 = vmatprep.subr.mxu0 0.0
        %3483 = vmatpush2.msra.mxu0 %v3408
        %3484 = vmatprep.mubr.f32.mxu0 %v2678
        %3485 = vmatmul.mubr.f32.gmra.mxu0 %v2649
        %v3486 = vpop.f32.mrf.mxu0
        %v3487 = vadd.f32 0.0, %v3486
        %v3488 = vpop.f32.mrf.mxu0
        %3489 = vdwg.mxu0
        %s3490 = scalar_lea.vmem [#allocation8], 64
        %v3491 = vld [vmem:[%s3490] sm:$0xff]
        %v3492 = vld [vmem:[%s3490 + $0x8] sm:$0xff]
        %v3494 = vsel %vm2858, %v3491, 0
        %v3497 = vsel %vm2858, %v3492, 0
        %3499 = vmatprep.subr.mxu0 0.0
        %3500 = vmatpush1.msra.mxu0 0.0
        %3501 = vmatprep.subr.mxu0 0.0
        %3502 = vmatpush1.msra.mxu0 0.0
        %3503 = vmatprep.subr.mxu0 0.0
        %3504 = vmatpush1.msra.mxu0 0.0
        %3505 = vmatprep.subr.mxu0 0.0
        %3506 = vmatpush1.msra.mxu0 0.0
        %3507 = vmatprep.subr.mxu0 0.0
        %3508 = vmatpush1.msra.mxu0 0.0
        %3509 = vmatprep.subr.mxu0 0.0
        %3510 = vmatpush1.msra.mxu0 0.0
        %3511 = vmatprep.subr.mxu0 0.0
        %3512 = vmatpush1.msra.mxu0 0.0
        %3513 = vmatprep.subr.mxu0 0.0
        %3514 = vmatpush1.msra.mxu0 0.0
        %3515 = vmatprep.subr.mxu0 0.0
        %3516 = vmatpush1.msra.mxu0 0.0
        %3517 = vmatprep.subr.mxu0 0.0
        %3518 = vmatpush1.msra.mxu0 0.0
        %3519 = vmatprep.subr.mxu0 0.0
        %3520 = vmatpush1.msra.mxu0 0.0
        %3521 = vmatprep.subr.mxu0 0.0
        %3522 = vmatpush1.msra.mxu0 0.0
        %3523 = vmatprep.subr.mxu0 0.0
        %3524 = vmatpush1.msra.mxu0 0.0
        %3525 = vmatprep.subr.mxu0 0.0
        %3526 = vmatpush1.msra.mxu0 0.0
        %3527 = vmatprep.subr.mxu0 0.0
        %3528 = vmatpush1.msra.mxu0 0.0
        %3529 = vmatprep.subr.mxu0 0.0
        %3530 = vmatpush1.msra.mxu0 %v3487
        %3531 = vmatprep.subr.mxu0 0.0
        %3532 = vmatpush2.msra.mxu0 0.0
        %3533 = vmatprep.subr.mxu0 0.0
        %3534 = vmatpush2.msra.mxu0 0.0
        %3535 = vmatprep.subr.mxu0 0.0
        %3536 = vmatpush2.msra.mxu0 0.0
        %3537 = vmatprep.subr.mxu0 0.0
        %3538 = vmatpush2.msra.mxu0 0.0
        %3539 = vmatprep.subr.mxu0 0.0
        %3540 = vmatpush2.msra.mxu0 0.0
        %3541 = vmatprep.subr.mxu0 0.0
        %3542 = vmatpush2.msra.mxu0 0.0
        %3543 = vmatprep.subr.mxu0 0.0
        %3544 = vmatpush2.msra.mxu0 0.0
        %3545 = vmatprep.subr.mxu0 0.0
        %3546 = vmatpush2.msra.mxu0 0.0
        %3547 = vmatprep.subr.mxu0 0.0
        %3548 = vmatpush2.msra.mxu0 0.0
        %3549 = vmatprep.subr.mxu0 0.0
        %3550 = vmatpush2.msra.mxu0 0.0
        %3551 = vmatprep.subr.mxu0 0.0
        %3552 = vmatpush2.msra.mxu0 0.0
        %3553 = vmatprep.subr.mxu0 0.0
        %3554 = vmatpush2.msra.mxu0 0.0
        %3555 = vmatprep.subr.mxu0 0.0
        %3556 = vmatpush2.msra.mxu0 0.0
        %3557 = vmatprep.subr.mxu0 0.0
        %3558 = vmatpush2.msra.mxu0 0.0
        %3559 = vmatprep.subr.mxu0 0.0
        %3560 = vmatpush2.msra.mxu0 0.0
        %3561 = vmatprep.subr.mxu0 0.0
        %3562 = vmatpush2.msra.mxu0 0.0
        %3563 = vmatprep.mubr.f32.mxu0 0.0
        %3564 = vmatmul.mubr.f32.gmra.mxu0 %v3494
        %v3565 = vpop.f32.mrf.mxu0
        %v3566 = vadd.f32 0.0, %v3565
        %v3567 = vpop.f32.mrf.mxu0
        %3568 = vmatprep.mubr.f32.mxu0 0.0
        %3569 = vmatmul.mubr.f32.gmra.mxu0 %v3497
        %v3570 = vpop.f32.mrf.mxu0
        %v3571 = vadd.f32 0.0, %v3570
        %v3572 = vpop.f32.mrf.mxu0
        %3573 = vdwg.mxu0
        %v3574 = vadd.f32 %v3389, %v3566
        %v3575 = vadd.f32 %v3390, %v3571
        %s3576 = scalar_lea.vmem [#allocation11], 1000
        %v3577 = vld [vmem:[%s3576] sm:$0xff]
        %v3578 = vld [vmem:[%s3576 + $0x8] sm:$0xff]
        %v3579 = vld [vmem:[%s3576 + $0x10] sm:$0xff]
        %v3580 = vld [vmem:[%s3576 + $0x18] sm:$0xff]
        %v3581 = vld [vmem:[%s3576 + $0x20] sm:$0xff]
        %v3582 = vld [vmem:[%s3576 + $0x28] sm:$0xff]
        %v3583 = vld [vmem:[%s3576 + $0x30] sm:$0xff]
        %v3584 = vld [vmem:[%s3576 + $0x38] sm:$0xff]
        %v3585 = vld [vmem:[%s3576 + $0x40] sm:$0xff]
        %v3586 = vld [vmem:[%s3576 + $0x48] sm:$0xff]
        %v3587 = vld [vmem:[%s3576 + $0x50] sm:$0xff]
        %v3588 = vld [vmem:[%s3576 + $0x58] sm:$0xff]
        %v3589 = vld [vmem:[%s3576 + $0x60] sm:$0xff]
        %v3590 = vld [vmem:[%s3576 + $0x68] sm:$0xff]
        %v3591 = vld [vmem:[%s3576 + $0x70] sm:$0xff]
        %v3592 = vld [vmem:[%s3576 + $0x78] sm:$0xff]
        %v3593 = vld [vmem:[%s3576 + $0x80] sm:$0xff]
        %v3594 = vld [vmem:[%s3576 + $0x88] sm:$0xff]
        %v3595 = vld [vmem:[%s3576 + $0x90] sm:$0xff]
        %v3596 = vld [vmem:[%s3576 + $0x98] sm:$0xff]
        %v3597 = vld [vmem:[%s3576 + $0xa0] sm:$0xff]
        %v3598 = vld [vmem:[%s3576 + $0xa8] sm:$0xff]
        %v3599 = vld [vmem:[%s3576 + $0xb0] sm:$0xff]
        %v3600 = vld [vmem:[%s3576 + $0xb8] sm:$0xff]
        %v3601 = vld [vmem:[%s3576 + $0xc0] sm:$0xf]
        %v3603 = vsel %vm2680, %v3601, 0
        %3605 = vmatprep.subr.mxu0 0.0
        %3606 = vmatpush1.msra.mxu0 %v3592
        %3607 = vmatprep.subr.mxu0 0.0
        %3608 = vmatpush1.msra.mxu0 %v3591
        %3609 = vmatprep.subr.mxu0 0.0
        %3610 = vmatpush1.msra.mxu0 %v3590
        %3611 = vmatprep.subr.mxu0 0.0
        %3612 = vmatpush1.msra.mxu0 %v3589
        %3613 = vmatprep.subr.mxu0 0.0
        %3614 = vmatpush1.msra.mxu0 %v3588
        %3615 = vmatprep.subr.mxu0 0.0
        %3616 = vmatpush1.msra.mxu0 %v3587
        %3617 = vmatprep.subr.mxu0 0.0
        %3618 = vmatpush1.msra.mxu0 %v3586
        %3619 = vmatprep.subr.mxu0 0.0
        %3620 = vmatpush1.msra.mxu0 %v3585
        %3621 = vmatprep.subr.mxu0 0.0
        %3622 = vmatpush1.msra.mxu0 %v3584
        %3623 = vmatprep.subr.mxu0 0.0
        %3624 = vmatpush1.msra.mxu0 %v3583
        %3625 = vmatprep.subr.mxu0 0.0
        %3626 = vmatpush1.msra.mxu0 %v3582
        %3627 = vmatprep.subr.mxu0 0.0
        %3628 = vmatpush1.msra.mxu0 %v3581
        %3629 = vmatprep.subr.mxu0 0.0
        %3630 = vmatpush1.msra.mxu0 %v3580
        %3631 = vmatprep.subr.mxu0 0.0
        %3632 = vmatpush1.msra.mxu0 %v3579
        %3633 = vmatprep.subr.mxu0 0.0
        %3634 = vmatpush1.msra.mxu0 %v3578
        %3635 = vmatprep.subr.mxu0 0.0
        %3636 = vmatpush1.msra.mxu0 %v3577
        %3637 = vmatprep.subr.mxu0 0.0
        %3638 = vmatpush2.msra.mxu0 0.0
        %3639 = vmatprep.subr.mxu0 0.0
        %3640 = vmatpush2.msra.mxu0 0.0
        %3641 = vmatprep.subr.mxu0 0.0
        %3642 = vmatpush2.msra.mxu0 0.0
        %3643 = vmatprep.subr.mxu0 0.0
        %3644 = vmatpush2.msra.mxu0 0.0
        %3645 = vmatprep.subr.mxu0 0.0
        %3646 = vmatpush2.msra.mxu0 0.0
        %3647 = vmatprep.subr.mxu0 0.0
        %3648 = vmatpush2.msra.mxu0 0.0
        %3649 = vmatprep.subr.mxu0 0.0
        %3650 = vmatpush2.msra.mxu0 0.0
        %3651 = vmatprep.subr.mxu0 0.0
        %3652 = vmatpush2.msra.mxu0 %v3603
        %3653 = vmatprep.subr.mxu0 0.0
        %3654 = vmatpush2.msra.mxu0 %v3600
        %3655 = vmatprep.subr.mxu0 0.0
        %3656 = vmatpush2.msra.mxu0 %v3599
        %3657 = vmatprep.subr.mxu0 0.0
        %3658 = vmatpush2.msra.mxu0 %v3598
        %3659 = vmatprep.subr.mxu0 0.0
        %3660 = vmatpush2.msra.mxu0 %v3597
        %3661 = vmatprep.subr.mxu0 0.0
        %3662 = vmatpush2.msra.mxu0 %v3596
        %3663 = vmatprep.subr.mxu0 0.0
        %3664 = vmatpush2.msra.mxu0 %v3595
        %3665 = vmatprep.subr.mxu0 0.0
        %3666 = vmatpush2.msra.mxu0 %v3594
        %3667 = vmatprep.subr.mxu0 0.0
        %3668 = vmatpush2.msra.mxu0 %v3593
        %3669 = vmatprep.mubr.f32.mxu0 %v2678
        %3670 = vmatmul.mubr.f32.gmra.mxu0 %v2649
        %v3671 = vpop.f32.mrf.mxu0
        %v3672 = vadd.f32 0.0, %v3671
        %v3673 = vpop.f32.mrf.mxu0
        %3674 = vdwg.mxu0
        %s3675 = scalar_lea.vmem [#allocation8], 80
        %v3676 = vld [vmem:[%s3675] sm:$0xff]
        %v3677 = vld [vmem:[%s3675 + $0x8] sm:$0xff]
        %v3679 = vsel %vm2858, %v3676, 0
        %v3682 = vsel %vm2858, %v3677, 0
        %3684 = vmatprep.subr.mxu0 0.0
        %3685 = vmatpush1.msra.mxu0 0.0
        %3686 = vmatprep.subr.mxu0 0.0
        %3687 = vmatpush1.msra.mxu0 0.0
        %3688 = vmatprep.subr.mxu0 0.0
        %3689 = vmatpush1.msra.mxu0 0.0
        %3690 = vmatprep.subr.mxu0 0.0
        %3691 = vmatpush1.msra.mxu0 0.0
        %3692 = vmatprep.subr.mxu0 0.0
        %3693 = vmatpush1.msra.mxu0 0.0
        %3694 = vmatprep.subr.mxu0 0.0
        %3695 = vmatpush1.msra.mxu0 0.0
        %3696 = vmatprep.subr.mxu0 0.0
        %3697 = vmatpush1.msra.mxu0 0.0
        %3698 = vmatprep.subr.mxu0 0.0
        %3699 = vmatpush1.msra.mxu0 0.0
        %3700 = vmatprep.subr.mxu0 0.0
        %3701 = vmatpush1.msra.mxu0 0.0
        %3702 = vmatprep.subr.mxu0 0.0
        %3703 = vmatpush1.msra.mxu0 0.0
        %3704 = vmatprep.subr.mxu0 0.0
        %3705 = vmatpush1.msra.mxu0 0.0
        %3706 = vmatprep.subr.mxu0 0.0
        %3707 = vmatpush1.msra.mxu0 0.0
        %3708 = vmatprep.subr.mxu0 0.0
        %3709 = vmatpush1.msra.mxu0 0.0
        %3710 = vmatprep.subr.mxu0 0.0
        %3711 = vmatpush1.msra.mxu0 0.0
        %3712 = vmatprep.subr.mxu0 0.0
        %3713 = vmatpush1.msra.mxu0 0.0
        %3714 = vmatprep.subr.mxu0 0.0
        %3715 = vmatpush1.msra.mxu0 %v3672
        %3716 = vmatprep.subr.mxu0 0.0
        %3717 = vmatpush2.msra.mxu0 0.0
        %3718 = vmatprep.subr.mxu0 0.0
        %3719 = vmatpush2.msra.mxu0 0.0
        %3720 = vmatprep.subr.mxu0 0.0
        %3721 = vmatpush2.msra.mxu0 0.0
        %3722 = vmatprep.subr.mxu0 0.0
        %3723 = vmatpush2.msra.mxu0 0.0
        %3724 = vmatprep.subr.mxu0 0.0
        %3725 = vmatpush2.msra.mxu0 0.0
        %3726 = vmatprep.subr.mxu0 0.0
        %3727 = vmatpush2.msra.mxu0 0.0
        %3728 = vmatprep.subr.mxu0 0.0
        %3729 = vmatpush2.msra.mxu0 0.0
        %3730 = vmatprep.subr.mxu0 0.0
        %3731 = vmatpush2.msra.mxu0 0.0
        %3732 = vmatprep.subr.mxu0 0.0
        %3733 = vmatpush2.msra.mxu0 0.0
        %3734 = vmatprep.subr.mxu0 0.0
        %3735 = vmatpush2.msra.mxu0 0.0
        %3736 = vmatprep.subr.mxu0 0.0
        %3737 = vmatpush2.msra.mxu0 0.0
        %3738 = vmatprep.subr.mxu0 0.0
        %3739 = vmatpush2.msra.mxu0 0.0
        %3740 = vmatprep.subr.mxu0 0.0
        %3741 = vmatpush2.msra.mxu0 0.0
        %3742 = vmatprep.subr.mxu0 0.0
        %3743 = vmatpush2.msra.mxu0 0.0
        %3744 = vmatprep.subr.mxu0 0.0
        %3745 = vmatpush2.msra.mxu0 0.0
        %3746 = vmatprep.subr.mxu0 0.0
        %3747 = vmatpush2.msra.mxu0 0.0
        %3748 = vmatprep.mubr.f32.mxu0 0.0
        %3749 = vmatmul.mubr.f32.gmra.mxu0 %v3679
        %v3750 = vpop.f32.mrf.mxu0
        %v3751 = vadd.f32 0.0, %v3750
        %v3752 = vpop.f32.mrf.mxu0
        %3753 = vmatprep.mubr.f32.mxu0 0.0
        %3754 = vmatmul.mubr.f32.gmra.mxu0 %v3682
        %v3755 = vpop.f32.mrf.mxu0
        %v3756 = vadd.f32 0.0, %v3755
        %v3757 = vpop.f32.mrf.mxu0
        %3758 = vdwg.mxu0
        %v3759 = vadd.f32 %v3574, %v3751
        %v3760 = vadd.f32 %v3575, %v3756
        %s3761 = scalar_lea.vmem [#allocation11], 1200
        %v3762 = vld [vmem:[%s3761] sm:$0xff]
        %v3763 = vld [vmem:[%s3761 + $0x8] sm:$0xff]
        %v3764 = vld [vmem:[%s3761 + $0x10] sm:$0xff]
        %v3765 = vld [vmem:[%s3761 + $0x18] sm:$0xff]
        %v3766 = vld [vmem:[%s3761 + $0x20] sm:$0xff]
        %v3767 = vld [vmem:[%s3761 + $0x28] sm:$0xff]
        %v3768 = vld [vmem:[%s3761 + $0x30] sm:$0xff]
        %v3769 = vld [vmem:[%s3761 + $0x38] sm:$0xff]
        %v3770 = vld [vmem:[%s3761 + $0x40] sm:$0xff]
        %v3771 = vld [vmem:[%s3761 + $0x48] sm:$0xff]
        %v3772 = vld [vmem:[%s3761 + $0x50] sm:$0xff]
        %v3773 = vld [vmem:[%s3761 + $0x58] sm:$0xff]
        %v3774 = vld [vmem:[%s3761 + $0x60] sm:$0xff]
        %v3775 = vld [vmem:[%s3761 + $0x68] sm:$0xff]
        %v3776 = vld [vmem:[%s3761 + $0x70] sm:$0xff]
        %v3777 = vld [vmem:[%s3761 + $0x78] sm:$0xff]
        %v3778 = vld [vmem:[%s3761 + $0x80] sm:$0xff]
        %v3779 = vld [vmem:[%s3761 + $0x88] sm:$0xff]
        %v3780 = vld [vmem:[%s3761 + $0x90] sm:$0xff]
        %v3781 = vld [vmem:[%s3761 + $0x98] sm:$0xff]
        %v3782 = vld [vmem:[%s3761 + $0xa0] sm:$0xff]
        %v3783 = vld [vmem:[%s3761 + $0xa8] sm:$0xff]
        %v3784 = vld [vmem:[%s3761 + $0xb0] sm:$0xff]
        %v3785 = vld [vmem:[%s3761 + $0xb8] sm:$0xff]
        %v3786 = vld [vmem:[%s3761 + $0xc0] sm:$0xf]
        %v3788 = vsel %vm2680, %v3786, 0
        %3790 = vmatprep.subr.mxu0 0.0
        %3791 = vmatpush1.msra.mxu0 %v3777
        %3792 = vmatprep.subr.mxu0 0.0
        %3793 = vmatpush1.msra.mxu0 %v3776
        %3794 = vmatprep.subr.mxu0 0.0
        %3795 = vmatpush1.msra.mxu0 %v3775
        %3796 = vmatprep.subr.mxu0 0.0
        %3797 = vmatpush1.msra.mxu0 %v3774
        %3798 = vmatprep.subr.mxu0 0.0
        %3799 = vmatpush1.msra.mxu0 %v3773
        %3800 = vmatprep.subr.mxu0 0.0
        %3801 = vmatpush1.msra.mxu0 %v3772
        %3802 = vmatprep.subr.mxu0 0.0
        %3803 = vmatpush1.msra.mxu0 %v3771
        %3804 = vmatprep.subr.mxu0 0.0
        %3805 = vmatpush1.msra.mxu0 %v3770
        %3806 = vmatprep.subr.mxu0 0.0
        %3807 = vmatpush1.msra.mxu0 %v3769
        %3808 = vmatprep.subr.mxu0 0.0
        %3809 = vmatpush1.msra.mxu0 %v3768
        %3810 = vmatprep.subr.mxu0 0.0
        %3811 = vmatpush1.msra.mxu0 %v3767
        %3812 = vmatprep.subr.mxu0 0.0
        %3813 = vmatpush1.msra.mxu0 %v3766
        %3814 = vmatprep.subr.mxu0 0.0
        %3815 = vmatpush1.msra.mxu0 %v3765
        %3816 = vmatprep.subr.mxu0 0.0
        %3817 = vmatpush1.msra.mxu0 %v3764
        %3818 = vmatprep.subr.mxu0 0.0
        %3819 = vmatpush1.msra.mxu0 %v3763
        %3820 = vmatprep.subr.mxu0 0.0
        %3821 = vmatpush1.msra.mxu0 %v3762
        %3822 = vmatprep.subr.mxu0 0.0
        %3823 = vmatpush2.msra.mxu0 0.0
        %3824 = vmatprep.subr.mxu0 0.0
        %3825 = vmatpush2.msra.mxu0 0.0
        %3826 = vmatprep.subr.mxu0 0.0
        %3827 = vmatpush2.msra.mxu0 0.0
        %3828 = vmatprep.subr.mxu0 0.0
        %3829 = vmatpush2.msra.mxu0 0.0
        %3830 = vmatprep.subr.mxu0 0.0
        %3831 = vmatpush2.msra.mxu0 0.0
        %3832 = vmatprep.subr.mxu0 0.0
        %3833 = vmatpush2.msra.mxu0 0.0
        %3834 = vmatprep.subr.mxu0 0.0
        %3835 = vmatpush2.msra.mxu0 0.0
        %3836 = vmatprep.subr.mxu0 0.0
        %3837 = vmatpush2.msra.mxu0 %v3788
        %3838 = vmatprep.subr.mxu0 0.0
        %3839 = vmatpush2.msra.mxu0 %v3785
        %3840 = vmatprep.subr.mxu0 0.0
        %3841 = vmatpush2.msra.mxu0 %v3784
        %3842 = vmatprep.subr.mxu0 0.0
        %3843 = vmatpush2.msra.mxu0 %v3783
        %3844 = vmatprep.subr.mxu0 0.0
        %3845 = vmatpush2.msra.mxu0 %v3782
        %3846 = vmatprep.subr.mxu0 0.0
        %3847 = vmatpush2.msra.mxu0 %v3781
        %3848 = vmatprep.subr.mxu0 0.0
        %3849 = vmatpush2.msra.mxu0 %v3780
        %3850 = vmatprep.subr.mxu0 0.0
        %3851 = vmatpush2.msra.mxu0 %v3779
        %3852 = vmatprep.subr.mxu0 0.0
        %3853 = vmatpush2.msra.mxu0 %v3778
        %3854 = vmatprep.mubr.f32.mxu0 %v2678
        %3855 = vmatmul.mubr.f32.gmra.mxu0 %v2649
        %v3856 = vpop.f32.mrf.mxu0
        %v3857 = vadd.f32 0.0, %v3856
        %v3858 = vpop.f32.mrf.mxu0
        %3859 = vdwg.mxu0
        %s3860 = scalar_lea.vmem [#allocation8], 96
        %v3861 = vld [vmem:[%s3860] sm:$0xff]
        %v3862 = vld [vmem:[%s3860 + $0x8] sm:$0xff]
        %v3864 = vsel %vm2858, %v3861, 0
        %v3867 = vsel %vm2858, %v3862, 0
        %3869 = vmatprep.subr.mxu0 0.0
        %3870 = vmatpush1.msra.mxu0 0.0
        %3871 = vmatprep.subr.mxu0 0.0
        %3872 = vmatpush1.msra.mxu0 0.0
        %3873 = vmatprep.subr.mxu0 0.0
        %3874 = vmatpush1.msra.mxu0 0.0
        %3875 = vmatprep.subr.mxu0 0.0
        %3876 = vmatpush1.msra.mxu0 0.0
        %3877 = vmatprep.subr.mxu0 0.0
        %3878 = vmatpush1.msra.mxu0 0.0
        %3879 = vmatprep.subr.mxu0 0.0
        %3880 = vmatpush1.msra.mxu0 0.0
        %3881 = vmatprep.subr.mxu0 0.0
        %3882 = vmatpush1.msra.mxu0 0.0
        %3883 = vmatprep.subr.mxu0 0.0
        %3884 = vmatpush1.msra.mxu0 0.0
        %3885 = vmatprep.subr.mxu0 0.0
        %3886 = vmatpush1.msra.mxu0 0.0
        %3887 = vmatprep.subr.mxu0 0.0
        %3888 = vmatpush1.msra.mxu0 0.0
        %3889 = vmatprep.subr.mxu0 0.0
        %3890 = vmatpush1.msra.mxu0 0.0
        %3891 = vmatprep.subr.mxu0 0.0
        %3892 = vmatpush1.msra.mxu0 0.0
        %3893 = vmatprep.subr.mxu0 0.0
        %3894 = vmatpush1.msra.mxu0 0.0
        %3895 = vmatprep.subr.mxu0 0.0
        %3896 = vmatpush1.msra.mxu0 0.0
        %3897 = vmatprep.subr.mxu0 0.0
        %3898 = vmatpush1.msra.mxu0 0.0
        %3899 = vmatprep.subr.mxu0 0.0
        %3900 = vmatpush1.msra.mxu0 %v3857
        %3901 = vmatprep.subr.mxu0 0.0
        %3902 = vmatpush2.msra.mxu0 0.0
        %3903 = vmatprep.subr.mxu0 0.0
        %3904 = vmatpush2.msra.mxu0 0.0
        %3905 = vmatprep.subr.mxu0 0.0
        %3906 = vmatpush2.msra.mxu0 0.0
        %3907 = vmatprep.subr.mxu0 0.0
        %3908 = vmatpush2.msra.mxu0 0.0
        %3909 = vmatprep.subr.mxu0 0.0
        %3910 = vmatpush2.msra.mxu0 0.0
        %3911 = vmatprep.subr.mxu0 0.0
        %3912 = vmatpush2.msra.mxu0 0.0
        %3913 = vmatprep.subr.mxu0 0.0
        %3914 = vmatpush2.msra.mxu0 0.0
        %3915 = vmatprep.subr.mxu0 0.0
        %3916 = vmatpush2.msra.mxu0 0.0
        %3917 = vmatprep.subr.mxu0 0.0
        %3918 = vmatpush2.msra.mxu0 0.0
        %3919 = vmatprep.subr.mxu0 0.0
        %3920 = vmatpush2.msra.mxu0 0.0
        %3921 = vmatprep.subr.mxu0 0.0
        %3922 = vmatpush2.msra.mxu0 0.0
        %3923 = vmatprep.subr.mxu0 0.0
        %3924 = vmatpush2.msra.mxu0 0.0
        %3925 = vmatprep.subr.mxu0 0.0
        %3926 = vmatpush2.msra.mxu0 0.0
        %3927 = vmatprep.subr.mxu0 0.0
        %3928 = vmatpush2.msra.mxu0 0.0
        %3929 = vmatprep.subr.mxu0 0.0
        %3930 = vmatpush2.msra.mxu0 0.0
        %3931 = vmatprep.subr.mxu0 0.0
        %3932 = vmatpush2.msra.mxu0 0.0
        %3933 = vmatprep.mubr.f32.mxu0 0.0
        %3934 = vmatmul.mubr.f32.gmra.mxu0 %v3864
        %v3935 = vpop.f32.mrf.mxu0
        %v3936 = vadd.f32 0.0, %v3935
        %v3937 = vpop.f32.mrf.mxu0
        %3938 = vmatprep.mubr.f32.mxu0 0.0
        %3939 = vmatmul.mubr.f32.gmra.mxu0 %v3867
        %v3940 = vpop.f32.mrf.mxu0
        %v3941 = vadd.f32 0.0, %v3940
        %v3942 = vpop.f32.mrf.mxu0
        %3943 = vdwg.mxu0
        %v3944 = vadd.f32 %v3759, %v3936
        %v3945 = vadd.f32 %v3760, %v3941
        %s3946 = scalar_lea.vmem [#allocation11], 1400
        %v3947 = vld [vmem:[%s3946] sm:$0xff]
        %v3948 = vld [vmem:[%s3946 + $0x8] sm:$0xff]
        %v3949 = vld [vmem:[%s3946 + $0x10] sm:$0xff]
        %v3950 = vld [vmem:[%s3946 + $0x18] sm:$0xff]
        %v3951 = vld [vmem:[%s3946 + $0x20] sm:$0xff]
        %v3952 = vld [vmem:[%s3946 + $0x28] sm:$0xff]
        %v3953 = vld [vmem:[%s3946 + $0x30] sm:$0xff]
        %v3954 = vld [vmem:[%s3946 + $0x38] sm:$0xff]
        %v3955 = vld [vmem:[%s3946 + $0x40] sm:$0xff]
        %v3956 = vld [vmem:[%s3946 + $0x48] sm:$0xff]
        %v3957 = vld [vmem:[%s3946 + $0x50] sm:$0xff]
        %v3958 = vld [vmem:[%s3946 + $0x58] sm:$0xff]
        %v3959 = vld [vmem:[%s3946 + $0x60] sm:$0xff]
        %v3960 = vld [vmem:[%s3946 + $0x68] sm:$0xff]
        %v3961 = vld [vmem:[%s3946 + $0x70] sm:$0xff]
        %v3962 = vld [vmem:[%s3946 + $0x78] sm:$0xff]
        %v3963 = vld [vmem:[%s3946 + $0x80] sm:$0xff]
        %v3964 = vld [vmem:[%s3946 + $0x88] sm:$0xff]
        %v3965 = vld [vmem:[%s3946 + $0x90] sm:$0xff]
        %v3966 = vld [vmem:[%s3946 + $0x98] sm:$0xff]
        %v3967 = vld [vmem:[%s3946 + $0xa0] sm:$0xff]
        %v3968 = vld [vmem:[%s3946 + $0xa8] sm:$0xff]
        %v3969 = vld [vmem:[%s3946 + $0xb0] sm:$0xff]
        %v3970 = vld [vmem:[%s3946 + $0xb8] sm:$0xff]
        %v3971 = vld [vmem:[%s3946 + $0xc0] sm:$0xf]
        %v3973 = vsel %vm2680, %v3971, 0
        %3975 = vmatprep.subr.mxu0 0.0
        %3976 = vmatpush1.msra.mxu0 %v3962
        %3977 = vmatprep.subr.mxu0 0.0
        %3978 = vmatpush1.msra.mxu0 %v3961
        %3979 = vmatprep.subr.mxu0 0.0
        %3980 = vmatpush1.msra.mxu0 %v3960
        %3981 = vmatprep.subr.mxu0 0.0
        %3982 = vmatpush1.msra.mxu0 %v3959
        %3983 = vmatprep.subr.mxu0 0.0
        %3984 = vmatpush1.msra.mxu0 %v3958
        %3985 = vmatprep.subr.mxu0 0.0
        %3986 = vmatpush1.msra.mxu0 %v3957
        %3987 = vmatprep.subr.mxu0 0.0
        %3988 = vmatpush1.msra.mxu0 %v3956
        %3989 = vmatprep.subr.mxu0 0.0
        %3990 = vmatpush1.msra.mxu0 %v3955
        %3991 = vmatprep.subr.mxu0 0.0
        %3992 = vmatpush1.msra.mxu0 %v3954
        %3993 = vmatprep.subr.mxu0 0.0
        %3994 = vmatpush1.msra.mxu0 %v3953
        %3995 = vmatprep.subr.mxu0 0.0
        %3996 = vmatpush1.msra.mxu0 %v3952
        %3997 = vmatprep.subr.mxu0 0.0
        %3998 = vmatpush1.msra.mxu0 %v3951
        %3999 = vmatprep.subr.mxu0 0.0
        %4000 = vmatpush1.msra.mxu0 %v3950
        %4001 = vmatprep.subr.mxu0 0.0
        %4002 = vmatpush1.msra.mxu0 %v3949
        %4003 = vmatprep.subr.mxu0 0.0
        %4004 = vmatpush1.msra.mxu0 %v3948
        %4005 = vmatprep.subr.mxu0 0.0
        %4006 = vmatpush1.msra.mxu0 %v3947
        %4007 = vmatprep.subr.mxu0 0.0
        %4008 = vmatpush2.msra.mxu0 0.0
        %4009 = vmatprep.subr.mxu0 0.0
        %4010 = vmatpush2.msra.mxu0 0.0
        %4011 = vmatprep.subr.mxu0 0.0
        %4012 = vmatpush2.msra.mxu0 0.0
        %4013 = vmatprep.subr.mxu0 0.0
        %4014 = vmatpush2.msra.mxu0 0.0
        %4015 = vmatprep.subr.mxu0 0.0
        %4016 = vmatpush2.msra.mxu0 0.0
        %4017 = vmatprep.subr.mxu0 0.0
        %4018 = vmatpush2.msra.mxu0 0.0
        %4019 = vmatprep.subr.mxu0 0.0
        %4020 = vmatpush2.msra.mxu0 0.0
        %4021 = vmatprep.subr.mxu0 0.0
        %4022 = vmatpush2.msra.mxu0 %v3973
        %4023 = vmatprep.subr.mxu0 0.0
        %4024 = vmatpush2.msra.mxu0 %v3970
        %4025 = vmatprep.subr.mxu0 0.0
        %4026 = vmatpush2.msra.mxu0 %v3969
        %4027 = vmatprep.subr.mxu0 0.0
        %4028 = vmatpush2.msra.mxu0 %v3968
        %4029 = vmatprep.subr.mxu0 0.0
        %4030 = vmatpush2.msra.mxu0 %v3967
        %4031 = vmatprep.subr.mxu0 0.0
        %4032 = vmatpush2.msra.mxu0 %v3966
        %4033 = vmatprep.subr.mxu0 0.0
        %4034 = vmatpush2.msra.mxu0 %v3965
        %4035 = vmatprep.subr.mxu0 0.0
        %4036 = vmatpush2.msra.mxu0 %v3964
        %4037 = vmatprep.subr.mxu0 0.0
        %4038 = vmatpush2.msra.mxu0 %v3963
        %4039 = vmatprep.mubr.f32.mxu0 %v2678
        %4040 = vmatmul.mubr.f32.gmra.mxu0 %v2649
        %v4041 = vpop.f32.mrf.mxu0
        %v4042 = vadd.f32 0.0, %v4041
        %v4043 = vpop.f32.mrf.mxu0
        %4044 = vdwg.mxu0
        %s4045 = scalar_lea.vmem [#allocation8], 112
        %v4046 = vld [vmem:[%s4045] sm:$0xff]
        %v4047 = vld [vmem:[%s4045 + $0x8] sm:$0xff]
        %v4049 = vsel %vm2858, %v4046, 0
        %v4052 = vsel %vm2858, %v4047, 0
        %4054 = vmatprep.subr.mxu0 0.0
        %4055 = vmatpush1.msra.mxu0 0.0
        %4056 = vmatprep.subr.mxu0 0.0
        %4057 = vmatpush1.msra.mxu0 0.0
        %4058 = vmatprep.subr.mxu0 0.0
        %4059 = vmatpush1.msra.mxu0 0.0
        %4060 = vmatprep.subr.mxu0 0.0
        %4061 = vmatpush1.msra.mxu0 0.0
        %4062 = vmatprep.subr.mxu0 0.0
        %4063 = vmatpush1.msra.mxu0 0.0
        %4064 = vmatprep.subr.mxu0 0.0
        %4065 = vmatpush1.msra.mxu0 0.0
        %4066 = vmatprep.subr.mxu0 0.0
        %4067 = vmatpush1.msra.mxu0 0.0
        %4068 = vmatprep.subr.mxu0 0.0
        %4069 = vmatpush1.msra.mxu0 0.0
        %4070 = vmatprep.subr.mxu0 0.0
        %4071 = vmatpush1.msra.mxu0 0.0
        %4072 = vmatprep.subr.mxu0 0.0
        %4073 = vmatpush1.msra.mxu0 0.0
        %4074 = vmatprep.subr.mxu0 0.0
        %4075 = vmatpush1.msra.mxu0 0.0
        %4076 = vmatprep.subr.mxu0 0.0
        %4077 = vmatpush1.msra.mxu0 0.0
        %4078 = vmatprep.subr.mxu0 0.0
        %4079 = vmatpush1.msra.mxu0 0.0
        %4080 = vmatprep.subr.mxu0 0.0
        %4081 = vmatpush1.msra.mxu0 0.0
        %4082 = vmatprep.subr.mxu0 0.0
        %4083 = vmatpush1.msra.mxu0 0.0
        %4084 = vmatprep.subr.mxu0 0.0
        %4085 = vmatpush1.msra.mxu0 %v4042
        %4086 = vmatprep.subr.mxu0 0.0
        %4087 = vmatpush2.msra.mxu0 0.0
        %4088 = vmatprep.subr.mxu0 0.0
        %4089 = vmatpush2.msra.mxu0 0.0
        %4090 = vmatprep.subr.mxu0 0.0
        %4091 = vmatpush2.msra.mxu0 0.0
        %4092 = vmatprep.subr.mxu0 0.0
        %4093 = vmatpush2.msra.mxu0 0.0
        %4094 = vmatprep.subr.mxu0 0.0
        %4095 = vmatpush2.msra.mxu0 0.0
        %4096 = vmatprep.subr.mxu0 0.0
        %4097 = vmatpush2.msra.mxu0 0.0
        %4098 = vmatprep.subr.mxu0 0.0
        %4099 = vmatpush2.msra.mxu0 0.0
        %4100 = vmatprep.subr.mxu0 0.0
        %4101 = vmatpush2.msra.mxu0 0.0
        %4102 = vmatprep.subr.mxu0 0.0
        %4103 = vmatpush2.msra.mxu0 0.0
        %4104 = vmatprep.subr.mxu0 0.0
        %4105 = vmatpush2.msra.mxu0 0.0
        %4106 = vmatprep.subr.mxu0 0.0
        %4107 = vmatpush2.msra.mxu0 0.0
        %4108 = vmatprep.subr.mxu0 0.0
        %4109 = vmatpush2.msra.mxu0 0.0
        %4110 = vmatprep.subr.mxu0 0.0
        %4111 = vmatpush2.msra.mxu0 0.0
        %4112 = vmatprep.subr.mxu0 0.0
        %4113 = vmatpush2.msra.mxu0 0.0
        %4114 = vmatprep.subr.mxu0 0.0
        %4115 = vmatpush2.msra.mxu0 0.0
        %4116 = vmatprep.subr.mxu0 0.0
        %4117 = vmatpush2.msra.mxu0 0.0
        %4118 = vmatprep.mubr.f32.mxu0 0.0
        %4119 = vmatmul.mubr.f32.gmra.mxu0 %v4049
        %v4120 = vpop.f32.mrf.mxu0
        %v4121 = vadd.f32 0.0, %v4120
        %v4122 = vpop.f32.mrf.mxu0
        %4123 = vmatprep.mubr.f32.mxu0 0.0
        %4124 = vmatmul.mubr.f32.gmra.mxu0 %v4052
        %v4125 = vpop.f32.mrf.mxu0
        %v4126 = vadd.f32 0.0, %v4125
        %v4127 = vpop.f32.mrf.mxu0
        %4128 = vdwg.mxu0
        %v4129 = vadd.f32 %v3944, %v4121
        %v4130 = vadd.f32 %v3945, %v4126
        %s4131 = scalar_lea.vmem [#allocation11], 1600
        %v4132 = vld [vmem:[%s4131] sm:$0xff]
        %v4133 = vld [vmem:[%s4131 + $0x8] sm:$0xff]
        %v4134 = vld [vmem:[%s4131 + $0x10] sm:$0xff]
        %v4135 = vld [vmem:[%s4131 + $0x18] sm:$0xff]
        %v4136 = vld [vmem:[%s4131 + $0x20] sm:$0xff]
        %v4137 = vld [vmem:[%s4131 + $0x28] sm:$0xff]
        %v4138 = vld [vmem:[%s4131 + $0x30] sm:$0xff]
        %v4139 = vld [vmem:[%s4131 + $0x38] sm:$0xff]
        %v4140 = vld [vmem:[%s4131 + $0x40] sm:$0xff]
        %v4141 = vld [vmem:[%s4131 + $0x48] sm:$0xff]
        %v4142 = vld [vmem:[%s4131 + $0x50] sm:$0xff]
        %v4143 = vld [vmem:[%s4131 + $0x58] sm:$0xff]
        %v4144 = vld [vmem:[%s4131 + $0x60] sm:$0xff]
        %v4145 = vld [vmem:[%s4131 + $0x68] sm:$0xff]
        %v4146 = vld [vmem:[%s4131 + $0x70] sm:$0xff]
        %v4147 = vld [vmem:[%s4131 + $0x78] sm:$0xff]
        %v4148 = vld [vmem:[%s4131 + $0x80] sm:$0xff]
        %v4149 = vld [vmem:[%s4131 + $0x88] sm:$0xff]
        %v4150 = vld [vmem:[%s4131 + $0x90] sm:$0xff]
        %v4151 = vld [vmem:[%s4131 + $0x98] sm:$0xff]
        %v4152 = vld [vmem:[%s4131 + $0xa0] sm:$0xff]
        %v4153 = vld [vmem:[%s4131 + $0xa8] sm:$0xff]
        %v4154 = vld [vmem:[%s4131 + $0xb0] sm:$0xff]
        %v4155 = vld [vmem:[%s4131 + $0xb8] sm:$0xff]
        %v4156 = vld [vmem:[%s4131 + $0xc0] sm:$0xf]
        %v4158 = vsel %vm2680, %v4156, 0
        %4160 = vmatprep.subr.mxu0 0.0
        %4161 = vmatpush1.msra.mxu0 %v4147
        %4162 = vmatprep.subr.mxu0 0.0
        %4163 = vmatpush1.msra.mxu0 %v4146
        %4164 = vmatprep.subr.mxu0 0.0
        %4165 = vmatpush1.msra.mxu0 %v4145
        %4166 = vmatprep.subr.mxu0 0.0
        %4167 = vmatpush1.msra.mxu0 %v4144
        %4168 = vmatprep.subr.mxu0 0.0
        %4169 = vmatpush1.msra.mxu0 %v4143
        %4170 = vmatprep.subr.mxu0 0.0
        %4171 = vmatpush1.msra.mxu0 %v4142
        %4172 = vmatprep.subr.mxu0 0.0
        %4173 = vmatpush1.msra.mxu0 %v4141
        %4174 = vmatprep.subr.mxu0 0.0
        %4175 = vmatpush1.msra.mxu0 %v4140
        %4176 = vmatprep.subr.mxu0 0.0
        %4177 = vmatpush1.msra.mxu0 %v4139
        %4178 = vmatprep.subr.mxu0 0.0
        %4179 = vmatpush1.msra.mxu0 %v4138
        %4180 = vmatprep.subr.mxu0 0.0
        %4181 = vmatpush1.msra.mxu0 %v4137
        %4182 = vmatprep.subr.mxu0 0.0
        %4183 = vmatpush1.msra.mxu0 %v4136
        %4184 = vmatprep.subr.mxu0 0.0
        %4185 = vmatpush1.msra.mxu0 %v4135
        %4186 = vmatprep.subr.mxu0 0.0
        %4187 = vmatpush1.msra.mxu0 %v4134
        %4188 = vmatprep.subr.mxu0 0.0
        %4189 = vmatpush1.msra.mxu0 %v4133
        %4190 = vmatprep.subr.mxu0 0.0
        %4191 = vmatpush1.msra.mxu0 %v4132
        %4192 = vmatprep.subr.mxu0 0.0
        %4193 = vmatpush2.msra.mxu0 0.0
        %4194 = vmatprep.subr.mxu0 0.0
        %4195 = vmatpush2.msra.mxu0 0.0
        %4196 = vmatprep.subr.mxu0 0.0
        %4197 = vmatpush2.msra.mxu0 0.0
        %4198 = vmatprep.subr.mxu0 0.0
        %4199 = vmatpush2.msra.mxu0 0.0
        %4200 = vmatprep.subr.mxu0 0.0
        %4201 = vmatpush2.msra.mxu0 0.0
        %4202 = vmatprep.subr.mxu0 0.0
        %4203 = vmatpush2.msra.mxu0 0.0
        %4204 = vmatprep.subr.mxu0 0.0
        %4205 = vmatpush2.msra.mxu0 0.0
        %4206 = vmatprep.subr.mxu0 0.0
        %4207 = vmatpush2.msra.mxu0 %v4158
        %4208 = vmatprep.subr.mxu0 0.0
        %4209 = vmatpush2.msra.mxu0 %v4155
        %4210 = vmatprep.subr.mxu0 0.0
        %4211 = vmatpush2.msra.mxu0 %v4154
        %4212 = vmatprep.subr.mxu0 0.0
        %4213 = vmatpush2.msra.mxu0 %v4153
        %4214 = vmatprep.subr.mxu0 0.0
        %4215 = vmatpush2.msra.mxu0 %v4152
        %4216 = vmatprep.subr.mxu0 0.0
        %4217 = vmatpush2.msra.mxu0 %v4151
        %4218 = vmatprep.subr.mxu0 0.0
        %4219 = vmatpush2.msra.mxu0 %v4150
        %4220 = vmatprep.subr.mxu0 0.0
        %4221 = vmatpush2.msra.mxu0 %v4149
        %4222 = vmatprep.subr.mxu0 0.0
        %4223 = vmatpush2.msra.mxu0 %v4148
        %4224 = vmatprep.mubr.f32.mxu0 %v2678
        %4225 = vmatmul.mubr.f32.gmra.mxu0 %v2649
        %v4226 = vpop.f32.mrf.mxu0
        %v4227 = vadd.f32 0.0, %v4226
        %v4228 = vpop.f32.mrf.mxu0
        %4229 = vdwg.mxu0
        %s4230 = scalar_lea.vmem [#allocation8], 128
        %v4231 = vld [vmem:[%s4230] sm:$0xff]
        %v4232 = vld [vmem:[%s4230 + $0x8] sm:$0xff]
        %v4234 = vsel %vm2858, %v4231, 0
        %v4237 = vsel %vm2858, %v4232, 0
        %4239 = vmatprep.subr.mxu0 0.0
        %4240 = vmatpush1.msra.mxu0 0.0
        %4241 = vmatprep.subr.mxu0 0.0
        %4242 = vmatpush1.msra.mxu0 0.0
        %4243 = vmatprep.subr.mxu0 0.0
        %4244 = vmatpush1.msra.mxu0 0.0
        %4245 = vmatprep.subr.mxu0 0.0
        %4246 = vmatpush1.msra.mxu0 0.0
        %4247 = vmatprep.subr.mxu0 0.0
        %4248 = vmatpush1.msra.mxu0 0.0
        %4249 = vmatprep.subr.mxu0 0.0
        %4250 = vmatpush1.msra.mxu0 0.0
        %4251 = vmatprep.subr.mxu0 0.0
        %4252 = vmatpush1.msra.mxu0 0.0
        %4253 = vmatprep.subr.mxu0 0.0
        %4254 = vmatpush1.msra.mxu0 0.0
        %4255 = vmatprep.subr.mxu0 0.0
        %4256 = vmatpush1.msra.mxu0 0.0
        %4257 = vmatprep.subr.mxu0 0.0
        %4258 = vmatpush1.msra.mxu0 0.0
        %4259 = vmatprep.subr.mxu0 0.0
        %4260 = vmatpush1.msra.mxu0 0.0
        %4261 = vmatprep.subr.mxu0 0.0
        %4262 = vmatpush1.msra.mxu0 0.0
        %4263 = vmatprep.subr.mxu0 0.0
        %4264 = vmatpush1.msra.mxu0 0.0
        %4265 = vmatprep.subr.mxu0 0.0
        %4266 = vmatpush1.msra.mxu0 0.0
        %4267 = vmatprep.subr.mxu0 0.0
        %4268 = vmatpush1.msra.mxu0 0.0
        %4269 = vmatprep.subr.mxu0 0.0
        %4270 = vmatpush1.msra.mxu0 %v4227
        %4271 = vmatprep.subr.mxu0 0.0
        %4272 = vmatpush2.msra.mxu0 0.0
        %4273 = vmatprep.subr.mxu0 0.0
        %4274 = vmatpush2.msra.mxu0 0.0
        %4275 = vmatprep.subr.mxu0 0.0
        %4276 = vmatpush2.msra.mxu0 0.0
        %4277 = vmatprep.subr.mxu0 0.0
        %4278 = vmatpush2.msra.mxu0 0.0
        %4279 = vmatprep.subr.mxu0 0.0
        %4280 = vmatpush2.msra.mxu0 0.0
        %4281 = vmatprep.subr.mxu0 0.0
        %4282 = vmatpush2.msra.mxu0 0.0
        %4283 = vmatprep.subr.mxu0 0.0
        %4284 = vmatpush2.msra.mxu0 0.0
        %4285 = vmatprep.subr.mxu0 0.0
        %4286 = vmatpush2.msra.mxu0 0.0
        %4287 = vmatprep.subr.mxu0 0.0
        %4288 = vmatpush2.msra.mxu0 0.0
        %4289 = vmatprep.subr.mxu0 0.0
        %4290 = vmatpush2.msra.mxu0 0.0
        %4291 = vmatprep.subr.mxu0 0.0
        %4292 = vmatpush2.msra.mxu0 0.0
        %4293 = vmatprep.subr.mxu0 0.0
        %4294 = vmatpush2.msra.mxu0 0.0
        %4295 = vmatprep.subr.mxu0 0.0
        %4296 = vmatpush2.msra.mxu0 0.0
        %4297 = vmatprep.subr.mxu0 0.0
        %4298 = vmatpush2.msra.mxu0 0.0
        %4299 = vmatprep.subr.mxu0 0.0
        %4300 = vmatpush2.msra.mxu0 0.0
        %4301 = vmatprep.subr.mxu0 0.0
        %4302 = vmatpush2.msra.mxu0 0.0
        %4303 = vmatprep.mubr.f32.mxu0 0.0
        %4304 = vmatmul.mubr.f32.gmra.mxu0 %v4234
        %v4305 = vpop.f32.mrf.mxu0
        %v4306 = vadd.f32 0.0, %v4305
        %v4307 = vpop.f32.mrf.mxu0
        %4308 = vmatprep.mubr.f32.mxu0 0.0
        %4309 = vmatmul.mubr.f32.gmra.mxu0 %v4237
        %v4310 = vpop.f32.mrf.mxu0
        %v4311 = vadd.f32 0.0, %v4310
        %v4312 = vpop.f32.mrf.mxu0
        %4313 = vdwg.mxu0
        %v4314 = vadd.f32 %v4129, %v4306
        %v4315 = vadd.f32 %v4130, %v4311
        %s4316 = scalar_lea.vmem [#allocation11], 1800
        %v4317 = vld [vmem:[%s4316] sm:$0xff]
        %v4318 = vld [vmem:[%s4316 + $0x8] sm:$0xff]
        %v4319 = vld [vmem:[%s4316 + $0x10] sm:$0xff]
        %v4320 = vld [vmem:[%s4316 + $0x18] sm:$0xff]
        %v4321 = vld [vmem:[%s4316 + $0x20] sm:$0xff]
        %v4322 = vld [vmem:[%s4316 + $0x28] sm:$0xff]
        %v4323 = vld [vmem:[%s4316 + $0x30] sm:$0xff]
        %v4324 = vld [vmem:[%s4316 + $0x38] sm:$0xff]
        %v4325 = vld [vmem:[%s4316 + $0x40] sm:$0xff]
        %v4326 = vld [vmem:[%s4316 + $0x48] sm:$0xff]
        %v4327 = vld [vmem:[%s4316 + $0x50] sm:$0xff]
        %v4328 = vld [vmem:[%s4316 + $0x58] sm:$0xff]
        %v4329 = vld [vmem:[%s4316 + $0x60] sm:$0xff]
        %v4330 = vld [vmem:[%s4316 + $0x68] sm:$0xff]
        %v4331 = vld [vmem:[%s4316 + $0x70] sm:$0xff]
        %v4332 = vld [vmem:[%s4316 + $0x78] sm:$0xff]
        %v4333 = vld [vmem:[%s4316 + $0x80] sm:$0xff]
        %v4334 = vld [vmem:[%s4316 + $0x88] sm:$0xff]
        %v4335 = vld [vmem:[%s4316 + $0x90] sm:$0xff]
        %v4336 = vld [vmem:[%s4316 + $0x98] sm:$0xff]
        %v4337 = vld [vmem:[%s4316 + $0xa0] sm:$0xff]
        %v4338 = vld [vmem:[%s4316 + $0xa8] sm:$0xff]
        %v4339 = vld [vmem:[%s4316 + $0xb0] sm:$0xff]
        %v4340 = vld [vmem:[%s4316 + $0xb8] sm:$0xff]
        %v4341 = vld [vmem:[%s4316 + $0xc0] sm:$0xf]
        %v4343 = vsel %vm2680, %v4341, 0
        %4345 = vmatprep.subr.mxu0 0.0
        %4346 = vmatpush1.msra.mxu0 %v4332
        %4347 = vmatprep.subr.mxu0 0.0
        %4348 = vmatpush1.msra.mxu0 %v4331
        %4349 = vmatprep.subr.mxu0 0.0
        %4350 = vmatpush1.msra.mxu0 %v4330
        %4351 = vmatprep.subr.mxu0 0.0
        %4352 = vmatpush1.msra.mxu0 %v4329
        %4353 = vmatprep.subr.mxu0 0.0
        %4354 = vmatpush1.msra.mxu0 %v4328
        %4355 = vmatprep.subr.mxu0 0.0
        %4356 = vmatpush1.msra.mxu0 %v4327
        %4357 = vmatprep.subr.mxu0 0.0
        %4358 = vmatpush1.msra.mxu0 %v4326
        %4359 = vmatprep.subr.mxu0 0.0
        %4360 = vmatpush1.msra.mxu0 %v4325
        %4361 = vmatprep.subr.mxu0 0.0
        %4362 = vmatpush1.msra.mxu0 %v4324
        %4363 = vmatprep.subr.mxu0 0.0
        %4364 = vmatpush1.msra.mxu0 %v4323
        %4365 = vmatprep.subr.mxu0 0.0
        %4366 = vmatpush1.msra.mxu0 %v4322
        %4367 = vmatprep.subr.mxu0 0.0
        %4368 = vmatpush1.msra.mxu0 %v4321
        %4369 = vmatprep.subr.mxu0 0.0
        %4370 = vmatpush1.msra.mxu0 %v4320
        %4371 = vmatprep.subr.mxu0 0.0
        %4372 = vmatpush1.msra.mxu0 %v4319
        %4373 = vmatprep.subr.mxu0 0.0
        %4374 = vmatpush1.msra.mxu0 %v4318
        %4375 = vmatprep.subr.mxu0 0.0
        %4376 = vmatpush1.msra.mxu0 %v4317
        %4377 = vmatprep.subr.mxu0 0.0
        %4378 = vmatpush2.msra.mxu0 0.0
        %4379 = vmatprep.subr.mxu0 0.0
        %4380 = vmatpush2.msra.mxu0 0.0
        %4381 = vmatprep.subr.mxu0 0.0
        %4382 = vmatpush2.msra.mxu0 0.0
        %4383 = vmatprep.subr.mxu0 0.0
        %4384 = vmatpush2.msra.mxu0 0.0
        %4385 = vmatprep.subr.mxu0 0.0
        %4386 = vmatpush2.msra.mxu0 0.0
        %4387 = vmatprep.subr.mxu0 0.0
        %4388 = vmatpush2.msra.mxu0 0.0
        %4389 = vmatprep.subr.mxu0 0.0
        %4390 = vmatpush2.msra.mxu0 0.0
        %4391 = vmatprep.subr.mxu0 0.0
        %4392 = vmatpush2.msra.mxu0 %v4343
        %4393 = vmatprep.subr.mxu0 0.0
        %4394 = vmatpush2.msra.mxu0 %v4340
        %4395 = vmatprep.subr.mxu0 0.0
        %4396 = vmatpush2.msra.mxu0 %v4339
        %4397 = vmatprep.subr.mxu0 0.0
        %4398 = vmatpush2.msra.mxu0 %v4338
        %4399 = vmatprep.subr.mxu0 0.0
        %4400 = vmatpush2.msra.mxu0 %v4337
        %4401 = vmatprep.subr.mxu0 0.0
        %4402 = vmatpush2.msra.mxu0 %v4336
        %4403 = vmatprep.subr.mxu0 0.0
        %4404 = vmatpush2.msra.mxu0 %v4335
        %4405 = vmatprep.subr.mxu0 0.0
        %4406 = vmatpush2.msra.mxu0 %v4334
        %4407 = vmatprep.subr.mxu0 0.0
        %4408 = vmatpush2.msra.mxu0 %v4333
        %4409 = vmatprep.mubr.f32.mxu0 %v2678
        %4410 = vmatmul.mubr.f32.gmra.mxu0 %v2649
        %v4411 = vpop.f32.mrf.mxu0
        %v4412 = vadd.f32 0.0, %v4411
        %v4413 = vpop.f32.mrf.mxu0
        %4414 = vdwg.mxu0
        %s4415 = scalar_lea.vmem [#allocation8], 144
        %v4416 = vld [vmem:[%s4415] sm:$0xff]
        %v4417 = vld [vmem:[%s4415 + $0x8] sm:$0xff]
        %v4419 = vsel %vm2858, %v4416, 0
        %v4422 = vsel %vm2858, %v4417, 0
        %4424 = vmatprep.subr.mxu0 0.0
        %4425 = vmatpush1.msra.mxu0 0.0
        %4426 = vmatprep.subr.mxu0 0.0
        %4427 = vmatpush1.msra.mxu0 0.0
        %4428 = vmatprep.subr.mxu0 0.0
        %4429 = vmatpush1.msra.mxu0 0.0
        %4430 = vmatprep.subr.mxu0 0.0
        %4431 = vmatpush1.msra.mxu0 0.0
        %4432 = vmatprep.subr.mxu0 0.0
        %4433 = vmatpush1.msra.mxu0 0.0
        %4434 = vmatprep.subr.mxu0 0.0
        %4435 = vmatpush1.msra.mxu0 0.0
        %4436 = vmatprep.subr.mxu0 0.0
        %4437 = vmatpush1.msra.mxu0 0.0
        %4438 = vmatprep.subr.mxu0 0.0
        %4439 = vmatpush1.msra.mxu0 0.0
        %4440 = vmatprep.subr.mxu0 0.0
        %4441 = vmatpush1.msra.mxu0 0.0
        %4442 = vmatprep.subr.mxu0 0.0
        %4443 = vmatpush1.msra.mxu0 0.0
        %4444 = vmatprep.subr.mxu0 0.0
        %4445 = vmatpush1.msra.mxu0 0.0
        %4446 = vmatprep.subr.mxu0 0.0
        %4447 = vmatpush1.msra.mxu0 0.0
        %4448 = vmatprep.subr.mxu0 0.0
        %4449 = vmatpush1.msra.mxu0 0.0
        %4450 = vmatprep.subr.mxu0 0.0
        %4451 = vmatpush1.msra.mxu0 0.0
        %4452 = vmatprep.subr.mxu0 0.0
        %4453 = vmatpush1.msra.mxu0 0.0
        %4454 = vmatprep.subr.mxu0 0.0
        %4455 = vmatpush1.msra.mxu0 %v4412
        %4456 = vmatprep.subr.mxu0 0.0
        %4457 = vmatpush2.msra.mxu0 0.0
        %4458 = vmatprep.subr.mxu0 0.0
        %4459 = vmatpush2.msra.mxu0 0.0
        %4460 = vmatprep.subr.mxu0 0.0
        %4461 = vmatpush2.msra.mxu0 0.0
        %4462 = vmatprep.subr.mxu0 0.0
        %4463 = vmatpush2.msra.mxu0 0.0
        %4464 = vmatprep.subr.mxu0 0.0
        %4465 = vmatpush2.msra.mxu0 0.0
        %4466 = vmatprep.subr.mxu0 0.0
        %4467 = vmatpush2.msra.mxu0 0.0
        %4468 = vmatprep.subr.mxu0 0.0
        %4469 = vmatpush2.msra.mxu0 0.0
        %4470 = vmatprep.subr.mxu0 0.0
        %4471 = vmatpush2.msra.mxu0 0.0
        %4472 = vmatprep.subr.mxu0 0.0
        %4473 = vmatpush2.msra.mxu0 0.0
        %4474 = vmatprep.subr.mxu0 0.0
        %4475 = vmatpush2.msra.mxu0 0.0
        %4476 = vmatprep.subr.mxu0 0.0
        %4477 = vmatpush2.msra.mxu0 0.0
        %4478 = vmatprep.subr.mxu0 0.0
        %4479 = vmatpush2.msra.mxu0 0.0
        %4480 = vmatprep.subr.mxu0 0.0
        %4481 = vmatpush2.msra.mxu0 0.0
        %4482 = vmatprep.subr.mxu0 0.0
        %4483 = vmatpush2.msra.mxu0 0.0
        %4484 = vmatprep.subr.mxu0 0.0
        %4485 = vmatpush2.msra.mxu0 0.0
        %4486 = vmatprep.subr.mxu0 0.0
        %4487 = vmatpush2.msra.mxu0 0.0
        %4488 = vmatprep.mubr.f32.mxu0 0.0
        %4489 = vmatmul.mubr.f32.gmra.mxu0 %v4419
        %v4490 = vpop.f32.mrf.mxu0
        %v4491 = vadd.f32 0.0, %v4490
        %v4492 = vpop.f32.mrf.mxu0
        %4493 = vmatprep.mubr.f32.mxu0 0.0
        %4494 = vmatmul.mubr.f32.gmra.mxu0 %v4422
        %v4495 = vpop.f32.mrf.mxu0
        %v4496 = vadd.f32 0.0, %v4495
        %v4497 = vpop.f32.mrf.mxu0
        %4498 = vdwg.mxu0
        %v4499 = vadd.f32 %v4314, %v4491
        %v4500 = vadd.f32 %v4315, %v4496
        %s4501 = scalar_lea.vmem [#allocation11], 2000
        %v4502 = vld [vmem:[%s4501] sm:$0xff]
        %v4503 = vld [vmem:[%s4501 + $0x8] sm:$0xff]
        %v4504 = vld [vmem:[%s4501 + $0x10] sm:$0xff]
        %v4505 = vld [vmem:[%s4501 + $0x18] sm:$0xff]
        %v4506 = vld [vmem:[%s4501 + $0x20] sm:$0xff]
        %v4507 = vld [vmem:[%s4501 + $0x28] sm:$0xff]
        %v4508 = vld [vmem:[%s4501 + $0x30] sm:$0xff]
        %v4509 = vld [vmem:[%s4501 + $0x38] sm:$0xff]
        %v4510 = vld [vmem:[%s4501 + $0x40] sm:$0xff]
        %v4511 = vld [vmem:[%s4501 + $0x48] sm:$0xff]
        %v4512 = vld [vmem:[%s4501 + $0x50] sm:$0xff]
        %v4513 = vld [vmem:[%s4501 + $0x58] sm:$0xff]
        %v4514 = vld [vmem:[%s4501 + $0x60] sm:$0xff]
        %v4515 = vld [vmem:[%s4501 + $0x68] sm:$0xff]
        %v4516 = vld [vmem:[%s4501 + $0x70] sm:$0xff]
        %v4517 = vld [vmem:[%s4501 + $0x78] sm:$0xff]
        %v4518 = vld [vmem:[%s4501 + $0x80] sm:$0xff]
        %v4519 = vld [vmem:[%s4501 + $0x88] sm:$0xff]
        %v4520 = vld [vmem:[%s4501 + $0x90] sm:$0xff]
        %v4521 = vld [vmem:[%s4501 + $0x98] sm:$0xff]
        %v4522 = vld [vmem:[%s4501 + $0xa0] sm:$0xff]
        %v4523 = vld [vmem:[%s4501 + $0xa8] sm:$0xff]
        %v4524 = vld [vmem:[%s4501 + $0xb0] sm:$0xff]
        %v4525 = vld [vmem:[%s4501 + $0xb8] sm:$0xff]
        %v4526 = vld [vmem:[%s4501 + $0xc0] sm:$0xf]
        %v4528 = vsel %vm2680, %v4526, 0
        %4530 = vmatprep.subr.mxu0 0.0
        %4531 = vmatpush1.msra.mxu0 %v4517
        %4532 = vmatprep.subr.mxu0 0.0
        %4533 = vmatpush1.msra.mxu0 %v4516
        %4534 = vmatprep.subr.mxu0 0.0
        %4535 = vmatpush1.msra.mxu0 %v4515
        %4536 = vmatprep.subr.mxu0 0.0
        %4537 = vmatpush1.msra.mxu0 %v4514
        %4538 = vmatprep.subr.mxu0 0.0
        %4539 = vmatpush1.msra.mxu0 %v4513
        %4540 = vmatprep.subr.mxu0 0.0
        %4541 = vmatpush1.msra.mxu0 %v4512
        %4542 = vmatprep.subr.mxu0 0.0
        %4543 = vmatpush1.msra.mxu0 %v4511
        %4544 = vmatprep.subr.mxu0 0.0
        %4545 = vmatpush1.msra.mxu0 %v4510
        %4546 = vmatprep.subr.mxu0 0.0
        %4547 = vmatpush1.msra.mxu0 %v4509
        %4548 = vmatprep.subr.mxu0 0.0
        %4549 = vmatpush1.msra.mxu0 %v4508
        %4550 = vmatprep.subr.mxu0 0.0
        %4551 = vmatpush1.msra.mxu0 %v4507
        %4552 = vmatprep.subr.mxu0 0.0
        %4553 = vmatpush1.msra.mxu0 %v4506
        %4554 = vmatprep.subr.mxu0 0.0
        %4555 = vmatpush1.msra.mxu0 %v4505
        %4556 = vmatprep.subr.mxu0 0.0
        %4557 = vmatpush1.msra.mxu0 %v4504
        %4558 = vmatprep.subr.mxu0 0.0
        %4559 = vmatpush1.msra.mxu0 %v4503
        %4560 = vmatprep.subr.mxu0 0.0
        %4561 = vmatpush1.msra.mxu0 %v4502
        %4562 = vmatprep.subr.mxu0 0.0
        %4563 = vmatpush2.msra.mxu0 0.0
        %4564 = vmatprep.subr.mxu0 0.0
        %4565 = vmatpush2.msra.mxu0 0.0
        %4566 = vmatprep.subr.mxu0 0.0
        %4567 = vmatpush2.msra.mxu0 0.0
        %4568 = vmatprep.subr.mxu0 0.0
        %4569 = vmatpush2.msra.mxu0 0.0
        %4570 = vmatprep.subr.mxu0 0.0
        %4571 = vmatpush2.msra.mxu0 0.0
        %4572 = vmatprep.subr.mxu0 0.0
        %4573 = vmatpush2.msra.mxu0 0.0
        %4574 = vmatprep.subr.mxu0 0.0
        %4575 = vmatpush2.msra.mxu0 0.0
        %4576 = vmatprep.subr.mxu0 0.0
        %4577 = vmatpush2.msra.mxu0 %v4528
        %4578 = vmatprep.subr.mxu0 0.0
        %4579 = vmatpush2.msra.mxu0 %v4525
        %4580 = vmatprep.subr.mxu0 0.0
        %4581 = vmatpush2.msra.mxu0 %v4524
        %4582 = vmatprep.subr.mxu0 0.0
        %4583 = vmatpush2.msra.mxu0 %v4523
        %4584 = vmatprep.subr.mxu0 0.0
        %4585 = vmatpush2.msra.mxu0 %v4522
        %4586 = vmatprep.subr.mxu0 0.0
        %4587 = vmatpush2.msra.mxu0 %v4521
        %4588 = vmatprep.subr.mxu0 0.0
        %4589 = vmatpush2.msra.mxu0 %v4520
        %4590 = vmatprep.subr.mxu0 0.0
        %4591 = vmatpush2.msra.mxu0 %v4519
        %4592 = vmatprep.subr.mxu0 0.0
        %4593 = vmatpush2.msra.mxu0 %v4518
        %4594 = vmatprep.mubr.f32.mxu0 %v2678
        %4595 = vmatmul.mubr.f32.gmra.mxu0 %v2649
        %v4596 = vpop.f32.mrf.mxu0
        %v4597 = vadd.f32 0.0, %v4596
        %v4598 = vpop.f32.mrf.mxu0
        %4599 = vdwg.mxu0
        %s4600 = scalar_lea.vmem [#allocation8], 160
        %v4601 = vld [vmem:[%s4600] sm:$0xff]
        %v4602 = vld [vmem:[%s4600 + $0x8] sm:$0xff]
        %v4604 = vsel %vm2858, %v4601, 0
        %v4607 = vsel %vm2858, %v4602, 0
        %4609 = vmatprep.subr.mxu0 0.0
        %4610 = vmatpush1.msra.mxu0 0.0
        %4611 = vmatprep.subr.mxu0 0.0
        %4612 = vmatpush1.msra.mxu0 0.0
        %4613 = vmatprep.subr.mxu0 0.0
        %4614 = vmatpush1.msra.mxu0 0.0
        %4615 = vmatprep.subr.mxu0 0.0
        %4616 = vmatpush1.msra.mxu0 0.0
        %4617 = vmatprep.subr.mxu0 0.0
        %4618 = vmatpush1.msra.mxu0 0.0
        %4619 = vmatprep.subr.mxu0 0.0
        %4620 = vmatpush1.msra.mxu0 0.0
        %4621 = vmatprep.subr.mxu0 0.0
        %4622 = vmatpush1.msra.mxu0 0.0
        %4623 = vmatprep.subr.mxu0 0.0
        %4624 = vmatpush1.msra.mxu0 0.0
        %4625 = vmatprep.subr.mxu0 0.0
        %4626 = vmatpush1.msra.mxu0 0.0
        %4627 = vmatprep.subr.mxu0 0.0
        %4628 = vmatpush1.msra.mxu0 0.0
        %4629 = vmatprep.subr.mxu0 0.0
        %4630 = vmatpush1.msra.mxu0 0.0
        %4631 = vmatprep.subr.mxu0 0.0
        %4632 = vmatpush1.msra.mxu0 0.0
        %4633 = vmatprep.subr.mxu0 0.0
        %4634 = vmatpush1.msra.mxu0 0.0
        %4635 = vmatprep.subr.mxu0 0.0
        %4636 = vmatpush1.msra.mxu0 0.0
        %4637 = vmatprep.subr.mxu0 0.0
        %4638 = vmatpush1.msra.mxu0 0.0
        %4639 = vmatprep.subr.mxu0 0.0
        %4640 = vmatpush1.msra.mxu0 %v4597
        %4641 = vmatprep.subr.mxu0 0.0
        %4642 = vmatpush2.msra.mxu0 0.0
        %4643 = vmatprep.subr.mxu0 0.0
        %4644 = vmatpush2.msra.mxu0 0.0
        %4645 = vmatprep.subr.mxu0 0.0
        %4646 = vmatpush2.msra.mxu0 0.0
        %4647 = vmatprep.subr.mxu0 0.0
        %4648 = vmatpush2.msra.mxu0 0.0
        %4649 = vmatprep.subr.mxu0 0.0
        %4650 = vmatpush2.msra.mxu0 0.0
        %4651 = vmatprep.subr.mxu0 0.0
        %4652 = vmatpush2.msra.mxu0 0.0
        %4653 = vmatprep.subr.mxu0 0.0
        %4654 = vmatpush2.msra.mxu0 0.0
        %4655 = vmatprep.subr.mxu0 0.0
        %4656 = vmatpush2.msra.mxu0 0.0
        %4657 = vmatprep.subr.mxu0 0.0
        %4658 = vmatpush2.msra.mxu0 0.0
        %4659 = vmatprep.subr.mxu0 0.0
        %4660 = vmatpush2.msra.mxu0 0.0
        %4661 = vmatprep.subr.mxu0 0.0
        %4662 = vmatpush2.msra.mxu0 0.0
        %4663 = vmatprep.subr.mxu0 0.0
        %4664 = vmatpush2.msra.mxu0 0.0
        %4665 = vmatprep.subr.mxu0 0.0
        %4666 = vmatpush2.msra.mxu0 0.0
        %4667 = vmatprep.subr.mxu0 0.0
        %4668 = vmatpush2.msra.mxu0 0.0
        %4669 = vmatprep.subr.mxu0 0.0
        %4670 = vmatpush2.msra.mxu0 0.0
        %4671 = vmatprep.subr.mxu0 0.0
        %4672 = vmatpush2.msra.mxu0 0.0
        %4673 = vmatprep.mubr.f32.mxu0 0.0
        %4674 = vmatmul.mubr.f32.gmra.mxu0 %v4604
        %v4675 = vpop.f32.mrf.mxu0
        %v4676 = vadd.f32 0.0, %v4675
        %v4677 = vpop.f32.mrf.mxu0
        %4678 = vmatprep.mubr.f32.mxu0 0.0
        %4679 = vmatmul.mubr.f32.gmra.mxu0 %v4607
        %v4680 = vpop.f32.mrf.mxu0
        %v4681 = vadd.f32 0.0, %v4680
        %v4682 = vpop.f32.mrf.mxu0
        %4683 = vdwg.mxu0
        %v4684 = vadd.f32 %v4499, %v4676
        %v4685 = vadd.f32 %v4500, %v4681
        %s4686 = scalar_lea.vmem [#allocation11], 2200
        %v4687 = vld [vmem:[%s4686] sm:$0xff]
        %v4688 = vld [vmem:[%s4686 + $0x8] sm:$0xff]
        %v4689 = vld [vmem:[%s4686 + $0x10] sm:$0xff]
        %v4690 = vld [vmem:[%s4686 + $0x18] sm:$0xff]
        %v4691 = vld [vmem:[%s4686 + $0x20] sm:$0xff]
        %v4692 = vld [vmem:[%s4686 + $0x28] sm:$0xff]
        %v4693 = vld [vmem:[%s4686 + $0x30] sm:$0xff]
        %v4694 = vld [vmem:[%s4686 + $0x38] sm:$0xff]
        %v4695 = vld [vmem:[%s4686 + $0x40] sm:$0xff]
        %v4696 = vld [vmem:[%s4686 + $0x48] sm:$0xff]
        %v4697 = vld [vmem:[%s4686 + $0x50] sm:$0xff]
        %v4698 = vld [vmem:[%s4686 + $0x58] sm:$0xff]
        %v4699 = vld [vmem:[%s4686 + $0x60] sm:$0xff]
        %v4700 = vld [vmem:[%s4686 + $0x68] sm:$0xff]
        %v4701 = vld [vmem:[%s4686 + $0x70] sm:$0xff]
        %v4702 = vld [vmem:[%s4686 + $0x78] sm:$0xff]
        %v4703 = vld [vmem:[%s4686 + $0x80] sm:$0xff]
        %v4704 = vld [vmem:[%s4686 + $0x88] sm:$0xff]
        %v4705 = vld [vmem:[%s4686 + $0x90] sm:$0xff]
        %v4706 = vld [vmem:[%s4686 + $0x98] sm:$0xff]
        %v4707 = vld [vmem:[%s4686 + $0xa0] sm:$0xff]
        %v4708 = vld [vmem:[%s4686 + $0xa8] sm:$0xff]
        %v4709 = vld [vmem:[%s4686 + $0xb0] sm:$0xff]
        %v4710 = vld [vmem:[%s4686 + $0xb8] sm:$0xff]
        %v4711 = vld [vmem:[%s4686 + $0xc0] sm:$0xf]
        %v4713 = vsel %vm2680, %v4711, 0
        %4715 = vmatprep.subr.mxu0 0.0
        %4716 = vmatpush1.msra.mxu0 %v4702
        %4717 = vmatprep.subr.mxu0 0.0
        %4718 = vmatpush1.msra.mxu0 %v4701
        %4719 = vmatprep.subr.mxu0 0.0
        %4720 = vmatpush1.msra.mxu0 %v4700
        %4721 = vmatprep.subr.mxu0 0.0
        %4722 = vmatpush1.msra.mxu0 %v4699
        %4723 = vmatprep.subr.mxu0 0.0
        %4724 = vmatpush1.msra.mxu0 %v4698
        %4725 = vmatprep.subr.mxu0 0.0
        %4726 = vmatpush1.msra.mxu0 %v4697
        %4727 = vmatprep.subr.mxu0 0.0
        %4728 = vmatpush1.msra.mxu0 %v4696
        %4729 = vmatprep.subr.mxu0 0.0
        %4730 = vmatpush1.msra.mxu0 %v4695
        %4731 = vmatprep.subr.mxu0 0.0
        %4732 = vmatpush1.msra.mxu0 %v4694
        %4733 = vmatprep.subr.mxu0 0.0
        %4734 = vmatpush1.msra.mxu0 %v4693
        %4735 = vmatprep.subr.mxu0 0.0
        %4736 = vmatpush1.msra.mxu0 %v4692
        %4737 = vmatprep.subr.mxu0 0.0
        %4738 = vmatpush1.msra.mxu0 %v4691
        %4739 = vmatprep.subr.mxu0 0.0
        %4740 = vmatpush1.msra.mxu0 %v4690
        %4741 = vmatprep.subr.mxu0 0.0
        %4742 = vmatpush1.msra.mxu0 %v4689
        %4743 = vmatprep.subr.mxu0 0.0
        %4744 = vmatpush1.msra.mxu0 %v4688
        %4745 = vmatprep.subr.mxu0 0.0
        %4746 = vmatpush1.msra.mxu0 %v4687
        %4747 = vmatprep.subr.mxu0 0.0
        %4748 = vmatpush2.msra.mxu0 0.0
        %4749 = vmatprep.subr.mxu0 0.0
        %4750 = vmatpush2.msra.mxu0 0.0
        %4751 = vmatprep.subr.mxu0 0.0
        %4752 = vmatpush2.msra.mxu0 0.0
        %4753 = vmatprep.subr.mxu0 0.0
        %4754 = vmatpush2.msra.mxu0 0.0
        %4755 = vmatprep.subr.mxu0 0.0
        %4756 = vmatpush2.msra.mxu0 0.0
        %4757 = vmatprep.subr.mxu0 0.0
        %4758 = vmatpush2.msra.mxu0 0.0
        %4759 = vmatprep.subr.mxu0 0.0
        %4760 = vmatpush2.msra.mxu0 0.0
        %4761 = vmatprep.subr.mxu0 0.0
        %4762 = vmatpush2.msra.mxu0 %v4713
        %4763 = vmatprep.subr.mxu0 0.0
        %4764 = vmatpush2.msra.mxu0 %v4710
        %4765 = vmatprep.subr.mxu0 0.0
        %4766 = vmatpush2.msra.mxu0 %v4709
        %4767 = vmatprep.subr.mxu0 0.0
        %4768 = vmatpush2.msra.mxu0 %v4708
        %4769 = vmatprep.subr.mxu0 0.0
        %4770 = vmatpush2.msra.mxu0 %v4707
        %4771 = vmatprep.subr.mxu0 0.0
        %4772 = vmatpush2.msra.mxu0 %v4706
        %4773 = vmatprep.subr.mxu0 0.0
        %4774 = vmatpush2.msra.mxu0 %v4705
        %4775 = vmatprep.subr.mxu0 0.0
        %4776 = vmatpush2.msra.mxu0 %v4704
        %4777 = vmatprep.subr.mxu0 0.0
        %4778 = vmatpush2.msra.mxu0 %v4703
        %4779 = vmatprep.mubr.f32.mxu0 %v2678
        %4780 = vmatmul.mubr.f32.gmra.mxu0 %v2649
        %v4781 = vpop.f32.mrf.mxu0
        %v4782 = vadd.f32 0.0, %v4781
        %v4783 = vpop.f32.mrf.mxu0
        %4784 = vdwg.mxu0
        %s4785 = scalar_lea.vmem [#allocation8], 176
        %v4786 = vld [vmem:[%s4785] sm:$0xff]
        %v4787 = vld [vmem:[%s4785 + $0x8] sm:$0xff]
        %v4789 = vsel %vm2858, %v4786, 0
        %v4792 = vsel %vm2858, %v4787, 0
        %4794 = vmatprep.subr.mxu0 0.0
        %4795 = vmatpush1.msra.mxu0 0.0
        %4796 = vmatprep.subr.mxu0 0.0
        %4797 = vmatpush1.msra.mxu0 0.0
        %4798 = vmatprep.subr.mxu0 0.0
        %4799 = vmatpush1.msra.mxu0 0.0
        %4800 = vmatprep.subr.mxu0 0.0
        %4801 = vmatpush1.msra.mxu0 0.0
        %4802 = vmatprep.subr.mxu0 0.0
        %4803 = vmatpush1.msra.mxu0 0.0
        %4804 = vmatprep.subr.mxu0 0.0
        %4805 = vmatpush1.msra.mxu0 0.0
        %4806 = vmatprep.subr.mxu0 0.0
        %4807 = vmatpush1.msra.mxu0 0.0
        %4808 = vmatprep.subr.mxu0 0.0
        %4809 = vmatpush1.msra.mxu0 0.0
        %4810 = vmatprep.subr.mxu0 0.0
        %4811 = vmatpush1.msra.mxu0 0.0
        %4812 = vmatprep.subr.mxu0 0.0
        %4813 = vmatpush1.msra.mxu0 0.0
        %4814 = vmatprep.subr.mxu0 0.0
        %4815 = vmatpush1.msra.mxu0 0.0
        %4816 = vmatprep.subr.mxu0 0.0
        %4817 = vmatpush1.msra.mxu0 0.0
        %4818 = vmatprep.subr.mxu0 0.0
        %4819 = vmatpush1.msra.mxu0 0.0
        %4820 = vmatprep.subr.mxu0 0.0
        %4821 = vmatpush1.msra.mxu0 0.0
        %4822 = vmatprep.subr.mxu0 0.0
        %4823 = vmatpush1.msra.mxu0 0.0
        %4824 = vmatprep.subr.mxu0 0.0
        %4825 = vmatpush1.msra.mxu0 %v4782
        %4826 = vmatprep.subr.mxu0 0.0
        %4827 = vmatpush2.msra.mxu0 0.0
        %4828 = vmatprep.subr.mxu0 0.0
        %4829 = vmatpush2.msra.mxu0 0.0
        %4830 = vmatprep.subr.mxu0 0.0
        %4831 = vmatpush2.msra.mxu0 0.0
        %4832 = vmatprep.subr.mxu0 0.0
        %4833 = vmatpush2.msra.mxu0 0.0
        %4834 = vmatprep.subr.mxu0 0.0
        %4835 = vmatpush2.msra.mxu0 0.0
        %4836 = vmatprep.subr.mxu0 0.0
        %4837 = vmatpush2.msra.mxu0 0.0
        %4838 = vmatprep.subr.mxu0 0.0
        %4839 = vmatpush2.msra.mxu0 0.0
        %4840 = vmatprep.subr.mxu0 0.0
        %4841 = vmatpush2.msra.mxu0 0.0
        %4842 = vmatprep.subr.mxu0 0.0
        %4843 = vmatpush2.msra.mxu0 0.0
        %4844 = vmatprep.subr.mxu0 0.0
        %4845 = vmatpush2.msra.mxu0 0.0
        %4846 = vmatprep.subr.mxu0 0.0
        %4847 = vmatpush2.msra.mxu0 0.0
        %4848 = vmatprep.subr.mxu0 0.0
        %4849 = vmatpush2.msra.mxu0 0.0
        %4850 = vmatprep.subr.mxu0 0.0
        %4851 = vmatpush2.msra.mxu0 0.0
        %4852 = vmatprep.subr.mxu0 0.0
        %4853 = vmatpush2.msra.mxu0 0.0
        %4854 = vmatprep.subr.mxu0 0.0
        %4855 = vmatpush2.msra.mxu0 0.0
        %4856 = vmatprep.subr.mxu0 0.0
        %4857 = vmatpush2.msra.mxu0 0.0
        %4858 = vmatprep.mubr.f32.mxu0 0.0
        %4859 = vmatmul.mubr.f32.gmra.mxu0 %v4789
        %v4860 = vpop.f32.mrf.mxu0
        %v4861 = vadd.f32 0.0, %v4860
        %v4862 = vpop.f32.mrf.mxu0
        %4863 = vmatprep.mubr.f32.mxu0 0.0
        %4864 = vmatmul.mubr.f32.gmra.mxu0 %v4792
        %v4865 = vpop.f32.mrf.mxu0
        %v4866 = vadd.f32 0.0, %v4865
        %v4867 = vpop.f32.mrf.mxu0
        %4868 = vdwg.mxu0
        %v4869 = vadd.f32 %v4684, %v4861
        %v4870 = vadd.f32 %v4685, %v4866
        %s4871 = scalar_lea.vmem [#allocation11], 2400
        %v4872 = vld [vmem:[%s4871] sm:$0xff]
        %v4873 = vld [vmem:[%s4871 + $0x8] sm:$0xff]
        %v4874 = vld [vmem:[%s4871 + $0x10] sm:$0xff]
        %v4875 = vld [vmem:[%s4871 + $0x18] sm:$0xff]
        %v4876 = vld [vmem:[%s4871 + $0x20] sm:$0xff]
        %v4877 = vld [vmem:[%s4871 + $0x28] sm:$0xff]
        %v4878 = vld [vmem:[%s4871 + $0x30] sm:$0xff]
        %v4879 = vld [vmem:[%s4871 + $0x38] sm:$0xff]
        %v4880 = vld [vmem:[%s4871 + $0x40] sm:$0xff]
        %v4881 = vld [vmem:[%s4871 + $0x48] sm:$0xff]
        %v4882 = vld [vmem:[%s4871 + $0x50] sm:$0xff]
        %v4883 = vld [vmem:[%s4871 + $0x58] sm:$0xff]
        %v4884 = vld [vmem:[%s4871 + $0x60] sm:$0xff]
        %v4885 = vld [vmem:[%s4871 + $0x68] sm:$0xff]
        %v4886 = vld [vmem:[%s4871 + $0x70] sm:$0xff]
        %v4887 = vld [vmem:[%s4871 + $0x78] sm:$0xff]
        %v4888 = vld [vmem:[%s4871 + $0x80] sm:$0xff]
        %v4889 = vld [vmem:[%s4871 + $0x88] sm:$0xff]
        %v4890 = vld [vmem:[%s4871 + $0x90] sm:$0xff]
        %v4891 = vld [vmem:[%s4871 + $0x98] sm:$0xff]
        %v4892 = vld [vmem:[%s4871 + $0xa0] sm:$0xff]
        %v4893 = vld [vmem:[%s4871 + $0xa8] sm:$0xff]
        %v4894 = vld [vmem:[%s4871 + $0xb0] sm:$0xff]
        %v4895 = vld [vmem:[%s4871 + $0xb8] sm:$0xff]
        %v4896 = vld [vmem:[%s4871 + $0xc0] sm:$0xf]
        %v4898 = vsel %vm2680, %v4896, 0
        %4900 = vmatprep.subr.mxu0 0.0
        %4901 = vmatpush1.msra.mxu0 %v4887
        %4902 = vmatprep.subr.mxu0 0.0
        %4903 = vmatpush1.msra.mxu0 %v4886
        %4904 = vmatprep.subr.mxu0 0.0
        %4905 = vmatpush1.msra.mxu0 %v4885
        %4906 = vmatprep.subr.mxu0 0.0
        %4907 = vmatpush1.msra.mxu0 %v4884
        %4908 = vmatprep.subr.mxu0 0.0
        %4909 = vmatpush1.msra.mxu0 %v4883
        %4910 = vmatprep.subr.mxu0 0.0
        %4911 = vmatpush1.msra.mxu0 %v4882
        %4912 = vmatprep.subr.mxu0 0.0
        %4913 = vmatpush1.msra.mxu0 %v4881
        %4914 = vmatprep.subr.mxu0 0.0
        %4915 = vmatpush1.msra.mxu0 %v4880
        %4916 = vmatprep.subr.mxu0 0.0
        %4917 = vmatpush1.msra.mxu0 %v4879
        %4918 = vmatprep.subr.mxu0 0.0
        %4919 = vmatpush1.msra.mxu0 %v4878
        %4920 = vmatprep.subr.mxu0 0.0
        %4921 = vmatpush1.msra.mxu0 %v4877
        %4922 = vmatprep.subr.mxu0 0.0
        %4923 = vmatpush1.msra.mxu0 %v4876
        %4924 = vmatprep.subr.mxu0 0.0
        %4925 = vmatpush1.msra.mxu0 %v4875
        %4926 = vmatprep.subr.mxu0 0.0
        %4927 = vmatpush1.msra.mxu0 %v4874
        %4928 = vmatprep.subr.mxu0 0.0
        %4929 = vmatpush1.msra.mxu0 %v4873
        %4930 = vmatprep.subr.mxu0 0.0
        %4931 = vmatpush1.msra.mxu0 %v4872
        %4932 = vmatprep.subr.mxu0 0.0
        %4933 = vmatpush2.msra.mxu0 0.0
        %4934 = vmatprep.subr.mxu0 0.0
        %4935 = vmatpush2.msra.mxu0 0.0
        %4936 = vmatprep.subr.mxu0 0.0
        %4937 = vmatpush2.msra.mxu0 0.0
        %4938 = vmatprep.subr.mxu0 0.0
        %4939 = vmatpush2.msra.mxu0 0.0
        %4940 = vmatprep.subr.mxu0 0.0
        %4941 = vmatpush2.msra.mxu0 0.0
        %4942 = vmatprep.subr.mxu0 0.0
        %4943 = vmatpush2.msra.mxu0 0.0
        %4944 = vmatprep.subr.mxu0 0.0
        %4945 = vmatpush2.msra.mxu0 0.0
        %4946 = vmatprep.subr.mxu0 0.0
        %4947 = vmatpush2.msra.mxu0 %v4898
        %4948 = vmatprep.subr.mxu0 0.0
        %4949 = vmatpush2.msra.mxu0 %v4895
        %4950 = vmatprep.subr.mxu0 0.0
        %4951 = vmatpush2.msra.mxu0 %v4894
        %4952 = vmatprep.subr.mxu0 0.0
        %4953 = vmatpush2.msra.mxu0 %v4893
        %4954 = vmatprep.subr.mxu0 0.0
        %4955 = vmatpush2.msra.mxu0 %v4892
        %4956 = vmatprep.subr.mxu0 0.0
        %4957 = vmatpush2.msra.mxu0 %v4891
        %4958 = vmatprep.subr.mxu0 0.0
        %4959 = vmatpush2.msra.mxu0 %v4890
        %4960 = vmatprep.subr.mxu0 0.0
        %4961 = vmatpush2.msra.mxu0 %v4889
        %4962 = vmatprep.subr.mxu0 0.0
        %4963 = vmatpush2.msra.mxu0 %v4888
        %4964 = vmatprep.mubr.f32.mxu0 %v2678
        %4965 = vmatmul.mubr.f32.gmra.mxu0 %v2649
        %v4966 = vpop.f32.mrf.mxu0
        %v4967 = vadd.f32 0.0, %v4966
        %v4968 = vpop.f32.mrf.mxu0
        %4969 = vdwg.mxu0
        %s4970 = scalar_lea.vmem [#allocation8], 192
        %v4971 = vld [vmem:[%s4970] sm:$0xff]
        %v4972 = vld [vmem:[%s4970 + $0x8] sm:$0xff]
        %v4974 = vsel %vm2858, %v4971, 0
        %v4977 = vsel %vm2858, %v4972, 0
        %4979 = vmatprep.subr.mxu0 0.0
        %4980 = vmatpush1.msra.mxu0 0.0
        %4981 = vmatprep.subr.mxu0 0.0
        %4982 = vmatpush1.msra.mxu0 0.0
        %4983 = vmatprep.subr.mxu0 0.0
        %4984 = vmatpush1.msra.mxu0 0.0
        %4985 = vmatprep.subr.mxu0 0.0
        %4986 = vmatpush1.msra.mxu0 0.0
        %4987 = vmatprep.subr.mxu0 0.0
        %4988 = vmatpush1.msra.mxu0 0.0
        %4989 = vmatprep.subr.mxu0 0.0
        %4990 = vmatpush1.msra.mxu0 0.0
        %4991 = vmatprep.subr.mxu0 0.0
        %4992 = vmatpush1.msra.mxu0 0.0
        %4993 = vmatprep.subr.mxu0 0.0
        %4994 = vmatpush1.msra.mxu0 0.0
        %4995 = vmatprep.subr.mxu0 0.0
        %4996 = vmatpush1.msra.mxu0 0.0
        %4997 = vmatprep.subr.mxu0 0.0
        %4998 = vmatpush1.msra.mxu0 0.0
        %4999 = vmatprep.subr.mxu0 0.0
        %5000 = vmatpush1.msra.mxu0 0.0
        %5001 = vmatprep.subr.mxu0 0.0
        %5002 = vmatpush1.msra.mxu0 0.0
        %5003 = vmatprep.subr.mxu0 0.0
        %5004 = vmatpush1.msra.mxu0 0.0
        %5005 = vmatprep.subr.mxu0 0.0
        %5006 = vmatpush1.msra.mxu0 0.0
        %5007 = vmatprep.subr.mxu0 0.0
        %5008 = vmatpush1.msra.mxu0 0.0
        %5009 = vmatprep.subr.mxu0 0.0
        %5010 = vmatpush1.msra.mxu0 %v4967
        %5011 = vmatprep.subr.mxu0 0.0
        %5012 = vmatpush2.msra.mxu0 0.0
        %5013 = vmatprep.subr.mxu0 0.0
        %5014 = vmatpush2.msra.mxu0 0.0
        %5015 = vmatprep.subr.mxu0 0.0
        %5016 = vmatpush2.msra.mxu0 0.0
        %5017 = vmatprep.subr.mxu0 0.0
        %5018 = vmatpush2.msra.mxu0 0.0
        %5019 = vmatprep.subr.mxu0 0.0
        %5020 = vmatpush2.msra.mxu0 0.0
        %5021 = vmatprep.subr.mxu0 0.0
        %5022 = vmatpush2.msra.mxu0 0.0
        %5023 = vmatprep.subr.mxu0 0.0
        %5024 = vmatpush2.msra.mxu0 0.0
        %5025 = vmatprep.subr.mxu0 0.0
        %5026 = vmatpush2.msra.mxu0 0.0
        %5027 = vmatprep.subr.mxu0 0.0
        %5028 = vmatpush2.msra.mxu0 0.0
        %5029 = vmatprep.subr.mxu0 0.0
        %5030 = vmatpush2.msra.mxu0 0.0
        %5031 = vmatprep.subr.mxu0 0.0
        %5032 = vmatpush2.msra.mxu0 0.0
        %5033 = vmatprep.subr.mxu0 0.0
        %5034 = vmatpush2.msra.mxu0 0.0
        %5035 = vmatprep.subr.mxu0 0.0
        %5036 = vmatpush2.msra.mxu0 0.0
        %5037 = vmatprep.subr.mxu0 0.0
        %5038 = vmatpush2.msra.mxu0 0.0
        %5039 = vmatprep.subr.mxu0 0.0
        %5040 = vmatpush2.msra.mxu0 0.0
        %5041 = vmatprep.subr.mxu0 0.0
        %5042 = vmatpush2.msra.mxu0 0.0
        %5043 = vmatprep.mubr.f32.mxu0 0.0
        %5044 = vmatmul.mubr.f32.gmra.mxu0 %v4974
        %v5045 = vpop.f32.mrf.mxu0
        %v5046 = vadd.f32 0.0, %v5045
        %v5047 = vpop.f32.mrf.mxu0
        %5048 = vmatprep.mubr.f32.mxu0 0.0
        %5049 = vmatmul.mubr.f32.gmra.mxu0 %v4977
        %v5050 = vpop.f32.mrf.mxu0
        %v5051 = vadd.f32 0.0, %v5050
        %v5052 = vpop.f32.mrf.mxu0
        %5053 = vdwg.mxu0
        %v5054 = vadd.f32 %v4869, %v5046
        %v5055 = vadd.f32 %v4870, %v5051
        %s5056 = scalar_lea.vmem [#allocation11], 2600
        %v5057 = vld [vmem:[%s5056] sm:$0xff]
        %v5058 = vld [vmem:[%s5056 + $0x8] sm:$0xff]
        %v5059 = vld [vmem:[%s5056 + $0x10] sm:$0xff]
        %v5060 = vld [vmem:[%s5056 + $0x18] sm:$0xff]
        %v5061 = vld [vmem:[%s5056 + $0x20] sm:$0xff]
        %v5062 = vld [vmem:[%s5056 + $0x28] sm:$0xff]
        %v5063 = vld [vmem:[%s5056 + $0x30] sm:$0xff]
        %v5064 = vld [vmem:[%s5056 + $0x38] sm:$0xff]
        %v5065 = vld [vmem:[%s5056 + $0x40] sm:$0xff]
        %v5066 = vld [vmem:[%s5056 + $0x48] sm:$0xff]
        %v5067 = vld [vmem:[%s5056 + $0x50] sm:$0xff]
        %v5068 = vld [vmem:[%s5056 + $0x58] sm:$0xff]
        %v5069 = vld [vmem:[%s5056 + $0x60] sm:$0xff]
        %v5070 = vld [vmem:[%s5056 + $0x68] sm:$0xff]
        %v5071 = vld [vmem:[%s5056 + $0x70] sm:$0xff]
        %v5072 = vld [vmem:[%s5056 + $0x78] sm:$0xff]
        %v5073 = vld [vmem:[%s5056 + $0x80] sm:$0xff]
        %v5074 = vld [vmem:[%s5056 + $0x88] sm:$0xff]
        %v5075 = vld [vmem:[%s5056 + $0x90] sm:$0xff]
        %v5076 = vld [vmem:[%s5056 + $0x98] sm:$0xff]
        %v5077 = vld [vmem:[%s5056 + $0xa0] sm:$0xff]
        %v5078 = vld [vmem:[%s5056 + $0xa8] sm:$0xff]
        %v5079 = vld [vmem:[%s5056 + $0xb0] sm:$0xff]
        %v5080 = vld [vmem:[%s5056 + $0xb8] sm:$0xff]
        %v5081 = vld [vmem:[%s5056 + $0xc0] sm:$0xf]
        %v5083 = vsel %vm2680, %v5081, 0
        %5085 = vmatprep.subr.mxu0 0.0
        %5086 = vmatpush1.msra.mxu0 %v5072
        %5087 = vmatprep.subr.mxu0 0.0
        %5088 = vmatpush1.msra.mxu0 %v5071
        %5089 = vmatprep.subr.mxu0 0.0
        %5090 = vmatpush1.msra.mxu0 %v5070
        %5091 = vmatprep.subr.mxu0 0.0
        %5092 = vmatpush1.msra.mxu0 %v5069
        %5093 = vmatprep.subr.mxu0 0.0
        %5094 = vmatpush1.msra.mxu0 %v5068
        %5095 = vmatprep.subr.mxu0 0.0
        %5096 = vmatpush1.msra.mxu0 %v5067
        %5097 = vmatprep.subr.mxu0 0.0
        %5098 = vmatpush1.msra.mxu0 %v5066
        %5099 = vmatprep.subr.mxu0 0.0
        %5100 = vmatpush1.msra.mxu0 %v5065
        %5101 = vmatprep.subr.mxu0 0.0
        %5102 = vmatpush1.msra.mxu0 %v5064
        %5103 = vmatprep.subr.mxu0 0.0
        %5104 = vmatpush1.msra.mxu0 %v5063
        %5105 = vmatprep.subr.mxu0 0.0
        %5106 = vmatpush1.msra.mxu0 %v5062
        %5107 = vmatprep.subr.mxu0 0.0
        %5108 = vmatpush1.msra.mxu0 %v5061
        %5109 = vmatprep.subr.mxu0 0.0
        %5110 = vmatpush1.msra.mxu0 %v5060
        %5111 = vmatprep.subr.mxu0 0.0
        %5112 = vmatpush1.msra.mxu0 %v5059
        %5113 = vmatprep.subr.mxu0 0.0
        %5114 = vmatpush1.msra.mxu0 %v5058
        %5115 = vmatprep.subr.mxu0 0.0
        %5116 = vmatpush1.msra.mxu0 %v5057
        %5117 = vmatprep.subr.mxu0 0.0
        %5118 = vmatpush2.msra.mxu0 0.0
        %5119 = vmatprep.subr.mxu0 0.0
        %5120 = vmatpush2.msra.mxu0 0.0
        %5121 = vmatprep.subr.mxu0 0.0
        %5122 = vmatpush2.msra.mxu0 0.0
        %5123 = vmatprep.subr.mxu0 0.0
        %5124 = vmatpush2.msra.mxu0 0.0
        %5125 = vmatprep.subr.mxu0 0.0
        %5126 = vmatpush2.msra.mxu0 0.0
        %5127 = vmatprep.subr.mxu0 0.0
        %5128 = vmatpush2.msra.mxu0 0.0
        %5129 = vmatprep.subr.mxu0 0.0
        %5130 = vmatpush2.msra.mxu0 0.0
        %5131 = vmatprep.subr.mxu0 0.0
        %5132 = vmatpush2.msra.mxu0 %v5083
        %5133 = vmatprep.subr.mxu0 0.0
        %5134 = vmatpush2.msra.mxu0 %v5080
        %5135 = vmatprep.subr.mxu0 0.0
        %5136 = vmatpush2.msra.mxu0 %v5079
        %5137 = vmatprep.subr.mxu0 0.0
        %5138 = vmatpush2.msra.mxu0 %v5078
        %5139 = vmatprep.subr.mxu0 0.0
        %5140 = vmatpush2.msra.mxu0 %v5077
        %5141 = vmatprep.subr.mxu0 0.0
        %5142 = vmatpush2.msra.mxu0 %v5076
        %5143 = vmatprep.subr.mxu0 0.0
        %5144 = vmatpush2.msra.mxu0 %v5075
        %5145 = vmatprep.subr.mxu0 0.0
        %5146 = vmatpush2.msra.mxu0 %v5074
        %5147 = vmatprep.subr.mxu0 0.0
        %5148 = vmatpush2.msra.mxu0 %v5073
        %5149 = vmatprep.mubr.f32.mxu0 %v2678
        %5150 = vmatmul.mubr.f32.gmra.mxu0 %v2649
        %v5151 = vpop.f32.mrf.mxu0
        %v5152 = vadd.f32 0.0, %v5151
        %v5153 = vpop.f32.mrf.mxu0
        %5154 = vdwg.mxu0
        %s5155 = scalar_lea.vmem [#allocation8], 208
        %v5156 = vld [vmem:[%s5155] sm:$0xff]
        %v5157 = vld [vmem:[%s5155 + $0x8] sm:$0xff]
        %v5159 = vsel %vm2858, %v5156, 0
        %v5162 = vsel %vm2858, %v5157, 0
        %5164 = vmatprep.subr.mxu0 0.0
        %5165 = vmatpush1.msra.mxu0 0.0
        %5166 = vmatprep.subr.mxu0 0.0
        %5167 = vmatpush1.msra.mxu0 0.0
        %5168 = vmatprep.subr.mxu0 0.0
        %5169 = vmatpush1.msra.mxu0 0.0
        %5170 = vmatprep.subr.mxu0 0.0
        %5171 = vmatpush1.msra.mxu0 0.0
        %5172 = vmatprep.subr.mxu0 0.0
        %5173 = vmatpush1.msra.mxu0 0.0
        %5174 = vmatprep.subr.mxu0 0.0
        %5175 = vmatpush1.msra.mxu0 0.0
        %5176 = vmatprep.subr.mxu0 0.0
        %5177 = vmatpush1.msra.mxu0 0.0
        %5178 = vmatprep.subr.mxu0 0.0
        %5179 = vmatpush1.msra.mxu0 0.0
        %5180 = vmatprep.subr.mxu0 0.0
        %5181 = vmatpush1.msra.mxu0 0.0
        %5182 = vmatprep.subr.mxu0 0.0
        %5183 = vmatpush1.msra.mxu0 0.0
        %5184 = vmatprep.subr.mxu0 0.0
        %5185 = vmatpush1.msra.mxu0 0.0
        %5186 = vmatprep.subr.mxu0 0.0
        %5187 = vmatpush1.msra.mxu0 0.0
        %5188 = vmatprep.subr.mxu0 0.0
        %5189 = vmatpush1.msra.mxu0 0.0
        %5190 = vmatprep.subr.mxu0 0.0
        %5191 = vmatpush1.msra.mxu0 0.0
        %5192 = vmatprep.subr.mxu0 0.0
        %5193 = vmatpush1.msra.mxu0 0.0
        %5194 = vmatprep.subr.mxu0 0.0
        %5195 = vmatpush1.msra.mxu0 %v5152
        %5196 = vmatprep.subr.mxu0 0.0
        %5197 = vmatpush2.msra.mxu0 0.0
        %5198 = vmatprep.subr.mxu0 0.0
        %5199 = vmatpush2.msra.mxu0 0.0
        %5200 = vmatprep.subr.mxu0 0.0
        %5201 = vmatpush2.msra.mxu0 0.0
        %5202 = vmatprep.subr.mxu0 0.0
        %5203 = vmatpush2.msra.mxu0 0.0
        %5204 = vmatprep.subr.mxu0 0.0
        %5205 = vmatpush2.msra.mxu0 0.0
        %5206 = vmatprep.subr.mxu0 0.0
        %5207 = vmatpush2.msra.mxu0 0.0
        %5208 = vmatprep.subr.mxu0 0.0
        %5209 = vmatpush2.msra.mxu0 0.0
        %5210 = vmatprep.subr.mxu0 0.0
        %5211 = vmatpush2.msra.mxu0 0.0
        %5212 = vmatprep.subr.mxu0 0.0
        %5213 = vmatpush2.msra.mxu0 0.0
        %5214 = vmatprep.subr.mxu0 0.0
        %5215 = vmatpush2.msra.mxu0 0.0
        %5216 = vmatprep.subr.mxu0 0.0
        %5217 = vmatpush2.msra.mxu0 0.0
        %5218 = vmatprep.subr.mxu0 0.0
        %5219 = vmatpush2.msra.mxu0 0.0
        %5220 = vmatprep.subr.mxu0 0.0
        %5221 = vmatpush2.msra.mxu0 0.0
        %5222 = vmatprep.subr.mxu0 0.0
        %5223 = vmatpush2.msra.mxu0 0.0
        %5224 = vmatprep.subr.mxu0 0.0
        %5225 = vmatpush2.msra.mxu0 0.0
        %5226 = vmatprep.subr.mxu0 0.0
        %5227 = vmatpush2.msra.mxu0 0.0
        %5228 = vmatprep.mubr.f32.mxu0 0.0
        %5229 = vmatmul.mubr.f32.gmra.mxu0 %v5159
        %v5230 = vpop.f32.mrf.mxu0
        %v5231 = vadd.f32 0.0, %v5230
        %v5232 = vpop.f32.mrf.mxu0
        %5233 = vmatprep.mubr.f32.mxu0 0.0
        %5234 = vmatmul.mubr.f32.gmra.mxu0 %v5162
        %v5235 = vpop.f32.mrf.mxu0
        %v5236 = vadd.f32 0.0, %v5235
        %v5237 = vpop.f32.mrf.mxu0
        %5238 = vdwg.mxu0
        %v5239 = vadd.f32 %v5054, %v5231
        %v5240 = vadd.f32 %v5055, %v5236
        %s5241 = scalar_lea.vmem [#allocation11], 2800
        %v5242 = vld [vmem:[%s5241] sm:$0xff]
        %v5243 = vld [vmem:[%s5241 + $0x8] sm:$0xff]
        %v5244 = vld [vmem:[%s5241 + $0x10] sm:$0xff]
        %v5245 = vld [vmem:[%s5241 + $0x18] sm:$0xff]
        %v5246 = vld [vmem:[%s5241 + $0x20] sm:$0xff]
        %v5247 = vld [vmem:[%s5241 + $0x28] sm:$0xff]
        %v5248 = vld [vmem:[%s5241 + $0x30] sm:$0xff]
        %v5249 = vld [vmem:[%s5241 + $0x38] sm:$0xff]
        %v5250 = vld [vmem:[%s5241 + $0x40] sm:$0xff]
        %v5251 = vld [vmem:[%s5241 + $0x48] sm:$0xff]
        %v5252 = vld [vmem:[%s5241 + $0x50] sm:$0xff]
        %v5253 = vld [vmem:[%s5241 + $0x58] sm:$0xff]
        %v5254 = vld [vmem:[%s5241 + $0x60] sm:$0xff]
        %v5255 = vld [vmem:[%s5241 + $0x68] sm:$0xff]
        %v5256 = vld [vmem:[%s5241 + $0x70] sm:$0xff]
        %v5257 = vld [vmem:[%s5241 + $0x78] sm:$0xff]
        %v5258 = vld [vmem:[%s5241 + $0x80] sm:$0xff]
        %v5259 = vld [vmem:[%s5241 + $0x88] sm:$0xff]
        %v5260 = vld [vmem:[%s5241 + $0x90] sm:$0xff]
        %v5261 = vld [vmem:[%s5241 + $0x98] sm:$0xff]
        %v5262 = vld [vmem:[%s5241 + $0xa0] sm:$0xff]
        %v5263 = vld [vmem:[%s5241 + $0xa8] sm:$0xff]
        %v5264 = vld [vmem:[%s5241 + $0xb0] sm:$0xff]
        %v5265 = vld [vmem:[%s5241 + $0xb8] sm:$0xff]
        %v5266 = vld [vmem:[%s5241 + $0xc0] sm:$0xf]
        %v5268 = vsel %vm2680, %v5266, 0
        %5270 = vmatprep.subr.mxu0 0.0
        %5271 = vmatpush1.msra.mxu0 %v5257
        %5272 = vmatprep.subr.mxu0 0.0
        %5273 = vmatpush1.msra.mxu0 %v5256
        %5274 = vmatprep.subr.mxu0 0.0
        %5275 = vmatpush1.msra.mxu0 %v5255
        %5276 = vmatprep.subr.mxu0 0.0
        %5277 = vmatpush1.msra.mxu0 %v5254
        %5278 = vmatprep.subr.mxu0 0.0
        %5279 = vmatpush1.msra.mxu0 %v5253
        %5280 = vmatprep.subr.mxu0 0.0
        %5281 = vmatpush1.msra.mxu0 %v5252
        %5282 = vmatprep.subr.mxu0 0.0
        %5283 = vmatpush1.msra.mxu0 %v5251
        %5284 = vmatprep.subr.mxu0 0.0
        %5285 = vmatpush1.msra.mxu0 %v5250
        %5286 = vmatprep.subr.mxu0 0.0
        %5287 = vmatpush1.msra.mxu0 %v5249
        %5288 = vmatprep.subr.mxu0 0.0
        %5289 = vmatpush1.msra.mxu0 %v5248
        %5290 = vmatprep.subr.mxu0 0.0
        %5291 = vmatpush1.msra.mxu0 %v5247
        %5292 = vmatprep.subr.mxu0 0.0
        %5293 = vmatpush1.msra.mxu0 %v5246
        %5294 = vmatprep.subr.mxu0 0.0
        %5295 = vmatpush1.msra.mxu0 %v5245
        %5296 = vmatprep.subr.mxu0 0.0
        %5297 = vmatpush1.msra.mxu0 %v5244
        %5298 = vmatprep.subr.mxu0 0.0
        %5299 = vmatpush1.msra.mxu0 %v5243
        %5300 = vmatprep.subr.mxu0 0.0
        %5301 = vmatpush1.msra.mxu0 %v5242
        %5302 = vmatprep.subr.mxu0 0.0
        %5303 = vmatpush2.msra.mxu0 0.0
        %5304 = vmatprep.subr.mxu0 0.0
        %5305 = vmatpush2.msra.mxu0 0.0
        %5306 = vmatprep.subr.mxu0 0.0
        %5307 = vmatpush2.msra.mxu0 0.0
        %5308 = vmatprep.subr.mxu0 0.0
        %5309 = vmatpush2.msra.mxu0 0.0
        %5310 = vmatprep.subr.mxu0 0.0
        %5311 = vmatpush2.msra.mxu0 0.0
        %5312 = vmatprep.subr.mxu0 0.0
        %5313 = vmatpush2.msra.mxu0 0.0
        %5314 = vmatprep.subr.mxu0 0.0
        %5315 = vmatpush2.msra.mxu0 0.0
        %5316 = vmatprep.subr.mxu0 0.0
        %5317 = vmatpush2.msra.mxu0 %v5268
        %5318 = vmatprep.subr.mxu0 0.0
        %5319 = vmatpush2.msra.mxu0 %v5265
        %5320 = vmatprep.subr.mxu0 0.0
        %5321 = vmatpush2.msra.mxu0 %v5264
        %5322 = vmatprep.subr.mxu0 0.0
        %5323 = vmatpush2.msra.mxu0 %v5263
        %5324 = vmatprep.subr.mxu0 0.0
        %5325 = vmatpush2.msra.mxu0 %v5262
        %5326 = vmatprep.subr.mxu0 0.0
        %5327 = vmatpush2.msra.mxu0 %v5261
        %5328 = vmatprep.subr.mxu0 0.0
        %5329 = vmatpush2.msra.mxu0 %v5260
        %5330 = vmatprep.subr.mxu0 0.0
        %5331 = vmatpush2.msra.mxu0 %v5259
        %5332 = vmatprep.subr.mxu0 0.0
        %5333 = vmatpush2.msra.mxu0 %v5258
        %5334 = vmatprep.mubr.f32.mxu0 %v2678
        %5335 = vmatmul.mubr.f32.gmra.mxu0 %v2649
        %v5336 = vpop.f32.mrf.mxu0
        %v5337 = vadd.f32 0.0, %v5336
        %v5338 = vpop.f32.mrf.mxu0
        %5339 = vdwg.mxu0
        %s5340 = scalar_lea.vmem [#allocation8], 224
        %v5341 = vld [vmem:[%s5340] sm:$0xff]
        %v5342 = vld [vmem:[%s5340 + $0x8] sm:$0xff]
        %v5344 = vsel %vm2858, %v5341, 0
        %v5347 = vsel %vm2858, %v5342, 0
        %5349 = vmatprep.subr.mxu0 0.0
        %5350 = vmatpush1.msra.mxu0 0.0
        %5351 = vmatprep.subr.mxu0 0.0
        %5352 = vmatpush1.msra.mxu0 0.0
        %5353 = vmatprep.subr.mxu0 0.0
        %5354 = vmatpush1.msra.mxu0 0.0
        %5355 = vmatprep.subr.mxu0 0.0
        %5356 = vmatpush1.msra.mxu0 0.0
        %5357 = vmatprep.subr.mxu0 0.0
        %5358 = vmatpush1.msra.mxu0 0.0
        %5359 = vmatprep.subr.mxu0 0.0
        %5360 = vmatpush1.msra.mxu0 0.0
        %5361 = vmatprep.subr.mxu0 0.0
        %5362 = vmatpush1.msra.mxu0 0.0
        %5363 = vmatprep.subr.mxu0 0.0
        %5364 = vmatpush1.msra.mxu0 0.0
        %5365 = vmatprep.subr.mxu0 0.0
        %5366 = vmatpush1.msra.mxu0 0.0
        %5367 = vmatprep.subr.mxu0 0.0
        %5368 = vmatpush1.msra.mxu0 0.0
        %5369 = vmatprep.subr.mxu0 0.0
        %5370 = vmatpush1.msra.mxu0 0.0
        %5371 = vmatprep.subr.mxu0 0.0
        %5372 = vmatpush1.msra.mxu0 0.0
        %5373 = vmatprep.subr.mxu0 0.0
        %5374 = vmatpush1.msra.mxu0 0.0
        %5375 = vmatprep.subr.mxu0 0.0
        %5376 = vmatpush1.msra.mxu0 0.0
        %5377 = vmatprep.subr.mxu0 0.0
        %5378 = vmatpush1.msra.mxu0 0.0
        %5379 = vmatprep.subr.mxu0 0.0
        %5380 = vmatpush1.msra.mxu0 %v5337
        %5381 = vmatprep.subr.mxu0 0.0
        %5382 = vmatpush2.msra.mxu0 0.0
        %5383 = vmatprep.subr.mxu0 0.0
        %5384 = vmatpush2.msra.mxu0 0.0
        %5385 = vmatprep.subr.mxu0 0.0
        %5386 = vmatpush2.msra.mxu0 0.0
        %5387 = vmatprep.subr.mxu0 0.0
        %5388 = vmatpush2.msra.mxu0 0.0
        %5389 = vmatprep.subr.mxu0 0.0
        %5390 = vmatpush2.msra.mxu0 0.0
        %5391 = vmatprep.subr.mxu0 0.0
        %5392 = vmatpush2.msra.mxu0 0.0
        %5393 = vmatprep.subr.mxu0 0.0
        %5394 = vmatpush2.msra.mxu0 0.0
        %5395 = vmatprep.subr.mxu0 0.0
        %5396 = vmatpush2.msra.mxu0 0.0
        %5397 = vmatprep.subr.mxu0 0.0
        %5398 = vmatpush2.msra.mxu0 0.0
        %5399 = vmatprep.subr.mxu0 0.0
        %5400 = vmatpush2.msra.mxu0 0.0
        %5401 = vmatprep.subr.mxu0 0.0
        %5402 = vmatpush2.msra.mxu0 0.0
        %5403 = vmatprep.subr.mxu0 0.0
        %5404 = vmatpush2.msra.mxu0 0.0
        %5405 = vmatprep.subr.mxu0 0.0
        %5406 = vmatpush2.msra.mxu0 0.0
        %5407 = vmatprep.subr.mxu0 0.0
        %5408 = vmatpush2.msra.mxu0 0.0
        %5409 = vmatprep.subr.mxu0 0.0
        %5410 = vmatpush2.msra.mxu0 0.0
        %5411 = vmatprep.subr.mxu0 0.0
        %5412 = vmatpush2.msra.mxu0 0.0
        %5413 = vmatprep.mubr.f32.mxu0 0.0
        %5414 = vmatmul.mubr.f32.gmra.mxu0 %v5344
        %v5415 = vpop.f32.mrf.mxu0
        %v5416 = vadd.f32 0.0, %v5415
        %v5417 = vpop.f32.mrf.mxu0
        %5418 = vmatprep.mubr.f32.mxu0 0.0
        %5419 = vmatmul.mubr.f32.gmra.mxu0 %v5347
        %v5420 = vpop.f32.mrf.mxu0
        %v5421 = vadd.f32 0.0, %v5420
        %v5422 = vpop.f32.mrf.mxu0
        %5423 = vdwg.mxu0
        %v5424 = vadd.f32 %v5239, %v5416
        %v5425 = vadd.f32 %v5240, %v5421
        %s5426 = scalar_lea.vmem [#allocation11], 3000
        %v5427 = vld [vmem:[%s5426] sm:$0xff]
        %v5428 = vld [vmem:[%s5426 + $0x8] sm:$0xff]
        %v5429 = vld [vmem:[%s5426 + $0x10] sm:$0xff]
        %v5430 = vld [vmem:[%s5426 + $0x18] sm:$0xff]
        %v5431 = vld [vmem:[%s5426 + $0x20] sm:$0xff]
        %v5432 = vld [vmem:[%s5426 + $0x28] sm:$0xff]
        %v5433 = vld [vmem:[%s5426 + $0x30] sm:$0xff]
        %v5434 = vld [vmem:[%s5426 + $0x38] sm:$0xff]
        %v5435 = vld [vmem:[%s5426 + $0x40] sm:$0xff]
        %v5436 = vld [vmem:[%s5426 + $0x48] sm:$0xff]
        %v5437 = vld [vmem:[%s5426 + $0x50] sm:$0xff]
        %v5438 = vld [vmem:[%s5426 + $0x58] sm:$0xff]
        %v5439 = vld [vmem:[%s5426 + $0x60] sm:$0xff]
        %v5440 = vld [vmem:[%s5426 + $0x68] sm:$0xff]
        %v5441 = vld [vmem:[%s5426 + $0x70] sm:$0xff]
        %v5442 = vld [vmem:[%s5426 + $0x78] sm:$0xff]
        %v5443 = vld [vmem:[%s5426 + $0x80] sm:$0xff]
        %v5444 = vld [vmem:[%s5426 + $0x88] sm:$0xff]
        %v5445 = vld [vmem:[%s5426 + $0x90] sm:$0xff]
        %v5446 = vld [vmem:[%s5426 + $0x98] sm:$0xff]
        %v5447 = vld [vmem:[%s5426 + $0xa0] sm:$0xff]
        %v5448 = vld [vmem:[%s5426 + $0xa8] sm:$0xff]
        %v5449 = vld [vmem:[%s5426 + $0xb0] sm:$0xff]
        %v5450 = vld [vmem:[%s5426 + $0xb8] sm:$0xff]
        %v5451 = vld [vmem:[%s5426 + $0xc0] sm:$0xf]
        %v5453 = vsel %vm2680, %v5451, 0
        %5455 = vmatprep.subr.mxu0 0.0
        %5456 = vmatpush1.msra.mxu0 %v5442
        %5457 = vmatprep.subr.mxu0 0.0
        %5458 = vmatpush1.msra.mxu0 %v5441
        %5459 = vmatprep.subr.mxu0 0.0
        %5460 = vmatpush1.msra.mxu0 %v5440
        %5461 = vmatprep.subr.mxu0 0.0
        %5462 = vmatpush1.msra.mxu0 %v5439
        %5463 = vmatprep.subr.mxu0 0.0
        %5464 = vmatpush1.msra.mxu0 %v5438
        %5465 = vmatprep.subr.mxu0 0.0
        %5466 = vmatpush1.msra.mxu0 %v5437
        %5467 = vmatprep.subr.mxu0 0.0
        %5468 = vmatpush1.msra.mxu0 %v5436
        %5469 = vmatprep.subr.mxu0 0.0
        %5470 = vmatpush1.msra.mxu0 %v5435
        %5471 = vmatprep.subr.mxu0 0.0
        %5472 = vmatpush1.msra.mxu0 %v5434
        %5473 = vmatprep.subr.mxu0 0.0
        %5474 = vmatpush1.msra.mxu0 %v5433
        %5475 = vmatprep.subr.mxu0 0.0
        %5476 = vmatpush1.msra.mxu0 %v5432
        %5477 = vmatprep.subr.mxu0 0.0
        %5478 = vmatpush1.msra.mxu0 %v5431
        %5479 = vmatprep.subr.mxu0 0.0
        %5480 = vmatpush1.msra.mxu0 %v5430
        %5481 = vmatprep.subr.mxu0 0.0
        %5482 = vmatpush1.msra.mxu0 %v5429
        %5483 = vmatprep.subr.mxu0 0.0
        %5484 = vmatpush1.msra.mxu0 %v5428
        %5485 = vmatprep.subr.mxu0 0.0
        %5486 = vmatpush1.msra.mxu0 %v5427
        %5487 = vmatprep.subr.mxu0 0.0
        %5488 = vmatpush2.msra.mxu0 0.0
        %5489 = vmatprep.subr.mxu0 0.0
        %5490 = vmatpush2.msra.mxu0 0.0
        %5491 = vmatprep.subr.mxu0 0.0
        %5492 = vmatpush2.msra.mxu0 0.0
        %5493 = vmatprep.subr.mxu0 0.0
        %5494 = vmatpush2.msra.mxu0 0.0
        %5495 = vmatprep.subr.mxu0 0.0
        %5496 = vmatpush2.msra.mxu0 0.0
        %5497 = vmatprep.subr.mxu0 0.0
        %5498 = vmatpush2.msra.mxu0 0.0
        %5499 = vmatprep.subr.mxu0 0.0
        %5500 = vmatpush2.msra.mxu0 0.0
        %5501 = vmatprep.subr.mxu0 0.0
        %5502 = vmatpush2.msra.mxu0 %v5453
        %5503 = vmatprep.subr.mxu0 0.0
        %5504 = vmatpush2.msra.mxu0 %v5450
        %5505 = vmatprep.subr.mxu0 0.0
        %5506 = vmatpush2.msra.mxu0 %v5449
        %5507 = vmatprep.subr.mxu0 0.0
        %5508 = vmatpush2.msra.mxu0 %v5448
        %5509 = vmatprep.subr.mxu0 0.0
        %5510 = vmatpush2.msra.mxu0 %v5447
        %5511 = vmatprep.subr.mxu0 0.0
        %5512 = vmatpush2.msra.mxu0 %v5446
        %5513 = vmatprep.subr.mxu0 0.0
        %5514 = vmatpush2.msra.mxu0 %v5445
        %5515 = vmatprep.subr.mxu0 0.0
        %5516 = vmatpush2.msra.mxu0 %v5444
        %5517 = vmatprep.subr.mxu0 0.0
        %5518 = vmatpush2.msra.mxu0 %v5443
        %5519 = vmatprep.mubr.f32.mxu0 %v2678
        %5520 = vmatmul.mubr.f32.gmra.mxu0 %v2649
        %v5521 = vpop.f32.mrf.mxu0
        %v5522 = vadd.f32 0.0, %v5521
        %v5523 = vpop.f32.mrf.mxu0
        %5524 = vdwg.mxu0
        %s5525 = scalar_lea.vmem [#allocation8], 240
        %v5526 = vld [vmem:[%s5525] sm:$0xff]
        %v5527 = vld [vmem:[%s5525 + $0x8] sm:$0xff]
        %v5529 = vsel %vm2858, %v5526, 0
        %v5532 = vsel %vm2858, %v5527, 0
        %5534 = vmatprep.subr.mxu0 0.0
        %5535 = vmatpush1.msra.mxu0 0.0
        %5536 = vmatprep.subr.mxu0 0.0
        %5537 = vmatpush1.msra.mxu0 0.0
        %5538 = vmatprep.subr.mxu0 0.0
        %5539 = vmatpush1.msra.mxu0 0.0
        %5540 = vmatprep.subr.mxu0 0.0
        %5541 = vmatpush1.msra.mxu0 0.0
        %5542 = vmatprep.subr.mxu0 0.0
        %5543 = vmatpush1.msra.mxu0 0.0
        %5544 = vmatprep.subr.mxu0 0.0
        %5545 = vmatpush1.msra.mxu0 0.0
        %5546 = vmatprep.subr.mxu0 0.0
        %5547 = vmatpush1.msra.mxu0 0.0
        %5548 = vmatprep.subr.mxu0 0.0
        %5549 = vmatpush1.msra.mxu0 0.0
        %5550 = vmatprep.subr.mxu0 0.0
        %5551 = vmatpush1.msra.mxu0 0.0
        %5552 = vmatprep.subr.mxu0 0.0
        %5553 = vmatpush1.msra.mxu0 0.0
        %5554 = vmatprep.subr.mxu0 0.0
        %5555 = vmatpush1.msra.mxu0 0.0
        %5556 = vmatprep.subr.mxu0 0.0
        %5557 = vmatpush1.msra.mxu0 0.0
        %5558 = vmatprep.subr.mxu0 0.0
        %5559 = vmatpush1.msra.mxu0 0.0
        %5560 = vmatprep.subr.mxu0 0.0
        %5561 = vmatpush1.msra.mxu0 0.0
        %5562 = vmatprep.subr.mxu0 0.0
        %5563 = vmatpush1.msra.mxu0 0.0
        %5564 = vmatprep.subr.mxu0 0.0
        %5565 = vmatpush1.msra.mxu0 %v5522
        %5566 = vmatprep.subr.mxu0 0.0
        %5567 = vmatpush2.msra.mxu0 0.0
        %5568 = vmatprep.subr.mxu0 0.0
        %5569 = vmatpush2.msra.mxu0 0.0
        %5570 = vmatprep.subr.mxu0 0.0
        %5571 = vmatpush2.msra.mxu0 0.0
        %5572 = vmatprep.subr.mxu0 0.0
        %5573 = vmatpush2.msra.mxu0 0.0
        %5574 = vmatprep.subr.mxu0 0.0
        %5575 = vmatpush2.msra.mxu0 0.0
        %5576 = vmatprep.subr.mxu0 0.0
        %5577 = vmatpush2.msra.mxu0 0.0
        %5578 = vmatprep.subr.mxu0 0.0
        %5579 = vmatpush2.msra.mxu0 0.0
        %5580 = vmatprep.subr.mxu0 0.0
        %5581 = vmatpush2.msra.mxu0 0.0
        %5582 = vmatprep.subr.mxu0 0.0
        %5583 = vmatpush2.msra.mxu0 0.0
        %5584 = vmatprep.subr.mxu0 0.0
        %5585 = vmatpush2.msra.mxu0 0.0
        %5586 = vmatprep.subr.mxu0 0.0
        %5587 = vmatpush2.msra.mxu0 0.0
        %5588 = vmatprep.subr.mxu0 0.0
        %5589 = vmatpush2.msra.mxu0 0.0
        %5590 = vmatprep.subr.mxu0 0.0
        %5591 = vmatpush2.msra.mxu0 0.0
        %5592 = vmatprep.subr.mxu0 0.0
        %5593 = vmatpush2.msra.mxu0 0.0
        %5594 = vmatprep.subr.mxu0 0.0
        %5595 = vmatpush2.msra.mxu0 0.0
        %5596 = vmatprep.subr.mxu0 0.0
        %5597 = vmatpush2.msra.mxu0 0.0
        %5598 = vmatprep.mubr.f32.mxu0 0.0
        %5599 = vmatmul.mubr.f32.gmra.mxu0 %v5529
        %v5600 = vpop.f32.mrf.mxu0
        %v5601 = vadd.f32 0.0, %v5600
        %v5602 = vpop.f32.mrf.mxu0
        %5603 = vmatprep.mubr.f32.mxu0 0.0
        %5604 = vmatmul.mubr.f32.gmra.mxu0 %v5532
        %v5605 = vpop.f32.mrf.mxu0
        %v5606 = vadd.f32 0.0, %v5605
        %v5607 = vpop.f32.mrf.mxu0
        %5608 = vdwg.mxu0
        %v5609 = vadd.f32 %v5424, %v5601
        %v5610 = vadd.f32 %v5425, %v5606
        %s5611 = scalar_lea.vmem [#allocation11], 3200
        %v5612 = vld [vmem:[%s5611] sm:$0xff]
        %v5613 = vld [vmem:[%s5611 + $0x8] sm:$0xff]
        %v5614 = vld [vmem:[%s5611 + $0x10] sm:$0xff]
        %v5615 = vld [vmem:[%s5611 + $0x18] sm:$0xff]
        %v5616 = vld [vmem:[%s5611 + $0x20] sm:$0xff]
        %v5617 = vld [vmem:[%s5611 + $0x28] sm:$0xff]
        %v5618 = vld [vmem:[%s5611 + $0x30] sm:$0xff]
        %v5619 = vld [vmem:[%s5611 + $0x38] sm:$0xff]
        %v5620 = vld [vmem:[%s5611 + $0x40] sm:$0xff]
        %v5621 = vld [vmem:[%s5611 + $0x48] sm:$0xff]
        %v5622 = vld [vmem:[%s5611 + $0x50] sm:$0xff]
        %v5623 = vld [vmem:[%s5611 + $0x58] sm:$0xff]
        %v5624 = vld [vmem:[%s5611 + $0x60] sm:$0xff]
        %v5625 = vld [vmem:[%s5611 + $0x68] sm:$0xff]
        %v5626 = vld [vmem:[%s5611 + $0x70] sm:$0xff]
        %v5627 = vld [vmem:[%s5611 + $0x78] sm:$0xff]
        %v5628 = vld [vmem:[%s5611 + $0x80] sm:$0xff]
        %v5629 = vld [vmem:[%s5611 + $0x88] sm:$0xff]
        %v5630 = vld [vmem:[%s5611 + $0x90] sm:$0xff]
        %v5631 = vld [vmem:[%s5611 + $0x98] sm:$0xff]
        %v5632 = vld [vmem:[%s5611 + $0xa0] sm:$0xff]
        %v5633 = vld [vmem:[%s5611 + $0xa8] sm:$0xff]
        %v5634 = vld [vmem:[%s5611 + $0xb0] sm:$0xff]
        %v5635 = vld [vmem:[%s5611 + $0xb8] sm:$0xff]
        %v5636 = vld [vmem:[%s5611 + $0xc0] sm:$0xf]
        %v5638 = vsel %vm2680, %v5636, 0
        %5640 = vmatprep.subr.mxu0 0.0
        %5641 = vmatpush1.msra.mxu0 %v5627
        %5642 = vmatprep.subr.mxu0 0.0
        %5643 = vmatpush1.msra.mxu0 %v5626
        %5644 = vmatprep.subr.mxu0 0.0
        %5645 = vmatpush1.msra.mxu0 %v5625
        %5646 = vmatprep.subr.mxu0 0.0
        %5647 = vmatpush1.msra.mxu0 %v5624
        %5648 = vmatprep.subr.mxu0 0.0
        %5649 = vmatpush1.msra.mxu0 %v5623
        %5650 = vmatprep.subr.mxu0 0.0
        %5651 = vmatpush1.msra.mxu0 %v5622
        %5652 = vmatprep.subr.mxu0 0.0
        %5653 = vmatpush1.msra.mxu0 %v5621
        %5654 = vmatprep.subr.mxu0 0.0
        %5655 = vmatpush1.msra.mxu0 %v5620
        %5656 = vmatprep.subr.mxu0 0.0
        %5657 = vmatpush1.msra.mxu0 %v5619
        %5658 = vmatprep.subr.mxu0 0.0
        %5659 = vmatpush1.msra.mxu0 %v5618
        %5660 = vmatprep.subr.mxu0 0.0
        %5661 = vmatpush1.msra.mxu0 %v5617
        %5662 = vmatprep.subr.mxu0 0.0
        %5663 = vmatpush1.msra.mxu0 %v5616
        %5664 = vmatprep.subr.mxu0 0.0
        %5665 = vmatpush1.msra.mxu0 %v5615
        %5666 = vmatprep.subr.mxu0 0.0
        %5667 = vmatpush1.msra.mxu0 %v5614
        %5668 = vmatprep.subr.mxu0 0.0
        %5669 = vmatpush1.msra.mxu0 %v5613
        %5670 = vmatprep.subr.mxu0 0.0
        %5671 = vmatpush1.msra.mxu0 %v5612
        %5672 = vmatprep.subr.mxu0 0.0
        %5673 = vmatpush2.msra.mxu0 0.0
        %5674 = vmatprep.subr.mxu0 0.0
        %5675 = vmatpush2.msra.mxu0 0.0
        %5676 = vmatprep.subr.mxu0 0.0
        %5677 = vmatpush2.msra.mxu0 0.0
        %5678 = vmatprep.subr.mxu0 0.0
        %5679 = vmatpush2.msra.mxu0 0.0
        %5680 = vmatprep.subr.mxu0 0.0
        %5681 = vmatpush2.msra.mxu0 0.0
        %5682 = vmatprep.subr.mxu0 0.0
        %5683 = vmatpush2.msra.mxu0 0.0
        %5684 = vmatprep.subr.mxu0 0.0
        %5685 = vmatpush2.msra.mxu0 0.0
        %5686 = vmatprep.subr.mxu0 0.0
        %5687 = vmatpush2.msra.mxu0 %v5638
        %5688 = vmatprep.subr.mxu0 0.0
        %5689 = vmatpush2.msra.mxu0 %v5635
        %5690 = vmatprep.subr.mxu0 0.0
        %5691 = vmatpush2.msra.mxu0 %v5634
        %5692 = vmatprep.subr.mxu0 0.0
        %5693 = vmatpush2.msra.mxu0 %v5633
        %5694 = vmatprep.subr.mxu0 0.0
        %5695 = vmatpush2.msra.mxu0 %v5632
        %5696 = vmatprep.subr.mxu0 0.0
        %5697 = vmatpush2.msra.mxu0 %v5631
        %5698 = vmatprep.subr.mxu0 0.0
        %5699 = vmatpush2.msra.mxu0 %v5630
        %5700 = vmatprep.subr.mxu0 0.0
        %5701 = vmatpush2.msra.mxu0 %v5629
        %5702 = vmatprep.subr.mxu0 0.0
        %5703 = vmatpush2.msra.mxu0 %v5628
        %5704 = vmatprep.mubr.f32.mxu0 %v2678
        %5705 = vmatmul.mubr.f32.gmra.mxu0 %v2649
        %v5706 = vpop.f32.mrf.mxu0
        %v5707 = vadd.f32 0.0, %v5706
        %v5708 = vpop.f32.mrf.mxu0
        %5709 = vdwg.mxu0
        %s5710 = scalar_lea.vmem [#allocation8], 256
        %v5711 = vld [vmem:[%s5710] sm:$0xff]
        %v5712 = vld [vmem:[%s5710 + $0x8] sm:$0xff]
        %v5714 = vsel %vm2858, %v5711, 0
        %v5717 = vsel %vm2858, %v5712, 0
        %5719 = vmatprep.subr.mxu0 0.0
        %5720 = vmatpush1.msra.mxu0 0.0
        %5721 = vmatprep.subr.mxu0 0.0
        %5722 = vmatpush1.msra.mxu0 0.0
        %5723 = vmatprep.subr.mxu0 0.0
        %5724 = vmatpush1.msra.mxu0 0.0
        %5725 = vmatprep.subr.mxu0 0.0
        %5726 = vmatpush1.msra.mxu0 0.0
        %5727 = vmatprep.subr.mxu0 0.0
        %5728 = vmatpush1.msra.mxu0 0.0
        %5729 = vmatprep.subr.mxu0 0.0
        %5730 = vmatpush1.msra.mxu0 0.0
        %5731 = vmatprep.subr.mxu0 0.0
        %5732 = vmatpush1.msra.mxu0 0.0
        %5733 = vmatprep.subr.mxu0 0.0
        %5734 = vmatpush1.msra.mxu0 0.0
        %5735 = vmatprep.subr.mxu0 0.0
        %5736 = vmatpush1.msra.mxu0 0.0
        %5737 = vmatprep.subr.mxu0 0.0
        %5738 = vmatpush1.msra.mxu0 0.0
        %5739 = vmatprep.subr.mxu0 0.0
        %5740 = vmatpush1.msra.mxu0 0.0
        %5741 = vmatprep.subr.mxu0 0.0
        %5742 = vmatpush1.msra.mxu0 0.0
        %5743 = vmatprep.subr.mxu0 0.0
        %5744 = vmatpush1.msra.mxu0 0.0
        %5745 = vmatprep.subr.mxu0 0.0
        %5746 = vmatpush1.msra.mxu0 0.0
        %5747 = vmatprep.subr.mxu0 0.0
        %5748 = vmatpush1.msra.mxu0 0.0
        %5749 = vmatprep.subr.mxu0 0.0
        %5750 = vmatpush1.msra.mxu0 %v5707
        %5751 = vmatprep.subr.mxu0 0.0
        %5752 = vmatpush2.msra.mxu0 0.0
        %5753 = vmatprep.subr.mxu0 0.0
        %5754 = vmatpush2.msra.mxu0 0.0
        %5755 = vmatprep.subr.mxu0 0.0
        %5756 = vmatpush2.msra.mxu0 0.0
        %5757 = vmatprep.subr.mxu0 0.0
        %5758 = vmatpush2.msra.mxu0 0.0
        %5759 = vmatprep.subr.mxu0 0.0
        %5760 = vmatpush2.msra.mxu0 0.0
        %5761 = vmatprep.subr.mxu0 0.0
        %5762 = vmatpush2.msra.mxu0 0.0
        %5763 = vmatprep.subr.mxu0 0.0
        %5764 = vmatpush2.msra.mxu0 0.0
        %5765 = vmatprep.subr.mxu0 0.0
        %5766 = vmatpush2.msra.mxu0 0.0
        %5767 = vmatprep.subr.mxu0 0.0
        %5768 = vmatpush2.msra.mxu0 0.0
        %5769 = vmatprep.subr.mxu0 0.0
        %5770 = vmatpush2.msra.mxu0 0.0
        %5771 = vmatprep.subr.mxu0 0.0
        %5772 = vmatpush2.msra.mxu0 0.0
        %5773 = vmatprep.subr.mxu0 0.0
        %5774 = vmatpush2.msra.mxu0 0.0
        %5775 = vmatprep.subr.mxu0 0.0
        %5776 = vmatpush2.msra.mxu0 0.0
        %5777 = vmatprep.subr.mxu0 0.0
        %5778 = vmatpush2.msra.mxu0 0.0
        %5779 = vmatprep.subr.mxu0 0.0
        %5780 = vmatpush2.msra.mxu0 0.0
        %5781 = vmatprep.subr.mxu0 0.0
        %5782 = vmatpush2.msra.mxu0 0.0
        %5783 = vmatprep.mubr.f32.mxu0 0.0
        %5784 = vmatmul.mubr.f32.gmra.mxu0 %v5714
        %v5785 = vpop.f32.mrf.mxu0
        %v5786 = vadd.f32 0.0, %v5785
        %v5787 = vpop.f32.mrf.mxu0
        %5788 = vmatprep.mubr.f32.mxu0 0.0
        %5789 = vmatmul.mubr.f32.gmra.mxu0 %v5717
        %v5790 = vpop.f32.mrf.mxu0
        %v5791 = vadd.f32 0.0, %v5790
        %v5792 = vpop.f32.mrf.mxu0
        %5793 = vdwg.mxu0
        %v5794 = vadd.f32 %v5609, %v5786
        %v5795 = vadd.f32 %v5610, %v5791
        %s5796 = scalar_lea.vmem [#allocation11], 3400
        %v5797 = vld [vmem:[%s5796] sm:$0xff]
        %v5798 = vld [vmem:[%s5796 + $0x8] sm:$0xff]
        %v5799 = vld [vmem:[%s5796 + $0x10] sm:$0xff]
        %v5800 = vld [vmem:[%s5796 + $0x18] sm:$0xff]
        %v5801 = vld [vmem:[%s5796 + $0x20] sm:$0xff]
        %v5802 = vld [vmem:[%s5796 + $0x28] sm:$0xff]
        %v5803 = vld [vmem:[%s5796 + $0x30] sm:$0xff]
        %v5804 = vld [vmem:[%s5796 + $0x38] sm:$0xff]
        %v5805 = vld [vmem:[%s5796 + $0x40] sm:$0xff]
        %v5806 = vld [vmem:[%s5796 + $0x48] sm:$0xff]
        %v5807 = vld [vmem:[%s5796 + $0x50] sm:$0xff]
        %v5808 = vld [vmem:[%s5796 + $0x58] sm:$0xff]
        %v5809 = vld [vmem:[%s5796 + $0x60] sm:$0xff]
        %v5810 = vld [vmem:[%s5796 + $0x68] sm:$0xff]
        %v5811 = vld [vmem:[%s5796 + $0x70] sm:$0xff]
        %v5812 = vld [vmem:[%s5796 + $0x78] sm:$0xff]
        %v5813 = vld [vmem:[%s5796 + $0x80] sm:$0xff]
        %v5814 = vld [vmem:[%s5796 + $0x88] sm:$0xff]
        %v5815 = vld [vmem:[%s5796 + $0x90] sm:$0xff]
        %v5816 = vld [vmem:[%s5796 + $0x98] sm:$0xff]
        %v5817 = vld [vmem:[%s5796 + $0xa0] sm:$0xff]
        %v5818 = vld [vmem:[%s5796 + $0xa8] sm:$0xff]
        %v5819 = vld [vmem:[%s5796 + $0xb0] sm:$0xff]
        %v5820 = vld [vmem:[%s5796 + $0xb8] sm:$0xff]
        %v5821 = vld [vmem:[%s5796 + $0xc0] sm:$0xf]
        %v5823 = vsel %vm2680, %v5821, 0
        %5825 = vmatprep.subr.mxu0 0.0
        %5826 = vmatpush1.msra.mxu0 %v5812
        %5827 = vmatprep.subr.mxu0 0.0
        %5828 = vmatpush1.msra.mxu0 %v5811
        %5829 = vmatprep.subr.mxu0 0.0
        %5830 = vmatpush1.msra.mxu0 %v5810
        %5831 = vmatprep.subr.mxu0 0.0
        %5832 = vmatpush1.msra.mxu0 %v5809
        %5833 = vmatprep.subr.mxu0 0.0
        %5834 = vmatpush1.msra.mxu0 %v5808
        %5835 = vmatprep.subr.mxu0 0.0
        %5836 = vmatpush1.msra.mxu0 %v5807
        %5837 = vmatprep.subr.mxu0 0.0
        %5838 = vmatpush1.msra.mxu0 %v5806
        %5839 = vmatprep.subr.mxu0 0.0
        %5840 = vmatpush1.msra.mxu0 %v5805
        %5841 = vmatprep.subr.mxu0 0.0
        %5842 = vmatpush1.msra.mxu0 %v5804
        %5843 = vmatprep.subr.mxu0 0.0
        %5844 = vmatpush1.msra.mxu0 %v5803
        %5845 = vmatprep.subr.mxu0 0.0
        %5846 = vmatpush1.msra.mxu0 %v5802
        %5847 = vmatprep.subr.mxu0 0.0
        %5848 = vmatpush1.msra.mxu0 %v5801
        %5849 = vmatprep.subr.mxu0 0.0
        %5850 = vmatpush1.msra.mxu0 %v5800
        %5851 = vmatprep.subr.mxu0 0.0
        %5852 = vmatpush1.msra.mxu0 %v5799
        %5853 = vmatprep.subr.mxu0 0.0
        %5854 = vmatpush1.msra.mxu0 %v5798
        %5855 = vmatprep.subr.mxu0 0.0
        %5856 = vmatpush1.msra.mxu0 %v5797
        %5857 = vmatprep.subr.mxu0 0.0
        %5858 = vmatpush2.msra.mxu0 0.0
        %5859 = vmatprep.subr.mxu0 0.0
        %5860 = vmatpush2.msra.mxu0 0.0
        %5861 = vmatprep.subr.mxu0 0.0
        %5862 = vmatpush2.msra.mxu0 0.0
        %5863 = vmatprep.subr.mxu0 0.0
        %5864 = vmatpush2.msra.mxu0 0.0
        %5865 = vmatprep.subr.mxu0 0.0
        %5866 = vmatpush2.msra.mxu0 0.0
        %5867 = vmatprep.subr.mxu0 0.0
        %5868 = vmatpush2.msra.mxu0 0.0
        %5869 = vmatprep.subr.mxu0 0.0
        %5870 = vmatpush2.msra.mxu0 0.0
        %5871 = vmatprep.subr.mxu0 0.0
        %5872 = vmatpush2.msra.mxu0 %v5823
        %5873 = vmatprep.subr.mxu0 0.0
        %5874 = vmatpush2.msra.mxu0 %v5820
        %5875 = vmatprep.subr.mxu0 0.0
        %5876 = vmatpush2.msra.mxu0 %v5819
        %5877 = vmatprep.subr.mxu0 0.0
        %5878 = vmatpush2.msra.mxu0 %v5818
        %5879 = vmatprep.subr.mxu0 0.0
        %5880 = vmatpush2.msra.mxu0 %v5817
        %5881 = vmatprep.subr.mxu0 0.0
        %5882 = vmatpush2.msra.mxu0 %v5816
        %5883 = vmatprep.subr.mxu0 0.0
        %5884 = vmatpush2.msra.mxu0 %v5815
        %5885 = vmatprep.subr.mxu0 0.0
        %5886 = vmatpush2.msra.mxu0 %v5814
        %5887 = vmatprep.subr.mxu0 0.0
        %5888 = vmatpush2.msra.mxu0 %v5813
        %5889 = vmatprep.mubr.f32.mxu0 %v2678
        %5890 = vmatmul.mubr.f32.gmra.mxu0 %v2649
        %v5891 = vpop.f32.mrf.mxu0
        %v5892 = vadd.f32 0.0, %v5891
        %v5893 = vpop.f32.mrf.mxu0
        %5894 = vdwg.mxu0
        %s5895 = scalar_lea.vmem [#allocation8], 272
        %v5896 = vld [vmem:[%s5895] sm:$0xff]
        %v5897 = vld [vmem:[%s5895 + $0x8] sm:$0xff]
        %v5899 = vsel %vm2858, %v5896, 0
        %v5902 = vsel %vm2858, %v5897, 0
        %5904 = vmatprep.subr.mxu0 0.0
        %5905 = vmatpush1.msra.mxu0 0.0
        %5906 = vmatprep.subr.mxu0 0.0
        %5907 = vmatpush1.msra.mxu0 0.0
        %5908 = vmatprep.subr.mxu0 0.0
        %5909 = vmatpush1.msra.mxu0 0.0
        %5910 = vmatprep.subr.mxu0 0.0
        %5911 = vmatpush1.msra.mxu0 0.0
        %5912 = vmatprep.subr.mxu0 0.0
        %5913 = vmatpush1.msra.mxu0 0.0
        %5914 = vmatprep.subr.mxu0 0.0
        %5915 = vmatpush1.msra.mxu0 0.0
        %5916 = vmatprep.subr.mxu0 0.0
        %5917 = vmatpush1.msra.mxu0 0.0
        %5918 = vmatprep.subr.mxu0 0.0
        %5919 = vmatpush1.msra.mxu0 0.0
        %5920 = vmatprep.subr.mxu0 0.0
        %5921 = vmatpush1.msra.mxu0 0.0
        %5922 = vmatprep.subr.mxu0 0.0
        %5923 = vmatpush1.msra.mxu0 0.0
        %5924 = vmatprep.subr.mxu0 0.0
        %5925 = vmatpush1.msra.mxu0 0.0
        %5926 = vmatprep.subr.mxu0 0.0
        %5927 = vmatpush1.msra.mxu0 0.0
        %5928 = vmatprep.subr.mxu0 0.0
        %5929 = vmatpush1.msra.mxu0 0.0
        %5930 = vmatprep.subr.mxu0 0.0
        %5931 = vmatpush1.msra.mxu0 0.0
        %5932 = vmatprep.subr.mxu0 0.0
        %5933 = vmatpush1.msra.mxu0 0.0
        %5934 = vmatprep.subr.mxu0 0.0
        %5935 = vmatpush1.msra.mxu0 %v5892
        %5936 = vmatprep.subr.mxu0 0.0
        %5937 = vmatpush2.msra.mxu0 0.0
        %5938 = vmatprep.subr.mxu0 0.0
        %5939 = vmatpush2.msra.mxu0 0.0
        %5940 = vmatprep.subr.mxu0 0.0
        %5941 = vmatpush2.msra.mxu0 0.0
        %5942 = vmatprep.subr.mxu0 0.0
        %5943 = vmatpush2.msra.mxu0 0.0
        %5944 = vmatprep.subr.mxu0 0.0
        %5945 = vmatpush2.msra.mxu0 0.0
        %5946 = vmatprep.subr.mxu0 0.0
        %5947 = vmatpush2.msra.mxu0 0.0
        %5948 = vmatprep.subr.mxu0 0.0
        %5949 = vmatpush2.msra.mxu0 0.0
        %5950 = vmatprep.subr.mxu0 0.0
        %5951 = vmatpush2.msra.mxu0 0.0
        %5952 = vmatprep.subr.mxu0 0.0
        %5953 = vmatpush2.msra.mxu0 0.0
        %5954 = vmatprep.subr.mxu0 0.0
        %5955 = vmatpush2.msra.mxu0 0.0
        %5956 = vmatprep.subr.mxu0 0.0
        %5957 = vmatpush2.msra.mxu0 0.0
        %5958 = vmatprep.subr.mxu0 0.0
        %5959 = vmatpush2.msra.mxu0 0.0
        %5960 = vmatprep.subr.mxu0 0.0
        %5961 = vmatpush2.msra.mxu0 0.0
        %5962 = vmatprep.subr.mxu0 0.0
        %5963 = vmatpush2.msra.mxu0 0.0
        %5964 = vmatprep.subr.mxu0 0.0
        %5965 = vmatpush2.msra.mxu0 0.0
        %5966 = vmatprep.subr.mxu0 0.0
        %5967 = vmatpush2.msra.mxu0 0.0
        %5968 = vmatprep.mubr.f32.mxu0 0.0
        %5969 = vmatmul.mubr.f32.gmra.mxu0 %v5899
        %v5970 = vpop.f32.mrf.mxu0
        %v5971 = vadd.f32 0.0, %v5970
        %v5972 = vpop.f32.mrf.mxu0
        %5973 = vmatprep.mubr.f32.mxu0 0.0
        %5974 = vmatmul.mubr.f32.gmra.mxu0 %v5902
        %v5975 = vpop.f32.mrf.mxu0
        %v5976 = vadd.f32 0.0, %v5975
        %v5977 = vpop.f32.mrf.mxu0
        %5978 = vdwg.mxu0
        %v5979 = vadd.f32 %v5794, %v5971
        %v5980 = vadd.f32 %v5795, %v5976
        %s5981 = scalar_lea.vmem [#allocation11], 3600
        %v5982 = vld [vmem:[%s5981] sm:$0xff]
        %v5983 = vld [vmem:[%s5981 + $0x8] sm:$0xff]
        %v5984 = vld [vmem:[%s5981 + $0x10] sm:$0xff]
        %v5985 = vld [vmem:[%s5981 + $0x18] sm:$0xff]
        %v5986 = vld [vmem:[%s5981 + $0x20] sm:$0xff]
        %v5987 = vld [vmem:[%s5981 + $0x28] sm:$0xff]
        %v5988 = vld [vmem:[%s5981 + $0x30] sm:$0xff]
        %v5989 = vld [vmem:[%s5981 + $0x38] sm:$0xff]
        %v5990 = vld [vmem:[%s5981 + $0x40] sm:$0xff]
        %v5991 = vld [vmem:[%s5981 + $0x48] sm:$0xff]
        %v5992 = vld [vmem:[%s5981 + $0x50] sm:$0xff]
        %v5993 = vld [vmem:[%s5981 + $0x58] sm:$0xff]
        %v5994 = vld [vmem:[%s5981 + $0x60] sm:$0xff]
        %v5995 = vld [vmem:[%s5981 + $0x68] sm:$0xff]
        %v5996 = vld [vmem:[%s5981 + $0x70] sm:$0xff]
        %v5997 = vld [vmem:[%s5981 + $0x78] sm:$0xff]
        %v5998 = vld [vmem:[%s5981 + $0x80] sm:$0xff]
        %v5999 = vld [vmem:[%s5981 + $0x88] sm:$0xff]
        %v6000 = vld [vmem:[%s5981 + $0x90] sm:$0xff]
        %v6001 = vld [vmem:[%s5981 + $0x98] sm:$0xff]
        %v6002 = vld [vmem:[%s5981 + $0xa0] sm:$0xff]
        %v6003 = vld [vmem:[%s5981 + $0xa8] sm:$0xff]
        %v6004 = vld [vmem:[%s5981 + $0xb0] sm:$0xff]
        %v6005 = vld [vmem:[%s5981 + $0xb8] sm:$0xff]
        %v6006 = vld [vmem:[%s5981 + $0xc0] sm:$0xf]
        %v6008 = vsel %vm2680, %v6006, 0
        %6010 = vmatprep.subr.mxu0 0.0
        %6011 = vmatpush1.msra.mxu0 %v5997
        %6012 = vmatprep.subr.mxu0 0.0
        %6013 = vmatpush1.msra.mxu0 %v5996
        %6014 = vmatprep.subr.mxu0 0.0
        %6015 = vmatpush1.msra.mxu0 %v5995
        %6016 = vmatprep.subr.mxu0 0.0
        %6017 = vmatpush1.msra.mxu0 %v5994
        %6018 = vmatprep.subr.mxu0 0.0
        %6019 = vmatpush1.msra.mxu0 %v5993
        %6020 = vmatprep.subr.mxu0 0.0
        %6021 = vmatpush1.msra.mxu0 %v5992
        %6022 = vmatprep.subr.mxu0 0.0
        %6023 = vmatpush1.msra.mxu0 %v5991
        %6024 = vmatprep.subr.mxu0 0.0
        %6025 = vmatpush1.msra.mxu0 %v5990
        %6026 = vmatprep.subr.mxu0 0.0
        %6027 = vmatpush1.msra.mxu0 %v5989
        %6028 = vmatprep.subr.mxu0 0.0
        %6029 = vmatpush1.msra.mxu0 %v5988
        %6030 = vmatprep.subr.mxu0 0.0
        %6031 = vmatpush1.msra.mxu0 %v5987
        %6032 = vmatprep.subr.mxu0 0.0
        %6033 = vmatpush1.msra.mxu0 %v5986
        %6034 = vmatprep.subr.mxu0 0.0
        %6035 = vmatpush1.msra.mxu0 %v5985
        %6036 = vmatprep.subr.mxu0 0.0
        %6037 = vmatpush1.msra.mxu0 %v5984
        %6038 = vmatprep.subr.mxu0 0.0
        %6039 = vmatpush1.msra.mxu0 %v5983
        %6040 = vmatprep.subr.mxu0 0.0
        %6041 = vmatpush1.msra.mxu0 %v5982
        %6042 = vmatprep.subr.mxu0 0.0
        %6043 = vmatpush2.msra.mxu0 0.0
        %6044 = vmatprep.subr.mxu0 0.0
        %6045 = vmatpush2.msra.mxu0 0.0
        %6046 = vmatprep.subr.mxu0 0.0
        %6047 = vmatpush2.msra.mxu0 0.0
        %6048 = vmatprep.subr.mxu0 0.0
        %6049 = vmatpush2.msra.mxu0 0.0
        %6050 = vmatprep.subr.mxu0 0.0
        %6051 = vmatpush2.msra.mxu0 0.0
        %6052 = vmatprep.subr.mxu0 0.0
        %6053 = vmatpush2.msra.mxu0 0.0
        %6054 = vmatprep.subr.mxu0 0.0
        %6055 = vmatpush2.msra.mxu0 0.0
        %6056 = vmatprep.subr.mxu0 0.0
        %6057 = vmatpush2.msra.mxu0 %v6008
        %6058 = vmatprep.subr.mxu0 0.0
        %6059 = vmatpush2.msra.mxu0 %v6005
        %6060 = vmatprep.subr.mxu0 0.0
        %6061 = vmatpush2.msra.mxu0 %v6004
        %6062 = vmatprep.subr.mxu0 0.0
        %6063 = vmatpush2.msra.mxu0 %v6003
        %6064 = vmatprep.subr.mxu0 0.0
        %6065 = vmatpush2.msra.mxu0 %v6002
        %6066 = vmatprep.subr.mxu0 0.0
        %6067 = vmatpush2.msra.mxu0 %v6001
        %6068 = vmatprep.subr.mxu0 0.0
        %6069 = vmatpush2.msra.mxu0 %v6000
        %6070 = vmatprep.subr.mxu0 0.0
        %6071 = vmatpush2.msra.mxu0 %v5999
        %6072 = vmatprep.subr.mxu0 0.0
        %6073 = vmatpush2.msra.mxu0 %v5998
        %6074 = vmatprep.mubr.f32.mxu0 %v2678
        %6075 = vmatmul.mubr.f32.gmra.mxu0 %v2649
        %v6076 = vpop.f32.mrf.mxu0
        %v6077 = vadd.f32 0.0, %v6076
        %v6078 = vpop.f32.mrf.mxu0
        %6079 = vdwg.mxu0
        %s6080 = scalar_lea.vmem [#allocation8], 288
        %v6081 = vld [vmem:[%s6080] sm:$0xff]
        %v6082 = vld [vmem:[%s6080 + $0x8] sm:$0xff]
        %v6084 = vsel %vm2858, %v6081, 0
        %v6087 = vsel %vm2858, %v6082, 0
        %6089 = vmatprep.subr.mxu0 0.0
        %6090 = vmatpush1.msra.mxu0 0.0
        %6091 = vmatprep.subr.mxu0 0.0
        %6092 = vmatpush1.msra.mxu0 0.0
        %6093 = vmatprep.subr.mxu0 0.0
        %6094 = vmatpush1.msra.mxu0 0.0
        %6095 = vmatprep.subr.mxu0 0.0
        %6096 = vmatpush1.msra.mxu0 0.0
        %6097 = vmatprep.subr.mxu0 0.0
        %6098 = vmatpush1.msra.mxu0 0.0
        %6099 = vmatprep.subr.mxu0 0.0
        %6100 = vmatpush1.msra.mxu0 0.0
        %6101 = vmatprep.subr.mxu0 0.0
        %6102 = vmatpush1.msra.mxu0 0.0
        %6103 = vmatprep.subr.mxu0 0.0
        %6104 = vmatpush1.msra.mxu0 0.0
        %6105 = vmatprep.subr.mxu0 0.0
        %6106 = vmatpush1.msra.mxu0 0.0
        %6107 = vmatprep.subr.mxu0 0.0
        %6108 = vmatpush1.msra.mxu0 0.0
        %6109 = vmatprep.subr.mxu0 0.0
        %6110 = vmatpush1.msra.mxu0 0.0
        %6111 = vmatprep.subr.mxu0 0.0
        %6112 = vmatpush1.msra.mxu0 0.0
        %6113 = vmatprep.subr.mxu0 0.0
        %6114 = vmatpush1.msra.mxu0 0.0
        %6115 = vmatprep.subr.mxu0 0.0
        %6116 = vmatpush1.msra.mxu0 0.0
        %6117 = vmatprep.subr.mxu0 0.0
        %6118 = vmatpush1.msra.mxu0 0.0
        %6119 = vmatprep.subr.mxu0 0.0
        %6120 = vmatpush1.msra.mxu0 %v6077
        %6121 = vmatprep.subr.mxu0 0.0
        %6122 = vmatpush2.msra.mxu0 0.0
        %6123 = vmatprep.subr.mxu0 0.0
        %6124 = vmatpush2.msra.mxu0 0.0
        %6125 = vmatprep.subr.mxu0 0.0
        %6126 = vmatpush2.msra.mxu0 0.0
        %6127 = vmatprep.subr.mxu0 0.0
        %6128 = vmatpush2.msra.mxu0 0.0
        %6129 = vmatprep.subr.mxu0 0.0
        %6130 = vmatpush2.msra.mxu0 0.0
        %6131 = vmatprep.subr.mxu0 0.0
        %6132 = vmatpush2.msra.mxu0 0.0
        %6133 = vmatprep.subr.mxu0 0.0
        %6134 = vmatpush2.msra.mxu0 0.0
        %6135 = vmatprep.subr.mxu0 0.0
        %6136 = vmatpush2.msra.mxu0 0.0
        %6137 = vmatprep.subr.mxu0 0.0
        %6138 = vmatpush2.msra.mxu0 0.0
        %6139 = vmatprep.subr.mxu0 0.0
        %6140 = vmatpush2.msra.mxu0 0.0
        %6141 = vmatprep.subr.mxu0 0.0
        %6142 = vmatpush2.msra.mxu0 0.0
        %6143 = vmatprep.subr.mxu0 0.0
        %6144 = vmatpush2.msra.mxu0 0.0
        %6145 = vmatprep.subr.mxu0 0.0
        %6146 = vmatpush2.msra.mxu0 0.0
        %6147 = vmatprep.subr.mxu0 0.0
        %6148 = vmatpush2.msra.mxu0 0.0
        %6149 = vmatprep.subr.mxu0 0.0
        %6150 = vmatpush2.msra.mxu0 0.0
        %6151 = vmatprep.subr.mxu0 0.0
        %6152 = vmatpush2.msra.mxu0 0.0
        %6153 = vmatprep.mubr.f32.mxu0 0.0
        %6154 = vmatmul.mubr.f32.gmra.mxu0 %v6084
        %v6155 = vpop.f32.mrf.mxu0
        %v6156 = vadd.f32 0.0, %v6155
        %v6157 = vpop.f32.mrf.mxu0
        %6158 = vmatprep.mubr.f32.mxu0 0.0
        %6159 = vmatmul.mubr.f32.gmra.mxu0 %v6087
        %v6160 = vpop.f32.mrf.mxu0
        %v6161 = vadd.f32 0.0, %v6160
        %v6162 = vpop.f32.mrf.mxu0
        %6163 = vdwg.mxu0
        %v6164 = vadd.f32 %v5979, %v6156
        %v6165 = vadd.f32 %v5980, %v6161
        %s6166 = scalar_lea.vmem [#allocation11], 3800
        %v6167 = vld [vmem:[%s6166] sm:$0xff]
        %v6168 = vld [vmem:[%s6166 + $0x8] sm:$0xff]
        %v6169 = vld [vmem:[%s6166 + $0x10] sm:$0xff]
        %v6170 = vld [vmem:[%s6166 + $0x18] sm:$0xff]
        %v6171 = vld [vmem:[%s6166 + $0x20] sm:$0xff]
        %v6172 = vld [vmem:[%s6166 + $0x28] sm:$0xff]
        %v6173 = vld [vmem:[%s6166 + $0x30] sm:$0xff]
        %v6174 = vld [vmem:[%s6166 + $0x38] sm:$0xff]
        %v6175 = vld [vmem:[%s6166 + $0x40] sm:$0xff]
        %v6176 = vld [vmem:[%s6166 + $0x48] sm:$0xff]
        %v6177 = vld [vmem:[%s6166 + $0x50] sm:$0xff]
        %v6178 = vld [vmem:[%s6166 + $0x58] sm:$0xff]
        %v6179 = vld [vmem:[%s6166 + $0x60] sm:$0xff]
        %v6180 = vld [vmem:[%s6166 + $0x68] sm:$0xff]
        %v6181 = vld [vmem:[%s6166 + $0x70] sm:$0xff]
        %v6182 = vld [vmem:[%s6166 + $0x78] sm:$0xff]
        %v6183 = vld [vmem:[%s6166 + $0x80] sm:$0xff]
        %v6184 = vld [vmem:[%s6166 + $0x88] sm:$0xff]
        %v6185 = vld [vmem:[%s6166 + $0x90] sm:$0xff]
        %v6186 = vld [vmem:[%s6166 + $0x98] sm:$0xff]
        %v6187 = vld [vmem:[%s6166 + $0xa0] sm:$0xff]
        %v6188 = vld [vmem:[%s6166 + $0xa8] sm:$0xff]
        %v6189 = vld [vmem:[%s6166 + $0xb0] sm:$0xff]
        %v6190 = vld [vmem:[%s6166 + $0xb8] sm:$0xff]
        %v6191 = vld [vmem:[%s6166 + $0xc0] sm:$0xf]
        %v6193 = vsel %vm2680, %v6191, 0
        %6195 = vmatprep.subr.mxu0 0.0
        %6196 = vmatpush1.msra.mxu0 %v6182
        %6197 = vmatprep.subr.mxu0 0.0
        %6198 = vmatpush1.msra.mxu0 %v6181
        %6199 = vmatprep.subr.mxu0 0.0
        %6200 = vmatpush1.msra.mxu0 %v6180
        %6201 = vmatprep.subr.mxu0 0.0
        %6202 = vmatpush1.msra.mxu0 %v6179
        %6203 = vmatprep.subr.mxu0 0.0
        %6204 = vmatpush1.msra.mxu0 %v6178
        %6205 = vmatprep.subr.mxu0 0.0
        %6206 = vmatpush1.msra.mxu0 %v6177
        %6207 = vmatprep.subr.mxu0 0.0
        %6208 = vmatpush1.msra.mxu0 %v6176
        %6209 = vmatprep.subr.mxu0 0.0
        %6210 = vmatpush1.msra.mxu0 %v6175
        %6211 = vmatprep.subr.mxu0 0.0
        %6212 = vmatpush1.msra.mxu0 %v6174
        %6213 = vmatprep.subr.mxu0 0.0
        %6214 = vmatpush1.msra.mxu0 %v6173
        %6215 = vmatprep.subr.mxu0 0.0
        %6216 = vmatpush1.msra.mxu0 %v6172
        %6217 = vmatprep.subr.mxu0 0.0
        %6218 = vmatpush1.msra.mxu0 %v6171
        %6219 = vmatprep.subr.mxu0 0.0
        %6220 = vmatpush1.msra.mxu0 %v6170
        %6221 = vmatprep.subr.mxu0 0.0
        %6222 = vmatpush1.msra.mxu0 %v6169
        %6223 = vmatprep.subr.mxu0 0.0
        %6224 = vmatpush1.msra.mxu0 %v6168
        %6225 = vmatprep.subr.mxu0 0.0
        %6226 = vmatpush1.msra.mxu0 %v6167
        %6227 = vmatprep.subr.mxu0 0.0
        %6228 = vmatpush2.msra.mxu0 0.0
        %6229 = vmatprep.subr.mxu0 0.0
        %6230 = vmatpush2.msra.mxu0 0.0
        %6231 = vmatprep.subr.mxu0 0.0
        %6232 = vmatpush2.msra.mxu0 0.0
        %6233 = vmatprep.subr.mxu0 0.0
        %6234 = vmatpush2.msra.mxu0 0.0
        %6235 = vmatprep.subr.mxu0 0.0
        %6236 = vmatpush2.msra.mxu0 0.0
        %6237 = vmatprep.subr.mxu0 0.0
        %6238 = vmatpush2.msra.mxu0 0.0
        %6239 = vmatprep.subr.mxu0 0.0
        %6240 = vmatpush2.msra.mxu0 0.0
        %6241 = vmatprep.subr.mxu0 0.0
        %6242 = vmatpush2.msra.mxu0 %v6193
        %6243 = vmatprep.subr.mxu0 0.0
        %6244 = vmatpush2.msra.mxu0 %v6190
        %6245 = vmatprep.subr.mxu0 0.0
        %6246 = vmatpush2.msra.mxu0 %v6189
        %6247 = vmatprep.subr.mxu0 0.0
        %6248 = vmatpush2.msra.mxu0 %v6188
        %6249 = vmatprep.subr.mxu0 0.0
        %6250 = vmatpush2.msra.mxu0 %v6187
        %6251 = vmatprep.subr.mxu0 0.0
        %6252 = vmatpush2.msra.mxu0 %v6186
        %6253 = vmatprep.subr.mxu0 0.0
        %6254 = vmatpush2.msra.mxu0 %v6185
        %6255 = vmatprep.subr.mxu0 0.0
        %6256 = vmatpush2.msra.mxu0 %v6184
        %6257 = vmatprep.subr.mxu0 0.0
        %6258 = vmatpush2.msra.mxu0 %v6183
        %6259 = vmatprep.mubr.f32.mxu0 %v2678
        %6260 = vmatmul.mubr.f32.gmra.mxu0 %v2649
        %v6261 = vpop.f32.mrf.mxu0
        %v6262 = vadd.f32 0.0, %v6261
        %v6263 = vpop.f32.mrf.mxu0
        %6264 = vdwg.mxu0
        %s6265 = scalar_lea.vmem [#allocation8], 304
        %v6266 = vld [vmem:[%s6265] sm:$0xff]
        %v6267 = vld [vmem:[%s6265 + $0x8] sm:$0xff]
        %v6269 = vsel %vm2858, %v6266, 0
        %v6272 = vsel %vm2858, %v6267, 0
        %6274 = vmatprep.subr.mxu0 0.0
        %6275 = vmatpush1.msra.mxu0 0.0
        %6276 = vmatprep.subr.mxu0 0.0
        %6277 = vmatpush1.msra.mxu0 0.0
        %6278 = vmatprep.subr.mxu0 0.0
        %6279 = vmatpush1.msra.mxu0 0.0
        %6280 = vmatprep.subr.mxu0 0.0
        %6281 = vmatpush1.msra.mxu0 0.0
        %6282 = vmatprep.subr.mxu0 0.0
        %6283 = vmatpush1.msra.mxu0 0.0
        %6284 = vmatprep.subr.mxu0 0.0
        %6285 = vmatpush1.msra.mxu0 0.0
        %6286 = vmatprep.subr.mxu0 0.0
        %6287 = vmatpush1.msra.mxu0 0.0
        %6288 = vmatprep.subr.mxu0 0.0
        %6289 = vmatpush1.msra.mxu0 0.0
        %6290 = vmatprep.subr.mxu0 0.0
        %6291 = vmatpush1.msra.mxu0 0.0
        %6292 = vmatprep.subr.mxu0 0.0
        %6293 = vmatpush1.msra.mxu0 0.0
        %6294 = vmatprep.subr.mxu0 0.0
        %6295 = vmatpush1.msra.mxu0 0.0
        %6296 = vmatprep.subr.mxu0 0.0
        %6297 = vmatpush1.msra.mxu0 0.0
        %6298 = vmatprep.subr.mxu0 0.0
        %6299 = vmatpush1.msra.mxu0 0.0
        %6300 = vmatprep.subr.mxu0 0.0
        %6301 = vmatpush1.msra.mxu0 0.0
        %6302 = vmatprep.subr.mxu0 0.0
        %6303 = vmatpush1.msra.mxu0 0.0
        %6304 = vmatprep.subr.mxu0 0.0
        %6305 = vmatpush1.msra.mxu0 %v6262
        %6306 = vmatprep.subr.mxu0 0.0
        %6307 = vmatpush2.msra.mxu0 0.0
        %6308 = vmatprep.subr.mxu0 0.0
        %6309 = vmatpush2.msra.mxu0 0.0
        %6310 = vmatprep.subr.mxu0 0.0
        %6311 = vmatpush2.msra.mxu0 0.0
        %6312 = vmatprep.subr.mxu0 0.0
        %6313 = vmatpush2.msra.mxu0 0.0
        %6314 = vmatprep.subr.mxu0 0.0
        %6315 = vmatpush2.msra.mxu0 0.0
        %6316 = vmatprep.subr.mxu0 0.0
        %6317 = vmatpush2.msra.mxu0 0.0
        %6318 = vmatprep.subr.mxu0 0.0
        %6319 = vmatpush2.msra.mxu0 0.0
        %6320 = vmatprep.subr.mxu0 0.0
        %6321 = vmatpush2.msra.mxu0 0.0
        %6322 = vmatprep.subr.mxu0 0.0
        %6323 = vmatpush2.msra.mxu0 0.0
        %6324 = vmatprep.subr.mxu0 0.0
        %6325 = vmatpush2.msra.mxu0 0.0
        %6326 = vmatprep.subr.mxu0 0.0
        %6327 = vmatpush2.msra.mxu0 0.0
        %6328 = vmatprep.subr.mxu0 0.0
        %6329 = vmatpush2.msra.mxu0 0.0
        %6330 = vmatprep.subr.mxu0 0.0
        %6331 = vmatpush2.msra.mxu0 0.0
        %6332 = vmatprep.subr.mxu0 0.0
        %6333 = vmatpush2.msra.mxu0 0.0
        %6334 = vmatprep.subr.mxu0 0.0
        %6335 = vmatpush2.msra.mxu0 0.0
        %6336 = vmatprep.subr.mxu0 0.0
        %6337 = vmatpush2.msra.mxu0 0.0
        %6338 = vmatprep.mubr.f32.mxu0 0.0
        %6339 = vmatmul.mubr.f32.gmra.mxu0 %v6269
        %v6340 = vpop.f32.mrf.mxu0
        %v6341 = vadd.f32 0.0, %v6340
        %v6342 = vpop.f32.mrf.mxu0
        %6343 = vmatprep.mubr.f32.mxu0 0.0
        %6344 = vmatmul.mubr.f32.gmra.mxu0 %v6272
        %v6345 = vpop.f32.mrf.mxu0
        %v6346 = vadd.f32 0.0, %v6345
        %v6347 = vpop.f32.mrf.mxu0
        %6348 = vdwg.mxu0
        %v6349 = vadd.f32 %v6164, %v6341
        %v6350 = vadd.f32 %v6165, %v6346
        %s6351 = scalar_lea.vmem [#allocation11], 4000
        %v6352 = vld [vmem:[%s6351] sm:$0xff]
        %v6353 = vld [vmem:[%s6351 + $0x8] sm:$0xff]
        %v6354 = vld [vmem:[%s6351 + $0x10] sm:$0xff]
        %v6355 = vld [vmem:[%s6351 + $0x18] sm:$0xff]
        %v6356 = vld [vmem:[%s6351 + $0x20] sm:$0xff]
        %v6357 = vld [vmem:[%s6351 + $0x28] sm:$0xff]
        %v6358 = vld [vmem:[%s6351 + $0x30] sm:$0xff]
        %v6359 = vld [vmem:[%s6351 + $0x38] sm:$0xff]
        %v6360 = vld [vmem:[%s6351 + $0x40] sm:$0xff]
        %v6361 = vld [vmem:[%s6351 + $0x48] sm:$0xff]
        %v6362 = vld [vmem:[%s6351 + $0x50] sm:$0xff]
        %v6363 = vld [vmem:[%s6351 + $0x58] sm:$0xff]
        %v6364 = vld [vmem:[%s6351 + $0x60] sm:$0xff]
        %v6365 = vld [vmem:[%s6351 + $0x68] sm:$0xff]
        %v6366 = vld [vmem:[%s6351 + $0x70] sm:$0xff]
        %v6367 = vld [vmem:[%s6351 + $0x78] sm:$0xff]
        %v6368 = vld [vmem:[%s6351 + $0x80] sm:$0xff]
        %v6369 = vld [vmem:[%s6351 + $0x88] sm:$0xff]
        %v6370 = vld [vmem:[%s6351 + $0x90] sm:$0xff]
        %v6371 = vld [vmem:[%s6351 + $0x98] sm:$0xff]
        %v6372 = vld [vmem:[%s6351 + $0xa0] sm:$0xff]
        %v6373 = vld [vmem:[%s6351 + $0xa8] sm:$0xff]
        %v6374 = vld [vmem:[%s6351 + $0xb0] sm:$0xff]
        %v6375 = vld [vmem:[%s6351 + $0xb8] sm:$0xff]
        %v6376 = vld [vmem:[%s6351 + $0xc0] sm:$0xf]
        %v6378 = vsel %vm2680, %v6376, 0
        %6380 = vmatprep.subr.mxu0 0.0
        %6381 = vmatpush1.msra.mxu0 %v6367
        %6382 = vmatprep.subr.mxu0 0.0
        %6383 = vmatpush1.msra.mxu0 %v6366
        %6384 = vmatprep.subr.mxu0 0.0
        %6385 = vmatpush1.msra.mxu0 %v6365
        %6386 = vmatprep.subr.mxu0 0.0
        %6387 = vmatpush1.msra.mxu0 %v6364
        %6388 = vmatprep.subr.mxu0 0.0
        %6389 = vmatpush1.msra.mxu0 %v6363
        %6390 = vmatprep.subr.mxu0 0.0
        %6391 = vmatpush1.msra.mxu0 %v6362
        %6392 = vmatprep.subr.mxu0 0.0
        %6393 = vmatpush1.msra.mxu0 %v6361
        %6394 = vmatprep.subr.mxu0 0.0
        %6395 = vmatpush1.msra.mxu0 %v6360
        %6396 = vmatprep.subr.mxu0 0.0
        %6397 = vmatpush1.msra.mxu0 %v6359
        %6398 = vmatprep.subr.mxu0 0.0
        %6399 = vmatpush1.msra.mxu0 %v6358
        %6400 = vmatprep.subr.mxu0 0.0
        %6401 = vmatpush1.msra.mxu0 %v6357
        %6402 = vmatprep.subr.mxu0 0.0
        %6403 = vmatpush1.msra.mxu0 %v6356
        %6404 = vmatprep.subr.mxu0 0.0
        %6405 = vmatpush1.msra.mxu0 %v6355
        %6406 = vmatprep.subr.mxu0 0.0
        %6407 = vmatpush1.msra.mxu0 %v6354
        %6408 = vmatprep.subr.mxu0 0.0
        %6409 = vmatpush1.msra.mxu0 %v6353
        %6410 = vmatprep.subr.mxu0 0.0
        %6411 = vmatpush1.msra.mxu0 %v6352
        %6412 = vmatprep.subr.mxu0 0.0
        %6413 = vmatpush2.msra.mxu0 0.0
        %6414 = vmatprep.subr.mxu0 0.0
        %6415 = vmatpush2.msra.mxu0 0.0
        %6416 = vmatprep.subr.mxu0 0.0
        %6417 = vmatpush2.msra.mxu0 0.0
        %6418 = vmatprep.subr.mxu0 0.0
        %6419 = vmatpush2.msra.mxu0 0.0
        %6420 = vmatprep.subr.mxu0 0.0
        %6421 = vmatpush2.msra.mxu0 0.0
        %6422 = vmatprep.subr.mxu0 0.0
        %6423 = vmatpush2.msra.mxu0 0.0
        %6424 = vmatprep.subr.mxu0 0.0
        %6425 = vmatpush2.msra.mxu0 0.0
        %6426 = vmatprep.subr.mxu0 0.0
        %6427 = vmatpush2.msra.mxu0 %v6378
        %6428 = vmatprep.subr.mxu0 0.0
        %6429 = vmatpush2.msra.mxu0 %v6375
        %6430 = vmatprep.subr.mxu0 0.0
        %6431 = vmatpush2.msra.mxu0 %v6374
        %6432 = vmatprep.subr.mxu0 0.0
        %6433 = vmatpush2.msra.mxu0 %v6373
        %6434 = vmatprep.subr.mxu0 0.0
        %6435 = vmatpush2.msra.mxu0 %v6372
        %6436 = vmatprep.subr.mxu0 0.0
        %6437 = vmatpush2.msra.mxu0 %v6371
        %6438 = vmatprep.subr.mxu0 0.0
        %6439 = vmatpush2.msra.mxu0 %v6370
        %6440 = vmatprep.subr.mxu0 0.0
        %6441 = vmatpush2.msra.mxu0 %v6369
        %6442 = vmatprep.subr.mxu0 0.0
        %6443 = vmatpush2.msra.mxu0 %v6368
        %6444 = vmatprep.mubr.f32.mxu0 %v2678
        %6445 = vmatmul.mubr.f32.gmra.mxu0 %v2649
        %v6446 = vpop.f32.mrf.mxu0
        %v6447 = vadd.f32 0.0, %v6446
        %v6448 = vpop.f32.mrf.mxu0
        %6449 = vdwg.mxu0
        %s6450 = scalar_lea.vmem [#allocation8], 320
        %v6451 = vld [vmem:[%s6450] sm:$0xff]
        %v6452 = vld [vmem:[%s6450 + $0x8] sm:$0xff]
        %v6454 = vsel %vm2858, %v6451, 0
        %v6457 = vsel %vm2858, %v6452, 0
        %6459 = vmatprep.subr.mxu0 0.0
        %6460 = vmatpush1.msra.mxu0 0.0
        %6461 = vmatprep.subr.mxu0 0.0
        %6462 = vmatpush1.msra.mxu0 0.0
        %6463 = vmatprep.subr.mxu0 0.0
        %6464 = vmatpush1.msra.mxu0 0.0
        %6465 = vmatprep.subr.mxu0 0.0
        %6466 = vmatpush1.msra.mxu0 0.0
        %6467 = vmatprep.subr.mxu0 0.0
        %6468 = vmatpush1.msra.mxu0 0.0
        %6469 = vmatprep.subr.mxu0 0.0
        %6470 = vmatpush1.msra.mxu0 0.0
        %6471 = vmatprep.subr.mxu0 0.0
        %6472 = vmatpush1.msra.mxu0 0.0
        %6473 = vmatprep.subr.mxu0 0.0
        %6474 = vmatpush1.msra.mxu0 0.0
        %6475 = vmatprep.subr.mxu0 0.0
        %6476 = vmatpush1.msra.mxu0 0.0
        %6477 = vmatprep.subr.mxu0 0.0
        %6478 = vmatpush1.msra.mxu0 0.0
        %6479 = vmatprep.subr.mxu0 0.0
        %6480 = vmatpush1.msra.mxu0 0.0
        %6481 = vmatprep.subr.mxu0 0.0
        %6482 = vmatpush1.msra.mxu0 0.0
        %6483 = vmatprep.subr.mxu0 0.0
        %6484 = vmatpush1.msra.mxu0 0.0
        %6485 = vmatprep.subr.mxu0 0.0
        %6486 = vmatpush1.msra.mxu0 0.0
        %6487 = vmatprep.subr.mxu0 0.0
        %6488 = vmatpush1.msra.mxu0 0.0
        %6489 = vmatprep.subr.mxu0 0.0
        %6490 = vmatpush1.msra.mxu0 %v6447
        %6491 = vmatprep.subr.mxu0 0.0
        %6492 = vmatpush2.msra.mxu0 0.0
        %6493 = vmatprep.subr.mxu0 0.0
        %6494 = vmatpush2.msra.mxu0 0.0
        %6495 = vmatprep.subr.mxu0 0.0
        %6496 = vmatpush2.msra.mxu0 0.0
        %6497 = vmatprep.subr.mxu0 0.0
        %6498 = vmatpush2.msra.mxu0 0.0
        %6499 = vmatprep.subr.mxu0 0.0
        %6500 = vmatpush2.msra.mxu0 0.0
        %6501 = vmatprep.subr.mxu0 0.0
        %6502 = vmatpush2.msra.mxu0 0.0
        %6503 = vmatprep.subr.mxu0 0.0
        %6504 = vmatpush2.msra.mxu0 0.0
        %6505 = vmatprep.subr.mxu0 0.0
        %6506 = vmatpush2.msra.mxu0 0.0
        %6507 = vmatprep.subr.mxu0 0.0
        %6508 = vmatpush2.msra.mxu0 0.0
        %6509 = vmatprep.subr.mxu0 0.0
        %6510 = vmatpush2.msra.mxu0 0.0
        %6511 = vmatprep.subr.mxu0 0.0
        %6512 = vmatpush2.msra.mxu0 0.0
        %6513 = vmatprep.subr.mxu0 0.0
        %6514 = vmatpush2.msra.mxu0 0.0
        %6515 = vmatprep.subr.mxu0 0.0
        %6516 = vmatpush2.msra.mxu0 0.0
        %6517 = vmatprep.subr.mxu0 0.0
        %6518 = vmatpush2.msra.mxu0 0.0
        %6519 = vmatprep.subr.mxu0 0.0
        %6520 = vmatpush2.msra.mxu0 0.0
        %6521 = vmatprep.subr.mxu0 0.0
        %6522 = vmatpush2.msra.mxu0 0.0
        %6523 = vmatprep.mubr.f32.mxu0 0.0
        %6524 = vmatmul.mubr.f32.gmra.mxu0 %v6454
        %v6525 = vpop.f32.mrf.mxu0
        %v6526 = vadd.f32 0.0, %v6525
        %v6527 = vpop.f32.mrf.mxu0
        %6528 = vmatprep.mubr.f32.mxu0 0.0
        %6529 = vmatmul.mubr.f32.gmra.mxu0 %v6457
        %v6530 = vpop.f32.mrf.mxu0
        %v6531 = vadd.f32 0.0, %v6530
        %v6532 = vpop.f32.mrf.mxu0
        %6533 = vdwg.mxu0
        %v6534 = vadd.f32 %v6349, %v6526
        %v6535 = vadd.f32 %v6350, %v6531
        %s6536 = scalar_lea.vmem [#allocation11], 4200
        %v6537 = vld [vmem:[%s6536] sm:$0xff]
        %v6538 = vld [vmem:[%s6536 + $0x8] sm:$0xff]
        %v6539 = vld [vmem:[%s6536 + $0x10] sm:$0xff]
        %v6540 = vld [vmem:[%s6536 + $0x18] sm:$0xff]
        %v6541 = vld [vmem:[%s6536 + $0x20] sm:$0xff]
        %v6542 = vld [vmem:[%s6536 + $0x28] sm:$0xff]
        %v6543 = vld [vmem:[%s6536 + $0x30] sm:$0xff]
        %v6544 = vld [vmem:[%s6536 + $0x38] sm:$0xff]
        %v6545 = vld [vmem:[%s6536 + $0x40] sm:$0xff]
        %v6546 = vld [vmem:[%s6536 + $0x48] sm:$0xff]
        %v6547 = vld [vmem:[%s6536 + $0x50] sm:$0xff]
        %v6548 = vld [vmem:[%s6536 + $0x58] sm:$0xff]
        %v6549 = vld [vmem:[%s6536 + $0x60] sm:$0xff]
        %v6550 = vld [vmem:[%s6536 + $0x68] sm:$0xff]
        %v6551 = vld [vmem:[%s6536 + $0x70] sm:$0xff]
        %v6552 = vld [vmem:[%s6536 + $0x78] sm:$0xff]
        %v6553 = vld [vmem:[%s6536 + $0x80] sm:$0xff]
        %v6554 = vld [vmem:[%s6536 + $0x88] sm:$0xff]
        %v6555 = vld [vmem:[%s6536 + $0x90] sm:$0xff]
        %v6556 = vld [vmem:[%s6536 + $0x98] sm:$0xff]
        %v6557 = vld [vmem:[%s6536 + $0xa0] sm:$0xff]
        %v6558 = vld [vmem:[%s6536 + $0xa8] sm:$0xff]
        %v6559 = vld [vmem:[%s6536 + $0xb0] sm:$0xff]
        %v6560 = vld [vmem:[%s6536 + $0xb8] sm:$0xff]
        %v6561 = vld [vmem:[%s6536 + $0xc0] sm:$0xf]
        %v6563 = vsel %vm2680, %v6561, 0
        %6565 = vmatprep.subr.mxu0 0.0
        %6566 = vmatpush1.msra.mxu0 %v6552
        %6567 = vmatprep.subr.mxu0 0.0
        %6568 = vmatpush1.msra.mxu0 %v6551
        %6569 = vmatprep.subr.mxu0 0.0
        %6570 = vmatpush1.msra.mxu0 %v6550
        %6571 = vmatprep.subr.mxu0 0.0
        %6572 = vmatpush1.msra.mxu0 %v6549
        %6573 = vmatprep.subr.mxu0 0.0
        %6574 = vmatpush1.msra.mxu0 %v6548
        %6575 = vmatprep.subr.mxu0 0.0
        %6576 = vmatpush1.msra.mxu0 %v6547
        %6577 = vmatprep.subr.mxu0 0.0
        %6578 = vmatpush1.msra.mxu0 %v6546
        %6579 = vmatprep.subr.mxu0 0.0
        %6580 = vmatpush1.msra.mxu0 %v6545
        %6581 = vmatprep.subr.mxu0 0.0
        %6582 = vmatpush1.msra.mxu0 %v6544
        %6583 = vmatprep.subr.mxu0 0.0
        %6584 = vmatpush1.msra.mxu0 %v6543
        %6585 = vmatprep.subr.mxu0 0.0
        %6586 = vmatpush1.msra.mxu0 %v6542
        %6587 = vmatprep.subr.mxu0 0.0
        %6588 = vmatpush1.msra.mxu0 %v6541
        %6589 = vmatprep.subr.mxu0 0.0
        %6590 = vmatpush1.msra.mxu0 %v6540
        %6591 = vmatprep.subr.mxu0 0.0
        %6592 = vmatpush1.msra.mxu0 %v6539
        %6593 = vmatprep.subr.mxu0 0.0
        %6594 = vmatpush1.msra.mxu0 %v6538
        %6595 = vmatprep.subr.mxu0 0.0
        %6596 = vmatpush1.msra.mxu0 %v6537
        %6597 = vmatprep.subr.mxu0 0.0
        %6598 = vmatpush2.msra.mxu0 0.0
        %6599 = vmatprep.subr.mxu0 0.0
        %6600 = vmatpush2.msra.mxu0 0.0
        %6601 = vmatprep.subr.mxu0 0.0
        %6602 = vmatpush2.msra.mxu0 0.0
        %6603 = vmatprep.subr.mxu0 0.0
        %6604 = vmatpush2.msra.mxu0 0.0
        %6605 = vmatprep.subr.mxu0 0.0
        %6606 = vmatpush2.msra.mxu0 0.0
        %6607 = vmatprep.subr.mxu0 0.0
        %6608 = vmatpush2.msra.mxu0 0.0
        %6609 = vmatprep.subr.mxu0 0.0
        %6610 = vmatpush2.msra.mxu0 0.0
        %6611 = vmatprep.subr.mxu0 0.0
        %6612 = vmatpush2.msra.mxu0 %v6563
        %6613 = vmatprep.subr.mxu0 0.0
        %6614 = vmatpush2.msra.mxu0 %v6560
        %6615 = vmatprep.subr.mxu0 0.0
        %6616 = vmatpush2.msra.mxu0 %v6559
        %6617 = vmatprep.subr.mxu0 0.0
        %6618 = vmatpush2.msra.mxu0 %v6558
        %6619 = vmatprep.subr.mxu0 0.0
        %6620 = vmatpush2.msra.mxu0 %v6557
        %6621 = vmatprep.subr.mxu0 0.0
        %6622 = vmatpush2.msra.mxu0 %v6556
        %6623 = vmatprep.subr.mxu0 0.0
        %6624 = vmatpush2.msra.mxu0 %v6555
        %6625 = vmatprep.subr.mxu0 0.0
        %6626 = vmatpush2.msra.mxu0 %v6554
        %6627 = vmatprep.subr.mxu0 0.0
        %6628 = vmatpush2.msra.mxu0 %v6553
        %6629 = vmatprep.mubr.f32.mxu0 %v2678
        %6630 = vmatmul.mubr.f32.gmra.mxu0 %v2649
        %v6631 = vpop.f32.mrf.mxu0
        %v6632 = vadd.f32 0.0, %v6631
        %v6633 = vpop.f32.mrf.mxu0
        %6634 = vdwg.mxu0
        %s6635 = scalar_lea.vmem [#allocation8], 336
        %v6636 = vld [vmem:[%s6635] sm:$0xff]
        %v6637 = vld [vmem:[%s6635 + $0x8] sm:$0xff]
        %v6639 = vsel %vm2858, %v6636, 0
        %v6642 = vsel %vm2858, %v6637, 0
        %6644 = vmatprep.subr.mxu0 0.0
        %6645 = vmatpush1.msra.mxu0 0.0
        %6646 = vmatprep.subr.mxu0 0.0
        %6647 = vmatpush1.msra.mxu0 0.0
        %6648 = vmatprep.subr.mxu0 0.0
        %6649 = vmatpush1.msra.mxu0 0.0
        %6650 = vmatprep.subr.mxu0 0.0
        %6651 = vmatpush1.msra.mxu0 0.0
        %6652 = vmatprep.subr.mxu0 0.0
        %6653 = vmatpush1.msra.mxu0 0.0
        %6654 = vmatprep.subr.mxu0 0.0
        %6655 = vmatpush1.msra.mxu0 0.0
        %6656 = vmatprep.subr.mxu0 0.0
        %6657 = vmatpush1.msra.mxu0 0.0
        %6658 = vmatprep.subr.mxu0 0.0
        %6659 = vmatpush1.msra.mxu0 0.0
        %6660 = vmatprep.subr.mxu0 0.0
        %6661 = vmatpush1.msra.mxu0 0.0
        %6662 = vmatprep.subr.mxu0 0.0
        %6663 = vmatpush1.msra.mxu0 0.0
        %6664 = vmatprep.subr.mxu0 0.0
        %6665 = vmatpush1.msra.mxu0 0.0
        %6666 = vmatprep.subr.mxu0 0.0
        %6667 = vmatpush1.msra.mxu0 0.0
        %6668 = vmatprep.subr.mxu0 0.0
        %6669 = vmatpush1.msra.mxu0 0.0
        %6670 = vmatprep.subr.mxu0 0.0
        %6671 = vmatpush1.msra.mxu0 0.0
        %6672 = vmatprep.subr.mxu0 0.0
        %6673 = vmatpush1.msra.mxu0 0.0
        %6674 = vmatprep.subr.mxu0 0.0
        %6675 = vmatpush1.msra.mxu0 %v6632
        %6676 = vmatprep.subr.mxu0 0.0
        %6677 = vmatpush2.msra.mxu0 0.0
        %6678 = vmatprep.subr.mxu0 0.0
        %6679 = vmatpush2.msra.mxu0 0.0
        %6680 = vmatprep.subr.mxu0 0.0
        %6681 = vmatpush2.msra.mxu0 0.0
        %6682 = vmatprep.subr.mxu0 0.0
        %6683 = vmatpush2.msra.mxu0 0.0
        %6684 = vmatprep.subr.mxu0 0.0
        %6685 = vmatpush2.msra.mxu0 0.0
        %6686 = vmatprep.subr.mxu0 0.0
        %6687 = vmatpush2.msra.mxu0 0.0
        %6688 = vmatprep.subr.mxu0 0.0
        %6689 = vmatpush2.msra.mxu0 0.0
        %6690 = vmatprep.subr.mxu0 0.0
        %6691 = vmatpush2.msra.mxu0 0.0
        %6692 = vmatprep.subr.mxu0 0.0
        %6693 = vmatpush2.msra.mxu0 0.0
        %6694 = vmatprep.subr.mxu0 0.0
        %6695 = vmatpush2.msra.mxu0 0.0
        %6696 = vmatprep.subr.mxu0 0.0
        %6697 = vmatpush2.msra.mxu0 0.0
        %6698 = vmatprep.subr.mxu0 0.0
        %6699 = vmatpush2.msra.mxu0 0.0
        %6700 = vmatprep.subr.mxu0 0.0
        %6701 = vmatpush2.msra.mxu0 0.0
        %6702 = vmatprep.subr.mxu0 0.0
        %6703 = vmatpush2.msra.mxu0 0.0
        %6704 = vmatprep.subr.mxu0 0.0
        %6705 = vmatpush2.msra.mxu0 0.0
        %6706 = vmatprep.subr.mxu0 0.0
        %6707 = vmatpush2.msra.mxu0 0.0
        %6708 = vmatprep.mubr.f32.mxu0 0.0
        %6709 = vmatmul.mubr.f32.gmra.mxu0 %v6639
        %v6710 = vpop.f32.mrf.mxu0
        %v6711 = vadd.f32 0.0, %v6710
        %v6712 = vpop.f32.mrf.mxu0
        %6713 = vmatprep.mubr.f32.mxu0 0.0
        %6714 = vmatmul.mubr.f32.gmra.mxu0 %v6642
        %v6715 = vpop.f32.mrf.mxu0
        %v6716 = vadd.f32 0.0, %v6715
        %v6717 = vpop.f32.mrf.mxu0
        %6718 = vdwg.mxu0
        %v6719 = vadd.f32 %v6534, %v6711
        %v6720 = vadd.f32 %v6535, %v6716
        %s6721 = scalar_lea.vmem [#allocation11], 4400
        %v6722 = vld [vmem:[%s6721] sm:$0xff]
        %v6723 = vld [vmem:[%s6721 + $0x8] sm:$0xff]
        %v6724 = vld [vmem:[%s6721 + $0x10] sm:$0xff]
        %v6725 = vld [vmem:[%s6721 + $0x18] sm:$0xff]
        %v6726 = vld [vmem:[%s6721 + $0x20] sm:$0xff]
        %v6727 = vld [vmem:[%s6721 + $0x28] sm:$0xff]
        %v6728 = vld [vmem:[%s6721 + $0x30] sm:$0xff]
        %v6729 = vld [vmem:[%s6721 + $0x38] sm:$0xff]
        %v6730 = vld [vmem:[%s6721 + $0x40] sm:$0xff]
        %v6731 = vld [vmem:[%s6721 + $0x48] sm:$0xff]
        %v6732 = vld [vmem:[%s6721 + $0x50] sm:$0xff]
        %v6733 = vld [vmem:[%s6721 + $0x58] sm:$0xff]
        %v6734 = vld [vmem:[%s6721 + $0x60] sm:$0xff]
        %v6735 = vld [vmem:[%s6721 + $0x68] sm:$0xff]
        %v6736 = vld [vmem:[%s6721 + $0x70] sm:$0xff]
        %v6737 = vld [vmem:[%s6721 + $0x78] sm:$0xff]
        %v6738 = vld [vmem:[%s6721 + $0x80] sm:$0xff]
        %v6739 = vld [vmem:[%s6721 + $0x88] sm:$0xff]
        %v6740 = vld [vmem:[%s6721 + $0x90] sm:$0xff]
        %v6741 = vld [vmem:[%s6721 + $0x98] sm:$0xff]
        %v6742 = vld [vmem:[%s6721 + $0xa0] sm:$0xff]
        %v6743 = vld [vmem:[%s6721 + $0xa8] sm:$0xff]
        %v6744 = vld [vmem:[%s6721 + $0xb0] sm:$0xff]
        %v6745 = vld [vmem:[%s6721 + $0xb8] sm:$0xff]
        %v6746 = vld [vmem:[%s6721 + $0xc0] sm:$0xf]
        %v6748 = vsel %vm2680, %v6746, 0
        %6750 = vmatprep.subr.mxu0 0.0
        %6751 = vmatpush1.msra.mxu0 %v6737
        %6752 = vmatprep.subr.mxu0 0.0
        %6753 = vmatpush1.msra.mxu0 %v6736
        %6754 = vmatprep.subr.mxu0 0.0
        %6755 = vmatpush1.msra.mxu0 %v6735
        %6756 = vmatprep.subr.mxu0 0.0
        %6757 = vmatpush1.msra.mxu0 %v6734
        %6758 = vmatprep.subr.mxu0 0.0
        %6759 = vmatpush1.msra.mxu0 %v6733
        %6760 = vmatprep.subr.mxu0 0.0
        %6761 = vmatpush1.msra.mxu0 %v6732
        %6762 = vmatprep.subr.mxu0 0.0
        %6763 = vmatpush1.msra.mxu0 %v6731
        %6764 = vmatprep.subr.mxu0 0.0
        %6765 = vmatpush1.msra.mxu0 %v6730
        %6766 = vmatprep.subr.mxu0 0.0
        %6767 = vmatpush1.msra.mxu0 %v6729
        %6768 = vmatprep.subr.mxu0 0.0
        %6769 = vmatpush1.msra.mxu0 %v6728
        %6770 = vmatprep.subr.mxu0 0.0
        %6771 = vmatpush1.msra.mxu0 %v6727
        %6772 = vmatprep.subr.mxu0 0.0
        %6773 = vmatpush1.msra.mxu0 %v6726
        %6774 = vmatprep.subr.mxu0 0.0
        %6775 = vmatpush1.msra.mxu0 %v6725
        %6776 = vmatprep.subr.mxu0 0.0
        %6777 = vmatpush1.msra.mxu0 %v6724
        %6778 = vmatprep.subr.mxu0 0.0
        %6779 = vmatpush1.msra.mxu0 %v6723
        %6780 = vmatprep.subr.mxu0 0.0
        %6781 = vmatpush1.msra.mxu0 %v6722
        %6782 = vmatprep.subr.mxu0 0.0
        %6783 = vmatpush2.msra.mxu0 0.0
        %6784 = vmatprep.subr.mxu0 0.0
        %6785 = vmatpush2.msra.mxu0 0.0
        %6786 = vmatprep.subr.mxu0 0.0
        %6787 = vmatpush2.msra.mxu0 0.0
        %6788 = vmatprep.subr.mxu0 0.0
        %6789 = vmatpush2.msra.mxu0 0.0
        %6790 = vmatprep.subr.mxu0 0.0
        %6791 = vmatpush2.msra.mxu0 0.0
        %6792 = vmatprep.subr.mxu0 0.0
        %6793 = vmatpush2.msra.mxu0 0.0
        %6794 = vmatprep.subr.mxu0 0.0
        %6795 = vmatpush2.msra.mxu0 0.0
        %6796 = vmatprep.subr.mxu0 0.0
        %6797 = vmatpush2.msra.mxu0 %v6748
        %6798 = vmatprep.subr.mxu0 0.0
        %6799 = vmatpush2.msra.mxu0 %v6745
        %6800 = vmatprep.subr.mxu0 0.0
        %6801 = vmatpush2.msra.mxu0 %v6744
        %6802 = vmatprep.subr.mxu0 0.0
        %6803 = vmatpush2.msra.mxu0 %v6743
        %6804 = vmatprep.subr.mxu0 0.0
        %6805 = vmatpush2.msra.mxu0 %v6742
        %6806 = vmatprep.subr.mxu0 0.0
        %6807 = vmatpush2.msra.mxu0 %v6741
        %6808 = vmatprep.subr.mxu0 0.0
        %6809 = vmatpush2.msra.mxu0 %v6740
        %6810 = vmatprep.subr.mxu0 0.0
        %6811 = vmatpush2.msra.mxu0 %v6739
        %6812 = vmatprep.subr.mxu0 0.0
        %6813 = vmatpush2.msra.mxu0 %v6738
        %6814 = vmatprep.mubr.f32.mxu0 %v2678
        %6815 = vmatmul.mubr.f32.gmra.mxu0 %v2649
        %v6816 = vpop.f32.mrf.mxu0
        %v6817 = vadd.f32 0.0, %v6816
        %v6818 = vpop.f32.mrf.mxu0
        %6819 = vdwg.mxu0
        %s6820 = scalar_lea.vmem [#allocation8], 352
        %v6821 = vld [vmem:[%s6820] sm:$0xff]
        %v6822 = vld [vmem:[%s6820 + $0x8] sm:$0xff]
        %v6824 = vsel %vm2858, %v6821, 0
        %v6827 = vsel %vm2858, %v6822, 0
        %6829 = vmatprep.subr.mxu0 0.0
        %6830 = vmatpush1.msra.mxu0 0.0
        %6831 = vmatprep.subr.mxu0 0.0
        %6832 = vmatpush1.msra.mxu0 0.0
        %6833 = vmatprep.subr.mxu0 0.0
        %6834 = vmatpush1.msra.mxu0 0.0
        %6835 = vmatprep.subr.mxu0 0.0
        %6836 = vmatpush1.msra.mxu0 0.0
        %6837 = vmatprep.subr.mxu0 0.0
        %6838 = vmatpush1.msra.mxu0 0.0
        %6839 = vmatprep.subr.mxu0 0.0
        %6840 = vmatpush1.msra.mxu0 0.0
        %6841 = vmatprep.subr.mxu0 0.0
        %6842 = vmatpush1.msra.mxu0 0.0
        %6843 = vmatprep.subr.mxu0 0.0
        %6844 = vmatpush1.msra.mxu0 0.0
        %6845 = vmatprep.subr.mxu0 0.0
        %6846 = vmatpush1.msra.mxu0 0.0
        %6847 = vmatprep.subr.mxu0 0.0
        %6848 = vmatpush1.msra.mxu0 0.0
        %6849 = vmatprep.subr.mxu0 0.0
        %6850 = vmatpush1.msra.mxu0 0.0
        %6851 = vmatprep.subr.mxu0 0.0
        %6852 = vmatpush1.msra.mxu0 0.0
        %6853 = vmatprep.subr.mxu0 0.0
        %6854 = vmatpush1.msra.mxu0 0.0
        %6855 = vmatprep.subr.mxu0 0.0
        %6856 = vmatpush1.msra.mxu0 0.0
        %6857 = vmatprep.subr.mxu0 0.0
        %6858 = vmatpush1.msra.mxu0 0.0
        %6859 = vmatprep.subr.mxu0 0.0
        %6860 = vmatpush1.msra.mxu0 %v6817
        %6861 = vmatprep.subr.mxu0 0.0
        %6862 = vmatpush2.msra.mxu0 0.0
        %6863 = vmatprep.subr.mxu0 0.0
        %6864 = vmatpush2.msra.mxu0 0.0
        %6865 = vmatprep.subr.mxu0 0.0
        %6866 = vmatpush2.msra.mxu0 0.0
        %6867 = vmatprep.subr.mxu0 0.0
        %6868 = vmatpush2.msra.mxu0 0.0
        %6869 = vmatprep.subr.mxu0 0.0
        %6870 = vmatpush2.msra.mxu0 0.0
        %6871 = vmatprep.subr.mxu0 0.0
        %6872 = vmatpush2.msra.mxu0 0.0
        %6873 = vmatprep.subr.mxu0 0.0
        %6874 = vmatpush2.msra.mxu0 0.0
        %6875 = vmatprep.subr.mxu0 0.0
        %6876 = vmatpush2.msra.mxu0 0.0
        %6877 = vmatprep.subr.mxu0 0.0
        %6878 = vmatpush2.msra.mxu0 0.0
        %6879 = vmatprep.subr.mxu0 0.0
        %6880 = vmatpush2.msra.mxu0 0.0
        %6881 = vmatprep.subr.mxu0 0.0
        %6882 = vmatpush2.msra.mxu0 0.0
        %6883 = vmatprep.subr.mxu0 0.0
        %6884 = vmatpush2.msra.mxu0 0.0
        %6885 = vmatprep.subr.mxu0 0.0
        %6886 = vmatpush2.msra.mxu0 0.0
        %6887 = vmatprep.subr.mxu0 0.0
        %6888 = vmatpush2.msra.mxu0 0.0
        %6889 = vmatprep.subr.mxu0 0.0
        %6890 = vmatpush2.msra.mxu0 0.0
        %6891 = vmatprep.subr.mxu0 0.0
        %6892 = vmatpush2.msra.mxu0 0.0
        %6893 = vmatprep.mubr.f32.mxu0 0.0
        %6894 = vmatmul.mubr.f32.gmra.mxu0 %v6824
        %v6895 = vpop.f32.mrf.mxu0
        %v6896 = vadd.f32 0.0, %v6895
        %v6897 = vpop.f32.mrf.mxu0
        %6898 = vmatprep.mubr.f32.mxu0 0.0
        %6899 = vmatmul.mubr.f32.gmra.mxu0 %v6827
        %v6900 = vpop.f32.mrf.mxu0
        %v6901 = vadd.f32 0.0, %v6900
        %v6902 = vpop.f32.mrf.mxu0
        %6903 = vdwg.mxu0
        %v6904 = vadd.f32 %v6719, %v6896
        %v6905 = vadd.f32 %v6720, %v6901
        %s6906 = scalar_lea.vmem [#allocation11], 4600
        %v6907 = vld [vmem:[%s6906] sm:$0xff]
        %v6908 = vld [vmem:[%s6906 + $0x8] sm:$0xff]
        %v6909 = vld [vmem:[%s6906 + $0x10] sm:$0xff]
        %v6910 = vld [vmem:[%s6906 + $0x18] sm:$0xff]
        %v6911 = vld [vmem:[%s6906 + $0x20] sm:$0xff]
        %v6912 = vld [vmem:[%s6906 + $0x28] sm:$0xff]
        %v6913 = vld [vmem:[%s6906 + $0x30] sm:$0xff]
        %v6914 = vld [vmem:[%s6906 + $0x38] sm:$0xff]
        %v6915 = vld [vmem:[%s6906 + $0x40] sm:$0xff]
        %v6916 = vld [vmem:[%s6906 + $0x48] sm:$0xff]
        %v6917 = vld [vmem:[%s6906 + $0x50] sm:$0xff]
        %v6918 = vld [vmem:[%s6906 + $0x58] sm:$0xff]
        %v6919 = vld [vmem:[%s6906 + $0x60] sm:$0xff]
        %v6920 = vld [vmem:[%s6906 + $0x68] sm:$0xff]
        %v6921 = vld [vmem:[%s6906 + $0x70] sm:$0xff]
        %v6922 = vld [vmem:[%s6906 + $0x78] sm:$0xff]
        %v6923 = vld [vmem:[%s6906 + $0x80] sm:$0xff]
        %v6924 = vld [vmem:[%s6906 + $0x88] sm:$0xff]
        %v6925 = vld [vmem:[%s6906 + $0x90] sm:$0xff]
        %v6926 = vld [vmem:[%s6906 + $0x98] sm:$0xff]
        %v6927 = vld [vmem:[%s6906 + $0xa0] sm:$0xff]
        %v6928 = vld [vmem:[%s6906 + $0xa8] sm:$0xff]
        %v6929 = vld [vmem:[%s6906 + $0xb0] sm:$0xff]
        %v6930 = vld [vmem:[%s6906 + $0xb8] sm:$0xff]
        %v6931 = vld [vmem:[%s6906 + $0xc0] sm:$0xf]
        %v6933 = vsel %vm2680, %v6931, 0
        %6935 = vmatprep.subr.mxu0 0.0
        %6936 = vmatpush1.msra.mxu0 %v6922
        %6937 = vmatprep.subr.mxu0 0.0
        %6938 = vmatpush1.msra.mxu0 %v6921
        %6939 = vmatprep.subr.mxu0 0.0
        %6940 = vmatpush1.msra.mxu0 %v6920
        %6941 = vmatprep.subr.mxu0 0.0
        %6942 = vmatpush1.msra.mxu0 %v6919
        %6943 = vmatprep.subr.mxu0 0.0
        %6944 = vmatpush1.msra.mxu0 %v6918
        %6945 = vmatprep.subr.mxu0 0.0
        %6946 = vmatpush1.msra.mxu0 %v6917
        %6947 = vmatprep.subr.mxu0 0.0
        %6948 = vmatpush1.msra.mxu0 %v6916
        %6949 = vmatprep.subr.mxu0 0.0
        %6950 = vmatpush1.msra.mxu0 %v6915
        %6951 = vmatprep.subr.mxu0 0.0
        %6952 = vmatpush1.msra.mxu0 %v6914
        %6953 = vmatprep.subr.mxu0 0.0
        %6954 = vmatpush1.msra.mxu0 %v6913
        %6955 = vmatprep.subr.mxu0 0.0
        %6956 = vmatpush1.msra.mxu0 %v6912
        %6957 = vmatprep.subr.mxu0 0.0
        %6958 = vmatpush1.msra.mxu0 %v6911
        %6959 = vmatprep.subr.mxu0 0.0
        %6960 = vmatpush1.msra.mxu0 %v6910
        %6961 = vmatprep.subr.mxu0 0.0
        %6962 = vmatpush1.msra.mxu0 %v6909
        %6963 = vmatprep.subr.mxu0 0.0
        %6964 = vmatpush1.msra.mxu0 %v6908
        %6965 = vmatprep.subr.mxu0 0.0
        %6966 = vmatpush1.msra.mxu0 %v6907
        %6967 = vmatprep.subr.mxu0 0.0
        %6968 = vmatpush2.msra.mxu0 0.0
        %6969 = vmatprep.subr.mxu0 0.0
        %6970 = vmatpush2.msra.mxu0 0.0
        %6971 = vmatprep.subr.mxu0 0.0
        %6972 = vmatpush2.msra.mxu0 0.0
        %6973 = vmatprep.subr.mxu0 0.0
        %6974 = vmatpush2.msra.mxu0 0.0
        %6975 = vmatprep.subr.mxu0 0.0
        %6976 = vmatpush2.msra.mxu0 0.0
        %6977 = vmatprep.subr.mxu0 0.0
        %6978 = vmatpush2.msra.mxu0 0.0
        %6979 = vmatprep.subr.mxu0 0.0
        %6980 = vmatpush2.msra.mxu0 0.0
        %6981 = vmatprep.subr.mxu0 0.0
        %6982 = vmatpush2.msra.mxu0 %v6933
        %6983 = vmatprep.subr.mxu0 0.0
        %6984 = vmatpush2.msra.mxu0 %v6930
        %6985 = vmatprep.subr.mxu0 0.0
        %6986 = vmatpush2.msra.mxu0 %v6929
        %6987 = vmatprep.subr.mxu0 0.0
        %6988 = vmatpush2.msra.mxu0 %v6928
        %6989 = vmatprep.subr.mxu0 0.0
        %6990 = vmatpush2.msra.mxu0 %v6927
        %6991 = vmatprep.subr.mxu0 0.0
        %6992 = vmatpush2.msra.mxu0 %v6926
        %6993 = vmatprep.subr.mxu0 0.0
        %6994 = vmatpush2.msra.mxu0 %v6925
        %6995 = vmatprep.subr.mxu0 0.0
        %6996 = vmatpush2.msra.mxu0 %v6924
        %6997 = vmatprep.subr.mxu0 0.0
        %6998 = vmatpush2.msra.mxu0 %v6923
        %6999 = vmatprep.mubr.f32.mxu0 %v2678
        %7000 = vmatmul.mubr.f32.gmra.mxu0 %v2649
        %v7001 = vpop.f32.mrf.mxu0
        %v7002 = vadd.f32 0.0, %v7001
        %v7003 = vpop.f32.mrf.mxu0
        %7004 = vdwg.mxu0
        %s7005 = scalar_lea.vmem [#allocation8], 368
        %v7006 = vld [vmem:[%s7005] sm:$0xff]
        %v7007 = vld [vmem:[%s7005 + $0x8] sm:$0xff]
        %v7009 = vsel %vm2858, %v7006, 0
        %v7012 = vsel %vm2858, %v7007, 0
        %7014 = vmatprep.subr.mxu0 0.0
        %7015 = vmatpush1.msra.mxu0 0.0
        %7016 = vmatprep.subr.mxu0 0.0
        %7017 = vmatpush1.msra.mxu0 0.0
        %7018 = vmatprep.subr.mxu0 0.0
        %7019 = vmatpush1.msra.mxu0 0.0
        %7020 = vmatprep.subr.mxu0 0.0
        %7021 = vmatpush1.msra.mxu0 0.0
        %7022 = vmatprep.subr.mxu0 0.0
        %7023 = vmatpush1.msra.mxu0 0.0
        %7024 = vmatprep.subr.mxu0 0.0
        %7025 = vmatpush1.msra.mxu0 0.0
        %7026 = vmatprep.subr.mxu0 0.0
        %7027 = vmatpush1.msra.mxu0 0.0
        %7028 = vmatprep.subr.mxu0 0.0
        %7029 = vmatpush1.msra.mxu0 0.0
        %7030 = vmatprep.subr.mxu0 0.0
        %7031 = vmatpush1.msra.mxu0 0.0
        %7032 = vmatprep.subr.mxu0 0.0
        %7033 = vmatpush1.msra.mxu0 0.0
        %7034 = vmatprep.subr.mxu0 0.0
        %7035 = vmatpush1.msra.mxu0 0.0
        %7036 = vmatprep.subr.mxu0 0.0
        %7037 = vmatpush1.msra.mxu0 0.0
        %7038 = vmatprep.subr.mxu0 0.0
        %7039 = vmatpush1.msra.mxu0 0.0
        %7040 = vmatprep.subr.mxu0 0.0
        %7041 = vmatpush1.msra.mxu0 0.0
        %7042 = vmatprep.subr.mxu0 0.0
        %7043 = vmatpush1.msra.mxu0 0.0
        %7044 = vmatprep.subr.mxu0 0.0
        %7045 = vmatpush1.msra.mxu0 %v7002
        %7046 = vmatprep.subr.mxu0 0.0
        %7047 = vmatpush2.msra.mxu0 0.0
        %7048 = vmatprep.subr.mxu0 0.0
        %7049 = vmatpush2.msra.mxu0 0.0
        %7050 = vmatprep.subr.mxu0 0.0
        %7051 = vmatpush2.msra.mxu0 0.0
        %7052 = vmatprep.subr.mxu0 0.0
        %7053 = vmatpush2.msra.mxu0 0.0
        %7054 = vmatprep.subr.mxu0 0.0
        %7055 = vmatpush2.msra.mxu0 0.0
        %7056 = vmatprep.subr.mxu0 0.0
        %7057 = vmatpush2.msra.mxu0 0.0
        %7058 = vmatprep.subr.mxu0 0.0
        %7059 = vmatpush2.msra.mxu0 0.0
        %7060 = vmatprep.subr.mxu0 0.0
        %7061 = vmatpush2.msra.mxu0 0.0
        %7062 = vmatprep.subr.mxu0 0.0
        %7063 = vmatpush2.msra.mxu0 0.0
        %7064 = vmatprep.subr.mxu0 0.0
        %7065 = vmatpush2.msra.mxu0 0.0
        %7066 = vmatprep.subr.mxu0 0.0
        %7067 = vmatpush2.msra.mxu0 0.0
        %7068 = vmatprep.subr.mxu0 0.0
        %7069 = vmatpush2.msra.mxu0 0.0
        %7070 = vmatprep.subr.mxu0 0.0
        %7071 = vmatpush2.msra.mxu0 0.0
        %7072 = vmatprep.subr.mxu0 0.0
        %7073 = vmatpush2.msra.mxu0 0.0
        %7074 = vmatprep.subr.mxu0 0.0
        %7075 = vmatpush2.msra.mxu0 0.0
        %7076 = vmatprep.subr.mxu0 0.0
        %7077 = vmatpush2.msra.mxu0 0.0
        %7078 = vmatprep.mubr.f32.mxu0 0.0
        %7079 = vmatmul.mubr.f32.gmra.mxu0 %v7009
        %v7080 = vpop.f32.mrf.mxu0
        %v7081 = vadd.f32 0.0, %v7080
        %v7082 = vpop.f32.mrf.mxu0
        %7083 = vmatprep.mubr.f32.mxu0 0.0
        %7084 = vmatmul.mubr.f32.gmra.mxu0 %v7012
        %v7085 = vpop.f32.mrf.mxu0
        %v7086 = vadd.f32 0.0, %v7085
        %v7087 = vpop.f32.mrf.mxu0
        %7088 = vdwg.mxu0
        %v7089 = vadd.f32 %v6904, %v7081
        %v7090 = vadd.f32 %v6905, %v7086
        %s7091 = scalar_lea.vmem [#allocation11], 4800
        %v7092 = vld [vmem:[%s7091] sm:$0xff]
        %v7093 = vld [vmem:[%s7091 + $0x8] sm:$0xff]
        %v7094 = vld [vmem:[%s7091 + $0x10] sm:$0xff]
        %v7095 = vld [vmem:[%s7091 + $0x18] sm:$0xff]
        %v7096 = vld [vmem:[%s7091 + $0x20] sm:$0xff]
        %v7097 = vld [vmem:[%s7091 + $0x28] sm:$0xff]
        %v7098 = vld [vmem:[%s7091 + $0x30] sm:$0xff]
        %v7099 = vld [vmem:[%s7091 + $0x38] sm:$0xff]
        %v7100 = vld [vmem:[%s7091 + $0x40] sm:$0xff]
        %v7101 = vld [vmem:[%s7091 + $0x48] sm:$0xff]
        %v7102 = vld [vmem:[%s7091 + $0x50] sm:$0xff]
        %v7103 = vld [vmem:[%s7091 + $0x58] sm:$0xff]
        %v7104 = vld [vmem:[%s7091 + $0x60] sm:$0xff]
        %v7105 = vld [vmem:[%s7091 + $0x68] sm:$0xff]
        %v7106 = vld [vmem:[%s7091 + $0x70] sm:$0xff]
        %v7107 = vld [vmem:[%s7091 + $0x78] sm:$0xff]
        %v7108 = vld [vmem:[%s7091 + $0x80] sm:$0xff]
        %v7109 = vld [vmem:[%s7091 + $0x88] sm:$0xff]
        %v7110 = vld [vmem:[%s7091 + $0x90] sm:$0xff]
        %v7111 = vld [vmem:[%s7091 + $0x98] sm:$0xff]
        %v7112 = vld [vmem:[%s7091 + $0xa0] sm:$0xff]
        %v7113 = vld [vmem:[%s7091 + $0xa8] sm:$0xff]
        %v7114 = vld [vmem:[%s7091 + $0xb0] sm:$0xff]
        %v7115 = vld [vmem:[%s7091 + $0xb8] sm:$0xff]
        %v7116 = vld [vmem:[%s7091 + $0xc0] sm:$0xf]
        %v7118 = vsel %vm2680, %v7116, 0
        %7120 = vmatprep.subr.mxu0 0.0
        %7121 = vmatpush1.msra.mxu0 %v7107
        %7122 = vmatprep.subr.mxu0 0.0
        %7123 = vmatpush1.msra.mxu0 %v7106
        %7124 = vmatprep.subr.mxu0 0.0
        %7125 = vmatpush1.msra.mxu0 %v7105
        %7126 = vmatprep.subr.mxu0 0.0
        %7127 = vmatpush1.msra.mxu0 %v7104
        %7128 = vmatprep.subr.mxu0 0.0
        %7129 = vmatpush1.msra.mxu0 %v7103
        %7130 = vmatprep.subr.mxu0 0.0
        %7131 = vmatpush1.msra.mxu0 %v7102
        %7132 = vmatprep.subr.mxu0 0.0
        %7133 = vmatpush1.msra.mxu0 %v7101
        %7134 = vmatprep.subr.mxu0 0.0
        %7135 = vmatpush1.msra.mxu0 %v7100
        %7136 = vmatprep.subr.mxu0 0.0
        %7137 = vmatpush1.msra.mxu0 %v7099
        %7138 = vmatprep.subr.mxu0 0.0
        %7139 = vmatpush1.msra.mxu0 %v7098
        %7140 = vmatprep.subr.mxu0 0.0
        %7141 = vmatpush1.msra.mxu0 %v7097
        %7142 = vmatprep.subr.mxu0 0.0
        %7143 = vmatpush1.msra.mxu0 %v7096
        %7144 = vmatprep.subr.mxu0 0.0
        %7145 = vmatpush1.msra.mxu0 %v7095
        %7146 = vmatprep.subr.mxu0 0.0
        %7147 = vmatpush1.msra.mxu0 %v7094
        %7148 = vmatprep.subr.mxu0 0.0
        %7149 = vmatpush1.msra.mxu0 %v7093
        %7150 = vmatprep.subr.mxu0 0.0
        %7151 = vmatpush1.msra.mxu0 %v7092
        %7152 = vmatprep.subr.mxu0 0.0
        %7153 = vmatpush2.msra.mxu0 0.0
        %7154 = vmatprep.subr.mxu0 0.0
        %7155 = vmatpush2.msra.mxu0 0.0
        %7156 = vmatprep.subr.mxu0 0.0
        %7157 = vmatpush2.msra.mxu0 0.0
        %7158 = vmatprep.subr.mxu0 0.0
        %7159 = vmatpush2.msra.mxu0 0.0
        %7160 = vmatprep.subr.mxu0 0.0
        %7161 = vmatpush2.msra.mxu0 0.0
        %7162 = vmatprep.subr.mxu0 0.0
        %7163 = vmatpush2.msra.mxu0 0.0
        %7164 = vmatprep.subr.mxu0 0.0
        %7165 = vmatpush2.msra.mxu0 0.0
        %7166 = vmatprep.subr.mxu0 0.0
        %7167 = vmatpush2.msra.mxu0 %v7118
        %7168 = vmatprep.subr.mxu0 0.0
        %7169 = vmatpush2.msra.mxu0 %v7115
        %7170 = vmatprep.subr.mxu0 0.0
        %7171 = vmatpush2.msra.mxu0 %v7114
        %7172 = vmatprep.subr.mxu0 0.0
        %7173 = vmatpush2.msra.mxu0 %v7113
        %7174 = vmatprep.subr.mxu0 0.0
        %7175 = vmatpush2.msra.mxu0 %v7112
        %7176 = vmatprep.subr.mxu0 0.0
        %7177 = vmatpush2.msra.mxu0 %v7111
        %7178 = vmatprep.subr.mxu0 0.0
        %7179 = vmatpush2.msra.mxu0 %v7110
        %7180 = vmatprep.subr.mxu0 0.0
        %7181 = vmatpush2.msra.mxu0 %v7109
        %7182 = vmatprep.subr.mxu0 0.0
        %7183 = vmatpush2.msra.mxu0 %v7108
        %7184 = vmatprep.mubr.f32.mxu0 %v2678
        %7185 = vmatmul.mubr.f32.gmra.mxu0 %v2649
        %v7186 = vpop.f32.mrf.mxu0
        %v7187 = vadd.f32 0.0, %v7186
        %v7188 = vpop.f32.mrf.mxu0
        %7189 = vdwg.mxu0
        %s7190 = scalar_lea.vmem [#allocation8], 384
        %v7191 = vld [vmem:[%s7190] sm:$0xff]
        %v7192 = vld [vmem:[%s7190 + $0x8] sm:$0xff]
        %v7194 = vsel %vm2858, %v7191, 0
        %v7197 = vsel %vm2858, %v7192, 0
        %7199 = vmatprep.subr.mxu0 0.0
        %7200 = vmatpush1.msra.mxu0 0.0
        %7201 = vmatprep.subr.mxu0 0.0
        %7202 = vmatpush1.msra.mxu0 0.0
        %7203 = vmatprep.subr.mxu0 0.0
        %7204 = vmatpush1.msra.mxu0 0.0
        %7205 = vmatprep.subr.mxu0 0.0
        %7206 = vmatpush1.msra.mxu0 0.0
        %7207 = vmatprep.subr.mxu0 0.0
        %7208 = vmatpush1.msra.mxu0 0.0
        %7209 = vmatprep.subr.mxu0 0.0
        %7210 = vmatpush1.msra.mxu0 0.0
        %7211 = vmatprep.subr.mxu0 0.0
        %7212 = vmatpush1.msra.mxu0 0.0
        %7213 = vmatprep.subr.mxu0 0.0
        %7214 = vmatpush1.msra.mxu0 0.0
        %7215 = vmatprep.subr.mxu0 0.0
        %7216 = vmatpush1.msra.mxu0 0.0
        %7217 = vmatprep.subr.mxu0 0.0
        %7218 = vmatpush1.msra.mxu0 0.0
        %7219 = vmatprep.subr.mxu0 0.0
        %7220 = vmatpush1.msra.mxu0 0.0
        %7221 = vmatprep.subr.mxu0 0.0
        %7222 = vmatpush1.msra.mxu0 0.0
        %7223 = vmatprep.subr.mxu0 0.0
        %7224 = vmatpush1.msra.mxu0 0.0
        %7225 = vmatprep.subr.mxu0 0.0
        %7226 = vmatpush1.msra.mxu0 0.0
        %7227 = vmatprep.subr.mxu0 0.0
        %7228 = vmatpush1.msra.mxu0 0.0
        %7229 = vmatprep.subr.mxu0 0.0
        %7230 = vmatpush1.msra.mxu0 %v7187
        %7231 = vmatprep.subr.mxu0 0.0
        %7232 = vmatpush2.msra.mxu0 0.0
        %7233 = vmatprep.subr.mxu0 0.0
        %7234 = vmatpush2.msra.mxu0 0.0
        %7235 = vmatprep.subr.mxu0 0.0
        %7236 = vmatpush2.msra.mxu0 0.0
        %7237 = vmatprep.subr.mxu0 0.0
        %7238 = vmatpush2.msra.mxu0 0.0
        %7239 = vmatprep.subr.mxu0 0.0
        %7240 = vmatpush2.msra.mxu0 0.0
        %7241 = vmatprep.subr.mxu0 0.0
        %7242 = vmatpush2.msra.mxu0 0.0
        %7243 = vmatprep.subr.mxu0 0.0
        %7244 = vmatpush2.msra.mxu0 0.0
        %7245 = vmatprep.subr.mxu0 0.0
        %7246 = vmatpush2.msra.mxu0 0.0
        %7247 = vmatprep.subr.mxu0 0.0
        %7248 = vmatpush2.msra.mxu0 0.0
        %7249 = vmatprep.subr.mxu0 0.0
        %7250 = vmatpush2.msra.mxu0 0.0
        %7251 = vmatprep.subr.mxu0 0.0
        %7252 = vmatpush2.msra.mxu0 0.0
        %7253 = vmatprep.subr.mxu0 0.0
        %7254 = vmatpush2.msra.mxu0 0.0
        %7255 = vmatprep.subr.mxu0 0.0
        %7256 = vmatpush2.msra.mxu0 0.0
        %7257 = vmatprep.subr.mxu0 0.0
        %7258 = vmatpush2.msra.mxu0 0.0
        %7259 = vmatprep.subr.mxu0 0.0
        %7260 = vmatpush2.msra.mxu0 0.0
        %7261 = vmatprep.subr.mxu0 0.0
        %7262 = vmatpush2.msra.mxu0 0.0
        %7263 = vmatprep.mubr.f32.mxu0 0.0
        %7264 = vmatmul.mubr.f32.gmra.mxu0 %v7194
        %v7265 = vpop.f32.mrf.mxu0
        %v7266 = vadd.f32 0.0, %v7265
        %v7267 = vpop.f32.mrf.mxu0
        %7268 = vmatprep.mubr.f32.mxu0 0.0
        %7269 = vmatmul.mubr.f32.gmra.mxu0 %v7197
        %v7270 = vpop.f32.mrf.mxu0
        %v7271 = vadd.f32 0.0, %v7270
        %v7272 = vpop.f32.mrf.mxu0
        %7273 = vdwg.mxu0
        %v7274 = vadd.f32 %v7089, %v7266
        %v7275 = vadd.f32 %v7090, %v7271
        %v7276 = vld [vmem:[#allocation10] sm:$0xff]
        %v7277 = vld [vmem:[#allocation10 + $0x8] sm:$0xff]
        %7279 = vset.pattern.permute.xlu0 0
        %7280 = vperm.xlu0 %7279, %v7276
        %v7281 = vpop.permute.xlu0 %7280
        %7284 = vset.pattern.permute.xlu0 0
        %7285 = vperm.xlu0 %7284, %v7277
        %v7286 = vpop.permute.xlu0 %7285
        %v7288 = vadd.f32 %v7274, %v7281
        %v7289 = vadd.f32 %v7275, %v7286
        %v7290 = vmax.f32 %v7288, 0.0
        %v7291 = vmax.f32 %v7289, 0.0
        %v7292 = vld [vmem:[#allocation13] sm:$0xff]
        %v7293 = vld [vmem:[#allocation13 + $0x8] sm:$0xff]
        %v7294 = vld [vmem:[#allocation13 + $0x10] sm:$0xff]
        %v7295 = vld [vmem:[#allocation13 + $0x18] sm:$0xff]
        %v7296 = vld [vmem:[#allocation13 + $0x20] sm:$0xff]
        %v7297 = vld [vmem:[#allocation13 + $0x28] sm:$0xff]
        %v7298 = vld [vmem:[#allocation13 + $0x30] sm:$0xff]
        %v7299 = vld [vmem:[#allocation13 + $0x38] sm:$0xff]
        %v7300 = vld [vmem:[#allocation13 + $0x40] sm:$0xff]
        %v7301 = vld [vmem:[#allocation13 + $0x48] sm:$0xff]
        %v7302 = vld [vmem:[#allocation13 + $0x50] sm:$0xff]
        %v7303 = vld [vmem:[#allocation13 + $0x58] sm:$0xff]
        %v7304 = vld [vmem:[#allocation13 + $0x60] sm:$0xf]
        %vm7305 = vcmask 818176
        %v7307 = vsel %vm7305, %v7290, 0
        %v7310 = vsel %vm7305, %v7291, 0
        %v7313 = vsel %vm2680, %v7304, 0
        %7315 = vmatprep.subr.mxu0 0.0
        %7316 = vmatpush1.msra.mxu0 0.0
        %7317 = vmatprep.subr.mxu0 0.0
        %7318 = vmatpush1.msra.mxu0 0.0
        %7319 = vmatprep.subr.mxu0 0.0
        %7320 = vmatpush1.msra.mxu0 0.0
        %7321 = vmatprep.subr.mxu0 0.0
        %7322 = vmatpush1.msra.mxu0 %v7313
        %7323 = vmatprep.subr.mxu0 0.0
        %7324 = vmatpush1.msra.mxu0 %v7303
        %7325 = vmatprep.subr.mxu0 0.0
        %7326 = vmatpush1.msra.mxu0 %v7302
        %7327 = vmatprep.subr.mxu0 0.0
        %7328 = vmatpush1.msra.mxu0 %v7301
        %7329 = vmatprep.subr.mxu0 0.0
        %7330 = vmatpush1.msra.mxu0 %v7300
        %7331 = vmatprep.subr.mxu0 0.0
        %7332 = vmatpush1.msra.mxu0 %v7299
        %7333 = vmatprep.subr.mxu0 0.0
        %7334 = vmatpush1.msra.mxu0 %v7298
        %7335 = vmatprep.subr.mxu0 0.0
        %7336 = vmatpush1.msra.mxu0 %v7297
        %7337 = vmatprep.subr.mxu0 0.0
        %7338 = vmatpush1.msra.mxu0 %v7296
        %7339 = vmatprep.subr.mxu0 0.0
        %7340 = vmatpush1.msra.mxu0 %v7295
        %7341 = vmatprep.subr.mxu0 0.0
        %7342 = vmatpush1.msra.mxu0 %v7294
        %7343 = vmatprep.subr.mxu0 0.0
        %7344 = vmatpush1.msra.mxu0 %v7293
        %7345 = vmatprep.subr.mxu0 0.0
        %7346 = vmatpush1.msra.mxu0 %v7292
        %7347 = vmatprep.subr.mxu0 0.0
        %7348 = vmatpush2.msra.mxu0 0.0
        %7349 = vmatprep.subr.mxu0 0.0
        %7350 = vmatpush2.msra.mxu0 0.0
        %7351 = vmatprep.subr.mxu0 0.0
        %7352 = vmatpush2.msra.mxu0 0.0
        %7353 = vmatprep.subr.mxu0 0.0
        %7354 = vmatpush2.msra.mxu0 0.0
        %7355 = vmatprep.subr.mxu0 0.0
        %7356 = vmatpush2.msra.mxu0 0.0
        %7357 = vmatprep.subr.mxu0 0.0
        %7358 = vmatpush2.msra.mxu0 0.0
        %7359 = vmatprep.subr.mxu0 0.0
        %7360 = vmatpush2.msra.mxu0 0.0
        %7361 = vmatprep.subr.mxu0 0.0
        %7362 = vmatpush2.msra.mxu0 0.0
        %7363 = vmatprep.subr.mxu0 0.0
        %7364 = vmatpush2.msra.mxu0 0.0
        %7365 = vmatprep.subr.mxu0 0.0
        %7366 = vmatpush2.msra.mxu0 0.0
        %7367 = vmatprep.subr.mxu0 0.0
        %7368 = vmatpush2.msra.mxu0 0.0
        %7369 = vmatprep.subr.mxu0 0.0
        %7370 = vmatpush2.msra.mxu0 0.0
        %7371 = vmatprep.subr.mxu0 0.0
        %7372 = vmatpush2.msra.mxu0 0.0
        %7373 = vmatprep.subr.mxu0 0.0
        %7374 = vmatpush2.msra.mxu0 0.0
        %7375 = vmatprep.subr.mxu0 0.0
        %7376 = vmatpush2.msra.mxu0 0.0
        %7377 = vmatprep.subr.mxu0 0.0
        %7378 = vmatpush2.msra.mxu0 0.0
        %7379 = vmatprep.mubr.f32.mxu0 0.0
        %7380 = vmatmul.mubr.f32.gmra.mxu0 %v7307
        %v7381 = vpop.f32.mrf.mxu0
        %v7382 = vadd.f32 0.0, %v7381
        %v7383 = vpop.f32.mrf.mxu0
        %7384 = vmatprep.mubr.f32.mxu0 0.0
        %7385 = vmatmul.mubr.f32.gmra.mxu0 %v7310
        %v7386 = vpop.f32.mrf.mxu0
        %v7387 = vadd.f32 0.0, %v7386
        %v7388 = vpop.f32.mrf.mxu0
        %7389 = vdwg.mxu0
        %s7390 = scalar_lea.vmem [#allocation13], 104
        %v7391 = vld [vmem:[%s7390] sm:$0xff]
        %v7392 = vld [vmem:[%s7390 + $0x8] sm:$0xff]
        %v7393 = vld [vmem:[%s7390 + $0x10] sm:$0xff]
        %v7394 = vld [vmem:[%s7390 + $0x18] sm:$0xff]
        %v7395 = vld [vmem:[%s7390 + $0x20] sm:$0xff]
        %v7396 = vld [vmem:[%s7390 + $0x28] sm:$0xff]
        %v7397 = vld [vmem:[%s7390 + $0x30] sm:$0xff]
        %v7398 = vld [vmem:[%s7390 + $0x38] sm:$0xff]
        %v7399 = vld [vmem:[%s7390 + $0x40] sm:$0xff]
        %v7400 = vld [vmem:[%s7390 + $0x48] sm:$0xff]
        %v7401 = vld [vmem:[%s7390 + $0x50] sm:$0xff]
        %v7402 = vld [vmem:[%s7390 + $0x58] sm:$0xff]
        %v7403 = vld [vmem:[%s7390 + $0x60] sm:$0xf]
        %v7405 = vsel %vm2680, %v7403, 0
        %7407 = vmatprep.subr.mxu0 0.0
        %7408 = vmatpush1.msra.mxu0 0.0
        %7409 = vmatprep.subr.mxu0 0.0
        %7410 = vmatpush1.msra.mxu0 0.0
        %7411 = vmatprep.subr.mxu0 0.0
        %7412 = vmatpush1.msra.mxu0 0.0
        %7413 = vmatprep.subr.mxu0 0.0
        %7414 = vmatpush1.msra.mxu0 %v7405
        %7415 = vmatprep.subr.mxu0 0.0
        %7416 = vmatpush1.msra.mxu0 %v7402
        %7417 = vmatprep.subr.mxu0 0.0
        %7418 = vmatpush1.msra.mxu0 %v7401
        %7419 = vmatprep.subr.mxu0 0.0
        %7420 = vmatpush1.msra.mxu0 %v7400
        %7421 = vmatprep.subr.mxu0 0.0
        %7422 = vmatpush1.msra.mxu0 %v7399
        %7423 = vmatprep.subr.mxu0 0.0
        %7424 = vmatpush1.msra.mxu0 %v7398
        %7425 = vmatprep.subr.mxu0 0.0
        %7426 = vmatpush1.msra.mxu0 %v7397
        %7427 = vmatprep.subr.mxu0 0.0
        %7428 = vmatpush1.msra.mxu0 %v7396
        %7429 = vmatprep.subr.mxu0 0.0
        %7430 = vmatpush1.msra.mxu0 %v7395
        %7431 = vmatprep.subr.mxu0 0.0
        %7432 = vmatpush1.msra.mxu0 %v7394
        %7433 = vmatprep.subr.mxu0 0.0
        %7434 = vmatpush1.msra.mxu0 %v7393
        %7435 = vmatprep.subr.mxu0 0.0
        %7436 = vmatpush1.msra.mxu0 %v7392
        %7437 = vmatprep.subr.mxu0 0.0
        %7438 = vmatpush1.msra.mxu0 %v7391
        %7439 = vmatprep.subr.mxu0 0.0
        %7440 = vmatpush2.msra.mxu0 0.0
        %7441 = vmatprep.subr.mxu0 0.0
        %7442 = vmatpush2.msra.mxu0 0.0
        %7443 = vmatprep.subr.mxu0 0.0
        %7444 = vmatpush2.msra.mxu0 0.0
        %7445 = vmatprep.subr.mxu0 0.0
        %7446 = vmatpush2.msra.mxu0 0.0
        %7447 = vmatprep.subr.mxu0 0.0
        %7448 = vmatpush2.msra.mxu0 0.0
        %7449 = vmatprep.subr.mxu0 0.0
        %7450 = vmatpush2.msra.mxu0 0.0
        %7451 = vmatprep.subr.mxu0 0.0
        %7452 = vmatpush2.msra.mxu0 0.0
        %7453 = vmatprep.subr.mxu0 0.0
        %7454 = vmatpush2.msra.mxu0 0.0
        %7455 = vmatprep.subr.mxu0 0.0
        %7456 = vmatpush2.msra.mxu0 0.0
        %7457 = vmatprep.subr.mxu0 0.0
        %7458 = vmatpush2.msra.mxu0 0.0
        %7459 = vmatprep.subr.mxu0 0.0
        %7460 = vmatpush2.msra.mxu0 0.0
        %7461 = vmatprep.subr.mxu0 0.0
        %7462 = vmatpush2.msra.mxu0 0.0
        %7463 = vmatprep.subr.mxu0 0.0
        %7464 = vmatpush2.msra.mxu0 0.0
        %7465 = vmatprep.subr.mxu0 0.0
        %7466 = vmatpush2.msra.mxu0 0.0
        %7467 = vmatprep.subr.mxu0 0.0
        %7468 = vmatpush2.msra.mxu0 0.0
        %7469 = vmatprep.subr.mxu0 0.0
        %7470 = vmatpush2.msra.mxu0 0.0
        %7471 = vmatprep.mubr.f32.mxu0 0.0
        %7472 = vmatmul.mubr.f32.gmra.mxu0 %v7307
        %v7473 = vpop.f32.mrf.mxu0
        %v7474 = vadd.f32 0.0, %v7473
        %v7475 = vpop.f32.mrf.mxu0
        %7476 = vmatprep.mubr.f32.mxu0 0.0
        %7477 = vmatmul.mubr.f32.gmra.mxu0 %v7310
        %v7478 = vpop.f32.mrf.mxu0
        %v7479 = vadd.f32 0.0, %v7478
        %v7480 = vpop.f32.mrf.mxu0
        %7481 = vdwg.mxu0
        %v7482 = vmax.f32 %v7382, %v7474
        %v7483 = vmax.f32 %v7387, %v7479
        %s7484 = scalar_lea.vmem [#allocation13], 208
        %v7485 = vld [vmem:[%s7484] sm:$0xff]
        %v7486 = vld [vmem:[%s7484 + $0x8] sm:$0xff]
        %v7487 = vld [vmem:[%s7484 + $0x10] sm:$0xff]
        %v7488 = vld [vmem:[%s7484 + $0x18] sm:$0xff]
        %v7489 = vld [vmem:[%s7484 + $0x20] sm:$0xff]
        %v7490 = vld [vmem:[%s7484 + $0x28] sm:$0xff]
        %v7491 = vld [vmem:[%s7484 + $0x30] sm:$0xff]
        %v7492 = vld [vmem:[%s7484 + $0x38] sm:$0xff]
        %v7493 = vld [vmem:[%s7484 + $0x40] sm:$0xff]
        %v7494 = vld [vmem:[%s7484 + $0x48] sm:$0xff]
        %v7495 = vld [vmem:[%s7484 + $0x50] sm:$0xff]
        %v7496 = vld [vmem:[%s7484 + $0x58] sm:$0xff]
        %v7497 = vld [vmem:[%s7484 + $0x60] sm:$0xf]
        %v7499 = vsel %vm2680, %v7497, 0
        %7501 = vmatprep.subr.mxu0 0.0
        %7502 = vmatpush1.msra.mxu0 0.0
        %7503 = vmatprep.subr.mxu0 0.0
        %7504 = vmatpush1.msra.mxu0 0.0
        %7505 = vmatprep.subr.mxu0 0.0
        %7506 = vmatpush1.msra.mxu0 0.0
        %7507 = vmatprep.subr.mxu0 0.0
        %7508 = vmatpush1.msra.mxu0 %v7499
        %7509 = vmatprep.subr.mxu0 0.0
        %7510 = vmatpush1.msra.mxu0 %v7496
        %7511 = vmatprep.subr.mxu0 0.0
        %7512 = vmatpush1.msra.mxu0 %v7495
        %7513 = vmatprep.subr.mxu0 0.0
        %7514 = vmatpush1.msra.mxu0 %v7494
        %7515 = vmatprep.subr.mxu0 0.0
        %7516 = vmatpush1.msra.mxu0 %v7493
        %7517 = vmatprep.subr.mxu0 0.0
        %7518 = vmatpush1.msra.mxu0 %v7492
        %7519 = vmatprep.subr.mxu0 0.0
        %7520 = vmatpush1.msra.mxu0 %v7491
        %7521 = vmatprep.subr.mxu0 0.0
        %7522 = vmatpush1.msra.mxu0 %v7490
        %7523 = vmatprep.subr.mxu0 0.0
        %7524 = vmatpush1.msra.mxu0 %v7489
        %7525 = vmatprep.subr.mxu0 0.0
        %7526 = vmatpush1.msra.mxu0 %v7488
        %7527 = vmatprep.subr.mxu0 0.0
        %7528 = vmatpush1.msra.mxu0 %v7487
        %7529 = vmatprep.subr.mxu0 0.0
        %7530 = vmatpush1.msra.mxu0 %v7486
        %7531 = vmatprep.subr.mxu0 0.0
        %7532 = vmatpush1.msra.mxu0 %v7485
        %7533 = vmatprep.subr.mxu0 0.0
        %7534 = vmatpush2.msra.mxu0 0.0
        %7535 = vmatprep.subr.mxu0 0.0
        %7536 = vmatpush2.msra.mxu0 0.0
        %7537 = vmatprep.subr.mxu0 0.0
        %7538 = vmatpush2.msra.mxu0 0.0
        %7539 = vmatprep.subr.mxu0 0.0
        %7540 = vmatpush2.msra.mxu0 0.0
        %7541 = vmatprep.subr.mxu0 0.0
        %7542 = vmatpush2.msra.mxu0 0.0
        %7543 = vmatprep.subr.mxu0 0.0
        %7544 = vmatpush2.msra.mxu0 0.0
        %7545 = vmatprep.subr.mxu0 0.0
        %7546 = vmatpush2.msra.mxu0 0.0
        %7547 = vmatprep.subr.mxu0 0.0
        %7548 = vmatpush2.msra.mxu0 0.0
        %7549 = vmatprep.subr.mxu0 0.0
        %7550 = vmatpush2.msra.mxu0 0.0
        %7551 = vmatprep.subr.mxu0 0.0
        %7552 = vmatpush2.msra.mxu0 0.0
        %7553 = vmatprep.subr.mxu0 0.0
        %7554 = vmatpush2.msra.mxu0 0.0
        %7555 = vmatprep.subr.mxu0 0.0
        %7556 = vmatpush2.msra.mxu0 0.0
        %7557 = vmatprep.subr.mxu0 0.0
        %7558 = vmatpush2.msra.mxu0 0.0
        %7559 = vmatprep.subr.mxu0 0.0
        %7560 = vmatpush2.msra.mxu0 0.0
        %7561 = vmatprep.subr.mxu0 0.0
        %7562 = vmatpush2.msra.mxu0 0.0
        %7563 = vmatprep.subr.mxu0 0.0
        %7564 = vmatpush2.msra.mxu0 0.0
        %7565 = vmatprep.mubr.f32.mxu0 0.0
        %7566 = vmatmul.mubr.f32.gmra.mxu0 %v7307
        %v7567 = vpop.f32.mrf.mxu0
        %v7568 = vadd.f32 0.0, %v7567
        %v7569 = vpop.f32.mrf.mxu0
        %7570 = vmatprep.mubr.f32.mxu0 0.0
        %7571 = vmatmul.mubr.f32.gmra.mxu0 %v7310
        %v7572 = vpop.f32.mrf.mxu0
        %v7573 = vadd.f32 0.0, %v7572
        %v7574 = vpop.f32.mrf.mxu0
        %7575 = vdwg.mxu0
        %v7576 = vmax.f32 %v7482, %v7568
        %v7577 = vmax.f32 %v7483, %v7573
        %s7578 = scalar_lea.vmem [#allocation13], 312
        %v7579 = vld [vmem:[%s7578] sm:$0xff]
        %v7580 = vld [vmem:[%s7578 + $0x8] sm:$0xff]
        %v7581 = vld [vmem:[%s7578 + $0x10] sm:$0xff]
        %v7582 = vld [vmem:[%s7578 + $0x18] sm:$0xff]
        %v7583 = vld [vmem:[%s7578 + $0x20] sm:$0xff]
        %v7584 = vld [vmem:[%s7578 + $0x28] sm:$0xff]
        %v7585 = vld [vmem:[%s7578 + $0x30] sm:$0xff]
        %v7586 = vld [vmem:[%s7578 + $0x38] sm:$0xff]
        %v7587 = vld [vmem:[%s7578 + $0x40] sm:$0xff]
        %v7588 = vld [vmem:[%s7578 + $0x48] sm:$0xff]
        %v7589 = vld [vmem:[%s7578 + $0x50] sm:$0xff]
        %v7590 = vld [vmem:[%s7578 + $0x58] sm:$0xff]
        %v7591 = vld [vmem:[%s7578 + $0x60] sm:$0xf]
        %v7593 = vsel %vm2680, %v7591, 0
        %7595 = vmatprep.subr.mxu0 0.0
        %7596 = vmatpush1.msra.mxu0 0.0
        %7597 = vmatprep.subr.mxu0 0.0
        %7598 = vmatpush1.msra.mxu0 0.0
        %7599 = vmatprep.subr.mxu0 0.0
        %7600 = vmatpush1.msra.mxu0 0.0
        %7601 = vmatprep.subr.mxu0 0.0
        %7602 = vmatpush1.msra.mxu0 %v7593
        %7603 = vmatprep.subr.mxu0 0.0
        %7604 = vmatpush1.msra.mxu0 %v7590
        %7605 = vmatprep.subr.mxu0 0.0
        %7606 = vmatpush1.msra.mxu0 %v7589
        %7607 = vmatprep.subr.mxu0 0.0
        %7608 = vmatpush1.msra.mxu0 %v7588
        %7609 = vmatprep.subr.mxu0 0.0
        %7610 = vmatpush1.msra.mxu0 %v7587
        %7611 = vmatprep.subr.mxu0 0.0
        %7612 = vmatpush1.msra.mxu0 %v7586
        %7613 = vmatprep.subr.mxu0 0.0
        %7614 = vmatpush1.msra.mxu0 %v7585
        %7615 = vmatprep.subr.mxu0 0.0
        %7616 = vmatpush1.msra.mxu0 %v7584
        %7617 = vmatprep.subr.mxu0 0.0
        %7618 = vmatpush1.msra.mxu0 %v7583
        %7619 = vmatprep.subr.mxu0 0.0
        %7620 = vmatpush1.msra.mxu0 %v7582
        %7621 = vmatprep.subr.mxu0 0.0
        %7622 = vmatpush1.msra.mxu0 %v7581
        %7623 = vmatprep.subr.mxu0 0.0
        %7624 = vmatpush1.msra.mxu0 %v7580
        %7625 = vmatprep.subr.mxu0 0.0
        %7626 = vmatpush1.msra.mxu0 %v7579
        %7627 = vmatprep.subr.mxu0 0.0
        %7628 = vmatpush2.msra.mxu0 0.0
        %7629 = vmatprep.subr.mxu0 0.0
        %7630 = vmatpush2.msra.mxu0 0.0
        %7631 = vmatprep.subr.mxu0 0.0
        %7632 = vmatpush2.msra.mxu0 0.0
        %7633 = vmatprep.subr.mxu0 0.0
        %7634 = vmatpush2.msra.mxu0 0.0
        %7635 = vmatprep.subr.mxu0 0.0
        %7636 = vmatpush2.msra.mxu0 0.0
        %7637 = vmatprep.subr.mxu0 0.0
        %7638 = vmatpush2.msra.mxu0 0.0
        %7639 = vmatprep.subr.mxu0 0.0
        %7640 = vmatpush2.msra.mxu0 0.0
        %7641 = vmatprep.subr.mxu0 0.0
        %7642 = vmatpush2.msra.mxu0 0.0
        %7643 = vmatprep.subr.mxu0 0.0
        %7644 = vmatpush2.msra.mxu0 0.0
        %7645 = vmatprep.subr.mxu0 0.0
        %7646 = vmatpush2.msra.mxu0 0.0
        %7647 = vmatprep.subr.mxu0 0.0
        %7648 = vmatpush2.msra.mxu0 0.0
        %7649 = vmatprep.subr.mxu0 0.0
        %7650 = vmatpush2.msra.mxu0 0.0
        %7651 = vmatprep.subr.mxu0 0.0
        %7652 = vmatpush2.msra.mxu0 0.0
        %7653 = vmatprep.subr.mxu0 0.0
        %7654 = vmatpush2.msra.mxu0 0.0
        %7655 = vmatprep.subr.mxu0 0.0
        %7656 = vmatpush2.msra.mxu0 0.0
        %7657 = vmatprep.subr.mxu0 0.0
        %7658 = vmatpush2.msra.mxu0 0.0
        %7659 = vmatprep.mubr.f32.mxu0 0.0
        %7660 = vmatmul.mubr.f32.gmra.mxu0 %v7307
        %v7661 = vpop.f32.mrf.mxu0
        %v7662 = vadd.f32 0.0, %v7661
        %v7663 = vpop.f32.mrf.mxu0
        %7664 = vmatprep.mubr.f32.mxu0 0.0
        %7665 = vmatmul.mubr.f32.gmra.mxu0 %v7310
        %v7666 = vpop.f32.mrf.mxu0
        %v7667 = vadd.f32 0.0, %v7666
        %v7668 = vpop.f32.mrf.mxu0
        %7669 = vdwg.mxu0
        %v7670 = vmax.f32 %v7576, %v7662
        %v7671 = vmax.f32 %v7577, %v7667
        %v7672 = vld [vmem:[#allocation16] sm:$0x1]
        %v7673 = vld [vmem:[#allocation14] sm:$0xff]
        %v7674 = vld [vmem:[#allocation14 + $0x8] sm:$0xff]
        %v7675 = vld [vmem:[#allocation14 + $0x10] sm:$0xff]
        %v7676 = vld [vmem:[#allocation14 + $0x18] sm:$0x1]
        %vm7677 = vcmask 203776
        %v7679 = vsel %vm7677, %v7670, 0
        %vm7681 = vcmask 1040384
        %v7683 = vsel %vm7681, %v7676, 0
        %7685 = vmatprep.subr.mxu0 0.0
        %7686 = vmatpush1.msra.mxu0 0.0
        %7687 = vmatprep.subr.mxu0 0.0
        %7688 = vmatpush1.msra.mxu0 0.0
        %7689 = vmatprep.subr.mxu0 0.0
        %7690 = vmatpush1.msra.mxu0 0.0
        %7691 = vmatprep.subr.mxu0 0.0
        %7692 = vmatpush1.msra.mxu0 0.0
        %7693 = vmatprep.subr.mxu0 0.0
        %7694 = vmatpush1.msra.mxu0 0.0
        %7695 = vmatprep.subr.mxu0 0.0
        %7696 = vmatpush1.msra.mxu0 0.0
        %7697 = vmatprep.subr.mxu0 0.0
        %7698 = vmatpush1.msra.mxu0 0.0
        %7699 = vmatprep.subr.mxu0 0.0
        %7700 = vmatpush1.msra.mxu0 0.0
        %7701 = vmatprep.subr.mxu0 0.0
        %7702 = vmatpush1.msra.mxu0 0.0
        %7703 = vmatprep.subr.mxu0 0.0
        %7704 = vmatpush1.msra.mxu0 0.0
        %7705 = vmatprep.subr.mxu0 0.0
        %7706 = vmatpush1.msra.mxu0 0.0
        %7707 = vmatprep.subr.mxu0 0.0
        %7708 = vmatpush1.msra.mxu0 0.0
        %7709 = vmatprep.subr.mxu0 0.0
        %7710 = vmatpush1.msra.mxu0 %v7683
        %7711 = vmatprep.subr.mxu0 0.0
        %7712 = vmatpush1.msra.mxu0 %v7675
        %7713 = vmatprep.subr.mxu0 0.0
        %7714 = vmatpush1.msra.mxu0 %v7674
        %7715 = vmatprep.subr.mxu0 0.0
        %7716 = vmatpush1.msra.mxu0 %v7673
        %7717 = vmatprep.subr.mxu0 0.0
        %7718 = vmatpush2.msra.mxu0 0.0
        %7719 = vmatprep.subr.mxu0 0.0
        %7720 = vmatpush2.msra.mxu0 0.0
        %7721 = vmatprep.subr.mxu0 0.0
        %7722 = vmatpush2.msra.mxu0 0.0
        %7723 = vmatprep.subr.mxu0 0.0
        %7724 = vmatpush2.msra.mxu0 0.0
        %7725 = vmatprep.subr.mxu0 0.0
        %7726 = vmatpush2.msra.mxu0 0.0
        %7727 = vmatprep.subr.mxu0 0.0
        %7728 = vmatpush2.msra.mxu0 0.0
        %7729 = vmatprep.subr.mxu0 0.0
        %7730 = vmatpush2.msra.mxu0 0.0
        %7731 = vmatprep.subr.mxu0 0.0
        %7732 = vmatpush2.msra.mxu0 0.0
        %7733 = vmatprep.subr.mxu0 0.0
        %7734 = vmatpush2.msra.mxu0 0.0
        %7735 = vmatprep.subr.mxu0 0.0
        %7736 = vmatpush2.msra.mxu0 0.0
        %7737 = vmatprep.subr.mxu0 0.0
        %7738 = vmatpush2.msra.mxu0 0.0
        %7739 = vmatprep.subr.mxu0 0.0
        %7740 = vmatpush2.msra.mxu0 0.0
        %7741 = vmatprep.subr.mxu0 0.0
        %7742 = vmatpush2.msra.mxu0 0.0
        %7743 = vmatprep.subr.mxu0 0.0
        %7744 = vmatpush2.msra.mxu0 0.0
        %7745 = vmatprep.subr.mxu0 0.0
        %7746 = vmatpush2.msra.mxu0 0.0
        %7747 = vmatprep.subr.mxu0 0.0
        %7748 = vmatpush2.msra.mxu0 0.0
        %7749 = vmatprep.mubr.f32.mxu0 0.0
        %7750 = vmatmul.mubr.f32.gmra.mxu0 %v7679
        %v7751 = vpop.f32.mrf.mxu0
        %v7752 = vadd.f32 0.0, %v7751
        %v7753 = vpop.f32.mrf.mxu0
        %7754 = vdwg.mxu0
        %v7755 = vadd.f32 %v7672, %v7752
        %s7756 = scalar_lea.vmem [#allocation14], 32
        %v7757 = vld [vmem:[%s7756] sm:$0xff]
        %v7758 = vld [vmem:[%s7756 + $0x8] sm:$0xff]
        %v7759 = vld [vmem:[%s7756 + $0x10] sm:$0xff]
        %v7760 = vld [vmem:[%s7756 + $0x18] sm:$0x1]
        %v7761 = vrot.slane %v7670, 1
        %v7762 = vsel %vm7677, %v7761, 0
        %v7765 = vsel %vm7681, %v7760, 0
        %7767 = vmatprep.subr.mxu0 0.0
        %7768 = vmatpush1.msra.mxu0 0.0
        %7769 = vmatprep.subr.mxu0 0.0
        %7770 = vmatpush1.msra.mxu0 0.0
        %7771 = vmatprep.subr.mxu0 0.0
        %7772 = vmatpush1.msra.mxu0 0.0
        %7773 = vmatprep.subr.mxu0 0.0
        %7774 = vmatpush1.msra.mxu0 0.0
        %7775 = vmatprep.subr.mxu0 0.0
        %7776 = vmatpush1.msra.mxu0 0.0
        %7777 = vmatprep.subr.mxu0 0.0
        %7778 = vmatpush1.msra.mxu0 0.0
        %7779 = vmatprep.subr.mxu0 0.0
        %7780 = vmatpush1.msra.mxu0 0.0
        %7781 = vmatprep.subr.mxu0 0.0
        %7782 = vmatpush1.msra.mxu0 0.0
        %7783 = vmatprep.subr.mxu0 0.0
        %7784 = vmatpush1.msra.mxu0 0.0
        %7785 = vmatprep.subr.mxu0 0.0
        %7786 = vmatpush1.msra.mxu0 0.0
        %7787 = vmatprep.subr.mxu0 0.0
        %7788 = vmatpush1.msra.mxu0 0.0
        %7789 = vmatprep.subr.mxu0 0.0
        %7790 = vmatpush1.msra.mxu0 0.0
        %7791 = vmatprep.subr.mxu0 0.0
        %7792 = vmatpush1.msra.mxu0 %v7765
        %7793 = vmatprep.subr.mxu0 0.0
        %7794 = vmatpush1.msra.mxu0 %v7759
        %7795 = vmatprep.subr.mxu0 0.0
        %7796 = vmatpush1.msra.mxu0 %v7758
        %7797 = vmatprep.subr.mxu0 0.0
        %7798 = vmatpush1.msra.mxu0 %v7757
        %7799 = vmatprep.subr.mxu0 0.0
        %7800 = vmatpush2.msra.mxu0 0.0
        %7801 = vmatprep.subr.mxu0 0.0
        %7802 = vmatpush2.msra.mxu0 0.0
        %7803 = vmatprep.subr.mxu0 0.0
        %7804 = vmatpush2.msra.mxu0 0.0
        %7805 = vmatprep.subr.mxu0 0.0
        %7806 = vmatpush2.msra.mxu0 0.0
        %7807 = vmatprep.subr.mxu0 0.0
        %7808 = vmatpush2.msra.mxu0 0.0
        %7809 = vmatprep.subr.mxu0 0.0
        %7810 = vmatpush2.msra.mxu0 0.0
        %7811 = vmatprep.subr.mxu0 0.0
        %7812 = vmatpush2.msra.mxu0 0.0
        %7813 = vmatprep.subr.mxu0 0.0
        %7814 = vmatpush2.msra.mxu0 0.0
        %7815 = vmatprep.subr.mxu0 0.0
        %7816 = vmatpush2.msra.mxu0 0.0
        %7817 = vmatprep.subr.mxu0 0.0
        %7818 = vmatpush2.msra.mxu0 0.0
        %7819 = vmatprep.subr.mxu0 0.0
        %7820 = vmatpush2.msra.mxu0 0.0
        %7821 = vmatprep.subr.mxu0 0.0
        %7822 = vmatpush2.msra.mxu0 0.0
        %7823 = vmatprep.subr.mxu0 0.0
        %7824 = vmatpush2.msra.mxu0 0.0
        %7825 = vmatprep.subr.mxu0 0.0
        %7826 = vmatpush2.msra.mxu0 0.0
        %7827 = vmatprep.subr.mxu0 0.0
        %7828 = vmatpush2.msra.mxu0 0.0
        %7829 = vmatprep.subr.mxu0 0.0
        %7830 = vmatpush2.msra.mxu0 0.0
        %7831 = vmatprep.mubr.f32.mxu0 0.0
        %7832 = vmatmul.mubr.f32.gmra.mxu0 %v7762
        %v7833 = vpop.f32.mrf.mxu0
        %v7834 = vadd.f32 0.0, %v7833
        %v7835 = vpop.f32.mrf.mxu0
        %7836 = vdwg.mxu0
        %v7837 = vadd.f32 %v7755, %v7834
        %s7838 = scalar_lea.vmem [#allocation14], 64
        %v7839 = vld [vmem:[%s7838] sm:$0xff]
        %v7840 = vld [vmem:[%s7838 + $0x8] sm:$0xff]
        %v7841 = vld [vmem:[%s7838 + $0x10] sm:$0xff]
        %v7842 = vld [vmem:[%s7838 + $0x18] sm:$0x1]
        %v7843 = vrot.slane %v7670, 2
        %v7844 = vsel %vm7677, %v7843, 0
        %v7847 = vsel %vm7681, %v7842, 0
        %7849 = vmatprep.subr.mxu0 0.0
        %7850 = vmatpush1.msra.mxu0 0.0
        %7851 = vmatprep.subr.mxu0 0.0
        %7852 = vmatpush1.msra.mxu0 0.0
        %7853 = vmatprep.subr.mxu0 0.0
        %7854 = vmatpush1.msra.mxu0 0.0
        %7855 = vmatprep.subr.mxu0 0.0
        %7856 = vmatpush1.msra.mxu0 0.0
        %7857 = vmatprep.subr.mxu0 0.0
        %7858 = vmatpush1.msra.mxu0 0.0
        %7859 = vmatprep.subr.mxu0 0.0
        %7860 = vmatpush1.msra.mxu0 0.0
        %7861 = vmatprep.subr.mxu0 0.0
        %7862 = vmatpush1.msra.mxu0 0.0
        %7863 = vmatprep.subr.mxu0 0.0
        %7864 = vmatpush1.msra.mxu0 0.0
        %7865 = vmatprep.subr.mxu0 0.0
        %7866 = vmatpush1.msra.mxu0 0.0
        %7867 = vmatprep.subr.mxu0 0.0
        %7868 = vmatpush1.msra.mxu0 0.0
        %7869 = vmatprep.subr.mxu0 0.0
        %7870 = vmatpush1.msra.mxu0 0.0
        %7871 = vmatprep.subr.mxu0 0.0
        %7872 = vmatpush1.msra.mxu0 0.0
        %7873 = vmatprep.subr.mxu0 0.0
        %7874 = vmatpush1.msra.mxu0 %v7847
        %7875 = vmatprep.subr.mxu0 0.0
        %7876 = vmatpush1.msra.mxu0 %v7841
        %7877 = vmatprep.subr.mxu0 0.0
        %7878 = vmatpush1.msra.mxu0 %v7840
        %7879 = vmatprep.subr.mxu0 0.0
        %7880 = vmatpush1.msra.mxu0 %v7839
        %7881 = vmatprep.subr.mxu0 0.0
        %7882 = vmatpush2.msra.mxu0 0.0
        %7883 = vmatprep.subr.mxu0 0.0
        %7884 = vmatpush2.msra.mxu0 0.0
        %7885 = vmatprep.subr.mxu0 0.0
        %7886 = vmatpush2.msra.mxu0 0.0
        %7887 = vmatprep.subr.mxu0 0.0
        %7888 = vmatpush2.msra.mxu0 0.0
        %7889 = vmatprep.subr.mxu0 0.0
        %7890 = vmatpush2.msra.mxu0 0.0
        %7891 = vmatprep.subr.mxu0 0.0
        %7892 = vmatpush2.msra.mxu0 0.0
        %7893 = vmatprep.subr.mxu0 0.0
        %7894 = vmatpush2.msra.mxu0 0.0
        %7895 = vmatprep.subr.mxu0 0.0
        %7896 = vmatpush2.msra.mxu0 0.0
        %7897 = vmatprep.subr.mxu0 0.0
        %7898 = vmatpush2.msra.mxu0 0.0
        %7899 = vmatprep.subr.mxu0 0.0
        %7900 = vmatpush2.msra.mxu0 0.0
        %7901 = vmatprep.subr.mxu0 0.0
        %7902 = vmatpush2.msra.mxu0 0.0
        %7903 = vmatprep.subr.mxu0 0.0
        %7904 = vmatpush2.msra.mxu0 0.0
        %7905 = vmatprep.subr.mxu0 0.0
        %7906 = vmatpush2.msra.mxu0 0.0
        %7907 = vmatprep.subr.mxu0 0.0
        %7908 = vmatpush2.msra.mxu0 0.0
        %7909 = vmatprep.subr.mxu0 0.0
        %7910 = vmatpush2.msra.mxu0 0.0
        %7911 = vmatprep.subr.mxu0 0.0
        %7912 = vmatpush2.msra.mxu0 0.0
        %7913 = vmatprep.mubr.f32.mxu0 0.0
        %7914 = vmatmul.mubr.f32.gmra.mxu0 %v7844
        %v7915 = vpop.f32.mrf.mxu0
        %v7916 = vadd.f32 0.0, %v7915
        %v7917 = vpop.f32.mrf.mxu0
        %7918 = vdwg.mxu0
        %v7919 = vadd.f32 %v7837, %v7916
        %s7920 = scalar_lea.vmem [#allocation14], 96
        %v7921 = vld [vmem:[%s7920] sm:$0xff]
        %v7922 = vld [vmem:[%s7920 + $0x8] sm:$0xff]
        %v7923 = vld [vmem:[%s7920 + $0x10] sm:$0xff]
        %v7924 = vld [vmem:[%s7920 + $0x18] sm:$0x1]
        %v7925 = vrot.slane %v7670, 3
        %v7926 = vsel %vm7677, %v7925, 0
        %v7929 = vsel %vm7681, %v7924, 0
        %7931 = vmatprep.subr.mxu0 0.0
        %7932 = vmatpush1.msra.mxu0 0.0
        %7933 = vmatprep.subr.mxu0 0.0
        %7934 = vmatpush1.msra.mxu0 0.0
        %7935 = vmatprep.subr.mxu0 0.0
        %7936 = vmatpush1.msra.mxu0 0.0
        %7937 = vmatprep.subr.mxu0 0.0
        %7938 = vmatpush1.msra.mxu0 0.0
        %7939 = vmatprep.subr.mxu0 0.0
        %7940 = vmatpush1.msra.mxu0 0.0
        %7941 = vmatprep.subr.mxu0 0.0
        %7942 = vmatpush1.msra.mxu0 0.0
        %7943 = vmatprep.subr.mxu0 0.0
        %7944 = vmatpush1.msra.mxu0 0.0
        %7945 = vmatprep.subr.mxu0 0.0
        %7946 = vmatpush1.msra.mxu0 0.0
        %7947 = vmatprep.subr.mxu0 0.0
        %7948 = vmatpush1.msra.mxu0 0.0
        %7949 = vmatprep.subr.mxu0 0.0
        %7950 = vmatpush1.msra.mxu0 0.0
        %7951 = vmatprep.subr.mxu0 0.0
        %7952 = vmatpush1.msra.mxu0 0.0
        %7953 = vmatprep.subr.mxu0 0.0
        %7954 = vmatpush1.msra.mxu0 0.0
        %7955 = vmatprep.subr.mxu0 0.0
        %7956 = vmatpush1.msra.mxu0 %v7929
        %7957 = vmatprep.subr.mxu0 0.0
        %7958 = vmatpush1.msra.mxu0 %v7923
        %7959 = vmatprep.subr.mxu0 0.0
        %7960 = vmatpush1.msra.mxu0 %v7922
        %7961 = vmatprep.subr.mxu0 0.0
        %7962 = vmatpush1.msra.mxu0 %v7921
        %7963 = vmatprep.subr.mxu0 0.0
        %7964 = vmatpush2.msra.mxu0 0.0
        %7965 = vmatprep.subr.mxu0 0.0
        %7966 = vmatpush2.msra.mxu0 0.0
        %7967 = vmatprep.subr.mxu0 0.0
        %7968 = vmatpush2.msra.mxu0 0.0
        %7969 = vmatprep.subr.mxu0 0.0
        %7970 = vmatpush2.msra.mxu0 0.0
        %7971 = vmatprep.subr.mxu0 0.0
        %7972 = vmatpush2.msra.mxu0 0.0
        %7973 = vmatprep.subr.mxu0 0.0
        %7974 = vmatpush2.msra.mxu0 0.0
        %7975 = vmatprep.subr.mxu0 0.0
        %7976 = vmatpush2.msra.mxu0 0.0
        %7977 = vmatprep.subr.mxu0 0.0
        %7978 = vmatpush2.msra.mxu0 0.0
        %7979 = vmatprep.subr.mxu0 0.0
        %7980 = vmatpush2.msra.mxu0 0.0
        %7981 = vmatprep.subr.mxu0 0.0
        %7982 = vmatpush2.msra.mxu0 0.0
        %7983 = vmatprep.subr.mxu0 0.0
        %7984 = vmatpush2.msra.mxu0 0.0
        %7985 = vmatprep.subr.mxu0 0.0
        %7986 = vmatpush2.msra.mxu0 0.0
        %7987 = vmatprep.subr.mxu0 0.0
        %7988 = vmatpush2.msra.mxu0 0.0
        %7989 = vmatprep.subr.mxu0 0.0
        %7990 = vmatpush2.msra.mxu0 0.0
        %7991 = vmatprep.subr.mxu0 0.0
        %7992 = vmatpush2.msra.mxu0 0.0
        %7993 = vmatprep.subr.mxu0 0.0
        %7994 = vmatpush2.msra.mxu0 0.0
        %7995 = vmatprep.mubr.f32.mxu0 0.0
        %7996 = vmatmul.mubr.f32.gmra.mxu0 %v7926
        %v7997 = vpop.f32.mrf.mxu0
        %v7998 = vadd.f32 0.0, %v7997
        %v7999 = vpop.f32.mrf.mxu0
        %8000 = vdwg.mxu0
        %v8001 = vadd.f32 %v7919, %v7998
        %s8002 = scalar_lea.vmem [#allocation14], 128
        %v8003 = vld [vmem:[%s8002] sm:$0xff]
        %v8004 = vld [vmem:[%s8002 + $0x8] sm:$0xff]
        %v8005 = vld [vmem:[%s8002 + $0x10] sm:$0xff]
        %v8006 = vld [vmem:[%s8002 + $0x18] sm:$0x1]
        %v8007 = vrot.slane %v7670, 4
        %v8008 = vsel %vm7677, %v8007, 0
        %v8011 = vsel %vm7681, %v8006, 0
        %8013 = vmatprep.subr.mxu0 0.0
        %8014 = vmatpush1.msra.mxu0 0.0
        %8015 = vmatprep.subr.mxu0 0.0
        %8016 = vmatpush1.msra.mxu0 0.0
        %8017 = vmatprep.subr.mxu0 0.0
        %8018 = vmatpush1.msra.mxu0 0.0
        %8019 = vmatprep.subr.mxu0 0.0
        %8020 = vmatpush1.msra.mxu0 0.0
        %8021 = vmatprep.subr.mxu0 0.0
        %8022 = vmatpush1.msra.mxu0 0.0
        %8023 = vmatprep.subr.mxu0 0.0
        %8024 = vmatpush1.msra.mxu0 0.0
        %8025 = vmatprep.subr.mxu0 0.0
        %8026 = vmatpush1.msra.mxu0 0.0
        %8027 = vmatprep.subr.mxu0 0.0
        %8028 = vmatpush1.msra.mxu0 0.0
        %8029 = vmatprep.subr.mxu0 0.0
        %8030 = vmatpush1.msra.mxu0 0.0
        %8031 = vmatprep.subr.mxu0 0.0
        %8032 = vmatpush1.msra.mxu0 0.0
        %8033 = vmatprep.subr.mxu0 0.0
        %8034 = vmatpush1.msra.mxu0 0.0
        %8035 = vmatprep.subr.mxu0 0.0
        %8036 = vmatpush1.msra.mxu0 0.0
        %8037 = vmatprep.subr.mxu0 0.0
        %8038 = vmatpush1.msra.mxu0 %v8011
        %8039 = vmatprep.subr.mxu0 0.0
        %8040 = vmatpush1.msra.mxu0 %v8005
        %8041 = vmatprep.subr.mxu0 0.0
        %8042 = vmatpush1.msra.mxu0 %v8004
        %8043 = vmatprep.subr.mxu0 0.0
        %8044 = vmatpush1.msra.mxu0 %v8003
        %8045 = vmatprep.subr.mxu0 0.0
        %8046 = vmatpush2.msra.mxu0 0.0
        %8047 = vmatprep.subr.mxu0 0.0
        %8048 = vmatpush2.msra.mxu0 0.0
        %8049 = vmatprep.subr.mxu0 0.0
        %8050 = vmatpush2.msra.mxu0 0.0
        %8051 = vmatprep.subr.mxu0 0.0
        %8052 = vmatpush2.msra.mxu0 0.0
        %8053 = vmatprep.subr.mxu0 0.0
        %8054 = vmatpush2.msra.mxu0 0.0
        %8055 = vmatprep.subr.mxu0 0.0
        %8056 = vmatpush2.msra.mxu0 0.0
        %8057 = vmatprep.subr.mxu0 0.0
        %8058 = vmatpush2.msra.mxu0 0.0
        %8059 = vmatprep.subr.mxu0 0.0
        %8060 = vmatpush2.msra.mxu0 0.0
        %8061 = vmatprep.subr.mxu0 0.0
        %8062 = vmatpush2.msra.mxu0 0.0
        %8063 = vmatprep.subr.mxu0 0.0
        %8064 = vmatpush2.msra.mxu0 0.0
        %8065 = vmatprep.subr.mxu0 0.0
        %8066 = vmatpush2.msra.mxu0 0.0
        %8067 = vmatprep.subr.mxu0 0.0
        %8068 = vmatpush2.msra.mxu0 0.0
        %8069 = vmatprep.subr.mxu0 0.0
        %8070 = vmatpush2.msra.mxu0 0.0
        %8071 = vmatprep.subr.mxu0 0.0
        %8072 = vmatpush2.msra.mxu0 0.0
        %8073 = vmatprep.subr.mxu0 0.0
        %8074 = vmatpush2.msra.mxu0 0.0
        %8075 = vmatprep.subr.mxu0 0.0
        %8076 = vmatpush2.msra.mxu0 0.0
        %8077 = vmatprep.mubr.f32.mxu0 0.0
        %8078 = vmatmul.mubr.f32.gmra.mxu0 %v8008
        %v8079 = vpop.f32.mrf.mxu0
        %v8080 = vadd.f32 0.0, %v8079
        %v8081 = vpop.f32.mrf.mxu0
        %8082 = vdwg.mxu0
        %v8083 = vadd.f32 %v8001, %v8080
        %s8084 = scalar_lea.vmem [#allocation14], 160
        %v8085 = vld [vmem:[%s8084] sm:$0xff]
        %v8086 = vld [vmem:[%s8084 + $0x8] sm:$0xff]
        %v8087 = vld [vmem:[%s8084 + $0x10] sm:$0xff]
        %v8088 = vld [vmem:[%s8084 + $0x18] sm:$0x1]
        %v8089 = vrot.slane %v7670, 5
        %v8090 = vsel %vm7677, %v8089, 0
        %v8093 = vsel %vm7681, %v8088, 0
        %8095 = vmatprep.subr.mxu0 0.0
        %8096 = vmatpush1.msra.mxu0 0.0
        %8097 = vmatprep.subr.mxu0 0.0
        %8098 = vmatpush1.msra.mxu0 0.0
        %8099 = vmatprep.subr.mxu0 0.0
        %8100 = vmatpush1.msra.mxu0 0.0
        %8101 = vmatprep.subr.mxu0 0.0
        %8102 = vmatpush1.msra.mxu0 0.0
        %8103 = vmatprep.subr.mxu0 0.0
        %8104 = vmatpush1.msra.mxu0 0.0
        %8105 = vmatprep.subr.mxu0 0.0
        %8106 = vmatpush1.msra.mxu0 0.0
        %8107 = vmatprep.subr.mxu0 0.0
        %8108 = vmatpush1.msra.mxu0 0.0
        %8109 = vmatprep.subr.mxu0 0.0
        %8110 = vmatpush1.msra.mxu0 0.0
        %8111 = vmatprep.subr.mxu0 0.0
        %8112 = vmatpush1.msra.mxu0 0.0
        %8113 = vmatprep.subr.mxu0 0.0
        %8114 = vmatpush1.msra.mxu0 0.0
        %8115 = vmatprep.subr.mxu0 0.0
        %8116 = vmatpush1.msra.mxu0 0.0
        %8117 = vmatprep.subr.mxu0 0.0
        %8118 = vmatpush1.msra.mxu0 0.0
        %8119 = vmatprep.subr.mxu0 0.0
        %8120 = vmatpush1.msra.mxu0 %v8093
        %8121 = vmatprep.subr.mxu0 0.0
        %8122 = vmatpush1.msra.mxu0 %v8087
        %8123 = vmatprep.subr.mxu0 0.0
        %8124 = vmatpush1.msra.mxu0 %v8086
        %8125 = vmatprep.subr.mxu0 0.0
        %8126 = vmatpush1.msra.mxu0 %v8085
        %8127 = vmatprep.subr.mxu0 0.0
        %8128 = vmatpush2.msra.mxu0 0.0
        %8129 = vmatprep.subr.mxu0 0.0
        %8130 = vmatpush2.msra.mxu0 0.0
        %8131 = vmatprep.subr.mxu0 0.0
        %8132 = vmatpush2.msra.mxu0 0.0
        %8133 = vmatprep.subr.mxu0 0.0
        %8134 = vmatpush2.msra.mxu0 0.0
        %8135 = vmatprep.subr.mxu0 0.0
        %8136 = vmatpush2.msra.mxu0 0.0
        %8137 = vmatprep.subr.mxu0 0.0
        %8138 = vmatpush2.msra.mxu0 0.0
        %8139 = vmatprep.subr.mxu0 0.0
        %8140 = vmatpush2.msra.mxu0 0.0
        %8141 = vmatprep.subr.mxu0 0.0
        %8142 = vmatpush2.msra.mxu0 0.0
        %8143 = vmatprep.subr.mxu0 0.0
        %8144 = vmatpush2.msra.mxu0 0.0
        %8145 = vmatprep.subr.mxu0 0.0
        %8146 = vmatpush2.msra.mxu0 0.0
        %8147 = vmatprep.subr.mxu0 0.0
        %8148 = vmatpush2.msra.mxu0 0.0
        %8149 = vmatprep.subr.mxu0 0.0
        %8150 = vmatpush2.msra.mxu0 0.0
        %8151 = vmatprep.subr.mxu0 0.0
        %8152 = vmatpush2.msra.mxu0 0.0
        %8153 = vmatprep.subr.mxu0 0.0
        %8154 = vmatpush2.msra.mxu0 0.0
        %8155 = vmatprep.subr.mxu0 0.0
        %8156 = vmatpush2.msra.mxu0 0.0
        %8157 = vmatprep.subr.mxu0 0.0
        %8158 = vmatpush2.msra.mxu0 0.0
        %8159 = vmatprep.mubr.f32.mxu0 0.0
        %8160 = vmatmul.mubr.f32.gmra.mxu0 %v8090
        %v8161 = vpop.f32.mrf.mxu0
        %v8162 = vadd.f32 0.0, %v8161
        %v8163 = vpop.f32.mrf.mxu0
        %8164 = vdwg.mxu0
        %v8165 = vadd.f32 %v8083, %v8162
        %s8166 = scalar_lea.vmem [#allocation14], 192
        %v8167 = vld [vmem:[%s8166] sm:$0xff]
        %v8168 = vld [vmem:[%s8166 + $0x8] sm:$0xff]
        %v8169 = vld [vmem:[%s8166 + $0x10] sm:$0xff]
        %v8170 = vld [vmem:[%s8166 + $0x18] sm:$0x1]
        %v8171 = vrot.slane %v7670, 6
        %v8172 = vsel %vm7677, %v8171, 0
        %v8175 = vsel %vm7681, %v8170, 0
        %8177 = vmatprep.subr.mxu0 0.0
        %8178 = vmatpush1.msra.mxu0 0.0
        %8179 = vmatprep.subr.mxu0 0.0
        %8180 = vmatpush1.msra.mxu0 0.0
        %8181 = vmatprep.subr.mxu0 0.0
        %8182 = vmatpush1.msra.mxu0 0.0
        %8183 = vmatprep.subr.mxu0 0.0
        %8184 = vmatpush1.msra.mxu0 0.0
        %8185 = vmatprep.subr.mxu0 0.0
        %8186 = vmatpush1.msra.mxu0 0.0
        %8187 = vmatprep.subr.mxu0 0.0
        %8188 = vmatpush1.msra.mxu0 0.0
        %8189 = vmatprep.subr.mxu0 0.0
        %8190 = vmatpush1.msra.mxu0 0.0
        %8191 = vmatprep.subr.mxu0 0.0
        %8192 = vmatpush1.msra.mxu0 0.0
        %8193 = vmatprep.subr.mxu0 0.0
        %8194 = vmatpush1.msra.mxu0 0.0
        %8195 = vmatprep.subr.mxu0 0.0
        %8196 = vmatpush1.msra.mxu0 0.0
        %8197 = vmatprep.subr.mxu0 0.0
        %8198 = vmatpush1.msra.mxu0 0.0
        %8199 = vmatprep.subr.mxu0 0.0
        %8200 = vmatpush1.msra.mxu0 0.0
        %8201 = vmatprep.subr.mxu0 0.0
        %8202 = vmatpush1.msra.mxu0 %v8175
        %8203 = vmatprep.subr.mxu0 0.0
        %8204 = vmatpush1.msra.mxu0 %v8169
        %8205 = vmatprep.subr.mxu0 0.0
        %8206 = vmatpush1.msra.mxu0 %v8168
        %8207 = vmatprep.subr.mxu0 0.0
        %8208 = vmatpush1.msra.mxu0 %v8167
        %8209 = vmatprep.subr.mxu0 0.0
        %8210 = vmatpush2.msra.mxu0 0.0
        %8211 = vmatprep.subr.mxu0 0.0
        %8212 = vmatpush2.msra.mxu0 0.0
        %8213 = vmatprep.subr.mxu0 0.0
        %8214 = vmatpush2.msra.mxu0 0.0
        %8215 = vmatprep.subr.mxu0 0.0
        %8216 = vmatpush2.msra.mxu0 0.0
        %8217 = vmatprep.subr.mxu0 0.0
        %8218 = vmatpush2.msra.mxu0 0.0
        %8219 = vmatprep.subr.mxu0 0.0
        %8220 = vmatpush2.msra.mxu0 0.0
        %8221 = vmatprep.subr.mxu0 0.0
        %8222 = vmatpush2.msra.mxu0 0.0
        %8223 = vmatprep.subr.mxu0 0.0
        %8224 = vmatpush2.msra.mxu0 0.0
        %8225 = vmatprep.subr.mxu0 0.0
        %8226 = vmatpush2.msra.mxu0 0.0
        %8227 = vmatprep.subr.mxu0 0.0
        %8228 = vmatpush2.msra.mxu0 0.0
        %8229 = vmatprep.subr.mxu0 0.0
        %8230 = vmatpush2.msra.mxu0 0.0
        %8231 = vmatprep.subr.mxu0 0.0
        %8232 = vmatpush2.msra.mxu0 0.0
        %8233 = vmatprep.subr.mxu0 0.0
        %8234 = vmatpush2.msra.mxu0 0.0
        %8235 = vmatprep.subr.mxu0 0.0
        %8236 = vmatpush2.msra.mxu0 0.0
        %8237 = vmatprep.subr.mxu0 0.0
        %8238 = vmatpush2.msra.mxu0 0.0
        %8239 = vmatprep.subr.mxu0 0.0
        %8240 = vmatpush2.msra.mxu0 0.0
        %8241 = vmatprep.mubr.f32.mxu0 0.0
        %8242 = vmatmul.mubr.f32.gmra.mxu0 %v8172
        %v8243 = vpop.f32.mrf.mxu0
        %v8244 = vadd.f32 0.0, %v8243
        %v8245 = vpop.f32.mrf.mxu0
        %8246 = vdwg.mxu0
        %v8247 = vadd.f32 %v8165, %v8244
        %s8248 = scalar_lea.vmem [#allocation14], 224
        %v8249 = vld [vmem:[%s8248] sm:$0xff]
        %v8250 = vld [vmem:[%s8248 + $0x8] sm:$0xff]
        %v8251 = vld [vmem:[%s8248 + $0x10] sm:$0xff]
        %v8252 = vld [vmem:[%s8248 + $0x18] sm:$0x1]
        %v8253 = vrot.slane %v7670, 7
        %v8254 = vsel %vm7677, %v8253, 0
        %v8257 = vsel %vm7681, %v8252, 0
        %8259 = vmatprep.subr.mxu0 0.0
        %8260 = vmatpush1.msra.mxu0 0.0
        %8261 = vmatprep.subr.mxu0 0.0
        %8262 = vmatpush1.msra.mxu0 0.0
        %8263 = vmatprep.subr.mxu0 0.0
        %8264 = vmatpush1.msra.mxu0 0.0
        %8265 = vmatprep.subr.mxu0 0.0
        %8266 = vmatpush1.msra.mxu0 0.0
        %8267 = vmatprep.subr.mxu0 0.0
        %8268 = vmatpush1.msra.mxu0 0.0
        %8269 = vmatprep.subr.mxu0 0.0
        %8270 = vmatpush1.msra.mxu0 0.0
        %8271 = vmatprep.subr.mxu0 0.0
        %8272 = vmatpush1.msra.mxu0 0.0
        %8273 = vmatprep.subr.mxu0 0.0
        %8274 = vmatpush1.msra.mxu0 0.0
        %8275 = vmatprep.subr.mxu0 0.0
        %8276 = vmatpush1.msra.mxu0 0.0
        %8277 = vmatprep.subr.mxu0 0.0
        %8278 = vmatpush1.msra.mxu0 0.0
        %8279 = vmatprep.subr.mxu0 0.0
        %8280 = vmatpush1.msra.mxu0 0.0
        %8281 = vmatprep.subr.mxu0 0.0
        %8282 = vmatpush1.msra.mxu0 0.0
        %8283 = vmatprep.subr.mxu0 0.0
        %8284 = vmatpush1.msra.mxu0 %v8257
        %8285 = vmatprep.subr.mxu0 0.0
        %8286 = vmatpush1.msra.mxu0 %v8251
        %8287 = vmatprep.subr.mxu0 0.0
        %8288 = vmatpush1.msra.mxu0 %v8250
        %8289 = vmatprep.subr.mxu0 0.0
        %8290 = vmatpush1.msra.mxu0 %v8249
        %8291 = vmatprep.subr.mxu0 0.0
        %8292 = vmatpush2.msra.mxu0 0.0
        %8293 = vmatprep.subr.mxu0 0.0
        %8294 = vmatpush2.msra.mxu0 0.0
        %8295 = vmatprep.subr.mxu0 0.0
        %8296 = vmatpush2.msra.mxu0 0.0
        %8297 = vmatprep.subr.mxu0 0.0
        %8298 = vmatpush2.msra.mxu0 0.0
        %8299 = vmatprep.subr.mxu0 0.0
        %8300 = vmatpush2.msra.mxu0 0.0
        %8301 = vmatprep.subr.mxu0 0.0
        %8302 = vmatpush2.msra.mxu0 0.0
        %8303 = vmatprep.subr.mxu0 0.0
        %8304 = vmatpush2.msra.mxu0 0.0
        %8305 = vmatprep.subr.mxu0 0.0
        %8306 = vmatpush2.msra.mxu0 0.0
        %8307 = vmatprep.subr.mxu0 0.0
        %8308 = vmatpush2.msra.mxu0 0.0
        %8309 = vmatprep.subr.mxu0 0.0
        %8310 = vmatpush2.msra.mxu0 0.0
        %8311 = vmatprep.subr.mxu0 0.0
        %8312 = vmatpush2.msra.mxu0 0.0
        %8313 = vmatprep.subr.mxu0 0.0
        %8314 = vmatpush2.msra.mxu0 0.0
        %8315 = vmatprep.subr.mxu0 0.0
        %8316 = vmatpush2.msra.mxu0 0.0
        %8317 = vmatprep.subr.mxu0 0.0
        %8318 = vmatpush2.msra.mxu0 0.0
        %8319 = vmatprep.subr.mxu0 0.0
        %8320 = vmatpush2.msra.mxu0 0.0
        %8321 = vmatprep.subr.mxu0 0.0
        %8322 = vmatpush2.msra.mxu0 0.0
        %8323 = vmatprep.mubr.f32.mxu0 0.0
        %8324 = vmatmul.mubr.f32.gmra.mxu0 %v8254
        %v8325 = vpop.f32.mrf.mxu0
        %v8326 = vadd.f32 0.0, %v8325
        %v8327 = vpop.f32.mrf.mxu0
        %8328 = vdwg.mxu0
        %v8329 = vadd.f32 %v8247, %v8326
        %s8330 = scalar_lea.vmem [#allocation14], 256
        %v8331 = vld [vmem:[%s8330] sm:$0xff]
        %v8332 = vld [vmem:[%s8330 + $0x8] sm:$0xff]
        %v8333 = vld [vmem:[%s8330 + $0x10] sm:$0xff]
        %v8334 = vld [vmem:[%s8330 + $0x18] sm:$0x1]
        %v8336 = vsel %vm7677, %v7671, 0
        %v8339 = vsel %vm7681, %v8334, 0
        %8341 = vmatprep.subr.mxu0 0.0
        %8342 = vmatpush1.msra.mxu0 0.0
        %8343 = vmatprep.subr.mxu0 0.0
        %8344 = vmatpush1.msra.mxu0 0.0
        %8345 = vmatprep.subr.mxu0 0.0
        %8346 = vmatpush1.msra.mxu0 0.0
        %8347 = vmatprep.subr.mxu0 0.0
        %8348 = vmatpush1.msra.mxu0 0.0
        %8349 = vmatprep.subr.mxu0 0.0
        %8350 = vmatpush1.msra.mxu0 0.0
        %8351 = vmatprep.subr.mxu0 0.0
        %8352 = vmatpush1.msra.mxu0 0.0
        %8353 = vmatprep.subr.mxu0 0.0
        %8354 = vmatpush1.msra.mxu0 0.0
        %8355 = vmatprep.subr.mxu0 0.0
        %8356 = vmatpush1.msra.mxu0 0.0
        %8357 = vmatprep.subr.mxu0 0.0
        %8358 = vmatpush1.msra.mxu0 0.0
        %8359 = vmatprep.subr.mxu0 0.0
        %8360 = vmatpush1.msra.mxu0 0.0
        %8361 = vmatprep.subr.mxu0 0.0
        %8362 = vmatpush1.msra.mxu0 0.0
        %8363 = vmatprep.subr.mxu0 0.0
        %8364 = vmatpush1.msra.mxu0 0.0
        %8365 = vmatprep.subr.mxu0 0.0
        %8366 = vmatpush1.msra.mxu0 %v8339
        %8367 = vmatprep.subr.mxu0 0.0
        %8368 = vmatpush1.msra.mxu0 %v8333
        %8369 = vmatprep.subr.mxu0 0.0
        %8370 = vmatpush1.msra.mxu0 %v8332
        %8371 = vmatprep.subr.mxu0 0.0
        %8372 = vmatpush1.msra.mxu0 %v8331
        %8373 = vmatprep.subr.mxu0 0.0
        %8374 = vmatpush2.msra.mxu0 0.0
        %8375 = vmatprep.subr.mxu0 0.0
        %8376 = vmatpush2.msra.mxu0 0.0
        %8377 = vmatprep.subr.mxu0 0.0
        %8378 = vmatpush2.msra.mxu0 0.0
        %8379 = vmatprep.subr.mxu0 0.0
        %8380 = vmatpush2.msra.mxu0 0.0
        %8381 = vmatprep.subr.mxu0 0.0
        %8382 = vmatpush2.msra.mxu0 0.0
        %8383 = vmatprep.subr.mxu0 0.0
        %8384 = vmatpush2.msra.mxu0 0.0
        %8385 = vmatprep.subr.mxu0 0.0
        %8386 = vmatpush2.msra.mxu0 0.0
        %8387 = vmatprep.subr.mxu0 0.0
        %8388 = vmatpush2.msra.mxu0 0.0
        %8389 = vmatprep.subr.mxu0 0.0
        %8390 = vmatpush2.msra.mxu0 0.0
        %8391 = vmatprep.subr.mxu0 0.0
        %8392 = vmatpush2.msra.mxu0 0.0
        %8393 = vmatprep.subr.mxu0 0.0
        %8394 = vmatpush2.msra.mxu0 0.0
        %8395 = vmatprep.subr.mxu0 0.0
        %8396 = vmatpush2.msra.mxu0 0.0
        %8397 = vmatprep.subr.mxu0 0.0
        %8398 = vmatpush2.msra.mxu0 0.0
        %8399 = vmatprep.subr.mxu0 0.0
        %8400 = vmatpush2.msra.mxu0 0.0
        %8401 = vmatprep.subr.mxu0 0.0
        %8402 = vmatpush2.msra.mxu0 0.0
        %8403 = vmatprep.subr.mxu0 0.0
        %8404 = vmatpush2.msra.mxu0 0.0
        %8405 = vmatprep.mubr.f32.mxu0 0.0
        %8406 = vmatmul.mubr.f32.gmra.mxu0 %v8336
        %v8407 = vpop.f32.mrf.mxu0
        %v8408 = vadd.f32 0.0, %v8407
        %v8409 = vpop.f32.mrf.mxu0
        %8410 = vdwg.mxu0
        %v8411 = vadd.f32 %v8329, %v8408
        %s8412 = scalar_lea.vmem [#allocation14], 288
        %v8413 = vld [vmem:[%s8412] sm:$0xff]
        %v8414 = vld [vmem:[%s8412 + $0x8] sm:$0xff]
        %v8415 = vld [vmem:[%s8412 + $0x10] sm:$0xff]
        %v8416 = vld [vmem:[%s8412 + $0x18] sm:$0x1]
        %v8417 = vrot.slane %v7671, 1
        %v8418 = vsel %vm7677, %v8417, 0
        %v8421 = vsel %vm7681, %v8416, 0
        %8423 = vmatprep.subr.mxu0 0.0
        %8424 = vmatpush1.msra.mxu0 0.0
        %8425 = vmatprep.subr.mxu0 0.0
        %8426 = vmatpush1.msra.mxu0 0.0
        %8427 = vmatprep.subr.mxu0 0.0
        %8428 = vmatpush1.msra.mxu0 0.0
        %8429 = vmatprep.subr.mxu0 0.0
        %8430 = vmatpush1.msra.mxu0 0.0
        %8431 = vmatprep.subr.mxu0 0.0
        %8432 = vmatpush1.msra.mxu0 0.0
        %8433 = vmatprep.subr.mxu0 0.0
        %8434 = vmatpush1.msra.mxu0 0.0
        %8435 = vmatprep.subr.mxu0 0.0
        %8436 = vmatpush1.msra.mxu0 0.0
        %8437 = vmatprep.subr.mxu0 0.0
        %8438 = vmatpush1.msra.mxu0 0.0
        %8439 = vmatprep.subr.mxu0 0.0
        %8440 = vmatpush1.msra.mxu0 0.0
        %8441 = vmatprep.subr.mxu0 0.0
        %8442 = vmatpush1.msra.mxu0 0.0
        %8443 = vmatprep.subr.mxu0 0.0
        %8444 = vmatpush1.msra.mxu0 0.0
        %8445 = vmatprep.subr.mxu0 0.0
        %8446 = vmatpush1.msra.mxu0 0.0
        %8447 = vmatprep.subr.mxu0 0.0
        %8448 = vmatpush1.msra.mxu0 %v8421
        %8449 = vmatprep.subr.mxu0 0.0
        %8450 = vmatpush1.msra.mxu0 %v8415
        %8451 = vmatprep.subr.mxu0 0.0
        %8452 = vmatpush1.msra.mxu0 %v8414
        %8453 = vmatprep.subr.mxu0 0.0
        %8454 = vmatpush1.msra.mxu0 %v8413
        %8455 = vmatprep.subr.mxu0 0.0
        %8456 = vmatpush2.msra.mxu0 0.0
        %8457 = vmatprep.subr.mxu0 0.0
        %8458 = vmatpush2.msra.mxu0 0.0
        %8459 = vmatprep.subr.mxu0 0.0
        %8460 = vmatpush2.msra.mxu0 0.0
        %8461 = vmatprep.subr.mxu0 0.0
        %8462 = vmatpush2.msra.mxu0 0.0
        %8463 = vmatprep.subr.mxu0 0.0
        %8464 = vmatpush2.msra.mxu0 0.0
        %8465 = vmatprep.subr.mxu0 0.0
        %8466 = vmatpush2.msra.mxu0 0.0
        %8467 = vmatprep.subr.mxu0 0.0
        %8468 = vmatpush2.msra.mxu0 0.0
        %8469 = vmatprep.subr.mxu0 0.0
        %8470 = vmatpush2.msra.mxu0 0.0
        %8471 = vmatprep.subr.mxu0 0.0
        %8472 = vmatpush2.msra.mxu0 0.0
        %8473 = vmatprep.subr.mxu0 0.0
        %8474 = vmatpush2.msra.mxu0 0.0
        %8475 = vmatprep.subr.mxu0 0.0
        %8476 = vmatpush2.msra.mxu0 0.0
        %8477 = vmatprep.subr.mxu0 0.0
        %8478 = vmatpush2.msra.mxu0 0.0
        %8479 = vmatprep.subr.mxu0 0.0
        %8480 = vmatpush2.msra.mxu0 0.0
        %8481 = vmatprep.subr.mxu0 0.0
        %8482 = vmatpush2.msra.mxu0 0.0
        %8483 = vmatprep.subr.mxu0 0.0
        %8484 = vmatpush2.msra.mxu0 0.0
        %8485 = vmatprep.subr.mxu0 0.0
        %8486 = vmatpush2.msra.mxu0 0.0
        %8487 = vmatprep.mubr.f32.mxu0 0.0
        %8488 = vmatmul.mubr.f32.gmra.mxu0 %v8418
        %v8489 = vpop.f32.mrf.mxu0
        %v8490 = vadd.f32 0.0, %v8489
        %v8491 = vpop.f32.mrf.mxu0
        %8492 = vdwg.mxu0
        %v8493 = vadd.f32 %v8411, %v8490
        %s8494 = scalar_lea.vmem [#allocation14], 320
        %v8495 = vld [vmem:[%s8494] sm:$0xff]
        %v8496 = vld [vmem:[%s8494 + $0x8] sm:$0xff]
        %v8497 = vld [vmem:[%s8494 + $0x10] sm:$0xff]
        %v8498 = vld [vmem:[%s8494 + $0x18] sm:$0x1]
        %v8499 = vrot.slane %v7671, 2
        %v8500 = vsel %vm7677, %v8499, 0
        %v8503 = vsel %vm7681, %v8498, 0
        %8505 = vmatprep.subr.mxu0 0.0
        %8506 = vmatpush1.msra.mxu0 0.0
        %8507 = vmatprep.subr.mxu0 0.0
        %8508 = vmatpush1.msra.mxu0 0.0
        %8509 = vmatprep.subr.mxu0 0.0
        %8510 = vmatpush1.msra.mxu0 0.0
        %8511 = vmatprep.subr.mxu0 0.0
        %8512 = vmatpush1.msra.mxu0 0.0
        %8513 = vmatprep.subr.mxu0 0.0
        %8514 = vmatpush1.msra.mxu0 0.0
        %8515 = vmatprep.subr.mxu0 0.0
        %8516 = vmatpush1.msra.mxu0 0.0
        %8517 = vmatprep.subr.mxu0 0.0
        %8518 = vmatpush1.msra.mxu0 0.0
        %8519 = vmatprep.subr.mxu0 0.0
        %8520 = vmatpush1.msra.mxu0 0.0
        %8521 = vmatprep.subr.mxu0 0.0
        %8522 = vmatpush1.msra.mxu0 0.0
        %8523 = vmatprep.subr.mxu0 0.0
        %8524 = vmatpush1.msra.mxu0 0.0
        %8525 = vmatprep.subr.mxu0 0.0
        %8526 = vmatpush1.msra.mxu0 0.0
        %8527 = vmatprep.subr.mxu0 0.0
        %8528 = vmatpush1.msra.mxu0 0.0
        %8529 = vmatprep.subr.mxu0 0.0
        %8530 = vmatpush1.msra.mxu0 %v8503
        %8531 = vmatprep.subr.mxu0 0.0
        %8532 = vmatpush1.msra.mxu0 %v8497
        %8533 = vmatprep.subr.mxu0 0.0
        %8534 = vmatpush1.msra.mxu0 %v8496
        %8535 = vmatprep.subr.mxu0 0.0
        %8536 = vmatpush1.msra.mxu0 %v8495
        %8537 = vmatprep.subr.mxu0 0.0
        %8538 = vmatpush2.msra.mxu0 0.0
        %8539 = vmatprep.subr.mxu0 0.0
        %8540 = vmatpush2.msra.mxu0 0.0
        %8541 = vmatprep.subr.mxu0 0.0
        %8542 = vmatpush2.msra.mxu0 0.0
        %8543 = vmatprep.subr.mxu0 0.0
        %8544 = vmatpush2.msra.mxu0 0.0
        %8545 = vmatprep.subr.mxu0 0.0
        %8546 = vmatpush2.msra.mxu0 0.0
        %8547 = vmatprep.subr.mxu0 0.0
        %8548 = vmatpush2.msra.mxu0 0.0
        %8549 = vmatprep.subr.mxu0 0.0
        %8550 = vmatpush2.msra.mxu0 0.0
        %8551 = vmatprep.subr.mxu0 0.0
        %8552 = vmatpush2.msra.mxu0 0.0
        %8553 = vmatprep.subr.mxu0 0.0
        %8554 = vmatpush2.msra.mxu0 0.0
        %8555 = vmatprep.subr.mxu0 0.0
        %8556 = vmatpush2.msra.mxu0 0.0
        %8557 = vmatprep.subr.mxu0 0.0
        %8558 = vmatpush2.msra.mxu0 0.0
        %8559 = vmatprep.subr.mxu0 0.0
        %8560 = vmatpush2.msra.mxu0 0.0
        %8561 = vmatprep.subr.mxu0 0.0
        %8562 = vmatpush2.msra.mxu0 0.0
        %8563 = vmatprep.subr.mxu0 0.0
        %8564 = vmatpush2.msra.mxu0 0.0
        %8565 = vmatprep.subr.mxu0 0.0
        %8566 = vmatpush2.msra.mxu0 0.0
        %8567 = vmatprep.subr.mxu0 0.0
        %8568 = vmatpush2.msra.mxu0 0.0
        %8569 = vmatprep.mubr.f32.mxu0 0.0
        %8570 = vmatmul.mubr.f32.gmra.mxu0 %v8500
        %v8571 = vpop.f32.mrf.mxu0
        %v8572 = vadd.f32 0.0, %v8571
        %v8573 = vpop.f32.mrf.mxu0
        %8574 = vdwg.mxu0
        %v8575 = vadd.f32 %v8493, %v8572
        %s8576 = scalar_lea.vmem [#allocation14], 352
        %v8577 = vld [vmem:[%s8576] sm:$0xff]
        %v8578 = vld [vmem:[%s8576 + $0x8] sm:$0xff]
        %v8579 = vld [vmem:[%s8576 + $0x10] sm:$0xff]
        %v8580 = vld [vmem:[%s8576 + $0x18] sm:$0x1]
        %v8581 = vrot.slane %v7671, 3
        %v8582 = vsel %vm7677, %v8581, 0
        %v8585 = vsel %vm7681, %v8580, 0
        %8587 = vmatprep.subr.mxu0 0.0
        %8588 = vmatpush1.msra.mxu0 0.0
        %8589 = vmatprep.subr.mxu0 0.0
        %8590 = vmatpush1.msra.mxu0 0.0
        %8591 = vmatprep.subr.mxu0 0.0
        %8592 = vmatpush1.msra.mxu0 0.0
        %8593 = vmatprep.subr.mxu0 0.0
        %8594 = vmatpush1.msra.mxu0 0.0
        %8595 = vmatprep.subr.mxu0 0.0
        %8596 = vmatpush1.msra.mxu0 0.0
        %8597 = vmatprep.subr.mxu0 0.0
        %8598 = vmatpush1.msra.mxu0 0.0
        %8599 = vmatprep.subr.mxu0 0.0
        %8600 = vmatpush1.msra.mxu0 0.0
        %8601 = vmatprep.subr.mxu0 0.0
        %8602 = vmatpush1.msra.mxu0 0.0
        %8603 = vmatprep.subr.mxu0 0.0
        %8604 = vmatpush1.msra.mxu0 0.0
        %8605 = vmatprep.subr.mxu0 0.0
        %8606 = vmatpush1.msra.mxu0 0.0
        %8607 = vmatprep.subr.mxu0 0.0
        %8608 = vmatpush1.msra.mxu0 0.0
        %8609 = vmatprep.subr.mxu0 0.0
        %8610 = vmatpush1.msra.mxu0 0.0
        %8611 = vmatprep.subr.mxu0 0.0
        %8612 = vmatpush1.msra.mxu0 %v8585
        %8613 = vmatprep.subr.mxu0 0.0
        %8614 = vmatpush1.msra.mxu0 %v8579
        %8615 = vmatprep.subr.mxu0 0.0
        %8616 = vmatpush1.msra.mxu0 %v8578
        %8617 = vmatprep.subr.mxu0 0.0
        %8618 = vmatpush1.msra.mxu0 %v8577
        %8619 = vmatprep.subr.mxu0 0.0
        %8620 = vmatpush2.msra.mxu0 0.0
        %8621 = vmatprep.subr.mxu0 0.0
        %8622 = vmatpush2.msra.mxu0 0.0
        %8623 = vmatprep.subr.mxu0 0.0
        %8624 = vmatpush2.msra.mxu0 0.0
        %8625 = vmatprep.subr.mxu0 0.0
        %8626 = vmatpush2.msra.mxu0 0.0
        %8627 = vmatprep.subr.mxu0 0.0
        %8628 = vmatpush2.msra.mxu0 0.0
        %8629 = vmatprep.subr.mxu0 0.0
        %8630 = vmatpush2.msra.mxu0 0.0
        %8631 = vmatprep.subr.mxu0 0.0
        %8632 = vmatpush2.msra.mxu0 0.0
        %8633 = vmatprep.subr.mxu0 0.0
        %8634 = vmatpush2.msra.mxu0 0.0
        %8635 = vmatprep.subr.mxu0 0.0
        %8636 = vmatpush2.msra.mxu0 0.0
        %8637 = vmatprep.subr.mxu0 0.0
        %8638 = vmatpush2.msra.mxu0 0.0
        %8639 = vmatprep.subr.mxu0 0.0
        %8640 = vmatpush2.msra.mxu0 0.0
        %8641 = vmatprep.subr.mxu0 0.0
        %8642 = vmatpush2.msra.mxu0 0.0
        %8643 = vmatprep.subr.mxu0 0.0
        %8644 = vmatpush2.msra.mxu0 0.0
        %8645 = vmatprep.subr.mxu0 0.0
        %8646 = vmatpush2.msra.mxu0 0.0
        %8647 = vmatprep.subr.mxu0 0.0
        %8648 = vmatpush2.msra.mxu0 0.0
        %8649 = vmatprep.subr.mxu0 0.0
        %8650 = vmatpush2.msra.mxu0 0.0
        %8651 = vmatprep.mubr.f32.mxu0 0.0
        %8652 = vmatmul.mubr.f32.gmra.mxu0 %v8582
        %v8653 = vpop.f32.mrf.mxu0
        %v8654 = vadd.f32 0.0, %v8653
        %v8655 = vpop.f32.mrf.mxu0
        %8656 = vdwg.mxu0
        %v8657 = vadd.f32 %v8575, %v8654
        %s8658 = scalar_lea.vmem [#allocation14], 384
        %v8659 = vld [vmem:[%s8658] sm:$0xff]
        %v8660 = vld [vmem:[%s8658 + $0x8] sm:$0xff]
        %v8661 = vld [vmem:[%s8658 + $0x10] sm:$0xff]
        %v8662 = vld [vmem:[%s8658 + $0x18] sm:$0x1]
        %v8663 = vrot.slane %v7671, 4
        %v8664 = vsel %vm7677, %v8663, 0
        %v8667 = vsel %vm7681, %v8662, 0
        %8669 = vmatprep.subr.mxu0 0.0
        %8670 = vmatpush1.msra.mxu0 0.0
        %8671 = vmatprep.subr.mxu0 0.0
        %8672 = vmatpush1.msra.mxu0 0.0
        %8673 = vmatprep.subr.mxu0 0.0
        %8674 = vmatpush1.msra.mxu0 0.0
        %8675 = vmatprep.subr.mxu0 0.0
        %8676 = vmatpush1.msra.mxu0 0.0
        %8677 = vmatprep.subr.mxu0 0.0
        %8678 = vmatpush1.msra.mxu0 0.0
        %8679 = vmatprep.subr.mxu0 0.0
        %8680 = vmatpush1.msra.mxu0 0.0
        %8681 = vmatprep.subr.mxu0 0.0
        %8682 = vmatpush1.msra.mxu0 0.0
        %8683 = vmatprep.subr.mxu0 0.0
        %8684 = vmatpush1.msra.mxu0 0.0
        %8685 = vmatprep.subr.mxu0 0.0
        %8686 = vmatpush1.msra.mxu0 0.0
        %8687 = vmatprep.subr.mxu0 0.0
        %8688 = vmatpush1.msra.mxu0 0.0
        %8689 = vmatprep.subr.mxu0 0.0
        %8690 = vmatpush1.msra.mxu0 0.0
        %8691 = vmatprep.subr.mxu0 0.0
        %8692 = vmatpush1.msra.mxu0 0.0
        %8693 = vmatprep.subr.mxu0 0.0
        %8694 = vmatpush1.msra.mxu0 %v8667
        %8695 = vmatprep.subr.mxu0 0.0
        %8696 = vmatpush1.msra.mxu0 %v8661
        %8697 = vmatprep.subr.mxu0 0.0
        %8698 = vmatpush1.msra.mxu0 %v8660
        %8699 = vmatprep.subr.mxu0 0.0
        %8700 = vmatpush1.msra.mxu0 %v8659
        %8701 = vmatprep.subr.mxu0 0.0
        %8702 = vmatpush2.msra.mxu0 0.0
        %8703 = vmatprep.subr.mxu0 0.0
        %8704 = vmatpush2.msra.mxu0 0.0
        %8705 = vmatprep.subr.mxu0 0.0
        %8706 = vmatpush2.msra.mxu0 0.0
        %8707 = vmatprep.subr.mxu0 0.0
        %8708 = vmatpush2.msra.mxu0 0.0
        %8709 = vmatprep.subr.mxu0 0.0
        %8710 = vmatpush2.msra.mxu0 0.0
        %8711 = vmatprep.subr.mxu0 0.0
        %8712 = vmatpush2.msra.mxu0 0.0
        %8713 = vmatprep.subr.mxu0 0.0
        %8714 = vmatpush2.msra.mxu0 0.0
        %8715 = vmatprep.subr.mxu0 0.0
        %8716 = vmatpush2.msra.mxu0 0.0
        %8717 = vmatprep.subr.mxu0 0.0
        %8718 = vmatpush2.msra.mxu0 0.0
        %8719 = vmatprep.subr.mxu0 0.0
        %8720 = vmatpush2.msra.mxu0 0.0
        %8721 = vmatprep.subr.mxu0 0.0
        %8722 = vmatpush2.msra.mxu0 0.0
        %8723 = vmatprep.subr.mxu0 0.0
        %8724 = vmatpush2.msra.mxu0 0.0
        %8725 = vmatprep.subr.mxu0 0.0
        %8726 = vmatpush2.msra.mxu0 0.0
        %8727 = vmatprep.subr.mxu0 0.0
        %8728 = vmatpush2.msra.mxu0 0.0
        %8729 = vmatprep.subr.mxu0 0.0
        %8730 = vmatpush2.msra.mxu0 0.0
        %8731 = vmatprep.subr.mxu0 0.0
        %8732 = vmatpush2.msra.mxu0 0.0
        %8733 = vmatprep.mubr.f32.mxu0 0.0
        %8734 = vmatmul.mubr.f32.gmra.mxu0 %v8664
        %v8735 = vpop.f32.mrf.mxu0
        %v8736 = vadd.f32 0.0, %v8735
        %v8737 = vpop.f32.mrf.mxu0
        %8738 = vdwg.mxu0
        %v8739 = vadd.f32 %v8657, %v8736
        %s8740 = scalar_lea.vmem [#allocation14], 416
        %v8741 = vld [vmem:[%s8740] sm:$0xff]
        %v8742 = vld [vmem:[%s8740 + $0x8] sm:$0xff]
        %v8743 = vld [vmem:[%s8740 + $0x10] sm:$0xff]
        %v8744 = vld [vmem:[%s8740 + $0x18] sm:$0x1]
        %v8745 = vrot.slane %v7671, 5
        %v8746 = vsel %vm7677, %v8745, 0
        %v8749 = vsel %vm7681, %v8744, 0
        %8751 = vmatprep.subr.mxu0 0.0
        %8752 = vmatpush1.msra.mxu0 0.0
        %8753 = vmatprep.subr.mxu0 0.0
        %8754 = vmatpush1.msra.mxu0 0.0
        %8755 = vmatprep.subr.mxu0 0.0
        %8756 = vmatpush1.msra.mxu0 0.0
        %8757 = vmatprep.subr.mxu0 0.0
        %8758 = vmatpush1.msra.mxu0 0.0
        %8759 = vmatprep.subr.mxu0 0.0
        %8760 = vmatpush1.msra.mxu0 0.0
        %8761 = vmatprep.subr.mxu0 0.0
        %8762 = vmatpush1.msra.mxu0 0.0
        %8763 = vmatprep.subr.mxu0 0.0
        %8764 = vmatpush1.msra.mxu0 0.0
        %8765 = vmatprep.subr.mxu0 0.0
        %8766 = vmatpush1.msra.mxu0 0.0
        %8767 = vmatprep.subr.mxu0 0.0
        %8768 = vmatpush1.msra.mxu0 0.0
        %8769 = vmatprep.subr.mxu0 0.0
        %8770 = vmatpush1.msra.mxu0 0.0
        %8771 = vmatprep.subr.mxu0 0.0
        %8772 = vmatpush1.msra.mxu0 0.0
        %8773 = vmatprep.subr.mxu0 0.0
        %8774 = vmatpush1.msra.mxu0 0.0
        %8775 = vmatprep.subr.mxu0 0.0
        %8776 = vmatpush1.msra.mxu0 %v8749
        %8777 = vmatprep.subr.mxu0 0.0
        %8778 = vmatpush1.msra.mxu0 %v8743
        %8779 = vmatprep.subr.mxu0 0.0
        %8780 = vmatpush1.msra.mxu0 %v8742
        %8781 = vmatprep.subr.mxu0 0.0
        %8782 = vmatpush1.msra.mxu0 %v8741
        %8783 = vmatprep.subr.mxu0 0.0
        %8784 = vmatpush2.msra.mxu0 0.0
        %8785 = vmatprep.subr.mxu0 0.0
        %8786 = vmatpush2.msra.mxu0 0.0
        %8787 = vmatprep.subr.mxu0 0.0
        %8788 = vmatpush2.msra.mxu0 0.0
        %8789 = vmatprep.subr.mxu0 0.0
        %8790 = vmatpush2.msra.mxu0 0.0
        %8791 = vmatprep.subr.mxu0 0.0
        %8792 = vmatpush2.msra.mxu0 0.0
        %8793 = vmatprep.subr.mxu0 0.0
        %8794 = vmatpush2.msra.mxu0 0.0
        %8795 = vmatprep.subr.mxu0 0.0
        %8796 = vmatpush2.msra.mxu0 0.0
        %8797 = vmatprep.subr.mxu0 0.0
        %8798 = vmatpush2.msra.mxu0 0.0
        %8799 = vmatprep.subr.mxu0 0.0
        %8800 = vmatpush2.msra.mxu0 0.0
        %8801 = vmatprep.subr.mxu0 0.0
        %8802 = vmatpush2.msra.mxu0 0.0
        %8803 = vmatprep.subr.mxu0 0.0
        %8804 = vmatpush2.msra.mxu0 0.0
        %8805 = vmatprep.subr.mxu0 0.0
        %8806 = vmatpush2.msra.mxu0 0.0
        %8807 = vmatprep.subr.mxu0 0.0
        %8808 = vmatpush2.msra.mxu0 0.0
        %8809 = vmatprep.subr.mxu0 0.0
        %8810 = vmatpush2.msra.mxu0 0.0
        %8811 = vmatprep.subr.mxu0 0.0
        %8812 = vmatpush2.msra.mxu0 0.0
        %8813 = vmatprep.subr.mxu0 0.0
        %8814 = vmatpush2.msra.mxu0 0.0
        %8815 = vmatprep.mubr.f32.mxu0 0.0
        %8816 = vmatmul.mubr.f32.gmra.mxu0 %v8746
        %v8817 = vpop.f32.mrf.mxu0
        %v8818 = vadd.f32 0.0, %v8817
        %v8819 = vpop.f32.mrf.mxu0
        %8820 = vdwg.mxu0
        %v8821 = vadd.f32 %v8739, %v8818
        %s8822 = scalar_lea.vmem [#allocation14], 448
        %v8823 = vld [vmem:[%s8822] sm:$0xff]
        %v8824 = vld [vmem:[%s8822 + $0x8] sm:$0xff]
        %v8825 = vld [vmem:[%s8822 + $0x10] sm:$0xff]
        %v8826 = vld [vmem:[%s8822 + $0x18] sm:$0x1]
        %v8827 = vrot.slane %v7671, 6
        %v8828 = vsel %vm7677, %v8827, 0
        %v8831 = vsel %vm7681, %v8826, 0
        %8833 = vmatprep.subr.mxu0 0.0
        %8834 = vmatpush1.msra.mxu0 0.0
        %8835 = vmatprep.subr.mxu0 0.0
        %8836 = vmatpush1.msra.mxu0 0.0
        %8837 = vmatprep.subr.mxu0 0.0
        %8838 = vmatpush1.msra.mxu0 0.0
        %8839 = vmatprep.subr.mxu0 0.0
        %8840 = vmatpush1.msra.mxu0 0.0
        %8841 = vmatprep.subr.mxu0 0.0
        %8842 = vmatpush1.msra.mxu0 0.0
        %8843 = vmatprep.subr.mxu0 0.0
        %8844 = vmatpush1.msra.mxu0 0.0
        %8845 = vmatprep.subr.mxu0 0.0
        %8846 = vmatpush1.msra.mxu0 0.0
        %8847 = vmatprep.subr.mxu0 0.0
        %8848 = vmatpush1.msra.mxu0 0.0
        %8849 = vmatprep.subr.mxu0 0.0
        %8850 = vmatpush1.msra.mxu0 0.0
        %8851 = vmatprep.subr.mxu0 0.0
        %8852 = vmatpush1.msra.mxu0 0.0
        %8853 = vmatprep.subr.mxu0 0.0
        %8854 = vmatpush1.msra.mxu0 0.0
        %8855 = vmatprep.subr.mxu0 0.0
        %8856 = vmatpush1.msra.mxu0 0.0
        %8857 = vmatprep.subr.mxu0 0.0
        %8858 = vmatpush1.msra.mxu0 %v8831
        %8859 = vmatprep.subr.mxu0 0.0
        %8860 = vmatpush1.msra.mxu0 %v8825
        %8861 = vmatprep.subr.mxu0 0.0
        %8862 = vmatpush1.msra.mxu0 %v8824
        %8863 = vmatprep.subr.mxu0 0.0
        %8864 = vmatpush1.msra.mxu0 %v8823
        %8865 = vmatprep.subr.mxu0 0.0
        %8866 = vmatpush2.msra.mxu0 0.0
        %8867 = vmatprep.subr.mxu0 0.0
        %8868 = vmatpush2.msra.mxu0 0.0
        %8869 = vmatprep.subr.mxu0 0.0
        %8870 = vmatpush2.msra.mxu0 0.0
        %8871 = vmatprep.subr.mxu0 0.0
        %8872 = vmatpush2.msra.mxu0 0.0
        %8873 = vmatprep.subr.mxu0 0.0
        %8874 = vmatpush2.msra.mxu0 0.0
        %8875 = vmatprep.subr.mxu0 0.0
        %8876 = vmatpush2.msra.mxu0 0.0
        %8877 = vmatprep.subr.mxu0 0.0
        %8878 = vmatpush2.msra.mxu0 0.0
        %8879 = vmatprep.subr.mxu0 0.0
        %8880 = vmatpush2.msra.mxu0 0.0
        %8881 = vmatprep.subr.mxu0 0.0
        %8882 = vmatpush2.msra.mxu0 0.0
        %8883 = vmatprep.subr.mxu0 0.0
        %8884 = vmatpush2.msra.mxu0 0.0
        %8885 = vmatprep.subr.mxu0 0.0
        %8886 = vmatpush2.msra.mxu0 0.0
        %8887 = vmatprep.subr.mxu0 0.0
        %8888 = vmatpush2.msra.mxu0 0.0
        %8889 = vmatprep.subr.mxu0 0.0
        %8890 = vmatpush2.msra.mxu0 0.0
        %8891 = vmatprep.subr.mxu0 0.0
        %8892 = vmatpush2.msra.mxu0 0.0
        %8893 = vmatprep.subr.mxu0 0.0
        %8894 = vmatpush2.msra.mxu0 0.0
        %8895 = vmatprep.subr.mxu0 0.0
        %8896 = vmatpush2.msra.mxu0 0.0
        %8897 = vmatprep.mubr.f32.mxu0 0.0
        %8898 = vmatmul.mubr.f32.gmra.mxu0 %v8828
        %v8899 = vpop.f32.mrf.mxu0
        %v8900 = vadd.f32 0.0, %v8899
        %v8901 = vpop.f32.mrf.mxu0
        %8902 = vdwg.mxu0
        %v8903 = vadd.f32 %v8821, %v8900
        %s8904 = scalar_lea.vmem [#allocation14], 480
        %v8905 = vld [vmem:[%s8904] sm:$0xff]
        %v8906 = vld [vmem:[%s8904 + $0x8] sm:$0xff]
        %v8907 = vld [vmem:[%s8904 + $0x10] sm:$0xff]
        %v8908 = vld [vmem:[%s8904 + $0x18] sm:$0x1]
        %v8909 = vrot.slane %v7671, 7
        %v8910 = vsel %vm7677, %v8909, 0
        %v8913 = vsel %vm7681, %v8908, 0
        %8915 = vmatprep.subr.mxu0 0.0
        %8916 = vmatpush1.msra.mxu0 0.0
        %8917 = vmatprep.subr.mxu0 0.0
        %8918 = vmatpush1.msra.mxu0 0.0
        %8919 = vmatprep.subr.mxu0 0.0
        %8920 = vmatpush1.msra.mxu0 0.0
        %8921 = vmatprep.subr.mxu0 0.0
        %8922 = vmatpush1.msra.mxu0 0.0
        %8923 = vmatprep.subr.mxu0 0.0
        %8924 = vmatpush1.msra.mxu0 0.0
        %8925 = vmatprep.subr.mxu0 0.0
        %8926 = vmatpush1.msra.mxu0 0.0
        %8927 = vmatprep.subr.mxu0 0.0
        %8928 = vmatpush1.msra.mxu0 0.0
        %8929 = vmatprep.subr.mxu0 0.0
        %8930 = vmatpush1.msra.mxu0 0.0
        %8931 = vmatprep.subr.mxu0 0.0
        %8932 = vmatpush1.msra.mxu0 0.0
        %8933 = vmatprep.subr.mxu0 0.0
        %8934 = vmatpush1.msra.mxu0 0.0
        %8935 = vmatprep.subr.mxu0 0.0
        %8936 = vmatpush1.msra.mxu0 0.0
        %8937 = vmatprep.subr.mxu0 0.0
        %8938 = vmatpush1.msra.mxu0 0.0
        %8939 = vmatprep.subr.mxu0 0.0
        %8940 = vmatpush1.msra.mxu0 %v8913
        %8941 = vmatprep.subr.mxu0 0.0
        %8942 = vmatpush1.msra.mxu0 %v8907
        %8943 = vmatprep.subr.mxu0 0.0
        %8944 = vmatpush1.msra.mxu0 %v8906
        %8945 = vmatprep.subr.mxu0 0.0
        %8946 = vmatpush1.msra.mxu0 %v8905
        %8947 = vmatprep.subr.mxu0 0.0
        %8948 = vmatpush2.msra.mxu0 0.0
        %8949 = vmatprep.subr.mxu0 0.0
        %8950 = vmatpush2.msra.mxu0 0.0
        %8951 = vmatprep.subr.mxu0 0.0
        %8952 = vmatpush2.msra.mxu0 0.0
        %8953 = vmatprep.subr.mxu0 0.0
        %8954 = vmatpush2.msra.mxu0 0.0
        %8955 = vmatprep.subr.mxu0 0.0
        %8956 = vmatpush2.msra.mxu0 0.0
        %8957 = vmatprep.subr.mxu0 0.0
        %8958 = vmatpush2.msra.mxu0 0.0
        %8959 = vmatprep.subr.mxu0 0.0
        %8960 = vmatpush2.msra.mxu0 0.0
        %8961 = vmatprep.subr.mxu0 0.0
        %8962 = vmatpush2.msra.mxu0 0.0
        %8963 = vmatprep.subr.mxu0 0.0
        %8964 = vmatpush2.msra.mxu0 0.0
        %8965 = vmatprep.subr.mxu0 0.0
        %8966 = vmatpush2.msra.mxu0 0.0
        %8967 = vmatprep.subr.mxu0 0.0
        %8968 = vmatpush2.msra.mxu0 0.0
        %8969 = vmatprep.subr.mxu0 0.0
        %8970 = vmatpush2.msra.mxu0 0.0
        %8971 = vmatprep.subr.mxu0 0.0
        %8972 = vmatpush2.msra.mxu0 0.0
        %8973 = vmatprep.subr.mxu0 0.0
        %8974 = vmatpush2.msra.mxu0 0.0
        %8975 = vmatprep.subr.mxu0 0.0
        %8976 = vmatpush2.msra.mxu0 0.0
        %8977 = vmatprep.subr.mxu0 0.0
        %8978 = vmatpush2.msra.mxu0 0.0
        %8979 = vmatprep.mubr.f32.mxu0 0.0
        %8980 = vmatmul.mubr.f32.gmra.mxu0 %v8910
        %v8981 = vpop.f32.mrf.mxu0
        %v8982 = vadd.f32 0.0, %v8981
        %v8983 = vpop.f32.mrf.mxu0
        %8984 = vdwg.mxu0
        %v8985 = vadd.f32 %v8903, %v8982
        %v8986 = vmax.f32 %v8985, 0.0
        %v8987 = vld [vmem:[#allocation17] sm:$0xff]
        %v8988 = vld [vmem:[#allocation17 + $0x8] sm:$0xff]
        %v8989 = vld [vmem:[#allocation17 + $0x10] sm:$0xff]
        %v8990 = vld [vmem:[#allocation17 + $0x18] sm:$0xff]
        %v8991 = vld [vmem:[#allocation17 + $0x20] sm:$0xff]
        %v8992 = vld [vmem:[#allocation17 + $0x28] sm:$0xff]
        %v8993 = vld [vmem:[#allocation17 + $0x30] sm:$0xff]
        %v8994 = vld [vmem:[#allocation17 + $0x38] sm:$0xff]
        %v8995 = vld [vmem:[#allocation17 + $0x40] sm:$0xff]
        %v8996 = vld [vmem:[#allocation17 + $0x48] sm:$0xff]
        %v8997 = vld [vmem:[#allocation17 + $0x50] sm:$0xff]
        %v8998 = vld [vmem:[#allocation17 + $0x58] sm:$0xff]
        %v8999 = vld [vmem:[#allocation17 + $0x60] sm:$0xff]
        %v9000 = vld [vmem:[#allocation17 + $0x68] sm:$0xff]
        %v9001 = vld [vmem:[#allocation17 + $0x70] sm:$0xff]
        %v9002 = vld [vmem:[#allocation17 + $0x78] sm:$0xff]
        %v9003 = vld [vmem:[#allocation19] sm:$0x1]
        %9004 = vmatprep.subr.mxu0 0.0
        %9005 = vmatpush1.msra.mxu0 %v9002
        %9006 = vmatprep.subr.mxu0 0.0
        %9007 = vmatpush1.msra.mxu0 %v9001
        %9008 = vmatprep.subr.mxu0 0.0
        %9009 = vmatpush1.msra.mxu0 %v9000
        %9010 = vmatprep.subr.mxu0 0.0
        %9011 = vmatpush1.msra.mxu0 %v8999
        %9012 = vmatprep.subr.mxu0 0.0
        %9013 = vmatpush1.msra.mxu0 %v8998
        %9014 = vmatprep.subr.mxu0 0.0
        %9015 = vmatpush1.msra.mxu0 %v8997
        %9016 = vmatprep.subr.mxu0 0.0
        %9017 = vmatpush1.msra.mxu0 %v8996
        %9018 = vmatprep.subr.mxu0 0.0
        %9019 = vmatpush1.msra.mxu0 %v8995
        %9020 = vmatprep.subr.mxu0 0.0
        %9021 = vmatpush1.msra.mxu0 %v8994
        %9022 = vmatprep.subr.mxu0 0.0
        %9023 = vmatpush1.msra.mxu0 %v8993
        %9024 = vmatprep.subr.mxu0 0.0
        %9025 = vmatpush1.msra.mxu0 %v8992
        %9026 = vmatprep.subr.mxu0 0.0
        %9027 = vmatpush1.msra.mxu0 %v8991
        %9028 = vmatprep.subr.mxu0 0.0
        %9029 = vmatpush1.msra.mxu0 %v8990
        %9030 = vmatprep.subr.mxu0 0.0
        %9031 = vmatpush1.msra.mxu0 %v8989
        %9032 = vmatprep.subr.mxu0 0.0
        %9033 = vmatpush1.msra.mxu0 %v8988
        %9034 = vmatprep.subr.mxu0 0.0
        %9035 = vmatpush1.msra.mxu0 %v8987
        %9036 = vmatprep.subr.mxu0 0.0
        %9037 = vmatpush2.msra.mxu0 0.0
        %9038 = vmatprep.subr.mxu0 0.0
        %9039 = vmatpush2.msra.mxu0 0.0
        %9040 = vmatprep.subr.mxu0 0.0
        %9041 = vmatpush2.msra.mxu0 0.0
        %9042 = vmatprep.subr.mxu0 0.0
        %9043 = vmatpush2.msra.mxu0 0.0
        %9044 = vmatprep.subr.mxu0 0.0
        %9045 = vmatpush2.msra.mxu0 0.0
        %9046 = vmatprep.subr.mxu0 0.0
        %9047 = vmatpush2.msra.mxu0 0.0
        %9048 = vmatprep.subr.mxu0 0.0
        %9049 = vmatpush2.msra.mxu0 0.0
        %9050 = vmatprep.subr.mxu0 0.0
        %9051 = vmatpush2.msra.mxu0 0.0
        %9052 = vmatprep.subr.mxu0 0.0
        %9053 = vmatpush2.msra.mxu0 0.0
        %9054 = vmatprep.subr.mxu0 0.0
        %9055 = vmatpush2.msra.mxu0 0.0
        %9056 = vmatprep.subr.mxu0 0.0
        %9057 = vmatpush2.msra.mxu0 0.0
        %9058 = vmatprep.subr.mxu0 0.0
        %9059 = vmatpush2.msra.mxu0 0.0
        %9060 = vmatprep.subr.mxu0 0.0
        %9061 = vmatpush2.msra.mxu0 0.0
        %9062 = vmatprep.subr.mxu0 0.0
        %9063 = vmatpush2.msra.mxu0 0.0
        %9064 = vmatprep.subr.mxu0 0.0
        %9065 = vmatpush2.msra.mxu0 0.0
        %9066 = vmatprep.subr.mxu0 0.0
        %9067 = vmatpush2.msra.mxu0 0.0
        %9068 = vmatprep.mubr.f32.mxu0 0.0
        %9069 = vmatmul.mubr.f32.gmra.mxu0 %v8986
        %v9070 = vpop.f32.mrf.mxu0
        %v9071 = vadd.f32 %v9003, %v9070
        %v9072 = vpop.f32.mrf.mxu0
        %9073 = vdwg.mxu0
        %v9074 = vmax.f32 %v9071, 0.0
        %v9075 = vld [vmem:[#allocation20] sm:$0xff]
        %v9076 = vld [vmem:[#allocation20 + $0x8] sm:$0xff]
        %v9077 = vld [vmem:[#allocation20 + $0x10] sm:$0xff]
        %v9078 = vld [vmem:[#allocation20 + $0x18] sm:$0xff]
        %v9079 = vld [vmem:[#allocation20 + $0x20] sm:$0xff]
        %v9080 = vld [vmem:[#allocation20 + $0x28] sm:$0xff]
        %v9081 = vld [vmem:[#allocation20 + $0x30] sm:$0xff]
        %v9082 = vld [vmem:[#allocation20 + $0x38] sm:$0xff]
        %v9083 = vld [vmem:[#allocation20 + $0x40] sm:$0xff]
        %v9084 = vld [vmem:[#allocation20 + $0x48] sm:$0xff]
        %v9085 = vld [vmem:[#allocation20 + $0x50] sm:$0xff]
        %v9086 = vld [vmem:[#allocation20 + $0x58] sm:$0xff]
        %v9087 = vld [vmem:[#allocation20 + $0x60] sm:$0xff]
        %v9088 = vld [vmem:[#allocation20 + $0x68] sm:$0xff]
        %v9089 = vld [vmem:[#allocation20 + $0x70] sm:$0xff]
        %v9090 = vld [vmem:[#allocation20 + $0x78] sm:$0xff]
        %v9091 = vld [vmem:[#allocation22] sm:$0x1]
        %9092 = vmatprep.subr.mxu0 0.0
        %9093 = vmatpush1.msra.mxu0 %v9090
        %9094 = vmatprep.subr.mxu0 0.0
        %9095 = vmatpush1.msra.mxu0 %v9089
        %9096 = vmatprep.subr.mxu0 0.0
        %9097 = vmatpush1.msra.mxu0 %v9088
        %9098 = vmatprep.subr.mxu0 0.0
        %9099 = vmatpush1.msra.mxu0 %v9087
        %9100 = vmatprep.subr.mxu0 0.0
        %9101 = vmatpush1.msra.mxu0 %v9086
        %9102 = vmatprep.subr.mxu0 0.0
        %9103 = vmatpush1.msra.mxu0 %v9085
        %9104 = vmatprep.subr.mxu0 0.0
        %9105 = vmatpush1.msra.mxu0 %v9084
        %9106 = vmatprep.subr.mxu0 0.0
        %9107 = vmatpush1.msra.mxu0 %v9083
        %9108 = vmatprep.subr.mxu0 0.0
        %9109 = vmatpush1.msra.mxu0 %v9082
        %9110 = vmatprep.subr.mxu0 0.0
        %9111 = vmatpush1.msra.mxu0 %v9081
        %9112 = vmatprep.subr.mxu0 0.0
        %9113 = vmatpush1.msra.mxu0 %v9080
        %9114 = vmatprep.subr.mxu0 0.0
        %9115 = vmatpush1.msra.mxu0 %v9079
        %9116 = vmatprep.subr.mxu0 0.0
        %9117 = vmatpush1.msra.mxu0 %v9078
        %9118 = vmatprep.subr.mxu0 0.0
        %9119 = vmatpush1.msra.mxu0 %v9077
        %9120 = vmatprep.subr.mxu0 0.0
        %9121 = vmatpush1.msra.mxu0 %v9076
        %9122 = vmatprep.subr.mxu0 0.0
        %9123 = vmatpush1.msra.mxu0 %v9075
        %9124 = vmatprep.subr.mxu0 0.0
        %9125 = vmatpush2.msra.mxu0 0.0
        %9126 = vmatprep.subr.mxu0 0.0
        %9127 = vmatpush2.msra.mxu0 0.0
        %9128 = vmatprep.subr.mxu0 0.0
        %9129 = vmatpush2.msra.mxu0 0.0
        %9130 = vmatprep.subr.mxu0 0.0
        %9131 = vmatpush2.msra.mxu0 0.0
        %9132 = vmatprep.subr.mxu0 0.0
        %9133 = vmatpush2.msra.mxu0 0.0
        %9134 = vmatprep.subr.mxu0 0.0
        %9135 = vmatpush2.msra.mxu0 0.0
        %9136 = vmatprep.subr.mxu0 0.0
        %9137 = vmatpush2.msra.mxu0 0.0
        %9138 = vmatprep.subr.mxu0 0.0
        %9139 = vmatpush2.msra.mxu0 0.0
        %9140 = vmatprep.subr.mxu0 0.0
        %9141 = vmatpush2.msra.mxu0 0.0
        %9142 = vmatprep.subr.mxu0 0.0
        %9143 = vmatpush2.msra.mxu0 0.0
        %9144 = vmatprep.subr.mxu0 0.0
        %9145 = vmatpush2.msra.mxu0 0.0
        %9146 = vmatprep.subr.mxu0 0.0
        %9147 = vmatpush2.msra.mxu0 0.0
        %9148 = vmatprep.subr.mxu0 0.0
        %9149 = vmatpush2.msra.mxu0 0.0
        %9150 = vmatprep.subr.mxu0 0.0
        %9151 = vmatpush2.msra.mxu0 0.0
        %9152 = vmatprep.subr.mxu0 0.0
        %9153 = vmatpush2.msra.mxu0 0.0
        %9154 = vmatprep.subr.mxu0 0.0
        %9155 = vmatpush2.msra.mxu0 0.0
        %9156 = vmatprep.mubr.f32.mxu0 0.0
        %9157 = vmatmul.mubr.f32.gmra.mxu0 %v9074
        %v9158 = vpop.f32.mrf.mxu0
        %v9159 = vadd.f32 %v9091, %v9158
        %v9160 = vpop.f32.mrf.mxu0
        %9161 = vdwg.mxu0
        %v9162 = vsel %vm7681, %v9159, -inf
        %9163 = vmax.xlane.f32.xlu0 %v9162
        %v9164 = vpop.xlane.xlu0 %9163
        %v9165 = vsub.f32 %v9159, %v9164
        %v9166 = vmul.f32 %v9165, 1.442695
        %v9167 = vpow.pop %v9166
        %v9168 = vsel %vm7681, %v9167, 0.0
        %9169 = vadd.xlane.f32.xlu0 %v9168
        %v9170 = vpop.xlane.xlu0 %9169
        %v9171 = vlog2.pop %v9170
        %v9172 = vmul.f32 %v9171, 0.6931472
        %v9173 = vadd.f32 %v9164, %v9172
        %v9174 = vsub.f32 %v9159, %v9173
        %9175 = vst [vmem:[%s636] sm:$0x1] %v9174
        %s9176 = sand.u32 %s342, 1
        %s9177 = scalar_lea.sflag [#allocation4], %s9176
        %s9178 = sand.u32 %s342, 1
        %s9179 = scalar_lea.vmem [#allocation23], %s9178
        // Predicated region
        $region129: #{forward.1} parent=75 // pred_check
          %p9180 = pneg %p352
        $region130: #{forward.1} parent=75 // pred_check_branch
          %9182 = sbr.rel (%p9180) target = $region132
        $region131: #{forward.1} parent=75 // pred_region
          %s9184 = ssub.s32 16, 16
          %9185 = vsyncadd %s9177, %s9184
          %s9186 = smul.addr %s35, 16
          %s9187 = scalar_lea.hbm %s14, %s9186
          %s9189 = sshll.u32 %s9179, 4
          %s9190 = int_to_ptr.vmem [resolvable:$true] %s9189
          %9192 = dma.vmem_to_hbm [thread:$0]  %s9190, 16, %s9187, %s9177
        $region132: #{forward.1} parent=75 // pred_fallthru
          _
      $region76: #{forward.1} parent=5 // pred_fallthru
        _
      %p9193 = scmp.le.s32.totalorder 2, %s30
      // Predicated region
      $region133: #{forward.1} parent=5 // pred_check
        %p9194 = pneg %p9193
      $region134: #{forward.1} parent=5 // pred_check_branch
        %9196 = sbr.rel (%p9194) target = $region136
      $region135: #{forward.1} parent=5 // pred_region
        %s9197 = ssub.s32 %s30, 2
        // Predicated region
        $region137: #{forward.1} parent=135 // pred_check
          %p9198 = pneg %p358
        $region138: #{forward.1} parent=135 // pred_check_branch
          %9200 = sbr.rel (%p9198) target = $region140
        $region139: #{forward.1} parent=135 // pred_region
          %s9201 = sand.u32 %s343, 1
          %s9202 = scalar_lea.sflag [#allocation4], %s9201
          %s9203 = sand.u32 %s343, 1
          %s9204 = scalar_lea.vmem [#allocation23], %s9203
          %9205 = dma.done %s9202, 16
        $region140: #{forward.1} parent=135 // pred_fallthru
          _
      $region136: #{forward.1} parent=5 // pred_fallthru
        _
    $region6: #{forward.1} parent=1 // loop_footer
      %s34 = sadd.s32 1, %s30
    $region7: #{forward.1} parent=1 // loop_footer_branch
      %29 = sbr.rel target = $region3
    $region8: #{forward.1} parent=1 // loop_exit
      _
    %9206 = vsyncpa [#allocation3], 1
    %s9207 = scalar_lea.sflag [#allocation3], 1
    %9208 = vsyncpa %s9207, 1
    %9209 = vsyncpa [#allocation6], 1
    %9210 = vsyncpa [#allocation9], 1
    %9211 = vsyncpa [#allocation12], 1
    %9212 = vsyncpa [#allocation15], 1
    %9213 = vsyncpa [#allocation18], 1
    %9214 = vsyncpa [#allocation21], 1
    %9215 = vsyncpa [#allocation4], 1
    %s9216 = scalar_lea.sflag [#allocation4], 1
    %9217 = vsyncpa %s9216, 1

</llo_original>
